<compile_context>
chip_gen: v7x
topology: tpu7x:2x2x1
jax: 0.10.0
libtpu: 0.0.40
codegen_flags: <defaults>
</compile_context>

<pallas_src>
import functools

import jax
import jax.numpy as jnp
from jax import lax
from jax.experimental import pallas as pl
from jax.experimental.pallas import tpu as pltpu


# ----------------------------------------------------------------------------
# Generation-aware tiling / VMEM configuration
# ----------------------------------------------------------------------------

def _tpu_config():
    """VMEM budget, vmem_limit_bytes, min grid programs, gx dtype per TPU generation."""
    kind = ""
    try:
        kind = (jax.devices()[0].device_kind or "").lower()
    except Exception:
        pass
    if "7" in kind:                                  # v7x: 64 MiB VMEM, 2 TensorCores
        return dict(budget=36 << 20, vmem_limit=48 << 20, min_programs=2,
                    gx_dtype=jnp.bfloat16)
    if any(t in kind for t in ("v4", "v5", "v6")):   # 128 MiB VMEM, 1 TensorCore
        return dict(budget=72 << 20, vmem_limit=96 << 20, min_programs=1,
                    gx_dtype=jnp.float32)
    # Unknown / old generation: stay inside the conservative scoped-VMEM default.
    return dict(budget=12 << 20, vmem_limit=None, min_programs=1, gx_dtype=jnp.float32)


def _vmem_bytes(L, D, H, bt, clf_cols, gx_itemsize):
    """Conservative VMEM model; inputs/outputs counted double-buffered."""
    x_b = 2 * L * bt * D * 2                                     # bf16 input tile
    w_b = 2 * (D * 6 * H * 2 + 2 * H * 6 * H * 4 + 8 * H * 4)    # wih(bf16)+whh+biases
    out_b = 2 * L * bt * 2 * H * 4                               # output tile (f32 bound)
    gx_b = L * bt * 6 * H * gx_itemsize                          # gate-projection scratch
    h_b = bt * 2 * H * 4
    clf_b = 0
    if clf_cols:
        clf_b = L * bt * 2 * H * 4                               # hidden-sequence scratch
        clf_b += 2 * 4 * (2 * H * clf_cols + clf_cols + clf_cols * 2 + 2)
        clf_b += 2 * bt * 2 * 4
    return x_b + w_b + out_b + gx_b + h_b + clf_b


def _pick_batch_tile(L, D, H, Bt, clf_cols, cfg):
    """Largest batch tile (divisor of Bt, multiple of 8 or == Bt) fitting the budget;
    on v7x prefer a split giving >= 2 grid programs (megacore)."""
    gx_item = jnp.dtype(cfg["gx_dtype"]).itemsize

    def fits(bt):
        return _vmem_bytes(L, D, H, bt, clf_cols, gx_item) <= cfg["budget"]

    cands = sorted({bt for bt in range(8, Bt + 1, 8) if Bt % bt == 0} | {Bt})
    bt = next((c for c in sorted(cands, reverse=True) if fits(c)), cands[0])
    if cfg["min_programs"] > 1 and Bt // bt < cfg["min_programs"]:
        smaller = [c for c in cands if Bt // c >= cfg["min_programs"]]
        if smaller:
            fitting = [c for c in smaller if fits(c)]
            bt = max(fitting) if fitting else max(smaller)
    return bt


def _unroll_for(L):
    return True if L <= 32 else 8


def _compiler_params(cfg):
    kw = dict(dimension_semantics=("parallel",))
    if cfg["vmem_limit"] is not None:
        kw["vmem_limit_bytes"] = cfg["vmem_limit"]
    return pltpu.CompilerParams(**kw)


# ----------------------------------------------------------------------------
# Fused bidirectional GRU recurrence (shared by both kernels)
# ----------------------------------------------------------------------------

def _bigru_recurrence(x_ref, wih_ref, whh_ref, gxb_ref, bhn_ref, out_ref,
                      gx_s, h_s, *, hidden, unroll):
    """Bidirectional GRU over a full sequence, both directions fused.

    Gate-column layout (width 6H): [f_r | b_r | f_z | b_z | f_n | b_n], so the four
    sigmoid gates form one contiguous 4H slab, the two tanh gates one 2H slab, and the
    hidden state is a contiguous [h_f | h_b] 2H slab -> no per-step concatenates.

    x_ref:   (L, Bt, D)   input sequence, bf16, time-major
    wih_ref: (D, 6H)      combined input weights, bf16
    whh_ref: (2H, 6H)     block-diagonal recurrent weights (fwd rows | bwd rows), f32
    gxb_ref: (1, 6H)      b_ih (all gates) + b_hh (r,z gates) pre-folded, f32
    bhn_ref: (1, 2H)      b_hh n-gate biases [f|b] (must stay per-step: scaled by r)
    out_ref: (L, Bt, 2H)  hidden-state sequence, torch order [fwd | bwd]
    gx_s:    (L, Bt, 6H)  VMEM scratch for the batched input projection
    h_s:     (Bt, 2H)     VMEM scratch for the recurrent state [h_f | h_b]
    """
    L, Bt, D = x_ref.shape
    H = hidden
    H2, H4, H6 = 2 * H, 4 * H, 6 * H

    # One batched bf16 input projection for BOTH directions (f32 accumulate).
    gx = jnp.dot(x_ref[...].reshape(L * Bt, D), wih_ref[...],
                 preferred_element_type=jnp.float32) + gxb_ref[...]
    gx_s[...] = gx.reshape(L, Bt, H6).astype(gx_s.dtype)
    h_s[...] = jnp.zeros(h_s.shape, h_s.dtype)

    # Loop-invariant broadcasts hoisted out of the serial time loop.
    col = lax.broadcasted_iota(jnp.int32, (Bt, H6), 1)
    fwd_cols = (col % H2) < H                         # fwd/bwd columns interleave every H
    bhn_full = jnp.broadcast_to(bhn_ref[...], (Bt, H2))
    out_dtype = out_ref.dtype

    def step(s, carry):
        tb = L - 1 - s
        h = h_s[...]                                              # (Bt, 2H) = [h_f | h_b]
        gh = jnp.dot(h, whh_ref[...],
                     preferred_element_type=jnp.float32)          # (Bt, 6H) block-diagonal
        # fwd gate inputs come from time s, bwd from time L-1-s; one elementwise select
        # assembles the step's gate-input row (no lane movement).
        gxt = jnp.where(fwd_cols, gx_s[s], gx_s[tb])
        rz = jax.nn.sigmoid(gxt[:, :H4] + gh[:, :H4])             # [f_r|b_r|f_z|b_z] slab
        r = rz[:, :H2]
        z = rz[:, H2:]
        n = jnp.tanh(gxt[:, H4:] + r * (gh[:, H4:] + bhn_full))   # [f_n|b_n] slab
        h_new = (1.0 - z) * n + z * h
        h_s[...] = h_new
        out_ref[s, :, pl.ds(0, H)] = h_new[:, :H].astype(out_dtype)    # fwd @ time s
        out_ref[tb, :, pl.ds(H, H)] = h_new[:, H:].astype(out_dtype)   # bwd @ time L-1-s
        return carry

    lax.fori_loop(0, L, step, 0, unroll=unroll)


# ----------------------------------------------------------------------------
# Pallas kernels
# ----------------------------------------------------------------------------

def _bigru_kernel(x_ref, wih_ref, whh_ref, gxb_ref, bhn_ref, out_ref,
                  gx_s, h_s, *, hidden, unroll):
    """Fused bidirectional GRU; out_ref: (L, Bt, 2H) = [fwd | bwd] features."""
    _bigru_recurrence(x_ref, wih_ref, whh_ref, gxb_ref, bhn_ref, out_ref,
                      gx_s, h_s, hidden=hidden, unroll=unroll)


def _gru_clf_kernel(x_ref, wih_ref, whh_ref, gxb_ref, bhn_ref,
                    w1_ref, b1_ref, w2_ref, b2_ref, out_ref,
                    gx_s, h_s, g_s, *, hidden, unroll):
    """Second bidirectional GRU fused with the classifier head.  out_ref: (Bt, 2)."""
    _bigru_recurrence(x_ref, wih_ref, whh_ref, gxb_ref, bhn_ref, g_s,
                      gx_s, h_s, hidden=hidden, unroll=unroll)
    L, Bt, H2 = g_s.shape
    h = jnp.maximum(g_s[...], 0.0).reshape(L * Bt, H2)    # F.relu(out_gru.permute(1,0,2))
    h = jnp.dot(h, w1_ref[...], preferred_element_type=jnp.float32) + b1_ref[...]
    h = jnp.maximum(h, 0.0)                               # nn.ReLU; Dropout = identity (eval)
    hsum = h.reshape(L, Bt, -1).sum(axis=0)               # seq-sum hoisted before Linear2
    out_ref[...] = (jnp.dot(hsum, w2_ref[...], preferred_element_type=jnp.float32)
                    + float(L) * b2_ref[...])


# ----------------------------------------------------------------------------
# Pallas wrappers
# ----------------------------------------------------------------------------

def bigru(x, p, *, out_dtype=jnp.bfloat16):
    """x: (L, N, D) -> (L, N, 2H) via the fused bidirectional GRU kernel."""
    L, N, D = x.shape
    H = p["hidden"]
    cfg = _tpu_config()
    bt = _pick_batch_tile(L, D, H, N, 0, cfg)
    kernel = functools.partial(_bigru_kernel, hidden=H, unroll=_unroll_for(L))
    return pl.pallas_call(
        kernel,
        out_shape=jax.ShapeDtypeStruct((L, N, 2 * H), out_dtype),
        grid=(N // bt,),
        in_specs=[
            pl.BlockSpec((L, bt, D), lambda i: (0, i, 0)),
            pl.BlockSpec((D, 6 * H), lambda i: (0, 0)),
            pl.BlockSpec((2 * H, 6 * H), lambda i: (0, 0)),
            pl.BlockSpec((1, 6 * H), lambda i: (0, 0)),
            pl.BlockSpec((1, 2 * H), lambda i: (0, 0)),
        ],
        out_specs=pl.BlockSpec((L, bt, 2 * H), lambda i: (0, i, 0)),
        scratch_shapes=[
            pltpu.VMEM((L, bt, 6 * H), cfg["gx_dtype"]),
            pltpu.VMEM((bt, 2 * H), jnp.float32),
        ],
        compiler_params=_compiler_params(cfg),
    )(x.astype(jnp.bfloat16), p["wih_c"], p["whh_c"], p["gxb"], p["bhn"])


def gru_classifier(x, gp, cp):
    """x: (L, B, Din) -> (B, 2).  Second BiGRU fused with the classifier head."""
    L, B, D = x.shape
    H = gp["hidden"]
    C = cp["w1"].shape[1]
    cfg = _tpu_config()
    bt = _pick_batch_tile(L, D, H, B, C, cfg)
    kernel = functools.partial(_gru_clf_kernel, hidden=H, unroll=_unroll_for(L))
    return pl.pallas_call(
        kernel,
        out_shape=jax.ShapeDtypeStruct((B, 2), jnp.float32),
        grid=(B // bt,),
        in_specs=[
            pl.BlockSpec((L, bt, D), lambda i: (0, i, 0)),
            pl.BlockSpec((D, 6 * H), lambda i: (0, 0)),
            pl.BlockSpec((2 * H, 6 * H), lambda i: (0, 0)),
            pl.BlockSpec((1, 6 * H), lambda i: (0, 0)),
            pl.BlockSpec((1, 2 * H), lambda i: (0, 0)),
            pl.BlockSpec((2 * H, C), lambda i: (0, 0)),
            pl.BlockSpec((1, C), lambda i: (0, 0)),
            pl.BlockSpec((C, 2), lambda i: (0, 0)),
            pl.BlockSpec((1, 2), lambda i: (0, 0)),
        ],
        out_specs=pl.BlockSpec((bt, 2), lambda i: (i, 0)),
        scratch_shapes=[
            pltpu.VMEM((L, bt, 6 * H), cfg["gx_dtype"]),
            pltpu.VMEM((bt, 2 * H), jnp.float32),
            pltpu.VMEM((L, bt, 2 * H), jnp.float32),
        ],
        compiler_params=_compiler_params(cfg),
    )(x.astype(jnp.bfloat16), gp["wih_c"], gp["whh_c"], gp["gxb"], gp["bhn"],
      cp["w1"], cp["b1"], cp["w2"], cp["b2"])


# ----------------------------------------------------------------------------
# Parameter init (deterministic, torch-equivalent shapes) + fused-layout packing
# ----------------------------------------------------------------------------

def _init_gru_dir(key, d_in, h):
    ks = jax.random.split(key, 4)
    s = 1.0 / jnp.sqrt(h)
    return {
        "w_ih": jax.random.uniform(ks[0], (3 * h, d_in), jnp.float32, -s, s),
        "w_hh": jax.random.uniform(ks[1], (3 * h, h), jnp.float32, -s, s),
        "b_ih": jax.random.uniform(ks[2], (3 * h,), jnp.float32, -s, s),
        "b_hh": jax.random.uniform(ks[3], (3 * h,), jnp.float32, -s, s),
    }


def _init_bigru(key, d_in, h):
    kf, kb = jax.random.split(key)
    f, b = _init_gru_dir(kf, d_in, h), _init_gru_dir(kb, d_in, h)
    return {
        "w_ih_f": f["w_ih"], "w_hh_f": f["w_hh"], "b_ih_f": f["b_ih"], "b_hh_f": f["b_hh"],
        "w_ih_b": b["w_ih"], "w_hh_b": b["w_hh"], "b_ih_b": b["b_ih"], "b_hh_b": b["b_hh"],
    }


def _combine_bigru(p):
    """Pack fwd/bwd GRU params into the fused-kernel layout [f_r|b_r|f_z|b_z|f_n|b_n]."""
    H = p["w_hh_f"].shape[1]

    def gate(w, g):   # torch packs rows as [r; z; n]
        return w[g * H:(g + 1) * H]

    # (D, 6H) input weights, bf16 for the MXU batched projection.
    wih_c = jnp.concatenate(
        [gate(p["w_ih_f"], 0).T, gate(p["w_ih_b"], 0).T,
         gate(p["w_ih_f"], 1).T, gate(p["w_ih_b"], 1).T,
         gate(p["w_ih_f"], 2).T, gate(p["w_ih_b"], 2).T], axis=1).astype(jnp.bfloat16)
    # (2H, 6H) block-diagonal recurrent weights: rows 0:H act on h_f, rows H:2H on h_b.
    whh_c = jnp.zeros((2 * H, 6 * H), jnp.float32)
    for g in range(3):
        whh_c = whh_c.at[:H, (2 * g) * H:(2 * g + 1) * H].set(gate(p["w_hh_f"], g).T)
        whh_c = whh_c.at[H:, (2 * g + 1) * H:(2 * g + 2) * H].set(gate(p["w_hh_b"], g).T)
    # Fold b_ih (all gates) + b_hh (r,z gates) into the batched projection bias.
    gxb = jnp.concatenate(
        [gate(p["b_ih_f"], 0) + gate(p["b_hh_f"], 0),
         gate(p["b_ih_b"], 0) + gate(p["b_hh_b"], 0),
         gate(p["b_ih_f"], 1) + gate(p["b_hh_f"], 1),
         gate(p["b_ih_b"], 1) + gate(p["b_hh_b"], 1),
         gate(p["b_ih_f"], 2),
         gate(p["b_ih_b"], 2)]).reshape(1, 6 * H)
    # n-gate hidden bias must stay per-step (it is scaled by r).
    bhn = jnp.concatenate([gate(p["b_hh_f"], 2), gate(p["b_hh_b"], 2)]).reshape(1, 2 * H)
    return {"wih_c": wih_c, "whh_c": whh_c, "gxb": gxb, "bhn": bhn, "hidden": H}


def init_params(key, *, num_grus=4, gru_hidden=32, clf_hidden=64,
                vocab=50, bert_hidden=768, num_bert_layers=12):
    num_shared = num_bert_layers // num_grus
    k_emb, k_ws, k_gru, k_c1, k_c1b, k_c2, k_c2b = jax.random.split(key, 7)

    params = {
        "num_grus": num_grus,
        "num_shared": num_shared,
        # Stand-in for the 13 BERT hidden states (embedding output + 12 layers).
        "embed_tables": 0.02 * jax.random.normal(
            k_emb, (num_bert_layers + 1, vocab, bert_hidden), jnp.float32),
        "ws_gru": _combine_bigru(_init_bigru(k_ws, num_shared * bert_hidden, gru_hidden)),
        "gru": _combine_bigru(_init_bigru(k_gru, 2 * num_grus * gru_hidden, gru_hidden)),
    }

    # Classifier: Linear(2H->clf_hidden) [xavier_normal], ReLU, Dropout, Linear(clf_hidden->2)
    f_in1, f_out1 = 2 * gru_hidden, clf_hidden
    f_in2, f_out2 = clf_hidden, 2
    xav1 = jnp.sqrt(2.0 / (f_in1 + f_out1))
    xav2 = jnp.sqrt(2.0 / (f_in2 + f_out2))
    params["clf"] = {
        "w1": xav1 * jax.random.normal(k_c1, (f_in1, f_out1), jnp.float32),
        "b1": jax.random.uniform(k_c1b, (1, f_out1), jnp.float32,
                                 -1.0 / jnp.sqrt(f_in1), 1.0 / jnp.sqrt(f_in1)),
        "w2": xav2 * jax.random.normal(k_c2, (f_in2, f_out2), jnp.float32),
        "b2": jax.random.uniform(k_c2b, (1, f_out2), jnp.float32,
                                 -1.0 / jnp.sqrt(f_in2), 1.0 / jnp.sqrt(f_in2)),
    }
    return params


# ----------------------------------------------------------------------------
# Forward pass (glue in plain JAX, hot paths in two fused Pallas kernels)
# ----------------------------------------------------------------------------

def grubert_forward(tokens, attention, params):
    del attention  # only consumed by BERT itself
    G, S = params["num_grus"], params["num_shared"]
    B, L = tokens.shape
    Dm = params["embed_tables"].shape[-1]

    # TODO(synk): the pretrained BertModel (12 transformer layers) is not reimplemented;
    # its hidden states are synthesized via deterministic per-layer embedding lookups.
    # Gather only layers 1..12, cast to bf16 immediately to halve wrapper HBM traffic.
    hs = params["embed_tables"][1:, tokens, :].astype(jnp.bfloat16)   # (G*S, B, L, Dm)

    # embeddings[2][i*S+1:(i+1)*S+1] concatenated along features, per group; groups folded
    # into the batch axis (b-major, g-minor) so one weight-shared BiGRU call covers all
    # groups and torch.cat(out_ws_gru, 2) becomes a plain reshape afterwards.
    hs = hs.reshape(G, S, B, L, Dm)
    x_ws = jnp.transpose(hs, (3, 2, 0, 1, 4)).reshape(L, B * G, S * Dm)

    out_ws = bigru(x_ws, params["ws_gru"], out_dtype=jnp.bfloat16)    # (L, B*G, 2H)
    H2 = out_ws.shape[-1]
    x2 = out_ws.reshape(L, B, G * H2)                                 # == torch.cat(..., 2)

    return gru_classifier(x2, params["gru"], params["clf"])           # (B, 2)


# ----------------------------------------------------------------------------

if __name__ == "__main__":
    key = jax.random.PRNGKey(0)
    k_tok, k_par = jax.random.split(key)

    B, L, VOCAB = 2, 8, 50
    tokens = jax.random.randint(k_tok, (B, L), 0, VOCAB)
    attention = jnp.ones((B, L), dtype=jnp.int32)

    params = init_params(k_par, num_grus=4, gru_hidden=32, clf_hidden=64,
                         vocab=VOCAB, bert_hidden=768)

    fwd = jax.jit(lambda tok: grubert_forward(tok, attention, params))
    out = jax.block_until_ready(fwd(tokens))

    assert out.shape == (B, 2) and out.dtype == jnp.float32
    assert bool(jnp.all(jnp.isfinite(out)))
    print("KERNEL_OK")
</pallas_src>

<mosaic_0001>
module attributes {stable_mosaic.version = 11 : i64} {
  func.func @_bigru_kernel(%arg0: i32, %arg1: memref<8x8x2304xbf16, #tpu.memory_space<vmem>>, %arg2: memref<2304x192xbf16, #tpu.memory_space<vmem>>, %arg3: memref<64x192xf32, #tpu.memory_space<vmem>>, %arg4: memref<1x192xf32, #tpu.memory_space<vmem>>, %arg5: memref<1x64xf32, #tpu.memory_space<vmem>>, %arg6: memref<8x8x64xbf16, #tpu.memory_space<vmem>>, %arg7: memref<8x8x192xf32, #tpu.memory_space<vmem>>, %arg8: memref<8x64xf32, #tpu.memory_space<vmem>>) attributes {dimension_semantics = [#tpu.dimension_semantics<parallel>], iteration_bounds = array<i64: 1>, scalar_prefetch = 0 : i64, scratch_operands = 2 : i64, tpu.core_type = #tpu.core_type<tc>, window_params = [{transform_indices = @transform_0, window_bounds = array<i64: 8, 8, 2304>}, {pipeline_mode = #tpu.pipeline_mode<synchronous>, transform_indices = @transform_1, window_bounds = array<i64: 2304, 192>}, {pipeline_mode = #tpu.pipeline_mode<synchronous>, transform_indices = @transform_2, window_bounds = array<i64: 64, 192>}, {pipeline_mode = #tpu.pipeline_mode<synchronous>, transform_indices = @transform_3, window_bounds = array<i64: 1, 192>}, {pipeline_mode = #tpu.pipeline_mode<synchronous>, transform_indices = @transform_4, window_bounds = array<i64: 1, 64>}, {transform_indices = @transform_5, window_bounds = array<i64: 8, 8, 64>}]} {
    %c0 = arith.constant 0 : index
    %c0_0 = arith.constant 0 : index
    %c0_1 = arith.constant 0 : index
    %0 = vector.load %arg1[%c0, %c0_0, %c0_1] : memref<8x8x2304xbf16, #tpu.memory_space<vmem>>, vector<8x8x2304xbf16>
    %1 = vector.shape_cast %0 : vector<8x8x2304xbf16> to vector<64x2304xbf16>
    %c0_2 = arith.constant 0 : index
    %c0_3 = arith.constant 0 : index
    %2 = vector.load %arg2[%c0_2, %c0_3] : memref<2304x192xbf16, #tpu.memory_space<vmem>>, vector<2304x192xbf16>
    %cst = arith.constant dense<0.000000e+00> : vector<64x192xf32>
    %3 = tpu.matmul %1, %2, %cst {dimension_numbers = #tpu.dot_dimension_numbers<[1], [0], [0], [1], [0, 0, 1, 1], [], []>} : vector<64x2304xbf16>, vector<2304x192xbf16>, vector<64x192xf32> -> vector<64x192xf32>
    %c0_4 = arith.constant 0 : index
    %c0_5 = arith.constant 0 : index
    %4 = vector.load %arg4[%c0_4, %c0_5] : memref<1x192xf32, #tpu.memory_space<vmem>>, vector<1x192xf32>
    %5 = vector.broadcast %4 : vector<1x192xf32> to vector<64x192xf32>
    %6 = arith.addf %3, %5 : vector<64x192xf32>
    %7 = vector.shape_cast %6 : vector<64x192xf32> to vector<8x8x192xf32>
    %c0_6 = arith.constant 0 : index
    %c0_7 = arith.constant 0 : index
    %c0_8 = arith.constant 0 : index
    %8 = vector.load %arg7[%c0_6, %c0_7, %c0_8] : memref<8x8x192xf32, #tpu.memory_space<vmem>>, vector<8x8x192xf32>
    tpu.vector_store %arg7[%c0_6, %c0_7, %c0_8], %7 {strides = array<i32>} : memref<8x8x192xf32, #tpu.memory_space<vmem>>, vector<8x8x192xf32>,
    %cst_9 = arith.constant 0.000000e+00 : f32
    %9 = vector.broadcast %cst_9 : f32 to vector<8x64xf32>
    %c0_10 = arith.constant 0 : index
    %c0_11 = arith.constant 0 : index
    %10 = vector.load %arg8[%c0_10, %c0_11] : memref<8x64xf32, #tpu.memory_space<vmem>>, vector<8x64xf32>
    tpu.vector_store %arg8[%c0_10, %c0_11], %9 {strides = array<i32>} : memref<8x64xf32, #tpu.memory_space<vmem>>, vector<8x64xf32>,
    %11 = tpu.iota {dimensions = array<i32: 1>} : vector<8x192xi32>
    %c64_i32 = arith.constant 64 : i32
    %c0_i32 = arith.constant 0 : i32
    %12 = arith.cmpi eq, %c64_i32, %c0_i32 : i32
    %c1_i32 = arith.constant 1 : i32
    %13 = arith.select %12, %c1_i32, %c64_i32 : i32
    %14 = vector.broadcast %13 : i32 to vector<8x192xi32>
    %15 = arith.remsi %11, %14 : vector<8x192xi32>
    %c0_i32_12 = arith.constant 0 : i32
    %16 = vector.broadcast %c0_i32_12 : i32 to vector<8x192xi32>
    %17 = arith.cmpi ne, %15, %16 : vector<8x192xi32>
    %c0_i32_13 = arith.constant 0 : i32
    %18 = vector.broadcast %c0_i32_13 : i32 to vector<8x192xi32>
    %19 = arith.cmpi slt, %15, %18 : vector<8x192xi32>
    %c0_i32_14 = arith.constant 0 : i32
    %20 = arith.cmpi slt, %13, %c0_i32_14 : i32
    %21 = vector.broadcast %20 : i1 to vector<8x192xi1>
    %22 = vector.broadcast %21 : vector<8x192xi1> to vector<8x192xi1>
    %23 = arith.xori %19, %22 : vector<8x192xi1>
    %24 = arith.andi %23, %17 : vector<8x192xi1>
    %25 = vector.broadcast %13 : i32 to vector<8x192xi32>
    %26 = arith.addi %15, %25 : vector<8x192xi32>
    %27 = arith.select %24, %26, %15 : vector<8x192xi1>, vector<8x192xi32>
    %c32_i32 = arith.constant 32 : i32
    %28 = vector.broadcast %c32_i32 : i32 to vector<8x192xi32>
    %29 = arith.cmpi slt, %27, %28 : vector<8x192xi32>
    %c0_15 = arith.constant 0 : index
    %c0_16 = arith.constant 0 : index
    %30 = vector.load %arg5[%c0_15, %c0_16] : memref<1x64xf32, #tpu.memory_space<vmem>>, vector<1x64xf32>
    %31 = vector.shape_cast %30 : vector<1x64xf32> to vector<1x64xf32>
    %32 = vector.broadcast %31 : vector<1x64xf32> to vector<8x64xf32>
    %c0_i32_17 = arith.constant 0 : i32
    %c7_i32 = arith.constant 7 : i32
    %33 = arith.subi %c7_i32, %c0_i32_17 : i32
    %c0_18 = arith.constant 0 : index
    %c0_19 = arith.constant 0 : index
    %34 = vector.load %arg8[%c0_18, %c0_19] : memref<8x64xf32, #tpu.memory_space<vmem>>, vector<8x64xf32>
    %c0_20 = arith.constant 0 : index
    %c0_21 = arith.constant 0 : index
    %35 = vector.load %arg3[%c0_20, %c0_21] : memref<64x192xf32, #tpu.memory_space<vmem>>, vector<64x192xf32>
    %cst_22 = arith.constant dense<0.000000e+00> : vector<8x192xf32>
    %36 = tpu.matmul %34, %35, %cst_22 {dimension_numbers = #tpu.dot_dimension_numbers<[1], [0], [0], [1], [0, 0, 1, 1], [], []>} : vector<8x64xf32>, vector<64x192xf32>, vector<8x192xf32> -> vector<8x192xf32>
    %37 = arith.index_cast %c0_i32_17 : i32 to index
    %c0_23 = arith.constant 0 : index
    %c0_24 = arith.constant 0 : index
    %38 = vector.load %arg7[%37, %c0_23, %c0_24] : memref<8x8x192xf32, #tpu.memory_space<vmem>>, vector<1x8x192xf32>
    %39 = vector.shape_cast %38 : vector<1x8x192xf32> to vector<8x192xf32>
    %40 = arith.index_cast %33 : i32 to index
    %c0_25 = arith.constant 0 : index
    %c0_26 = arith.constant 0 : index
    %41 = vector.load %arg7[%40, %c0_25, %c0_26] : memref<8x8x192xf32, #tpu.memory_space<vmem>>, vector<1x8x192xf32>
    %42 = vector.shape_cast %41 : vector<1x8x192xf32> to vector<8x192xf32>
    %43 = arith.select %29, %39, %42 : vector<8x192xi1>, vector<8x192xf32>
    %44 = vector.extract_strided_slice %43 {offsets = [0, 0], sizes = [8, 128], strides = [1, 1]} : vector<8x192xf32> to vector<8x128xf32>
    %45 = vector.extract_strided_slice %36 {offsets = [0, 0], sizes = [8, 128], strides = [1, 1]} : vector<8x192xf32> to vector<8x128xf32>
    %46 = arith.addf %44, %45 : vector<8x128xf32>
    %47 = arith.negf %46 : vector<8x128xf32>
    %48 = math.exp %47 : vector<8x128xf32>
    %cst_27 = arith.constant 1.000000e+00 : f32
    %49 = vector.broadcast %cst_27 : f32 to vector<8x128xf32>
    %50 = arith.addf %49, %48 : vector<8x128xf32>
    %51 = arith.divf %49, %50 : vector<8x128xf32>
    %52 = vector.extract_strided_slice %51 {offsets = [0, 0], sizes = [8, 64], strides = [1, 1]} : vector<8x128xf32> to vector<8x64xf32>
    %53 = vector.extract_strided_slice %51 {offsets = [0, 64], sizes = [8, 64], strides = [1, 1]} : vector<8x128xf32> to vector<8x64xf32>
    %54 = vector.extract_strided_slice %43 {offsets = [0, 128], sizes = [8, 64], strides = [1, 1]} : vector<8x192xf32> to vector<8x64xf32>
    %55 = vector.extract_strided_slice %36 {offsets = [0, 128], sizes = [8, 64], strides = [1, 1]} : vector<8x192xf32> to vector<8x64xf32>
    %56 = arith.addf %55, %32 : vector<8x64xf32>
    %57 = arith.mulf %52, %56 : vector<8x64xf32>
    %58 = arith.addf %54, %57 : vector<8x64xf32>
    %59 = math.tanh %58 : vector<8x64xf32>
    %cst_28 = arith.constant 1.000000e+00 : f32
    %60 = vector.broadcast %cst_28 : f32 to vector<8x64xf32>
    %61 = arith.subf %60, %53 : vector<8x64xf32>
    %62 = arith.mulf %61, %59 : vector<8x64xf32>
    %63 = arith.mulf %53, %34 : vector<8x64xf32>
    %64 = arith.addf %62, %63 : vector<8x64xf32>
    %c0_29 = arith.constant 0 : index
    %c0_30 = arith.constant 0 : index
    %65 = vector.load %arg8[%c0_29, %c0_30] : memref<8x64xf32, #tpu.memory_space<vmem>>, vector<8x64xf32>
    tpu.vector_store %arg8[%c0_29, %c0_30], %64 {strides = array<i32>} : memref<8x64xf32, #tpu.memory_space<vmem>>, vector<8x64xf32>,
    %66 = vector.extract_strided_slice %64 {offsets = [0, 0], sizes = [8, 32], strides = [1, 1]} : vector<8x64xf32> to vector<8x32xf32>
    %67 = arith.truncf %66 : vector<8x32xf32> to vector<8x32xbf16>
    %68 = arith.index_cast %c0_i32_17 : i32 to index
    %c0_31 = arith.constant 0 : index
    %c0_32 = arith.constant 0 : index
    %69 = vector.load %arg6[%68, %c0_31, %c0_32] : memref<8x8x64xbf16, #tpu.memory_space<vmem>>, vector<1x8x32xbf16>
    %70 = vector.shape_cast %69 : vector<1x8x32xbf16> to vector<8x32xbf16>
    %71 = vector.shape_cast %67 : vector<8x32xbf16> to vector<1x8x32xbf16>
    tpu.vector_store %arg6[%68, %c0_31, %c0_32], %71 {strides = array<i32>} : memref<8x8x64xbf16, #tpu.memory_space<vmem>>, vector<1x8x32xbf16>,
    %72 = vector.extract_strided_slice %64 {offsets = [0, 32], sizes = [8, 32], strides = [1, 1]} : vector<8x64xf32> to vector<8x32xf32>
    %73 = arith.truncf %72 : vector<8x32xf32> to vector<8x32xbf16>
    %74 = arith.index_cast %33 : i32 to index
    %c0_33 = arith.constant 0 : index
    %c32 = arith.constant 32 : index
    %75 = vector.load %arg6[%74, %c0_33, %c32] : memref<8x8x64xbf16, #tpu.memory_space<vmem>>, vector<1x8x32xbf16>
    %76 = vector.shape_cast %75 : vector<1x8x32xbf16> to vector<8x32xbf16>
    %77 = vector.shape_cast %73 : vector<8x32xbf16> to vector<1x8x32xbf16>
    tpu.vector_store %arg6[%74, %c0_33, %c32], %77 {strides = array<i32>} : memref<8x8x64xbf16, #tpu.memory_space<vmem>>, vector<1x8x32xbf16>,
    %c1_i32_34 = arith.constant 1 : i32
    %c7_i32_35 = arith.constant 7 : i32
    %78 = arith.subi %c7_i32_35, %c1_i32_34 : i32
    %c0_36 = arith.constant 0 : index
    %c0_37 = arith.constant 0 : index
    %79 = vector.load %arg8[%c0_36, %c0_37] : memref<8x64xf32, #tpu.memory_space<vmem>>, vector<8x64xf32>
    %c0_38 = arith.constant 0 : index
    %c0_39 = arith.constant 0 : index
    %80 = vector.load %arg3[%c0_38, %c0_39] : memref<64x192xf32, #tpu.memory_space<vmem>>, vector<64x192xf32>
    %cst_40 = arith.constant dense<0.000000e+00> : vector<8x192xf32>
    %81 = tpu.matmul %79, %80, %cst_40 {dimension_numbers = #tpu.dot_dimension_numbers<[1], [0], [0], [1], [0, 0, 1, 1], [], []>} : vector<8x64xf32>, vector<64x192xf32>, vector<8x192xf32> -> vector<8x192xf32>
    %82 = arith.index_cast %c1_i32_34 : i32 to index
    %c0_41 = arith.constant 0 : index
    %c0_42 = arith.constant 0 : index
    %83 = vector.load %arg7[%82, %c0_41, %c0_42] : memref<8x8x192xf32, #tpu.memory_space<vmem>>, vector<1x8x192xf32>
    %84 = vector.shape_cast %83 : vector<1x8x192xf32> to vector<8x192xf32>
    %85 = arith.index_cast %78 : i32 to index
    %c0_43 = arith.constant 0 : index
    %c0_44 = arith.constant 0 : index
    %86 = vector.load %arg7[%85, %c0_43, %c0_44] : memref<8x8x192xf32, #tpu.memory_space<vmem>>, vector<1x8x192xf32>
    %87 = vector.shape_cast %86 : vector<1x8x192xf32> to vector<8x192xf32>
    %88 = arith.select %29, %84, %87 : vector<8x192xi1>, vector<8x192xf32>
    %89 = vector.extract_strided_slice %88 {offsets = [0, 0], sizes = [8, 128], strides = [1, 1]} : vector<8x192xf32> to vector<8x128xf32>
    %90 = vector.extract_strided_slice %81 {offsets = [0, 0], sizes = [8, 128], strides = [1, 1]} : vector<8x192xf32> to vector<8x128xf32>
    %91 = arith.addf %89, %90 : vector<8x128xf32>
    %92 = arith.negf %91 : vector<8x128xf32>
    %93 = math.exp %92 : vector<8x128xf32>
    %cst_45 = arith.constant 1.000000e+00 : f32
    %94 = vector.broadcast %cst_45 : f32 to vector<8x128xf32>
    %95 = arith.addf %94, %93 : vector<8x128xf32>
    %96 = arith.divf %94, %95 : vector<8x128xf32>
    %97 = vector.extract_strided_slice %96 {offsets = [0, 0], sizes = [8, 64], strides = [1, 1]} : vector<8x128xf32> to vector<8x64xf32>
    %98 = vector.extract_strided_slice %96 {offsets = [0, 64], sizes = [8, 64], strides = [1, 1]} : vector<8x128xf32> to vector<8x64xf32>
    %99 = vector.extract_strided_slice %88 {offsets = [0, 128], sizes = [8, 64], strides = [1, 1]} : vector<8x192xf32> to vector<8x64xf32>
    %100 = vector.extract_strided_slice %81 {offsets = [0, 128], sizes = [8, 64], strides = [1, 1]} : vector<8x192xf32> to vector<8x64xf32>
    %101 = arith.addf %100, %32 : vector<8x64xf32>
    %102 = arith.mulf %97, %101 : vector<8x64xf32>
    %103 = arith.addf %99, %102 : vector<8x64xf32>
    %104 = math.tanh %103 : vector<8x64xf32>
    %cst_46 = arith.constant 1.000000e+00 : f32
    %105 = vector.broadcast %cst_46 : f32 to vector<8x64xf32>
    %106 = arith.subf %105, %98 : vector<8x64xf32>
    %107 = arith.mulf %106, %104 : vector<8x64xf32>
    %108 = arith.mulf %98, %79 : vector<8x64xf32>
    %109 = arith.addf %107, %108 : vector<8x64xf32>
    %c0_47 = arith.constant 0 : index
    %c0_48 = arith.constant 0 : index
    %110 = vector.load %arg8[%c0_47, %c0_48] : memref<8x64xf32, #tpu.memory_space<vmem>>, vector<8x64xf32>
    tpu.vector_store %arg8[%c0_47, %c0_48], %109 {strides = array<i32>} : memref<8x64xf32, #tpu.memory_space<vmem>>, vector<8x64xf32>,
    %111 = vector.extract_strided_slice %109 {offsets = [0, 0], sizes = [8, 32], strides = [1, 1]} : vector<8x64xf32> to vector<8x32xf32>
    %112 = arith.truncf %111 : vector<8x32xf32> to vector<8x32xbf16>
    %113 = arith.index_cast %c1_i32_34 : i32 to index
    %c0_49 = arith.constant 0 : index
    %c0_50 = arith.constant 0 : index
    %114 = vector.load %arg6[%113, %c0_49, %c0_50] : memref<8x8x64xbf16, #tpu.memory_space<vmem>>, vector<1x8x32xbf16>
    %115 = vector.shape_cast %114 : vector<1x8x32xbf16> to vector<8x32xbf16>
    %116 = vector.shape_cast %112 : vector<8x32xbf16> to vector<1x8x32xbf16>
    tpu.vector_store %arg6[%113, %c0_49, %c0_50], %116 {strides = array<i32>} : memref<8x8x64xbf16, #tpu.memory_space<vmem>>, vector<1x8x32xbf16>,
    %117 = vector.extract_strided_slice %109 {offsets = [0, 32], sizes = [8, 32], strides = [1, 1]} : vector<8x64xf32> to vector<8x32xf32>
    %118 = arith.truncf %117 : vector<8x32xf32> to vector<8x32xbf16>
    %119 = arith.index_cast %78 : i32 to index
    %c0_51 = arith.constant 0 : index
    %c32_52 = arith.constant 32 : index
    %120 = vector.load %arg6[%119, %c0_51, %c32_52] : memref<8x8x64xbf16, #tpu.memory_space<vmem>>, vector<1x8x32xbf16>
    %121 = vector.shape_cast %120 : vector<1x8x32xbf16> to vector<8x32xbf16>
    %122 = vector.shape_cast %118 : vector<8x32xbf16> to vector<1x8x32xbf16>
    tpu.vector_store %arg6[%119, %c0_51, %c32_52], %122 {strides = array<i32>} : memref<8x8x64xbf16, #tpu.memory_space<vmem>>, vector<1x8x32xbf16>,
    %c2_i32 = arith.constant 2 : i32
    %c7_i32_53 = arith.constant 7 : i32
    %123 = arith.subi %c7_i32_53, %c2_i32 : i32
    %c0_54 = arith.constant 0 : index
    %c0_55 = arith.constant 0 : index
    %124 = vector.load %arg8[%c0_54, %c0_55] : memref<8x64xf32, #tpu.memory_space<vmem>>, vector<8x64xf32>
    %c0_56 = arith.constant 0 : index
    %c0_57 = arith.constant 0 : index
    %125 = vector.load %arg3[%c0_56, %c0_57] : memref<64x192xf32, #tpu.memory_space<vmem>>, vector<64x192xf32>
    %cst_58 = arith.constant dense<0.000000e+00> : vector<8x192xf32>
    %126 = tpu.matmul %124, %125, %cst_58 {dimension_numbers = #tpu.dot_dimension_numbers<[1], [0], [0], [1], [0, 0, 1, 1], [], []>} : vector<8x64xf32>, vector<64x192xf32>, vector<8x192xf32> -> vector<8x192xf32>
    %127 = arith.index_cast %c2_i32 : i32 to index
    %c0_59 = arith.constant 0 : index
    %c0_60 = arith.constant 0 : index
    %128 = vector.load %arg7[%127, %c0_59, %c0_60] : memref<8x8x192xf32, #tpu.memory_space<vmem>>, vector<1x8x192xf32>
    %129 = vector.shape_cast %128 : vector<1x8x192xf32> to vector<8x192xf32>
    %130 = arith.index_cast %123 : i32 to index
    %c0_61 = arith.constant 0 : index
    %c0_62 = arith.constant 0 : index
    %131 = vector.load %arg7[%130, %c0_61, %c0_62] : memref<8x8x192xf32, #tpu.memory_space<vmem>>, vector<1x8x192xf32>
    %132 = vector.shape_cast %131 : vector<1x8x192xf32> to vector<8x192xf32>
    %133 = arith.select %29, %129, %132 : vector<8x192xi1>, vector<8x192xf32>
    %134 = vector.extract_strided_slice %133 {offsets = [0, 0], sizes = [8, 128], strides = [1, 1]} : vector<8x192xf32> to vector<8x128xf32>
    %135 = vector.extract_strided_slice %126 {offsets = [0, 0], sizes = [8, 128], strides = [1, 1]} : vector<8x192xf32> to vector<8x128xf32>
    %136 = arith.addf %134, %135 : vector<8x128xf32>
    %137 = arith.negf %136 : vector<8x128xf32>
    %138 = math.exp %137 : vector<8x128xf32>
    %cst_63 = arith.constant 1.000000e+00 : f32
    %139 = vector.broadcast %cst_63 : f32 to vector<8x128xf32>
    %140 = arith.addf %139, %138 : vector<8x128xf32>
    %141 = arith.divf %139, %140 : vector<8x128xf32>
    %142 = vector.extract_strided_slice %141 {offsets = [0, 0], sizes = [8, 64], strides = [1, 1]} : vector<8x128xf32> to vector<8x64xf32>
    %143 = vector.extract_strided_slice %141 {offsets = [0, 64], sizes = [8, 64], strides = [1, 1]} : vector<8x128xf32> to vector<8x64xf32>
    %144 = vector.extract_strided_slice %133 {offsets = [0, 128], sizes = [8, 64], strides = [1, 1]} : vector<8x192xf32> to vector<8x64xf32>
    %145 = vector.extract_strided_slice %126 {offsets = [0, 128], sizes = [8, 64], strides = [1, 1]} : vector<8x192xf32> to vector<8x64xf32>
    %146 = arith.addf %145, %32 : vector<8x64xf32>
    %147 = arith.mulf %142, %146 : vector<8x64xf32>
    %148 = arith.addf %144, %147 : vector<8x64xf32>
    %149 = math.tanh %148 : vector<8x64xf32>
    %cst_64 = arith.constant 1.000000e+00 : f32
    %150 = vector.broadcast %cst_64 : f32 to vector<8x64xf32>
    %151 = arith.subf %150, %143 : vector<8x64xf32>
    %152 = arith.mulf %151, %149 : vector<8x64xf32>
    %153 = arith.mulf %143, %124 : vector<8x64xf32>
    %154 = arith.addf %152, %153 : vector<8x64xf32>
    %c0_65 = arith.constant 0 : index
    %c0_66 = arith.constant 0 : index
    %155 = vector.load %arg8[%c0_65, %c0_66] : memref<8x64xf32, #tpu.memory_space<vmem>>, vector<8x64xf32>
    tpu.vector_store %arg8[%c0_65, %c0_66], %154 {strides = array<i32>} : memref<8x64xf32, #tpu.memory_space<vmem>>, vector<8x64xf32>,
    %156 = vector.extract_strided_slice %154 {offsets = [0, 0], sizes = [8, 32], strides = [1, 1]} : vector<8x64xf32> to vector<8x32xf32>
    %157 = arith.truncf %156 : vector<8x32xf32> to vector<8x32xbf16>
    %158 = arith.index_cast %c2_i32 : i32 to index
    %c0_67 = arith.constant 0 : index
    %c0_68 = arith.constant 0 : index
    %159 = vector.load %arg6[%158, %c0_67, %c0_68] : memref<8x8x64xbf16, #tpu.memory_space<vmem>>, vector<1x8x32xbf16>
    %160 = vector.shape_cast %159 : vector<1x8x32xbf16> to vector<8x32xbf16>
    %161 = vector.shape_cast %157 : vector<8x32xbf16> to vector<1x8x32xbf16>
    tpu.vector_store %arg6[%158, %c0_67, %c0_68], %161 {strides = array<i32>} : memref<8x8x64xbf16, #tpu.memory_space<vmem>>, vector<1x8x32xbf16>,
    %162 = vector.extract_strided_slice %154 {offsets = [0, 32], sizes = [8, 32], strides = [1, 1]} : vector<8x64xf32> to vector<8x32xf32>
    %163 = arith.truncf %162 : vector<8x32xf32> to vector<8x32xbf16>
    %164 = arith.index_cast %123 : i32 to index
    %c0_69 = arith.constant 0 : index
    %c32_70 = arith.constant 32 : index
    %165 = vector.load %arg6[%164, %c0_69, %c32_70] : memref<8x8x64xbf16, #tpu.memory_space<vmem>>, vector<1x8x32xbf16>
    %166 = vector.shape_cast %165 : vector<1x8x32xbf16> to vector<8x32xbf16>
    %167 = vector.shape_cast %163 : vector<8x32xbf16> to vector<1x8x32xbf16>
    tpu.vector_store %arg6[%164, %c0_69, %c32_70], %167 {strides = array<i32>} : memref<8x8x64xbf16, #tpu.memory_space<vmem>>, vector<1x8x32xbf16>,
    %c3_i32 = arith.constant 3 : i32
    %c7_i32_71 = arith.constant 7 : i32
    %168 = arith.subi %c7_i32_71, %c3_i32 : i32
    %c0_72 = arith.constant 0 : index
    %c0_73 = arith.constant 0 : index
    %169 = vector.load %arg8[%c0_72, %c0_73] : memref<8x64xf32, #tpu.memory_space<vmem>>, vector<8x64xf32>
    %c0_74 = arith.constant 0 : index
    %c0_75 = arith.constant 0 : index
    %170 = vector.load %arg3[%c0_74, %c0_75] : memref<64x192xf32, #tpu.memory_space<vmem>>, vector<64x192xf32>
    %cst_76 = arith.constant dense<0.000000e+00> : vector<8x192xf32>
    %171 = tpu.matmul %169, %170, %cst_76 {dimension_numbers = #tpu.dot_dimension_numbers<[1], [0], [0], [1], [0, 0, 1, 1], [], []>} : vector<8x64xf32>, vector<64x192xf32>, vector<8x192xf32> -> vector<8x192xf32>
    %172 = arith.index_cast %c3_i32 : i32 to index
    %c0_77 = arith.constant 0 : index
    %c0_78 = arith.constant 0 : index
    %173 = vector.load %arg7[%172, %c0_77, %c0_78] : memref<8x8x192xf32, #tpu.memory_space<vmem>>, vector<1x8x192xf32>
    %174 = vector.shape_cast %173 : vector<1x8x192xf32> to vector<8x192xf32>
    %175 = arith.index_cast %168 : i32 to index
    %c0_79 = arith.constant 0 : index
    %c0_80 = arith.constant 0 : index
    %176 = vector.load %arg7[%175, %c0_79, %c0_80] : memref<8x8x192xf32, #tpu.memory_space<vmem>>, vector<1x8x192xf32>
    %177 = vector.shape_cast %176 : vector<1x8x192xf32> to vector<8x192xf32>
    %178 = arith.select %29, %174, %177 : vector<8x192xi1>, vector<8x192xf32>
    %179 = vector.extract_strided_slice %178 {offsets = [0, 0], sizes = [8, 128], strides = [1, 1]} : vector<8x192xf32> to vector<8x128xf32>
    %180 = vector.extract_strided_slice %171 {offsets = [0, 0], sizes = [8, 128], strides = [1, 1]} : vector<8x192xf32> to vector<8x128xf32>
    %181 = arith.addf %179, %180 : vector<8x128xf32>
    %182 = arith.negf %181 : vector<8x128xf32>
    %183 = math.exp %182 : vector<8x128xf32>
    %cst_81 = arith.constant 1.000000e+00 : f32
    %184 = vector.broadcast %cst_81 : f32 to vector<8x128xf32>
    %185 = arith.addf %184, %183 : vector<8x128xf32>
    %186 = arith.divf %184, %185 : vector<8x128xf32>
    %187 = vector.extract_strided_slice %186 {offsets = [0, 0], sizes = [8, 64], strides = [1, 1]} : vector<8x128xf32> to vector<8x64xf32>
    %188 = vector.extract_strided_slice %186 {offsets = [0, 64], sizes = [8, 64], strides = [1, 1]} : vector<8x128xf32> to vector<8x64xf32>
    %189 = vector.extract_strided_slice %178 {offsets = [0, 128], sizes = [8, 64], strides = [1, 1]} : vector<8x192xf32> to vector<8x64xf32>
    %190 = vector.extract_strided_slice %171 {offsets = [0, 128], sizes = [8, 64], strides = [1, 1]} : vector<8x192xf32> to vector<8x64xf32>
    %191 = arith.addf %190, %32 : vector<8x64xf32>
    %192 = arith.mulf %187, %191 : vector<8x64xf32>
    %193 = arith.addf %189, %192 : vector<8x64xf32>
    %194 = math.tanh %193 : vector<8x64xf32>
    %cst_82 = arith.constant 1.000000e+00 : f32
    %195 = vector.broadcast %cst_82 : f32 to vector<8x64xf32>
    %196 = arith.subf %195, %188 : vector<8x64xf32>
    %197 = arith.mulf %196, %194 : vector<8x64xf32>
    %198 = arith.mulf %188, %169 : vector<8x64xf32>
    %199 = arith.addf %197, %198 : vector<8x64xf32>
    %c0_83 = arith.constant 0 : index
    %c0_84 = arith.constant 0 : index
    %200 = vector.load %arg8[%c0_83, %c0_84] : memref<8x64xf32, #tpu.memory_space<vmem>>, vector<8x64xf32>
    tpu.vector_store %arg8[%c0_83, %c0_84], %199 {strides = array<i32>} : memref<8x64xf32, #tpu.memory_space<vmem>>, vector<8x64xf32>,
    %201 = vector.extract_strided_slice %199 {offsets = [0, 0], sizes = [8, 32], strides = [1, 1]} : vector<8x64xf32> to vector<8x32xf32>
    %202 = arith.truncf %201 : vector<8x32xf32> to vector<8x32xbf16>
    %203 = arith.index_cast %c3_i32 : i32 to index
    %c0_85 = arith.constant 0 : index
    %c0_86 = arith.constant 0 : index
    %204 = vector.load %arg6[%203, %c0_85, %c0_86] : memref<8x8x64xbf16, #tpu.memory_space<vmem>>, vector<1x8x32xbf16>
    %205 = vector.shape_cast %204 : vector<1x8x32xbf16> to vector<8x32xbf16>
    %206 = vector.shape_cast %202 : vector<8x32xbf16> to vector<1x8x32xbf16>
    tpu.vector_store %arg6[%203, %c0_85, %c0_86], %206 {strides = array<i32>} : memref<8x8x64xbf16, #tpu.memory_space<vmem>>, vector<1x8x32xbf16>,
    %207 = vector.extract_strided_slice %199 {offsets = [0, 32], sizes = [8, 32], strides = [1, 1]} : vector<8x64xf32> to vector<8x32xf32>
    %208 = arith.truncf %207 : vector<8x32xf32> to vector<8x32xbf16>
    %209 = arith.index_cast %168 : i32 to index
    %c0_87 = arith.constant 0 : index
    %c32_88 = arith.constant 32 : index
    %210 = vector.load %arg6[%209, %c0_87, %c32_88] : memref<8x8x64xbf16, #tpu.memory_space<vmem>>, vector<1x8x32xbf16>
    %211 = vector.shape_cast %210 : vector<1x8x32xbf16> to vector<8x32xbf16>
    %212 = vector.shape_cast %208 : vector<8x32xbf16> to vector<1x8x32xbf16>
    tpu.vector_store %arg6[%209, %c0_87, %c32_88], %212 {strides = array<i32>} : memref<8x8x64xbf16, #tpu.memory_space<vmem>>, vector<1x8x32xbf16>,
    %c4_i32 = arith.constant 4 : i32
    %c7_i32_89 = arith.constant 7 : i32
    %213 = arith.subi %c7_i32_89, %c4_i32 : i32
    %c0_90 = arith.constant 0 : index
    %c0_91 = arith.constant 0 : index
    %214 = vector.load %arg8[%c0_90, %c0_91] : memref<8x64xf32, #tpu.memory_space<vmem>>, vector<8x64xf32>
    %c0_92 = arith.constant 0 : index
    %c0_93 = arith.constant 0 : index
    %215 = vector.load %arg3[%c0_92, %c0_93] : memref<64x192xf32, #tpu.memory_space<vmem>>, vector<64x192xf32>
    %cst_94 = arith.constant dense<0.000000e+00> : vector<8x192xf32>
    %216 = tpu.matmul %214, %215, %cst_94 {dimension_numbers = #tpu.dot_dimension_numbers<[1], [0], [0], [1], [0, 0, 1, 1], [], []>} : vector<8x64xf32>, vector<64x192xf32>, vector<8x192xf32> -> vector<8x192xf32>
    %217 = arith.index_cast %c4_i32 : i32 to index
    %c0_95 = arith.constant 0 : index
    %c0_96 = arith.constant 0 : index
    %218 = vector.load %arg7[%217, %c0_95, %c0_96] : memref<8x8x192xf32, #tpu.memory_space<vmem>>, vector<1x8x192xf32>
    %219 = vector.shape_cast %218 : vector<1x8x192xf32> to vector<8x192xf32>
    %220 = arith.index_cast %213 : i32 to index
    %c0_97 = arith.constant 0 : index
    %c0_98 = arith.constant 0 : index
    %221 = vector.load %arg7[%220, %c0_97, %c0_98] : memref<8x8x192xf32, #tpu.memory_space<vmem>>, vector<1x8x192xf32>
    %222 = vector.shape_cast %221 : vector<1x8x192xf32> to vector<8x192xf32>
    %223 = arith.select %29, %219, %222 : vector<8x192xi1>, vector<8x192xf32>
    %224 = vector.extract_strided_slice %223 {offsets = [0, 0], sizes = [8, 128], strides = [1, 1]} : vector<8x192xf32> to vector<8x128xf32>
    %225 = vector.extract_strided_slice %216 {offsets = [0, 0], sizes = [8, 128], strides = [1, 1]} : vector<8x192xf32> to vector<8x128xf32>
    %226 = arith.addf %224, %225 : vector<8x128xf32>
    %227 = arith.negf %226 : vector<8x128xf32>
    %228 = math.exp %227 : vector<8x128xf32>
    %cst_99 = arith.constant 1.000000e+00 : f32
    %229 = vector.broadcast %cst_99 : f32 to vector<8x128xf32>
    %230 = arith.addf %229, %228 : vector<8x128xf32>
    %231 = arith.divf %229, %230 : vector<8x128xf32>
    %232 = vector.extract_strided_slice %231 {offsets = [0, 0], sizes = [8, 64], strides = [1, 1]} : vector<8x128xf32> to vector<8x64xf32>
    %233 = vector.extract_strided_slice %231 {offsets = [0, 64], sizes = [8, 64], strides = [1, 1]} : vector<8x128xf32> to vector<8x64xf32>
    %234 = vector.extract_strided_slice %223 {offsets = [0, 128], sizes = [8, 64], strides = [1, 1]} : vector<8x192xf32> to vector<8x64xf32>
    %235 = vector.extract_strided_slice %216 {offsets = [0, 128], sizes = [8, 64], strides = [1, 1]} : vector<8x192xf32> to vector<8x64xf32>
    %236 = arith.addf %235, %32 : vector<8x64xf32>
    %237 = arith.mulf %232, %236 : vector<8x64xf32>
    %238 = arith.addf %234, %237 : vector<8x64xf32>
    %239 = math.tanh %238 : vector<8x64xf32>
    %cst_100 = arith.constant 1.000000e+00 : f32
    %240 = vector.broadcast %cst_100 : f32 to vector<8x64xf32>
    %241 = arith.subf %240, %233 : vector<8x64xf32>
    %242 = arith.mulf %241, %239 : vector<8x64xf32>
    %243 = arith.mulf %233, %214 : vector<8x64xf32>
    %244 = arith.addf %242, %243 : vector<8x64xf32>
    %c0_101 = arith.constant 0 : index
    %c0_102 = arith.constant 0 : index
    %245 = vector.load %arg8[%c0_101, %c0_102] : memref<8x64xf32, #tpu.memory_space<vmem>>, vector<8x64xf32>
    tpu.vector_store %arg8[%c0_101, %c0_102], %244 {strides = array<i32>} : memref<8x64xf32, #tpu.memory_space<vmem>>, vector<8x64xf32>,
    %246 = vector.extract_strided_slice %244 {offsets = [0, 0], sizes = [8, 32], strides = [1, 1]} : vector<8x64xf32> to vector<8x32xf32>
    %247 = arith.truncf %246 : vector<8x32xf32> to vector<8x32xbf16>
    %248 = arith.index_cast %c4_i32 : i32 to index
    %c0_103 = arith.constant 0 : index
    %c0_104 = arith.constant 0 : index
    %249 = vector.load %arg6[%248, %c0_103, %c0_104] : memref<8x8x64xbf16, #tpu.memory_space<vmem>>, vector<1x8x32xbf16>
    %250 = vector.shape_cast %249 : vector<1x8x32xbf16> to vector<8x32xbf16>
    %251 = vector.shape_cast %247 : vector<8x32xbf16> to vector<1x8x32xbf16>
    tpu.vector_store %arg6[%248, %c0_103, %c0_104], %251 {strides = array<i32>} : memref<8x8x64xbf16, #tpu.memory_space<vmem>>, vector<1x8x32xbf16>,
    %252 = vector.extract_strided_slice %244 {offsets = [0, 32], sizes = [8, 32], strides = [1, 1]} : vector<8x64xf32> to vector<8x32xf32>
    %253 = arith.truncf %252 : vector<8x32xf32> to vector<8x32xbf16>
    %254 = arith.index_cast %213 : i32 to index
    %c0_105 = arith.constant 0 : index
    %c32_106 = arith.constant 32 : index
    %255 = vector.load %arg6[%254, %c0_105, %c32_106] : memref<8x8x64xbf16, #tpu.memory_space<vmem>>, vector<1x8x32xbf16>
    %256 = vector.shape_cast %255 : vector<1x8x32xbf16> to vector<8x32xbf16>
    %257 = vector.shape_cast %253 : vector<8x32xbf16> to vector<1x8x32xbf16>
    tpu.vector_store %arg6[%254, %c0_105, %c32_106], %257 {strides = array<i32>} : memref<8x8x64xbf16, #tpu.memory_space<vmem>>, vector<1x8x32xbf16>,
    %c5_i32 = arith.constant 5 : i32
    %c7_i32_107 = arith.constant 7 : i32
    %258 = arith.subi %c7_i32_107, %c5_i32 : i32
    %c0_108 = arith.constant 0 : index
    %c0_109 = arith.constant 0 : index
    %259 = vector.load %arg8[%c0_108, %c0_109] : memref<8x64xf32, #tpu.memory_space<vmem>>, vector<8x64xf32>
    %c0_110 = arith.constant 0 : index
    %c0_111 = arith.constant 0 : index
    %260 = vector.load %arg3[%c0_110, %c0_111] : memref<64x192xf32, #tpu.memory_space<vmem>>, vector<64x192xf32>
    %cst_112 = arith.constant dense<0.000000e+00> : vector<8x192xf32>
    %261 = tpu.matmul %259, %260, %cst_112 {dimension_numbers = #tpu.dot_dimension_numbers<[1], [0], [0], [1], [0, 0, 1, 1], [], []>} : vector<8x64xf32>, vector<64x192xf32>, vector<8x192xf32> -> vector<8x192xf32>
    %262 = arith.index_cast %c5_i32 : i32 to index
    %c0_113 = arith.constant 0 : index
    %c0_114 = arith.constant 0 : index
    %263 = vector.load %arg7[%262, %c0_113, %c0_114] : memref<8x8x192xf32, #tpu.memory_space<vmem>>, vector<1x8x192xf32>
    %264 = vector.shape_cast %263 : vector<1x8x192xf32> to vector<8x192xf32>
    %265 = arith.index_cast %258 : i32 to index
    %c0_115 = arith.constant 0 : index
    %c0_116 = arith.constant 0 : index
    %266 = vector.load %arg7[%265, %c0_115, %c0_116] : memref<8x8x192xf32, #tpu.memory_space<vmem>>, vector<1x8x192xf32>
    %267 = vector.shape_cast %266 : vector<1x8x192xf32> to vector<8x192xf32>
    %268 = arith.select %29, %264, %267 : vector<8x192xi1>, vector<8x192xf32>
    %269 = vector.extract_strided_slice %268 {offsets = [0, 0], sizes = [8, 128], strides = [1, 1]} : vector<8x192xf32> to vector<8x128xf32>
    %270 = vector.extract_strided_slice %261 {offsets = [0, 0], sizes = [8, 128], strides = [1, 1]} : vector<8x192xf32> to vector<8x128xf32>
    %271 = arith.addf %269, %270 : vector<8x128xf32>
    %272 = arith.negf %271 : vector<8x128xf32>
    %273 = math.exp %272 : vector<8x128xf32>
    %cst_117 = arith.constant 1.000000e+00 : f32
    %274 = vector.broadcast %cst_117 : f32 to vector<8x128xf32>
    %275 = arith.addf %274, %273 : vector<8x128xf32>
    %276 = arith.divf %274, %275 : vector<8x128xf32>
    %277 = vector.extract_strided_slice %276 {offsets = [0, 0], sizes = [8, 64], strides = [1, 1]} : vector<8x128xf32> to vector<8x64xf32>
    %278 = vector.extract_strided_slice %276 {offsets = [0, 64], sizes = [8, 64], strides = [1, 1]} : vector<8x128xf32> to vector<8x64xf32>
    %279 = vector.extract_strided_slice %268 {offsets = [0, 128], sizes = [8, 64], strides = [1, 1]} : vector<8x192xf32> to vector<8x64xf32>
    %280 = vector.extract_strided_slice %261 {offsets = [0, 128], sizes = [8, 64], strides = [1, 1]} : vector<8x192xf32> to vector<8x64xf32>
    %281 = arith.addf %280, %32 : vector<8x64xf32>
    %282 = arith.mulf %277, %281 : vector<8x64xf32>
    %283 = arith.addf %279, %282 : vector<8x64xf32>
    %284 = math.tanh %283 : vector<8x64xf32>
    %cst_118 = arith.constant 1.000000e+00 : f32
    %285 = vector.broadcast %cst_118 : f32 to vector<8x64xf32>
    %286 = arith.subf %285, %278 : vector<8x64xf32>
    %287 = arith.mulf %286, %284 : vector<8x64xf32>
    %288 = arith.mulf %278, %259 : vector<8x64xf32>
    %289 = arith.addf %287, %288 : vector<8x64xf32>
    %c0_119 = arith.constant 0 : index
    %c0_120 = arith.constant 0 : index
    %290 = vector.load %arg8[%c0_119, %c0_120] : memref<8x64xf32, #tpu.memory_space<vmem>>, vector<8x64xf32>
    tpu.vector_store %arg8[%c0_119, %c0_120], %289 {strides = array<i32>} : memref<8x64xf32, #tpu.memory_space<vmem>>, vector<8x64xf32>,
    %291 = vector.extract_strided_slice %289 {offsets = [0, 0], sizes = [8, 32], strides = [1, 1]} : vector<8x64xf32> to vector<8x32xf32>
    %292 = arith.truncf %291 : vector<8x32xf32> to vector<8x32xbf16>
    %293 = arith.index_cast %c5_i32 : i32 to index
    %c0_121 = arith.constant 0 : index
    %c0_122 = arith.constant 0 : index
    %294 = vector.load %arg6[%293, %c0_121, %c0_122] : memref<8x8x64xbf16, #tpu.memory_space<vmem>>, vector<1x8x32xbf16>
    %295 = vector.shape_cast %294 : vector<1x8x32xbf16> to vector<8x32xbf16>
    %296 = vector.shape_cast %292 : vector<8x32xbf16> to vector<1x8x32xbf16>
    tpu.vector_store %arg6[%293, %c0_121, %c0_122], %296 {strides = array<i32>} : memref<8x8x64xbf16, #tpu.memory_space<vmem>>, vector<1x8x32xbf16>,
    %297 = vector.extract_strided_slice %289 {offsets = [0, 32], sizes = [8, 32], strides = [1, 1]} : vector<8x64xf32> to vector<8x32xf32>
    %298 = arith.truncf %297 : vector<8x32xf32> to vector<8x32xbf16>
    %299 = arith.index_cast %258 : i32 to index
    %c0_123 = arith.constant 0 : index
    %c32_124 = arith.constant 32 : index
    %300 = vector.load %arg6[%299, %c0_123, %c32_124] : memref<8x8x64xbf16, #tpu.memory_space<vmem>>, vector<1x8x32xbf16>
    %301 = vector.shape_cast %300 : vector<1x8x32xbf16> to vector<8x32xbf16>
    %302 = vector.shape_cast %298 : vector<8x32xbf16> to vector<1x8x32xbf16>
    tpu.vector_store %arg6[%299, %c0_123, %c32_124], %302 {strides = array<i32>} : memref<8x8x64xbf16, #tpu.memory_space<vmem>>, vector<1x8x32xbf16>,
    %c6_i32 = arith.constant 6 : i32
    %c7_i32_125 = arith.constant 7 : i32
    %303 = arith.subi %c7_i32_125, %c6_i32 : i32
    %c0_126 = arith.constant 0 : index
    %c0_127 = arith.constant 0 : index
    %304 = vector.load %arg8[%c0_126, %c0_127] : memref<8x64xf32, #tpu.memory_space<vmem>>, vector<8x64xf32>
    %c0_128 = arith.constant 0 : index
    %c0_129 = arith.constant 0 : index
    %305 = vector.load %arg3[%c0_128, %c0_129] : memref<64x192xf32, #tpu.memory_space<vmem>>, vector<64x192xf32>
    %cst_130 = arith.constant dense<0.000000e+00> : vector<8x192xf32>
    %306 = tpu.matmul %304, %305, %cst_130 {dimension_numbers = #tpu.dot_dimension_numbers<[1], [0], [0], [1], [0, 0, 1, 1], [], []>} : vector<8x64xf32>, vector<64x192xf32>, vector<8x192xf32> -> vector<8x192xf32>
    %307 = arith.index_cast %c6_i32 : i32 to index
    %c0_131 = arith.constant 0 : index
    %c0_132 = arith.constant 0 : index
    %308 = vector.load %arg7[%307, %c0_131, %c0_132] : memref<8x8x192xf32, #tpu.memory_space<vmem>>, vector<1x8x192xf32>
    %309 = vector.shape_cast %308 : vector<1x8x192xf32> to vector<8x192xf32>
    %310 = arith.index_cast %303 : i32 to index
    %c0_133 = arith.constant 0 : index
    %c0_134 = arith.constant 0 : index
    %311 = vector.load %arg7[%310, %c0_133, %c0_134] : memref<8x8x192xf32, #tpu.memory_space<vmem>>, vector<1x8x192xf32>
    %312 = vector.shape_cast %311 : vector<1x8x192xf32> to vector<8x192xf32>
    %313 = arith.select %29, %309, %312 : vector<8x192xi1>, vector<8x192xf32>
    %314 = vector.extract_strided_slice %313 {offsets = [0, 0], sizes = [8, 128], strides = [1, 1]} : vector<8x192xf32> to vector<8x128xf32>
    %315 = vector.extract_strided_slice %306 {offsets = [0, 0], sizes = [8, 128], strides = [1, 1]} : vector<8x192xf32> to vector<8x128xf32>
    %316 = arith.addf %314, %315 : vector<8x128xf32>
    %317 = arith.negf %316 : vector<8x128xf32>
    %318 = math.exp %317 : vector<8x128xf32>
    %cst_135 = arith.constant 1.000000e+00 : f32
    %319 = vector.broadcast %cst_135 : f32 to vector<8x128xf32>
    %320 = arith.addf %319, %318 : vector<8x128xf32>
    %321 = arith.divf %319, %320 : vector<8x128xf32>
    %322 = vector.extract_strided_slice %321 {offsets = [0, 0], sizes = [8, 64], strides = [1, 1]} : vector<8x128xf32> to vector<8x64xf32>
    %323 = vector.extract_strided_slice %321 {offsets = [0, 64], sizes = [8, 64], strides = [1, 1]} : vector<8x128xf32> to vector<8x64xf32>
    %324 = vector.extract_strided_slice %313 {offsets = [0, 128], sizes = [8, 64], strides = [1, 1]} : vector<8x192xf32> to vector<8x64xf32>
    %325 = vector.extract_strided_slice %306 {offsets = [0, 128], sizes = [8, 64], strides = [1, 1]} : vector<8x192xf32> to vector<8x64xf32>
    %326 = arith.addf %325, %32 : vector<8x64xf32>
    %327 = arith.mulf %322, %326 : vector<8x64xf32>
    %328 = arith.addf %324, %327 : vector<8x64xf32>
    %329 = math.tanh %328 : vector<8x64xf32>
    %cst_136 = arith.constant 1.000000e+00 : f32
    %330 = vector.broadcast %cst_136 : f32 to vector<8x64xf32>
    %331 = arith.subf %330, %323 : vector<8x64xf32>
    %332 = arith.mulf %331, %329 : vector<8x64xf32>
    %333 = arith.mulf %323, %304 : vector<8x64xf32>
    %334 = arith.addf %332, %333 : vector<8x64xf32>
    %c0_137 = arith.constant 0 : index
    %c0_138 = arith.constant 0 : index
    %335 = vector.load %arg8[%c0_137, %c0_138] : memref<8x64xf32, #tpu.memory_space<vmem>>, vector<8x64xf32>
    tpu.vector_store %arg8[%c0_137, %c0_138], %334 {strides = array<i32>} : memref<8x64xf32, #tpu.memory_space<vmem>>, vector<8x64xf32>,
    %336 = vector.extract_strided_slice %334 {offsets = [0, 0], sizes = [8, 32], strides = [1, 1]} : vector<8x64xf32> to vector<8x32xf32>
    %337 = arith.truncf %336 : vector<8x32xf32> to vector<8x32xbf16>
    %338 = arith.index_cast %c6_i32 : i32 to index
    %c0_139 = arith.constant 0 : index
    %c0_140 = arith.constant 0 : index
    %339 = vector.load %arg6[%338, %c0_139, %c0_140] : memref<8x8x64xbf16, #tpu.memory_space<vmem>>, vector<1x8x32xbf16>
    %340 = vector.shape_cast %339 : vector<1x8x32xbf16> to vector<8x32xbf16>
    %341 = vector.shape_cast %337 : vector<8x32xbf16> to vector<1x8x32xbf16>
    tpu.vector_store %arg6[%338, %c0_139, %c0_140], %341 {strides = array<i32>} : memref<8x8x64xbf16, #tpu.memory_space<vmem>>, vector<1x8x32xbf16>,
    %342 = vector.extract_strided_slice %334 {offsets = [0, 32], sizes = [8, 32], strides = [1, 1]} : vector<8x64xf32> to vector<8x32xf32>
    %343 = arith.truncf %342 : vector<8x32xf32> to vector<8x32xbf16>
    %344 = arith.index_cast %303 : i32 to index
    %c0_141 = arith.constant 0 : index
    %c32_142 = arith.constant 32 : index
    %345 = vector.load %arg6[%344, %c0_141, %c32_142] : memref<8x8x64xbf16, #tpu.memory_space<vmem>>, vector<1x8x32xbf16>
    %346 = vector.shape_cast %345 : vector<1x8x32xbf16> to vector<8x32xbf16>
    %347 = vector.shape_cast %343 : vector<8x32xbf16> to vector<1x8x32xbf16>
    tpu.vector_store %arg6[%344, %c0_141, %c32_142], %347 {strides = array<i32>} : memref<8x8x64xbf16, #tpu.memory_space<vmem>>, vector<1x8x32xbf16>,
    %c7_i32_143 = arith.constant 7 : i32
    %c7_i32_144 = arith.constant 7 : i32
    %348 = arith.subi %c7_i32_144, %c7_i32_143 : i32
    %c0_145 = arith.constant 0 : index
    %c0_146 = arith.constant 0 : index
    %349 = vector.load %arg8[%c0_145, %c0_146] : memref<8x64xf32, #tpu.memory_space<vmem>>, vector<8x64xf32>
    %c0_147 = arith.constant 0 : index
    %c0_148 = arith.constant 0 : index
    %350 = vector.load %arg3[%c0_147, %c0_148] : memref<64x192xf32, #tpu.memory_space<vmem>>, vector<64x192xf32>
    %cst_149 = arith.constant dense<0.000000e+00> : vector<8x192xf32>
    %351 = tpu.matmul %349, %350, %cst_149 {dimension_numbers = #tpu.dot_dimension_numbers<[1], [0], [0], [1], [0, 0, 1, 1], [], []>} : vector<8x64xf32>, vector<64x192xf32>, vector<8x192xf32> -> vector<8x192xf32>
    %352 = arith.index_cast %c7_i32_143 : i32 to index
    %c0_150 = arith.constant 0 : index
    %c0_151 = arith.constant 0 : index
    %353 = vector.load %arg7[%352, %c0_150, %c0_151] : memref<8x8x192xf32, #tpu.memory_space<vmem>>, vector<1x8x192xf32>
    %354 = vector.shape_cast %353 : vector<1x8x192xf32> to vector<8x192xf32>
    %355 = arith.index_cast %348 : i32 to index
    %c0_152 = arith.constant 0 : index
    %c0_153 = arith.constant 0 : index
    %356 = vector.load %arg7[%355, %c0_152, %c0_153] : memref<8x8x192xf32, #tpu.memory_space<vmem>>, vector<1x8x192xf32>
    %357 = vector.shape_cast %356 : vector<1x8x192xf32> to vector<8x192xf32>
    %358 = arith.select %29, %354, %357 : vector<8x192xi1>, vector<8x192xf32>
    %359 = vector.extract_strided_slice %358 {offsets = [0, 0], sizes = [8, 128], strides = [1, 1]} : vector<8x192xf32> to vector<8x128xf32>
    %360 = vector.extract_strided_slice %351 {offsets = [0, 0], sizes = [8, 128], strides = [1, 1]} : vector<8x192xf32> to vector<8x128xf32>
    %361 = arith.addf %359, %360 : vector<8x128xf32>
    %362 = arith.negf %361 : vector<8x128xf32>
    %363 = math.exp %362 : vector<8x128xf32>
    %cst_154 = arith.constant 1.000000e+00 : f32
    %364 = vector.broadcast %cst_154 : f32 to vector<8x128xf32>
    %365 = arith.addf %364, %363 : vector<8x128xf32>
    %366 = arith.divf %364, %365 : vector<8x128xf32>
    %367 = vector.extract_strided_slice %366 {offsets = [0, 0], sizes = [8, 64], strides = [1, 1]} : vector<8x128xf32> to vector<8x64xf32>
    %368 = vector.extract_strided_slice %366 {offsets = [0, 64], sizes = [8, 64], strides = [1, 1]} : vector<8x128xf32> to vector<8x64xf32>
    %369 = vector.extract_strided_slice %358 {offsets = [0, 128], sizes = [8, 64], strides = [1, 1]} : vector<8x192xf32> to vector<8x64xf32>
    %370 = vector.extract_strided_slice %351 {offsets = [0, 128], sizes = [8, 64], strides = [1, 1]} : vector<8x192xf32> to vector<8x64xf32>
    %371 = arith.addf %370, %32 : vector<8x64xf32>
    %372 = arith.mulf %367, %371 : vector<8x64xf32>
    %373 = arith.addf %369, %372 : vector<8x64xf32>
    %374 = math.tanh %373 : vector<8x64xf32>
    %cst_155 = arith.constant 1.000000e+00 : f32
    %375 = vector.broadcast %cst_155 : f32 to vector<8x64xf32>
    %376 = arith.subf %375, %368 : vector<8x64xf32>
    %377 = arith.mulf %376, %374 : vector<8x64xf32>
    %378 = arith.mulf %368, %349 : vector<8x64xf32>
    %379 = arith.addf %377, %378 : vector<8x64xf32>
    %c0_156 = arith.constant 0 : index
    %c0_157 = arith.constant 0 : index
    %380 = vector.load %arg8[%c0_156, %c0_157] : memref<8x64xf32, #tpu.memory_space<vmem>>, vector<8x64xf32>
    tpu.vector_store %arg8[%c0_156, %c0_157], %379 {strides = array<i32>} : memref<8x64xf32, #tpu.memory_space<vmem>>, vector<8x64xf32>,
    %381 = vector.extract_strided_slice %379 {offsets = [0, 0], sizes = [8, 32], strides = [1, 1]} : vector<8x64xf32> to vector<8x32xf32>
    %382 = arith.truncf %381 : vector<8x32xf32> to vector<8x32xbf16>
    %383 = arith.index_cast %c7_i32_143 : i32 to index
    %c0_158 = arith.constant 0 : index
    %c0_159 = arith.constant 0 : index
    %384 = vector.load %arg6[%383, %c0_158, %c0_159] : memref<8x8x64xbf16, #tpu.memory_space<vmem>>, vector<1x8x32xbf16>
    %385 = vector.shape_cast %384 : vector<1x8x32xbf16> to vector<8x32xbf16>
    %386 = vector.shape_cast %382 : vector<8x32xbf16> to vector<1x8x32xbf16>
    tpu.vector_store %arg6[%383, %c0_158, %c0_159], %386 {strides = array<i32>} : memref<8x8x64xbf16, #tpu.memory_space<vmem>>, vector<1x8x32xbf16>,
    %387 = vector.extract_strided_slice %379 {offsets = [0, 32], sizes = [8, 32], strides = [1, 1]} : vector<8x64xf32> to vector<8x32xf32>
    %388 = arith.truncf %387 : vector<8x32xf32> to vector<8x32xbf16>
    %389 = arith.index_cast %348 : i32 to index
    %c0_160 = arith.constant 0 : index
    %c32_161 = arith.constant 32 : index
    %390 = vector.load %arg6[%389, %c0_160, %c32_161] : memref<8x8x64xbf16, #tpu.memory_space<vmem>>, vector<1x8x32xbf16>
    %391 = vector.shape_cast %390 : vector<1x8x32xbf16> to vector<8x32xbf16>
    %392 = vector.shape_cast %388 : vector<8x32xbf16> to vector<1x8x32xbf16>
    tpu.vector_store %arg6[%389, %c0_160, %c32_161], %392 {strides = array<i32>} : memref<8x8x64xbf16, #tpu.memory_space<vmem>>, vector<1x8x32xbf16>,
    %c8_i32 = arith.constant 8 : i32
    return
  }
  func.func @transform_0(%arg0: i32) -> (i32, i32, i32) {
    %c0_i32 = arith.constant 0 : i32
    %c0_i32_0 = arith.constant 0 : i32
    %c0_i32_1 = arith.constant 0 : i32
    return %c0_i32, %arg0, %c0_i32_0 : i32, i32, i32
  }
  func.func @transform_1(%arg0: i32) -> (i32, i32) {
    %c0_i32 = arith.constant 0 : i32
    %c0_i32_0 = arith.constant 0 : i32
    %c0_i32_1 = arith.constant 0 : i32
    return %c0_i32, %c0_i32_0 : i32, i32
  }
  func.func @transform_2(%arg0: i32) -> (i32, i32) {
    %c0_i32 = arith.constant 0 : i32
    %c0_i32_0 = arith.constant 0 : i32
    %c0_i32_1 = arith.constant 0 : i32
    return %c0_i32, %c0_i32_0 : i32, i32
  }
  func.func @transform_3(%arg0: i32) -> (i32, i32) {
    %c0_i32 = arith.constant 0 : i32
    %c0_i32_0 = arith.constant 0 : i32
    %c0_i32_1 = arith.constant 0 : i32
    return %c0_i32, %c0_i32_0 : i32, i32
  }
  func.func @transform_4(%arg0: i32) -> (i32, i32) {
    %c0_i32 = arith.constant 0 : i32
    %c0_i32_0 = arith.constant 0 : i32
    %c0_i32_1 = arith.constant 0 : i32
    return %c0_i32, %c0_i32_0 : i32, i32
  }
  func.func @transform_5(%arg0: i32) -> (i32, i32, i32) {
    %c0_i32 = arith.constant 0 : i32
    %c0_i32_0 = arith.constant 0 : i32
    %c0_i32_1 = arith.constant 0 : i32
    return %c0_i32, %arg0, %c0_i32_0 : i32, i32, i32
  }
}

module attributes {stable_mosaic.version = 11 : i64} {
  func.func @_gru_clf_kernel(%arg0: i32, %arg1: memref<8x2x256xbf16, #tpu.memory_space<vmem>>, %arg2: memref<256x192xbf16, #tpu.memory_space<vmem>>, %arg3: memref<64x192xf32, #tpu.memory_space<vmem>>, %arg4: memref<1x192xf32, #tpu.memory_space<vmem>>, %arg5: memref<1x64xf32, #tpu.memory_space<vmem>>, %arg6: memref<64x64xf32, #tpu.memory_space<vmem>>, %arg7: memref<1x64xf32, #tpu.memory_space<vmem>>, %arg8: memref<64x2xf32, #tpu.memory_space<vmem>>, %arg9: memref<1x2xf32, #tpu.memory_space<vmem>>, %arg10: memref<2x2xf32, #tpu.memory_space<vmem>>, %arg11: memref<8x2x192xf32, #tpu.memory_space<vmem>>, %arg12: memref<2x64xf32, #tpu.memory_space<vmem>>, %arg13: memref<8x2x64xf32, #tpu.memory_space<vmem>>) attributes {dimension_semantics = [#tpu.dimension_semantics<parallel>], iteration_bounds = array<i64: 1>, scalar_prefetch = 0 : i64, scratch_operands = 3 : i64, tpu.core_type = #tpu.core_type<tc>, window_params = [{transform_indices = @transform_0, window_bounds = array<i64: 8, 2, 256>}, {pipeline_mode = #tpu.pipeline_mode<synchronous>, transform_indices = @transform_1, window_bounds = array<i64: 256, 192>}, {pipeline_mode = #tpu.pipeline_mode<synchronous>, transform_indices = @transform_2, window_bounds = array<i64: 64, 192>}, {pipeline_mode = #tpu.pipeline_mode<synchronous>, transform_indices = @transform_3, window_bounds = array<i64: 1, 192>}, {pipeline_mode = #tpu.pipeline_mode<synchronous>, transform_indices = @transform_4, window_bounds = array<i64: 1, 64>}, {pipeline_mode = #tpu.pipeline_mode<synchronous>, transform_indices = @transform_5, window_bounds = array<i64: 64, 64>}, {pipeline_mode = #tpu.pipeline_mode<synchronous>, transform_indices = @transform_6, window_bounds = array<i64: 1, 64>}, {pipeline_mode = #tpu.pipeline_mode<synchronous>, transform_indices = @transform_7, window_bounds = array<i64: 64, 2>}, {pipeline_mode = #tpu.pipeline_mode<synchronous>, transform_indices = @transform_8, window_bounds = array<i64: 1, 2>}, {transform_indices = @transform_9, window_bounds = array<i64: 2, 2>}]} {
    %c0 = arith.constant 0 : index
    %c0_0 = arith.constant 0 : index
    %c0_1 = arith.constant 0 : index
    %0 = vector.load %arg1[%c0, %c0_0, %c0_1] : memref<8x2x256xbf16, #tpu.memory_space<vmem>>, vector<8x2x256xbf16>
    %1 = vector.shape_cast %0 : vector<8x2x256xbf16> to vector<16x256xbf16>
    %c0_2 = arith.constant 0 : index
    %c0_3 = arith.constant 0 : index
    %2 = vector.load %arg2[%c0_2, %c0_3] : memref<256x192xbf16, #tpu.memory_space<vmem>>, vector<256x192xbf16>
    %cst = arith.constant dense<0.000000e+00> : vector<16x192xf32>
    %3 = tpu.matmul %1, %2, %cst {dimension_numbers = #tpu.dot_dimension_numbers<[1], [0], [0], [1], [0, 0, 1, 1], [], []>} : vector<16x256xbf16>, vector<256x192xbf16>, vector<16x192xf32> -> vector<16x192xf32>
    %c0_4 = arith.constant 0 : index
    %c0_5 = arith.constant 0 : index
    %4 = vector.load %arg4[%c0_4, %c0_5] : memref<1x192xf32, #tpu.memory_space<vmem>>, vector<1x192xf32>
    %5 = vector.broadcast %4 : vector<1x192xf32> to vector<16x192xf32>
    %6 = arith.addf %3, %5 : vector<16x192xf32>
    %7 = vector.shape_cast %6 : vector<16x192xf32> to vector<8x2x192xf32>
    %c0_6 = arith.constant 0 : index
    %c0_7 = arith.constant 0 : index
    %c0_8 = arith.constant 0 : index
    %8 = vector.load %arg11[%c0_6, %c0_7, %c0_8] : memref<8x2x192xf32, #tpu.memory_space<vmem>>, vector<8x2x192xf32>
    tpu.vector_store %arg11[%c0_6, %c0_7, %c0_8], %7 {strides = array<i32>} : memref<8x2x192xf32, #tpu.memory_space<vmem>>, vector<8x2x192xf32>,
    %cst_9 = arith.constant 0.000000e+00 : f32
    %9 = vector.broadcast %cst_9 : f32 to vector<2x64xf32>
    %c0_10 = arith.constant 0 : index
    %c0_11 = arith.constant 0 : index
    %10 = vector.load %arg12[%c0_10, %c0_11] : memref<2x64xf32, #tpu.memory_space<vmem>>, vector<2x64xf32>
    tpu.vector_store %arg12[%c0_10, %c0_11], %9 {strides = array<i32>} : memref<2x64xf32, #tpu.memory_space<vmem>>, vector<2x64xf32>,
    %11 = tpu.iota {dimensions = array<i32: 1>} : vector<2x192xi32>
    %c64_i32 = arith.constant 64 : i32
    %c0_i32 = arith.constant 0 : i32
    %12 = arith.cmpi eq, %c64_i32, %c0_i32 : i32
    %c1_i32 = arith.constant 1 : i32
    %13 = arith.select %12, %c1_i32, %c64_i32 : i32
    %14 = vector.broadcast %13 : i32 to vector<2x192xi32>
    %15 = arith.remsi %11, %14 : vector<2x192xi32>
    %c0_i32_12 = arith.constant 0 : i32
    %16 = vector.broadcast %c0_i32_12 : i32 to vector<2x192xi32>
    %17 = arith.cmpi ne, %15, %16 : vector<2x192xi32>
    %c0_i32_13 = arith.constant 0 : i32
    %18 = vector.broadcast %c0_i32_13 : i32 to vector<2x192xi32>
    %19 = arith.cmpi slt, %15, %18 : vector<2x192xi32>
    %c0_i32_14 = arith.constant 0 : i32
    %20 = arith.cmpi slt, %13, %c0_i32_14 : i32
    %21 = vector.broadcast %20 : i1 to vector<2x192xi1>
    %22 = vector.broadcast %21 : vector<2x192xi1> to vector<2x192xi1>
    %23 = arith.xori %19, %22 : vector<2x192xi1>
    %24 = arith.andi %23, %17 : vector<2x192xi1>
    %25 = vector.broadcast %13 : i32 to vector<2x192xi32>
    %26 = arith.addi %15, %25 : vector<2x192xi32>
    %27 = arith.select %24, %26, %15 : vector<2x192xi1>, vector<2x192xi32>
    %c32_i32 = arith.constant 32 : i32
    %28 = vector.broadcast %c32_i32 : i32 to vector<2x192xi32>
    %29 = arith.cmpi slt, %27, %28 : vector<2x192xi32>
    %c0_15 = arith.constant 0 : index
    %c0_16 = arith.constant 0 : index
    %30 = vector.load %arg5[%c0_15, %c0_16] : memref<1x64xf32, #tpu.memory_space<vmem>>, vector<1x64xf32>
    %31 = vector.shape_cast %30 : vector<1x64xf32> to vector<1x64xf32>
    %32 = vector.broadcast %31 : vector<1x64xf32> to vector<2x64xf32>
    %c0_i32_17 = arith.constant 0 : i32
    %c7_i32 = arith.constant 7 : i32
    %33 = arith.subi %c7_i32, %c0_i32_17 : i32
    %c0_18 = arith.constant 0 : index
    %c0_19 = arith.constant 0 : index
    %34 = vector.load %arg12[%c0_18, %c0_19] : memref<2x64xf32, #tpu.memory_space<vmem>>, vector<2x64xf32>
    %c0_20 = arith.constant 0 : index
    %c0_21 = arith.constant 0 : index
    %35 = vector.load %arg3[%c0_20, %c0_21] : memref<64x192xf32, #tpu.memory_space<vmem>>, vector<64x192xf32>
    %cst_22 = arith.constant dense<0.000000e+00> : vector<2x192xf32>
    %36 = tpu.matmul %34, %35, %cst_22 {dimension_numbers = #tpu.dot_dimension_numbers<[1], [0], [0], [1], [0, 0, 1, 1], [], []>} : vector<2x64xf32>, vector<64x192xf32>, vector<2x192xf32> -> vector<2x192xf32>
    %37 = arith.index_cast %c0_i32_17 : i32 to index
    %c0_23 = arith.constant 0 : index
    %c0_24 = arith.constant 0 : index
    %38 = vector.load %arg11[%37, %c0_23, %c0_24] : memref<8x2x192xf32, #tpu.memory_space<vmem>>, vector<1x2x192xf32>
    %39 = vector.shape_cast %38 : vector<1x2x192xf32> to vector<2x192xf32>
    %40 = arith.index_cast %33 : i32 to index
    %c0_25 = arith.constant 0 : index
    %c0_26 = arith.constant 0 : index
    %41 = vector.load %arg11[%40, %c0_25, %c0_26] : memref<8x2x192xf32, #tpu.memory_space<vmem>>, vector<1x2x192xf32>
    %42 = vector.shape_cast %41 : vector<1x2x192xf32> to vector<2x192xf32>
    %43 = arith.select %29, %39, %42 : vector<2x192xi1>, vector<2x192xf32>
    %44 = vector.extract_strided_slice %43 {offsets = [0, 0], sizes = [2, 128], strides = [1, 1]} : vector<2x192xf32> to vector<2x128xf32>
    %45 = vector.extract_strided_slice %36 {offsets = [0, 0], sizes = [2, 128], strides = [1, 1]} : vector<2x192xf32> to vector<2x128xf32>
    %46 = arith.addf %44, %45 : vector<2x128xf32>
    %47 = arith.negf %46 : vector<2x128xf32>
    %48 = math.exp %47 : vector<2x128xf32>
    %cst_27 = arith.constant 1.000000e+00 : f32
    %49 = vector.broadcast %cst_27 : f32 to vector<2x128xf32>
    %50 = arith.addf %49, %48 : vector<2x128xf32>
    %51 = arith.divf %49, %50 : vector<2x128xf32>
    %52 = vector.extract_strided_slice %51 {offsets = [0, 0], sizes = [2, 64], strides = [1, 1]} : vector<2x128xf32> to vector<2x64xf32>
    %53 = vector.extract_strided_slice %51 {offsets = [0, 64], sizes = [2, 64], strides = [1, 1]} : vector<2x128xf32> to vector<2x64xf32>
    %54 = vector.extract_strided_slice %43 {offsets = [0, 128], sizes = [2, 64], strides = [1, 1]} : vector<2x192xf32> to vector<2x64xf32>
    %55 = vector.extract_strided_slice %36 {offsets = [0, 128], sizes = [2, 64], strides = [1, 1]} : vector<2x192xf32> to vector<2x64xf32>
    %56 = arith.addf %55, %32 : vector<2x64xf32>
    %57 = arith.mulf %52, %56 : vector<2x64xf32>
    %58 = arith.addf %54, %57 : vector<2x64xf32>
    %59 = math.tanh %58 : vector<2x64xf32>
    %cst_28 = arith.constant 1.000000e+00 : f32
    %60 = vector.broadcast %cst_28 : f32 to vector<2x64xf32>
    %61 = arith.subf %60, %53 : vector<2x64xf32>
    %62 = arith.mulf %61, %59 : vector<2x64xf32>
    %63 = arith.mulf %53, %34 : vector<2x64xf32>
    %64 = arith.addf %62, %63 : vector<2x64xf32>
    %c0_29 = arith.constant 0 : index
    %c0_30 = arith.constant 0 : index
    %65 = vector.load %arg12[%c0_29, %c0_30] : memref<2x64xf32, #tpu.memory_space<vmem>>, vector<2x64xf32>
    tpu.vector_store %arg12[%c0_29, %c0_30], %64 {strides = array<i32>} : memref<2x64xf32, #tpu.memory_space<vmem>>, vector<2x64xf32>,
    %66 = vector.extract_strided_slice %64 {offsets = [0, 0], sizes = [2, 32], strides = [1, 1]} : vector<2x64xf32> to vector<2x32xf32>
    %67 = arith.index_cast %c0_i32_17 : i32 to index
    %c0_31 = arith.constant 0 : index
    %c0_32 = arith.constant 0 : index
    %68 = vector.load %arg13[%67, %c0_31, %c0_32] : memref<8x2x64xf32, #tpu.memory_space<vmem>>, vector<1x2x32xf32>
    %69 = vector.shape_cast %68 : vector<1x2x32xf32> to vector<2x32xf32>
    %70 = vector.shape_cast %66 : vector<2x32xf32> to vector<1x2x32xf32>
    tpu.vector_store %arg13[%67, %c0_31, %c0_32], %70 {strides = array<i32>} : memref<8x2x64xf32, #tpu.memory_space<vmem>>, vector<1x2x32xf32>,
    %71 = vector.extract_strided_slice %64 {offsets = [0, 32], sizes = [2, 32], strides = [1, 1]} : vector<2x64xf32> to vector<2x32xf32>
    %72 = arith.index_cast %33 : i32 to index
    %c0_33 = arith.constant 0 : index
    %c32 = arith.constant 32 : index
    %73 = vector.load %arg13[%72, %c0_33, %c32] : memref<8x2x64xf32, #tpu.memory_space<vmem>>, vector<1x2x32xf32>
    %74 = vector.shape_cast %73 : vector<1x2x32xf32> to vector<2x32xf32>
    %75 = vector.shape_cast %71 : vector<2x32xf32> to vector<1x2x32xf32>
    tpu.vector_store %arg13[%72, %c0_33, %c32], %75 {strides = array<i32>} : memref<8x2x64xf32, #tpu.memory_space<vmem>>, vector<1x2x32xf32>,
    %c1_i32_34 = arith.constant 1 : i32
    %c7_i32_35 = arith.constant 7 : i32
    %76 = arith.subi %c7_i32_35, %c1_i32_34 : i32
    %c0_36 = arith.constant 0 : index
    %c0_37 = arith.constant 0 : index
    %77 = vector.load %arg12[%c0_36, %c0_37] : memref<2x64xf32, #tpu.memory_space<vmem>>, vector<2x64xf32>
    %c0_38 = arith.constant 0 : index
    %c0_39 = arith.constant 0 : index
    %78 = vector.load %arg3[%c0_38, %c0_39] : memref<64x192xf32, #tpu.memory_space<vmem>>, vector<64x192xf32>
    %cst_40 = arith.constant dense<0.000000e+00> : vector<2x192xf32>
    %79 = tpu.matmul %77, %78, %cst_40 {dimension_numbers = #tpu.dot_dimension_numbers<[1], [0], [0], [1], [0, 0, 1, 1], [], []>} : vector<2x64xf32>, vector<64x192xf32>, vector<2x192xf32> -> vector<2x192xf32>
    %80 = arith.index_cast %c1_i32_34 : i32 to index
    %c0_41 = arith.constant 0 : index
    %c0_42 = arith.constant 0 : index
    %81 = vector.load %arg11[%80, %c0_41, %c0_42] : memref<8x2x192xf32, #tpu.memory_space<vmem>>, vector<1x2x192xf32>
    %82 = vector.shape_cast %81 : vector<1x2x192xf32> to vector<2x192xf32>
    %83 = arith.index_cast %76 : i32 to index
    %c0_43 = arith.constant 0 : index
    %c0_44 = arith.constant 0 : index
    %84 = vector.load %arg11[%83, %c0_43, %c0_44] : memref<8x2x192xf32, #tpu.memory_space<vmem>>, vector<1x2x192xf32>
    %85 = vector.shape_cast %84 : vector<1x2x192xf32> to vector<2x192xf32>
    %86 = arith.select %29, %82, %85 : vector<2x192xi1>, vector<2x192xf32>
    %87 = vector.extract_strided_slice %86 {offsets = [0, 0], sizes = [2, 128], strides = [1, 1]} : vector<2x192xf32> to vector<2x128xf32>
    %88 = vector.extract_strided_slice %79 {offsets = [0, 0], sizes = [2, 128], strides = [1, 1]} : vector<2x192xf32> to vector<2x128xf32>
    %89 = arith.addf %87, %88 : vector<2x128xf32>
    %90 = arith.negf %89 : vector<2x128xf32>
    %91 = math.exp %90 : vector<2x128xf32>
    %cst_45 = arith.constant 1.000000e+00 : f32
    %92 = vector.broadcast %cst_45 : f32 to vector<2x128xf32>
    %93 = arith.addf %92, %91 : vector<2x128xf32>
    %94 = arith.divf %92, %93 : vector<2x128xf32>
    %95 = vector.extract_strided_slice %94 {offsets = [0, 0], sizes = [2, 64], strides = [1, 1]} : vector<2x128xf32> to vector<2x64xf32>
    %96 = vector.extract_strided_slice %94 {offsets = [0, 64], sizes = [2, 64], strides = [1, 1]} : vector<2x128xf32> to vector<2x64xf32>
    %97 = vector.extract_strided_slice %86 {offsets = [0, 128], sizes = [2, 64], strides = [1, 1]} : vector<2x192xf32> to vector<2x64xf32>
    %98 = vector.extract_strided_slice %79 {offsets = [0, 128], sizes = [2, 64], strides = [1, 1]} : vector<2x192xf32> to vector<2x64xf32>
    %99 = arith.addf %98, %32 : vector<2x64xf32>
    %100 = arith.mulf %95, %99 : vector<2x64xf32>
    %101 = arith.addf %97, %100 : vector<2x64xf32>
    %102 = math.tanh %101 : vector<2x64xf32>
    %cst_46 = arith.constant 1.000000e+00 : f32
    %103 = vector.broadcast %cst_46 : f32 to vector<2x64xf32>
    %104 = arith.subf %103, %96 : vector<2x64xf32>
    %105 = arith.mulf %104, %102 : vector<2x64xf32>
    %106 = arith.mulf %96, %77 : vector<2x64xf32>
    %107 = arith.addf %105, %106 : vector<2x64xf32>
    %c0_47 = arith.constant 0 : index
    %c0_48 = arith.constant 0 : index
    %108 = vector.load %arg12[%c0_47, %c0_48] : memref<2x64xf32, #tpu.memory_space<vmem>>, vector<2x64xf32>
    tpu.vector_store %arg12[%c0_47, %c0_48], %107 {strides = array<i32>} : memref<2x64xf32, #tpu.memory_space<vmem>>, vector<2x64xf32>,
    %109 = vector.extract_strided_slice %107 {offsets = [0, 0], sizes = [2, 32], strides = [1, 1]} : vector<2x64xf32> to vector<2x32xf32>
    %110 = arith.index_cast %c1_i32_34 : i32 to index
    %c0_49 = arith.constant 0 : index
    %c0_50 = arith.constant 0 : index
    %111 = vector.load %arg13[%110, %c0_49, %c0_50] : memref<8x2x64xf32, #tpu.memory_space<vmem>>, vector<1x2x32xf32>
    %112 = vector.shape_cast %111 : vector<1x2x32xf32> to vector<2x32xf32>
    %113 = vector.shape_cast %109 : vector<2x32xf32> to vector<1x2x32xf32>
    tpu.vector_store %arg13[%110, %c0_49, %c0_50], %113 {strides = array<i32>} : memref<8x2x64xf32, #tpu.memory_space<vmem>>, vector<1x2x32xf32>,
    %114 = vector.extract_strided_slice %107 {offsets = [0, 32], sizes = [2, 32], strides = [1, 1]} : vector<2x64xf32> to vector<2x32xf32>
    %115 = arith.index_cast %76 : i32 to index
    %c0_51 = arith.constant 0 : index
    %c32_52 = arith.constant 32 : index
    %116 = vector.load %arg13[%115, %c0_51, %c32_52] : memref<8x2x64xf32, #tpu.memory_space<vmem>>, vector<1x2x32xf32>
    %117 = vector.shape_cast %116 : vector<1x2x32xf32> to vector<2x32xf32>
    %118 = vector.shape_cast %114 : vector<2x32xf32> to vector<1x2x32xf32>
    tpu.vector_store %arg13[%115, %c0_51, %c32_52], %118 {strides = array<i32>} : memref<8x2x64xf32, #tpu.memory_space<vmem>>, vector<1x2x32xf32>,
    %c2_i32 = arith.constant 2 : i32
    %c7_i32_53 = arith.constant 7 : i32
    %119 = arith.subi %c7_i32_53, %c2_i32 : i32
    %c0_54 = arith.constant 0 : index
    %c0_55 = arith.constant 0 : index
    %120 = vector.load %arg12[%c0_54, %c0_55] : memref<2x64xf32, #tpu.memory_space<vmem>>, vector<2x64xf32>
    %c0_56 = arith.constant 0 : index
    %c0_57 = arith.constant 0 : index
    %121 = vector.load %arg3[%c0_56, %c0_57] : memref<64x192xf32, #tpu.memory_space<vmem>>, vector<64x192xf32>
    %cst_58 = arith.constant dense<0.000000e+00> : vector<2x192xf32>
    %122 = tpu.matmul %120, %121, %cst_58 {dimension_numbers = #tpu.dot_dimension_numbers<[1], [0], [0], [1], [0, 0, 1, 1], [], []>} : vector<2x64xf32>, vector<64x192xf32>, vector<2x192xf32> -> vector<2x192xf32>
    %123 = arith.index_cast %c2_i32 : i32 to index
    %c0_59 = arith.constant 0 : index
    %c0_60 = arith.constant 0 : index
    %124 = vector.load %arg11[%123, %c0_59, %c0_60] : memref<8x2x192xf32, #tpu.memory_space<vmem>>, vector<1x2x192xf32>
    %125 = vector.shape_cast %124 : vector<1x2x192xf32> to vector<2x192xf32>
    %126 = arith.index_cast %119 : i32 to index
    %c0_61 = arith.constant 0 : index
    %c0_62 = arith.constant 0 : index
    %127 = vector.load %arg11[%126, %c0_61, %c0_62] : memref<8x2x192xf32, #tpu.memory_space<vmem>>, vector<1x2x192xf32>
    %128 = vector.shape_cast %127 : vector<1x2x192xf32> to vector<2x192xf32>
    %129 = arith.select %29, %125, %128 : vector<2x192xi1>, vector<2x192xf32>
    %130 = vector.extract_strided_slice %129 {offsets = [0, 0], sizes = [2, 128], strides = [1, 1]} : vector<2x192xf32> to vector<2x128xf32>
    %131 = vector.extract_strided_slice %122 {offsets = [0, 0], sizes = [2, 128], strides = [1, 1]} : vector<2x192xf32> to vector<2x128xf32>
    %132 = arith.addf %130, %131 : vector<2x128xf32>
    %133 = arith.negf %132 : vector<2x128xf32>
    %134 = math.exp %133 : vector<2x128xf32>
    %cst_63 = arith.constant 1.000000e+00 : f32
    %135 = vector.broadcast %cst_63 : f32 to vector<2x128xf32>
    %136 = arith.addf %135, %134 : vector<2x128xf32>
    %137 = arith.divf %135, %136 : vector<2x128xf32>
    %138 = vector.extract_strided_slice %137 {offsets = [0, 0], sizes = [2, 64], strides = [1, 1]} : vector<2x128xf32> to vector<2x64xf32>
    %139 = vector.extract_strided_slice %137 {offsets = [0, 64], sizes = [2, 64], strides = [1, 1]} : vector<2x128xf32> to vector<2x64xf32>
    %140 = vector.extract_strided_slice %129 {offsets = [0, 128], sizes = [2, 64], strides = [1, 1]} : vector<2x192xf32> to vector<2x64xf32>
    %141 = vector.extract_strided_slice %122 {offsets = [0, 128], sizes = [2, 64], strides = [1, 1]} : vector<2x192xf32> to vector<2x64xf32>
    %142 = arith.addf %141, %32 : vector<2x64xf32>
    %143 = arith.mulf %138, %142 : vector<2x64xf32>
    %144 = arith.addf %140, %143 : vector<2x64xf32>
    %145 = math.tanh %144 : vector<2x64xf32>
    %cst_64 = arith.constant 1.000000e+00 : f32
    %146 = vector.broadcast %cst_64 : f32 to vector<2x64xf32>
    %147 = arith.subf %146, %139 : vector<2x64xf32>
    %148 = arith.mulf %147, %145 : vector<2x64xf32>
    %149 = arith.mulf %139, %120 : vector<2x64xf32>
    %150 = arith.addf %148, %149 : vector<2x64xf32>
    %c0_65 = arith.constant 0 : index
    %c0_66 = arith.constant 0 : index
    %151 = vector.load %arg12[%c0_65, %c0_66] : memref<2x64xf32, #tpu.memory_space<vmem>>, vector<2x64xf32>
    tpu.vector_store %arg12[%c0_65, %c0_66], %150 {strides = array<i32>} : memref<2x64xf32, #tpu.memory_space<vmem>>, vector<2x64xf32>,
    %152 = vector.extract_strided_slice %150 {offsets = [0, 0], sizes = [2, 32], strides = [1, 1]} : vector<2x64xf32> to vector<2x32xf32>
    %153 = arith.index_cast %c2_i32 : i32 to index
    %c0_67 = arith.constant 0 : index
    %c0_68 = arith.constant 0 : index
    %154 = vector.load %arg13[%153, %c0_67, %c0_68] : memref<8x2x64xf32, #tpu.memory_space<vmem>>, vector<1x2x32xf32>
    %155 = vector.shape_cast %154 : vector<1x2x32xf32> to vector<2x32xf32>
    %156 = vector.shape_cast %152 : vector<2x32xf32> to vector<1x2x32xf32>
    tpu.vector_store %arg13[%153, %c0_67, %c0_68], %156 {strides = array<i32>} : memref<8x2x64xf32, #tpu.memory_space<vmem>>, vector<1x2x32xf32>,
    %157 = vector.extract_strided_slice %150 {offsets = [0, 32], sizes = [2, 32], strides = [1, 1]} : vector<2x64xf32> to vector<2x32xf32>
    %158 = arith.index_cast %119 : i32 to index
    %c0_69 = arith.constant 0 : index
    %c32_70 = arith.constant 32 : index
    %159 = vector.load %arg13[%158, %c0_69, %c32_70] : memref<8x2x64xf32, #tpu.memory_space<vmem>>, vector<1x2x32xf32>
    %160 = vector.shape_cast %159 : vector<1x2x32xf32> to vector<2x32xf32>
    %161 = vector.shape_cast %157 : vector<2x32xf32> to vector<1x2x32xf32>
    tpu.vector_store %arg13[%158, %c0_69, %c32_70], %161 {strides = array<i32>} : memref<8x2x64xf32, #tpu.memory_space<vmem>>, vector<1x2x32xf32>,
    %c3_i32 = arith.constant 3 : i32
    %c7_i32_71 = arith.constant 7 : i32
    %162 = arith.subi %c7_i32_71, %c3_i32 : i32
    %c0_72 = arith.constant 0 : index
    %c0_73 = arith.constant 0 : index
    %163 = vector.load %arg12[%c0_72, %c0_73] : memref<2x64xf32, #tpu.memory_space<vmem>>, vector<2x64xf32>
    %c0_74 = arith.constant 0 : index
    %c0_75 = arith.constant 0 : index
    %164 = vector.load %arg3[%c0_74, %c0_75] : memref<64x192xf32, #tpu.memory_space<vmem>>, vector<64x192xf32>
    %cst_76 = arith.constant dense<0.000000e+00> : vector<2x192xf32>
    %165 = tpu.matmul %163, %164, %cst_76 {dimension_numbers = #tpu.dot_dimension_numbers<[1], [0], [0], [1], [0, 0, 1, 1], [], []>} : vector<2x64xf32>, vector<64x192xf32>, vector<2x192xf32> -> vector<2x192xf32>
    %166 = arith.index_cast %c3_i32 : i32 to index
    %c0_77 = arith.constant 0 : index
    %c0_78 = arith.constant 0 : index
    %167 = vector.load %arg11[%166, %c0_77, %c0_78] : memref<8x2x192xf32, #tpu.memory_space<vmem>>, vector<1x2x192xf32>
    %168 = vector.shape_cast %167 : vector<1x2x192xf32> to vector<2x192xf32>
    %169 = arith.index_cast %162 : i32 to index
    %c0_79 = arith.constant 0 : index
    %c0_80 = arith.constant 0 : index
    %170 = vector.load %arg11[%169, %c0_79, %c0_80] : memref<8x2x192xf32, #tpu.memory_space<vmem>>, vector<1x2x192xf32>
    %171 = vector.shape_cast %170 : vector<1x2x192xf32> to vector<2x192xf32>
    %172 = arith.select %29, %168, %171 : vector<2x192xi1>, vector<2x192xf32>
    %173 = vector.extract_strided_slice %172 {offsets = [0, 0], sizes = [2, 128], strides = [1, 1]} : vector<2x192xf32> to vector<2x128xf32>
    %174 = vector.extract_strided_slice %165 {offsets = [0, 0], sizes = [2, 128], strides = [1, 1]} : vector<2x192xf32> to vector<2x128xf32>
    %175 = arith.addf %173, %174 : vector<2x128xf32>
    %176 = arith.negf %175 : vector<2x128xf32>
    %177 = math.exp %176 : vector<2x128xf32>
    %cst_81 = arith.constant 1.000000e+00 : f32
    %178 = vector.broadcast %cst_81 : f32 to vector<2x128xf32>
    %179 = arith.addf %178, %177 : vector<2x128xf32>
    %180 = arith.divf %178, %179 : vector<2x128xf32>
    %181 = vector.extract_strided_slice %180 {offsets = [0, 0], sizes = [2, 64], strides = [1, 1]} : vector<2x128xf32> to vector<2x64xf32>
    %182 = vector.extract_strided_slice %180 {offsets = [0, 64], sizes = [2, 64], strides = [1, 1]} : vector<2x128xf32> to vector<2x64xf32>
    %183 = vector.extract_strided_slice %172 {offsets = [0, 128], sizes = [2, 64], strides = [1, 1]} : vector<2x192xf32> to vector<2x64xf32>
    %184 = vector.extract_strided_slice %165 {offsets = [0, 128], sizes = [2, 64], strides = [1, 1]} : vector<2x192xf32> to vector<2x64xf32>
    %185 = arith.addf %184, %32 : vector<2x64xf32>
    %186 = arith.mulf %181, %185 : vector<2x64xf32>
    %187 = arith.addf %183, %186 : vector<2x64xf32>
    %188 = math.tanh %187 : vector<2x64xf32>
    %cst_82 = arith.constant 1.000000e+00 : f32
    %189 = vector.broadcast %cst_82 : f32 to vector<2x64xf32>
    %190 = arith.subf %189, %182 : vector<2x64xf32>
    %191 = arith.mulf %190, %188 : vector<2x64xf32>
    %192 = arith.mulf %182, %163 : vector<2x64xf32>
    %193 = arith.addf %191, %192 : vector<2x64xf32>
    %c0_83 = arith.constant 0 : index
    %c0_84 = arith.constant 0 : index
    %194 = vector.load %arg12[%c0_83, %c0_84] : memref<2x64xf32, #tpu.memory_space<vmem>>, vector<2x64xf32>
    tpu.vector_store %arg12[%c0_83, %c0_84], %193 {strides = array<i32>} : memref<2x64xf32, #tpu.memory_space<vmem>>, vector<2x64xf32>,
    %195 = vector.extract_strided_slice %193 {offsets = [0, 0], sizes = [2, 32], strides = [1, 1]} : vector<2x64xf32> to vector<2x32xf32>
    %196 = arith.index_cast %c3_i32 : i32 to index
    %c0_85 = arith.constant 0 : index
    %c0_86 = arith.constant 0 : index
    %197 = vector.load %arg13[%196, %c0_85, %c0_86] : memref<8x2x64xf32, #tpu.memory_space<vmem>>, vector<1x2x32xf32>
    %198 = vector.shape_cast %197 : vector<1x2x32xf32> to vector<2x32xf32>
    %199 = vector.shape_cast %195 : vector<2x32xf32> to vector<1x2x32xf32>
    tpu.vector_store %arg13[%196, %c0_85, %c0_86], %199 {strides = array<i32>} : memref<8x2x64xf32, #tpu.memory_space<vmem>>, vector<1x2x32xf32>,
    %200 = vector.extract_strided_slice %193 {offsets = [0, 32], sizes = [2, 32], strides = [1, 1]} : vector<2x64xf32> to vector<2x32xf32>
    %201 = arith.index_cast %162 : i32 to index
    %c0_87 = arith.constant 0 : index
    %c32_88 = arith.constant 32 : index
    %202 = vector.load %arg13[%201, %c0_87, %c32_88] : memref<8x2x64xf32, #tpu.memory_space<vmem>>, vector<1x2x32xf32>
    %203 = vector.shape_cast %202 : vector<1x2x32xf32> to vector<2x32xf32>
    %204 = vector.shape_cast %200 : vector<2x32xf32> to vector<1x2x32xf32>
    tpu.vector_store %arg13[%201, %c0_87, %c32_88], %204 {strides = array<i32>} : memref<8x2x64xf32, #tpu.memory_space<vmem>>, vector<1x2x32xf32>,
    %c4_i32 = arith.constant 4 : i32
    %c7_i32_89 = arith.constant 7 : i32
    %205 = arith.subi %c7_i32_89, %c4_i32 : i32
    %c0_90 = arith.constant 0 : index
    %c0_91 = arith.constant 0 : index
    %206 = vector.load %arg12[%c0_90, %c0_91] : memref<2x64xf32, #tpu.memory_space<vmem>>, vector<2x64xf32>
    %c0_92 = arith.constant 0 : index
    %c0_93 = arith.constant 0 : index
    %207 = vector.load %arg3[%c0_92, %c0_93] : memref<64x192xf32, #tpu.memory_space<vmem>>, vector<64x192xf32>
    %cst_94 = arith.constant dense<0.000000e+00> : vector<2x192xf32>
    %208 = tpu.matmul %206, %207, %cst_94 {dimension_numbers = #tpu.dot_dimension_numbers<[1], [0], [0], [1], [0, 0, 1, 1], [], []>} : vector<2x64xf32>, vector<64x192xf32>, vector<2x192xf32> -> vector<2x192xf32>
    %209 = arith.index_cast %c4_i32 : i32 to index
    %c0_95 = arith.constant 0 : index
    %c0_96 = arith.constant 0 : index
    %210 = vector.load %arg11[%209, %c0_95, %c0_96] : memref<8x2x192xf32, #tpu.memory_space<vmem>>, vector<1x2x192xf32>
    %211 = vector.shape_cast %210 : vector<1x2x192xf32> to vector<2x192xf32>
    %212 = arith.index_cast %205 : i32 to index
    %c0_97 = arith.constant 0 : index
    %c0_98 = arith.constant 0 : index
    %213 = vector.load %arg11[%212, %c0_97, %c0_98] : memref<8x2x192xf32, #tpu.memory_space<vmem>>, vector<1x2x192xf32>
    %214 = vector.shape_cast %213 : vector<1x2x192xf32> to vector<2x192xf32>
    %215 = arith.select %29, %211, %214 : vector<2x192xi1>, vector<2x192xf32>
    %216 = vector.extract_strided_slice %215 {offsets = [0, 0], sizes = [2, 128], strides = [1, 1]} : vector<2x192xf32> to vector<2x128xf32>
    %217 = vector.extract_strided_slice %208 {offsets = [0, 0], sizes = [2, 128], strides = [1, 1]} : vector<2x192xf32> to vector<2x128xf32>
    %218 = arith.addf %216, %217 : vector<2x128xf32>
    %219 = arith.negf %218 : vector<2x128xf32>
    %220 = math.exp %219 : vector<2x128xf32>
    %cst_99 = arith.constant 1.000000e+00 : f32
    %221 = vector.broadcast %cst_99 : f32 to vector<2x128xf32>
    %222 = arith.addf %221, %220 : vector<2x128xf32>
    %223 = arith.divf %221, %222 : vector<2x128xf32>
    %224 = vector.extract_strided_slice %223 {offsets = [0, 0], sizes = [2, 64], strides = [1, 1]} : vector<2x128xf32> to vector<2x64xf32>
    %225 = vector.extract_strided_slice %223 {offsets = [0, 64], sizes = [2, 64], strides = [1, 1]} : vector<2x128xf32> to vector<2x64xf32>
    %226 = vector.extract_strided_slice %215 {offsets = [0, 128], sizes = [2, 64], strides = [1, 1]} : vector<2x192xf32> to vector<2x64xf32>
    %227 = vector.extract_strided_slice %208 {offsets = [0, 128], sizes = [2, 64], strides = [1, 1]} : vector<2x192xf32> to vector<2x64xf32>
    %228 = arith.addf %227, %32 : vector<2x64xf32>
    %229 = arith.mulf %224, %228 : vector<2x64xf32>
    %230 = arith.addf %226, %229 : vector<2x64xf32>
    %231 = math.tanh %230 : vector<2x64xf32>
    %cst_100 = arith.constant 1.000000e+00 : f32
    %232 = vector.broadcast %cst_100 : f32 to vector<2x64xf32>
    %233 = arith.subf %232, %225 : vector<2x64xf32>
    %234 = arith.mulf %233, %231 : vector<2x64xf32>
    %235 = arith.mulf %225, %206 : vector<2x64xf32>
    %236 = arith.addf %234, %235 : vector<2x64xf32>
    %c0_101 = arith.constant 0 : index
    %c0_102 = arith.constant 0 : index
    %237 = vector.load %arg12[%c0_101, %c0_102] : memref<2x64xf32, #tpu.memory_space<vmem>>, vector<2x64xf32>
    tpu.vector_store %arg12[%c0_101, %c0_102], %236 {strides = array<i32>} : memref<2x64xf32, #tpu.memory_space<vmem>>, vector<2x64xf32>,
    %238 = vector.extract_strided_slice %236 {offsets = [0, 0], sizes = [2, 32], strides = [1, 1]} : vector<2x64xf32> to vector<2x32xf32>
    %239 = arith.index_cast %c4_i32 : i32 to index
    %c0_103 = arith.constant 0 : index
    %c0_104 = arith.constant 0 : index
    %240 = vector.load %arg13[%239, %c0_103, %c0_104] : memref<8x2x64xf32, #tpu.memory_space<vmem>>, vector<1x2x32xf32>
    %241 = vector.shape_cast %240 : vector<1x2x32xf32> to vector<2x32xf32>
    %242 = vector.shape_cast %238 : vector<2x32xf32> to vector<1x2x32xf32>
    tpu.vector_store %arg13[%239, %c0_103, %c0_104], %242 {strides = array<i32>} : memref<8x2x64xf32, #tpu.memory_space<vmem>>, vector<1x2x32xf32>,
    %243 = vector.extract_strided_slice %236 {offsets = [0, 32], sizes = [2, 32], strides = [1, 1]} : vector<2x64xf32> to vector<2x32xf32>
    %244 = arith.index_cast %205 : i32 to index
    %c0_105 = arith.constant 0 : index
    %c32_106 = arith.constant 32 : index
    %245 = vector.load %arg13[%244, %c0_105, %c32_106] : memref<8x2x64xf32, #tpu.memory_space<vmem>>, vector<1x2x32xf32>
    %246 = vector.shape_cast %245 : vector<1x2x32xf32> to vector<2x32xf32>
    %247 = vector.shape_cast %243 : vector<2x32xf32> to vector<1x2x32xf32>
    tpu.vector_store %arg13[%244, %c0_105, %c32_106], %247 {strides = array<i32>} : memref<8x2x64xf32, #tpu.memory_space<vmem>>, vector<1x2x32xf32>,
    %c5_i32 = arith.constant 5 : i32
    %c7_i32_107 = arith.constant 7 : i32
    %248 = arith.subi %c7_i32_107, %c5_i32 : i32
    %c0_108 = arith.constant 0 : index
    %c0_109 = arith.constant 0 : index
    %249 = vector.load %arg12[%c0_108, %c0_109] : memref<2x64xf32, #tpu.memory_space<vmem>>, vector<2x64xf32>
    %c0_110 = arith.constant 0 : index
    %c0_111 = arith.constant 0 : index
    %250 = vector.load %arg3[%c0_110, %c0_111] : memref<64x192xf32, #tpu.memory_space<vmem>>, vector<64x192xf32>
    %cst_112 = arith.constant dense<0.000000e+00> : vector<2x192xf32>
    %251 = tpu.matmul %249, %250, %cst_112 {dimension_numbers = #tpu.dot_dimension_numbers<[1], [0], [0], [1], [0, 0, 1, 1], [], []>} : vector<2x64xf32>, vector<64x192xf32>, vector<2x192xf32> -> vector<2x192xf32>
    %252 = arith.index_cast %c5_i32 : i32 to index
    %c0_113 = arith.constant 0 : index
    %c0_114 = arith.constant 0 : index
    %253 = vector.load %arg11[%252, %c0_113, %c0_114] : memref<8x2x192xf32, #tpu.memory_space<vmem>>, vector<1x2x192xf32>
    %254 = vector.shape_cast %253 : vector<1x2x192xf32> to vector<2x192xf32>
    %255 = arith.index_cast %248 : i32 to index
    %c0_115 = arith.constant 0 : index
    %c0_116 = arith.constant 0 : index
    %256 = vector.load %arg11[%255, %c0_115, %c0_116] : memref<8x2x192xf32, #tpu.memory_space<vmem>>, vector<1x2x192xf32>
    %257 = vector.shape_cast %256 : vector<1x2x192xf32> to vector<2x192xf32>
    %258 = arith.select %29, %254, %257 : vector<2x192xi1>, vector<2x192xf32>
    %259 = vector.extract_strided_slice %258 {offsets = [0, 0], sizes = [2, 128], strides = [1, 1]} : vector<2x192xf32> to vector<2x128xf32>
    %260 = vector.extract_strided_slice %251 {offsets = [0, 0], sizes = [2, 128], strides = [1, 1]} : vector<2x192xf32> to vector<2x128xf32>
    %261 = arith.addf %259, %260 : vector<2x128xf32>
    %262 = arith.negf %261 : vector<2x128xf32>
    %263 = math.exp %262 : vector<2x128xf32>
    %cst_117 = arith.constant 1.000000e+00 : f32
    %264 = vector.broadcast %cst_117 : f32 to vector<2x128xf32>
    %265 = arith.addf %264, %263 : vector<2x128xf32>
    %266 = arith.divf %264, %265 : vector<2x128xf32>
    %267 = vector.extract_strided_slice %266 {offsets = [0, 0], sizes = [2, 64], strides = [1, 1]} : vector<2x128xf32> to vector<2x64xf32>
    %268 = vector.extract_strided_slice %266 {offsets = [0, 64], sizes = [2, 64], strides = [1, 1]} : vector<2x128xf32> to vector<2x64xf32>
    %269 = vector.extract_strided_slice %258 {offsets = [0, 128], sizes = [2, 64], strides = [1, 1]} : vector<2x192xf32> to vector<2x64xf32>
    %270 = vector.extract_strided_slice %251 {offsets = [0, 128], sizes = [2, 64], strides = [1, 1]} : vector<2x192xf32> to vector<2x64xf32>
    %271 = arith.addf %270, %32 : vector<2x64xf32>
    %272 = arith.mulf %267, %271 : vector<2x64xf32>
    %273 = arith.addf %269, %272 : vector<2x64xf32>
    %274 = math.tanh %273 : vector<2x64xf32>
    %cst_118 = arith.constant 1.000000e+00 : f32
    %275 = vector.broadcast %cst_118 : f32 to vector<2x64xf32>
    %276 = arith.subf %275, %268 : vector<2x64xf32>
    %277 = arith.mulf %276, %274 : vector<2x64xf32>
    %278 = arith.mulf %268, %249 : vector<2x64xf32>
    %279 = arith.addf %277, %278 : vector<2x64xf32>
    %c0_119 = arith.constant 0 : index
    %c0_120 = arith.constant 0 : index
    %280 = vector.load %arg12[%c0_119, %c0_120] : memref<2x64xf32, #tpu.memory_space<vmem>>, vector<2x64xf32>
    tpu.vector_store %arg12[%c0_119, %c0_120], %279 {strides = array<i32>} : memref<2x64xf32, #tpu.memory_space<vmem>>, vector<2x64xf32>,
    %281 = vector.extract_strided_slice %279 {offsets = [0, 0], sizes = [2, 32], strides = [1, 1]} : vector<2x64xf32> to vector<2x32xf32>
    %282 = arith.index_cast %c5_i32 : i32 to index
    %c0_121 = arith.constant 0 : index
    %c0_122 = arith.constant 0 : index
    %283 = vector.load %arg13[%282, %c0_121, %c0_122] : memref<8x2x64xf32, #tpu.memory_space<vmem>>, vector<1x2x32xf32>
    %284 = vector.shape_cast %283 : vector<1x2x32xf32> to vector<2x32xf32>
    %285 = vector.shape_cast %281 : vector<2x32xf32> to vector<1x2x32xf32>
    tpu.vector_store %arg13[%282, %c0_121, %c0_122], %285 {strides = array<i32>} : memref<8x2x64xf32, #tpu.memory_space<vmem>>, vector<1x2x32xf32>,
    %286 = vector.extract_strided_slice %279 {offsets = [0, 32], sizes = [2, 32], strides = [1, 1]} : vector<2x64xf32> to vector<2x32xf32>
    %287 = arith.index_cast %248 : i32 to index
    %c0_123 = arith.constant 0 : index
    %c32_124 = arith.constant 32 : index
    %288 = vector.load %arg13[%287, %c0_123, %c32_124] : memref<8x2x64xf32, #tpu.memory_space<vmem>>, vector<1x2x32xf32>
    %289 = vector.shape_cast %288 : vector<1x2x32xf32> to vector<2x32xf32>
    %290 = vector.shape_cast %286 : vector<2x32xf32> to vector<1x2x32xf32>
    tpu.vector_store %arg13[%287, %c0_123, %c32_124], %290 {strides = array<i32>} : memref<8x2x64xf32, #tpu.memory_space<vmem>>, vector<1x2x32xf32>,
    %c6_i32 = arith.constant 6 : i32
    %c7_i32_125 = arith.constant 7 : i32
    %291 = arith.subi %c7_i32_125, %c6_i32 : i32
    %c0_126 = arith.constant 0 : index
    %c0_127 = arith.constant 0 : index
    %292 = vector.load %arg12[%c0_126, %c0_127] : memref<2x64xf32, #tpu.memory_space<vmem>>, vector<2x64xf32>
    %c0_128 = arith.constant 0 : index
    %c0_129 = arith.constant 0 : index
    %293 = vector.load %arg3[%c0_128, %c0_129] : memref<64x192xf32, #tpu.memory_space<vmem>>, vector<64x192xf32>
    %cst_130 = arith.constant dense<0.000000e+00> : vector<2x192xf32>
    %294 = tpu.matmul %292, %293, %cst_130 {dimension_numbers = #tpu.dot_dimension_numbers<[1], [0], [0], [1], [0, 0, 1, 1], [], []>} : vector<2x64xf32>, vector<64x192xf32>, vector<2x192xf32> -> vector<2x192xf32>
    %295 = arith.index_cast %c6_i32 : i32 to index
    %c0_131 = arith.constant 0 : index
    %c0_132 = arith.constant 0 : index
    %296 = vector.load %arg11[%295, %c0_131, %c0_132] : memref<8x2x192xf32, #tpu.memory_space<vmem>>, vector<1x2x192xf32>
    %297 = vector.shape_cast %296 : vector<1x2x192xf32> to vector<2x192xf32>
    %298 = arith.index_cast %291 : i32 to index
    %c0_133 = arith.constant 0 : index
    %c0_134 = arith.constant 0 : index
    %299 = vector.load %arg11[%298, %c0_133, %c0_134] : memref<8x2x192xf32, #tpu.memory_space<vmem>>, vector<1x2x192xf32>
    %300 = vector.shape_cast %299 : vector<1x2x192xf32> to vector<2x192xf32>
    %301 = arith.select %29, %297, %300 : vector<2x192xi1>, vector<2x192xf32>
    %302 = vector.extract_strided_slice %301 {offsets = [0, 0], sizes = [2, 128], strides = [1, 1]} : vector<2x192xf32> to vector<2x128xf32>
    %303 = vector.extract_strided_slice %294 {offsets = [0, 0], sizes = [2, 128], strides = [1, 1]} : vector<2x192xf32> to vector<2x128xf32>
    %304 = arith.addf %302, %303 : vector<2x128xf32>
    %305 = arith.negf %304 : vector<2x128xf32>
    %306 = math.exp %305 : vector<2x128xf32>
    %cst_135 = arith.constant 1.000000e+00 : f32
    %307 = vector.broadcast %cst_135 : f32 to vector<2x128xf32>
    %308 = arith.addf %307, %306 : vector<2x128xf32>
    %309 = arith.divf %307, %308 : vector<2x128xf32>
    %310 = vector.extract_strided_slice %309 {offsets = [0, 0], sizes = [2, 64], strides = [1, 1]} : vector<2x128xf32> to vector<2x64xf32>
    %311 = vector.extract_strided_slice %309 {offsets = [0, 64], sizes = [2, 64], strides = [1, 1]} : vector<2x128xf32> to vector<2x64xf32>
    %312 = vector.extract_strided_slice %301 {offsets = [0, 128], sizes = [2, 64], strides = [1, 1]} : vector<2x192xf32> to vector<2x64xf32>
    %313 = vector.extract_strided_slice %294 {offsets = [0, 128], sizes = [2, 64], strides = [1, 1]} : vector<2x192xf32> to vector<2x64xf32>
    %314 = arith.addf %313, %32 : vector<2x64xf32>
    %315 = arith.mulf %310, %314 : vector<2x64xf32>
    %316 = arith.addf %312, %315 : vector<2x64xf32>
    %317 = math.tanh %316 : vector<2x64xf32>
    %cst_136 = arith.constant 1.000000e+00 : f32
    %318 = vector.broadcast %cst_136 : f32 to vector<2x64xf32>
    %319 = arith.subf %318, %311 : vector<2x64xf32>
    %320 = arith.mulf %319, %317 : vector<2x64xf32>
    %321 = arith.mulf %311, %292 : vector<2x64xf32>
    %322 = arith.addf %320, %321 : vector<2x64xf32>
    %c0_137 = arith.constant 0 : index
    %c0_138 = arith.constant 0 : index
    %323 = vector.load %arg12[%c0_137, %c0_138] : memref<2x64xf32, #tpu.memory_space<vmem>>, vector<2x64xf32>
    tpu.vector_store %arg12[%c0_137, %c0_138], %322 {strides = array<i32>} : memref<2x64xf32, #tpu.memory_space<vmem>>, vector<2x64xf32>,
    %324 = vector.extract_strided_slice %322 {offsets = [0, 0], sizes = [2, 32], strides = [1, 1]} : vector<2x64xf32> to vector<2x32xf32>
    %325 = arith.index_cast %c6_i32 : i32 to index
    %c0_139 = arith.constant 0 : index
    %c0_140 = arith.constant 0 : index
    %326 = vector.load %arg13[%325, %c0_139, %c0_140] : memref<8x2x64xf32, #tpu.memory_space<vmem>>, vector<1x2x32xf32>
    %327 = vector.shape_cast %326 : vector<1x2x32xf32> to vector<2x32xf32>
    %328 = vector.shape_cast %324 : vector<2x32xf32> to vector<1x2x32xf32>
    tpu.vector_store %arg13[%325, %c0_139, %c0_140], %328 {strides = array<i32>} : memref<8x2x64xf32, #tpu.memory_space<vmem>>, vector<1x2x32xf32>,
    %329 = vector.extract_strided_slice %322 {offsets = [0, 32], sizes = [2, 32], strides = [1, 1]} : vector<2x64xf32> to vector<2x32xf32>
    %330 = arith.index_cast %291 : i32 to index
    %c0_141 = arith.constant 0 : index
    %c32_142 = arith.constant 32 : index
    %331 = vector.load %arg13[%330, %c0_141, %c32_142] : memref<8x2x64xf32, #tpu.memory_space<vmem>>, vector<1x2x32xf32>
    %332 = vector.shape_cast %331 : vector<1x2x32xf32> to vector<2x32xf32>
    %333 = vector.shape_cast %329 : vector<2x32xf32> to vector<1x2x32xf32>
    tpu.vector_store %arg13[%330, %c0_141, %c32_142], %333 {strides = array<i32>} : memref<8x2x64xf32, #tpu.memory_space<vmem>>, vector<1x2x32xf32>,
    %c7_i32_143 = arith.constant 7 : i32
    %c7_i32_144 = arith.constant 7 : i32
    %334 = arith.subi %c7_i32_144, %c7_i32_143 : i32
    %c0_145 = arith.constant 0 : index
    %c0_146 = arith.constant 0 : index
    %335 = vector.load %arg12[%c0_145, %c0_146] : memref<2x64xf32, #tpu.memory_space<vmem>>, vector<2x64xf32>
    %c0_147 = arith.constant 0 : index
    %c0_148 = arith.constant 0 : index
    %336 = vector.load %arg3[%c0_147, %c0_148] : memref<64x192xf32, #tpu.memory_space<vmem>>, vector<64x192xf32>
    %cst_149 = arith.constant dense<0.000000e+00> : vector<2x192xf32>
    %337 = tpu.matmul %335, %336, %cst_149 {dimension_numbers = #tpu.dot_dimension_numbers<[1], [0], [0], [1], [0, 0, 1, 1], [], []>} : vector<2x64xf32>, vector<64x192xf32>, vector<2x192xf32> -> vector<2x192xf32>
    %338 = arith.index_cast %c7_i32_143 : i32 to index
    %c0_150 = arith.constant 0 : index
    %c0_151 = arith.constant 0 : index
    %339 = vector.load %arg11[%338, %c0_150, %c0_151] : memref<8x2x192xf32, #tpu.memory_space<vmem>>, vector<1x2x192xf32>
    %340 = vector.shape_cast %339 : vector<1x2x192xf32> to vector<2x192xf32>
    %341 = arith.index_cast %334 : i32 to index
    %c0_152 = arith.constant 0 : index
    %c0_153 = arith.constant 0 : index
    %342 = vector.load %arg11[%341, %c0_152, %c0_153] : memref<8x2x192xf32, #tpu.memory_space<vmem>>, vector<1x2x192xf32>
    %343 = vector.shape_cast %342 : vector<1x2x192xf32> to vector<2x192xf32>
    %344 = arith.select %29, %340, %343 : vector<2x192xi1>, vector<2x192xf32>
    %345 = vector.extract_strided_slice %344 {offsets = [0, 0], sizes = [2, 128], strides = [1, 1]} : vector<2x192xf32> to vector<2x128xf32>
    %346 = vector.extract_strided_slice %337 {offsets = [0, 0], sizes = [2, 128], strides = [1, 1]} : vector<2x192xf32> to vector<2x128xf32>
    %347 = arith.addf %345, %346 : vector<2x128xf32>
    %348 = arith.negf %347 : vector<2x128xf32>
    %349 = math.exp %348 : vector<2x128xf32>
    %cst_154 = arith.constant 1.000000e+00 : f32
    %350 = vector.broadcast %cst_154 : f32 to vector<2x128xf32>
    %351 = arith.addf %350, %349 : vector<2x128xf32>
    %352 = arith.divf %350, %351 : vector<2x128xf32>
    %353 = vector.extract_strided_slice %352 {offsets = [0, 0], sizes = [2, 64], strides = [1, 1]} : vector<2x128xf32> to vector<2x64xf32>
    %354 = vector.extract_strided_slice %352 {offsets = [0, 64], sizes = [2, 64], strides = [1, 1]} : vector<2x128xf32> to vector<2x64xf32>
    %355 = vector.extract_strided_slice %344 {offsets = [0, 128], sizes = [2, 64], strides = [1, 1]} : vector<2x192xf32> to vector<2x64xf32>
    %356 = vector.extract_strided_slice %337 {offsets = [0, 128], sizes = [2, 64], strides = [1, 1]} : vector<2x192xf32> to vector<2x64xf32>
    %357 = arith.addf %356, %32 : vector<2x64xf32>
    %358 = arith.mulf %353, %357 : vector<2x64xf32>
    %359 = arith.addf %355, %358 : vector<2x64xf32>
    %360 = math.tanh %359 : vector<2x64xf32>
    %cst_155 = arith.constant 1.000000e+00 : f32
    %361 = vector.broadcast %cst_155 : f32 to vector<2x64xf32>
    %362 = arith.subf %361, %354 : vector<2x64xf32>
    %363 = arith.mulf %362, %360 : vector<2x64xf32>
    %364 = arith.mulf %354, %335 : vector<2x64xf32>
    %365 = arith.addf %363, %364 : vector<2x64xf32>
    %c0_156 = arith.constant 0 : index
    %c0_157 = arith.constant 0 : index
    %366 = vector.load %arg12[%c0_156, %c0_157] : memref<2x64xf32, #tpu.memory_space<vmem>>, vector<2x64xf32>
    tpu.vector_store %arg12[%c0_156, %c0_157], %365 {strides = array<i32>} : memref<2x64xf32, #tpu.memory_space<vmem>>, vector<2x64xf32>,
    %367 = vector.extract_strided_slice %365 {offsets = [0, 0], sizes = [2, 32], strides = [1, 1]} : vector<2x64xf32> to vector<2x32xf32>
    %368 = arith.index_cast %c7_i32_143 : i32 to index
    %c0_158 = arith.constant 0 : index
    %c0_159 = arith.constant 0 : index
    %369 = vector.load %arg13[%368, %c0_158, %c0_159] : memref<8x2x64xf32, #tpu.memory_space<vmem>>, vector<1x2x32xf32>
    %370 = vector.shape_cast %369 : vector<1x2x32xf32> to vector<2x32xf32>
    %371 = vector.shape_cast %367 : vector<2x32xf32> to vector<1x2x32xf32>
    tpu.vector_store %arg13[%368, %c0_158, %c0_159], %371 {strides = array<i32>} : memref<8x2x64xf32, #tpu.memory_space<vmem>>, vector<1x2x32xf32>,
    %372 = vector.extract_strided_slice %365 {offsets = [0, 32], sizes = [2, 32], strides = [1, 1]} : vector<2x64xf32> to vector<2x32xf32>
    %373 = arith.index_cast %334 : i32 to index
    %c0_160 = arith.constant 0 : index
    %c32_161 = arith.constant 32 : index
    %374 = vector.load %arg13[%373, %c0_160, %c32_161] : memref<8x2x64xf32, #tpu.memory_space<vmem>>, vector<1x2x32xf32>
    %375 = vector.shape_cast %374 : vector<1x2x32xf32> to vector<2x32xf32>
    %376 = vector.shape_cast %372 : vector<2x32xf32> to vector<1x2x32xf32>
    tpu.vector_store %arg13[%373, %c0_160, %c32_161], %376 {strides = array<i32>} : memref<8x2x64xf32, #tpu.memory_space<vmem>>, vector<1x2x32xf32>,
    %c8_i32 = arith.constant 8 : i32
    %c0_162 = arith.constant 0 : index
    %c0_163 = arith.constant 0 : index
    %c0_164 = arith.constant 0 : index
    %377 = vector.load %arg13[%c0_162, %c0_163, %c0_164] : memref<8x2x64xf32, #tpu.memory_space<vmem>>, vector<8x2x64xf32>
    %cst_165 = arith.constant 0.000000e+00 : f32
    %378 = vector.broadcast %cst_165 : f32 to vector<8x2x64xf32>
    %379 = arith.maximumf %377, %378 : vector<8x2x64xf32>
    %380 = vector.shape_cast %379 : vector<8x2x64xf32> to vector<16x64xf32>
    %c0_166 = arith.constant 0 : index
    %c0_167 = arith.constant 0 : index
    %381 = vector.load %arg6[%c0_166, %c0_167] : memref<64x64xf32, #tpu.memory_space<vmem>>, vector<64x64xf32>
    %cst_168 = arith.constant dense<0.000000e+00> : vector<16x64xf32>
    %382 = tpu.matmul %380, %381, %cst_168 {dimension_numbers = #tpu.dot_dimension_numbers<[1], [0], [0], [1], [0, 0, 1, 1], [], []>} : vector<16x64xf32>, vector<64x64xf32>, vector<16x64xf32> -> vector<16x64xf32>
    %c0_169 = arith.constant 0 : index
    %c0_170 = arith.constant 0 : index
    %383 = vector.load %arg7[%c0_169, %c0_170] : memref<1x64xf32, #tpu.memory_space<vmem>>, vector<1x64xf32>
    %384 = vector.broadcast %383 : vector<1x64xf32> to vector<16x64xf32>
    %385 = arith.addf %382, %384 : vector<16x64xf32>
    %cst_171 = arith.constant 0.000000e+00 : f32
    %386 = vector.broadcast %cst_171 : f32 to vector<16x64xf32>
    %387 = arith.maximumf %385, %386 : vector<16x64xf32>
    %388 = vector.shape_cast %387 : vector<16x64xf32> to vector<8x2x64xf32>
    %cst_172 = arith.constant dense<0.000000e+00> : vector<2x64xf32>
    %389 = vector.multi_reduction <add>, %388, %cst_172 [0] : vector<8x2x64xf32> to vector<2x64xf32>
    %c0_173 = arith.constant 0 : index
    %c0_174 = arith.constant 0 : index
    %390 = vector.load %arg8[%c0_173, %c0_174] : memref<64x2xf32, #tpu.memory_space<vmem>>, vector<64x2xf32>
    %cst_175 = arith.constant dense<0.000000e+00> : vector<2x2xf32>
    %391 = tpu.matmul %389, %390, %cst_175 {dimension_numbers = #tpu.dot_dimension_numbers<[1], [0], [0], [1], [0, 0, 1, 1], [], []>} : vector<2x64xf32>, vector<64x2xf32>, vector<2x2xf32> -> vector<2x2xf32>
    %c0_176 = arith.constant 0 : index
    %c0_177 = arith.constant 0 : index
    %392 = vector.load %arg9[%c0_176, %c0_177] : memref<1x2xf32, #tpu.memory_space<vmem>>, vector<1x2xf32>
    %cst_178 = arith.constant 8.000000e+00 : f32
    %393 = vector.broadcast %cst_178 : f32 to vector<1x2xf32>
    %394 = arith.mulf %393, %392 : vector<1x2xf32>
    %395 = vector.broadcast %394 : vector<1x2xf32> to vector<2x2xf32>
    %396 = arith.addf %391, %395 : vector<2x2xf32>
    %c0_179 = arith.constant 0 : index
    %c0_180 = arith.constant 0 : index
    %397 = vector.load %arg10[%c0_179, %c0_180] : memref<2x2xf32, #tpu.memory_space<vmem>>, vector<2x2xf32>
    tpu.vector_store %arg10[%c0_179, %c0_180], %396 {strides = array<i32>} : memref<2x2xf32, #tpu.memory_space<vmem>>, vector<2x2xf32>,
    return
  }
  func.func @transform_0(%arg0: i32) -> (i32, i32, i32) {
    %c0_i32 = arith.constant 0 : i32
    %c0_i32_0 = arith.constant 0 : i32
    %c0_i32_1 = arith.constant 0 : i32
    return %c0_i32, %arg0, %c0_i32_0 : i32, i32, i32
  }
  func.func @transform_1(%arg0: i32) -> (i32, i32) {
    %c0_i32 = arith.constant 0 : i32
    %c0_i32_0 = arith.constant 0 : i32
    %c0_i32_1 = arith.constant 0 : i32
    return %c0_i32, %c0_i32_0 : i32, i32
  }
  func.func @transform_2(%arg0: i32) -> (i32, i32) {
    %c0_i32 = arith.constant 0 : i32
    %c0_i32_0 = arith.constant 0 : i32
    %c0_i32_1 = arith.constant 0 : i32
    return %c0_i32, %c0_i32_0 : i32, i32
  }
  func.func @transform_3(%arg0: i32) -> (i32, i32) {
    %c0_i32 = arith.constant 0 : i32
    %c0_i32_0 = arith.constant 0 : i32
    %c0_i32_1 = arith.constant 0 : i32
    return %c0_i32, %c0_i32_0 : i32, i32
  }
  func.func @transform_4(%arg0: i32) -> (i32, i32) {
    %c0_i32 = arith.constant 0 : i32
    %c0_i32_0 = arith.constant 0 : i32
    %c0_i32_1 = arith.constant 0 : i32
    return %c0_i32, %c0_i32_0 : i32, i32
  }
  func.func @transform_5(%arg0: i32) -> (i32, i32) {
    %c0_i32 = arith.constant 0 : i32
    %c0_i32_0 = arith.constant 0 : i32
    %c0_i32_1 = arith.constant 0 : i32
    return %c0_i32, %c0_i32_0 : i32, i32
  }
  func.func @transform_6(%arg0: i32) -> (i32, i32) {
    %c0_i32 = arith.constant 0 : i32
    %c0_i32_0 = arith.constant 0 : i32
    %c0_i32_1 = arith.constant 0 : i32
    return %c0_i32, %c0_i32_0 : i32, i32
  }
  func.func @transform_7(%arg0: i32) -> (i32, i32) {
    %c0_i32 = arith.constant 0 : i32
    %c0_i32_0 = arith.constant 0 : i32
    %c0_i32_1 = arith.constant 0 : i32
    return %c0_i32, %c0_i32_0 : i32, i32
  }
  func.func @transform_8(%arg0: i32) -> (i32, i32) {
    %c0_i32 = arith.constant 0 : i32
    %c0_i32_0 = arith.constant 0 : i32
    %c0_i32_1 = arith.constant 0 : i32
    return %c0_i32, %c0_i32_0 : i32, i32
  }
  func.func @transform_9(%arg0: i32) -> (i32, i32) {
    %c0_i32 = arith.constant 0 : i32
    %c0_i32_0 = arith.constant 0 : i32
    return %arg0, %c0_i32 : i32, i32
  }
}

</mosaic_0001>

<llo_original>
// kernel: _lambda_.3
$region0: #{_lambda_.3}
  #allocation0 [shape = 'u32[]', space=smem, size = 0x4, offset = 0x4, fixed_abs, tag = 'smem constant byte address 0x4 - core index']
  #allocation1 [shape = 'u32[144,128]{1,0:T(1,128)}', space=vmem, size = 0x12000, scoped, tag = 'internal scratch']
  #allocation2 [shape = 'f32[8,2,192]{2,1,0:T(2,128)}', space=vmem, size = 0x4000, scoped, tag = 'scratch operand']
  #allocation3 [shape = 'f32[2,64]{1,0:T(2,128)}', space=vmem, size = 0x400, scoped, tag = 'scratch operand']
  #allocation4 [shape = 'f32[8,2,64]{2,1,0:T(2,128)}', space=vmem, size = 0x2000, scoped, tag = 'scratch operand']
  %s0 = inlined_call_operand.vmem [shape: bf16[8,2,256], index: 0, kind: input, shape index: {}]
  %s1 = inlined_call_operand.vmem [shape: bf16[256,192], index: 1, kind: input, shape index: {}]
  %s2 = inlined_call_operand.vmem [shape: f32[64,192], index: 2, kind: input, shape index: {}]
  %s3 = inlined_call_operand.vmem [shape: f32[1,192], index: 3, kind: input, shape index: {}]
  %s4 = inlined_call_operand.vmem [shape: f32[1,64], index: 4, kind: input, shape index: {}]
  %s5 = inlined_call_operand.vmem [shape: f32[64,64], index: 5, kind: input, shape index: {}]
  %s6 = inlined_call_operand.vmem [shape: f32[1,64], index: 6, kind: input, shape index: {}]
  %s7 = inlined_call_operand.vmem [shape: f32[64,2], index: 7, kind: input, shape index: {}]
  %s8 = inlined_call_operand.vmem [shape: f32[1,2], index: 8, kind: input, shape index: {}]
  %s9 = inlined_call_operand.hbm [shape: f32[2,2], index: 9, kind: output, shape index: {}]
  %s10 = sld [smem:[#allocation0]]
  $region46: #{_lambda_.3} parent=0
    _
  %s12 = ssub.s32 1, %s10
  %s13 = scalar_select 0, %s12, %s10
  $region1: #{_lambda_.3} parent=0
    #allocation5 [shape = 'u8[1024]{0}', space=vmem, size = 0x400, scoped, tag = 'output window, operand 0, single buffered']
    #allocation6 [shape = 's32[1]{0}', space=sflag, size = 0x4, scoped, tag = 'scoped memory for _lambda_.3']
    %14 = vsyncpa [#allocation6], 0
    // Predicated region
    $region2: #{_lambda_.3} parent=1 // pred_check
      _
    $region3: #{_lambda_.3} parent=1 // pred_check_branch
      %16 = sbr.rel (0) target = $region5
    $region4: #{_lambda_.3} parent=1 // pred_region
      _
    $region5: #{_lambda_.3} parent=1 // pred_fallthru
      _
    // Predicated region
    $region6: #{_lambda_.3} parent=1 // pred_check
      _
    $region7: #{_lambda_.3} parent=1 // pred_check_branch
      %18 = sbr.rel (0) target = $region9
    $region8: #{_lambda_.3} parent=1 // pred_region
      _
    $region9: #{_lambda_.3} parent=1 // pred_fallthru
      _
    // Predicated region
    $region10: #{_lambda_.3} parent=1 // pred_check
      _
    $region11: #{_lambda_.3} parent=1 // pred_check_branch
      %20 = sbr.rel (0) target = $region13
    $region12: #{_lambda_.3} parent=1 // pred_region
      _
    $region13: #{_lambda_.3} parent=1 // pred_fallthru
      _
    // Predicated region
    $region14: #{_lambda_.3} parent=1 // pred_check
      _
    $region15: #{_lambda_.3} parent=1 // pred_check_branch
      %22 = sbr.rel (0) target = $region17
    $region16: #{_lambda_.3} parent=1 // pred_region
      _
    $region17: #{_lambda_.3} parent=1 // pred_fallthru
      _
    // Predicated region
    $region18: #{_lambda_.3} parent=1 // pred_check
      _
    $region19: #{_lambda_.3} parent=1 // pred_check_branch
      %24 = sbr.rel (0) target = $region21
    $region20: #{_lambda_.3} parent=1 // pred_region
      _
    $region21: #{_lambda_.3} parent=1 // pred_fallthru
      _
    // Predicated region
    $region22: #{_lambda_.3} parent=1 // pred_check
      _
    $region23: #{_lambda_.3} parent=1 // pred_check_branch
      %26 = sbr.rel (0) target = $region25
    $region24: #{_lambda_.3} parent=1 // pred_region
      _
    $region25: #{_lambda_.3} parent=1 // pred_fallthru
      _
    // Predicated region
    $region26: #{_lambda_.3} parent=1 // pred_check
      _
    $region27: #{_lambda_.3} parent=1 // pred_check_branch
      %28 = sbr.rel (0) target = $region29
    $region28: #{_lambda_.3} parent=1 // pred_region
      _
    $region29: #{_lambda_.3} parent=1 // pred_fallthru
      _
    // Predicated region
    $region30: #{_lambda_.3} parent=1 // pred_check
      _
    $region31: #{_lambda_.3} parent=1 // pred_check_branch
      %30 = sbr.rel (0) target = $region33
    $region32: #{_lambda_.3} parent=1 // pred_region
      _
    $region33: #{_lambda_.3} parent=1 // pred_fallthru
      _
    // Predicated region
    $region34: #{_lambda_.3} parent=1 // pred_check
      _
    $region35: #{_lambda_.3} parent=1 // pred_check_branch
      %32 = sbr.rel (0) target = $region37
    $region36: #{_lambda_.3} parent=1 // pred_region
      _
    $region37: #{_lambda_.3} parent=1 // pred_fallthru
      _
    %v33 = vld [vmem:[%s0] sm:$0x3]
    %v34 = vld [vmem:[%s0 + $0x2] sm:$0x3]
    %v35 = vld [vmem:[%s0 + $0x4] sm:$0x3]
    %v36 = vld [vmem:[%s0 + $0x6] sm:$0x3]
    %v37 = vld [vmem:[%s0 + $0x8] sm:$0x3]
    %v38 = vld [vmem:[%s0 + $0xa] sm:$0x3]
    %v39 = vld [vmem:[%s0 + $0xc] sm:$0x3]
    %v40 = vld [vmem:[%s0 + $0xe] sm:$0x3]
    %v41 = vld [vmem:[%s1] sm:$0xff]
    %v42 = vld [vmem:[%s1 + $0x8] sm:$0xff]
    %v43 = vld [vmem:[%s1 + $0x10] sm:$0xff]
    %v44 = vld [vmem:[%s1 + $0x18] sm:$0xff]
    %v45 = vld [vmem:[%s1 + $0x20] sm:$0xff]
    %v46 = vld [vmem:[%s1 + $0x28] sm:$0xff]
    %v47 = vld [vmem:[%s1 + $0x30] sm:$0xff]
    %v48 = vld [vmem:[%s1 + $0x38] sm:$0xff]
    %v49 = vld [vmem:[%s1 + $0x40] sm:$0xff]
    %v50 = vld [vmem:[%s1 + $0x48] sm:$0xff]
    %v51 = vld [vmem:[%s1 + $0x50] sm:$0xff]
    %v52 = vld [vmem:[%s1 + $0x58] sm:$0xff]
    %v53 = vld [vmem:[%s1 + $0x60] sm:$0xff]
    %v54 = vld [vmem:[%s1 + $0x68] sm:$0xff]
    %v55 = vld [vmem:[%s1 + $0x70] sm:$0xff]
    %v56 = vld [vmem:[%s1 + $0x78] sm:$0xff]
    %v57 = vld [vmem:[%s1 + $0x80] sm:$0xff]
    %v58 = vld [vmem:[%s1 + $0x88] sm:$0xff]
    %v59 = vld [vmem:[%s1 + $0x90] sm:$0xff]
    %v60 = vld [vmem:[%s1 + $0x98] sm:$0xff]
    %v61 = vld [vmem:[%s1 + $0xa0] sm:$0xff]
    %v62 = vld [vmem:[%s1 + $0xa8] sm:$0xff]
    %v63 = vld [vmem:[%s1 + $0xb0] sm:$0xff]
    %v64 = vld [vmem:[%s1 + $0xb8] sm:$0xff]
    %v65 = vld [vmem:[%s1 + $0xc0] sm:$0xff]
    %v66 = vld [vmem:[%s1 + $0xc8] sm:$0xff]
    %v67 = vld [vmem:[%s1 + $0xd0] sm:$0xff]
    %v68 = vld [vmem:[%s1 + $0xd8] sm:$0xff]
    %v69 = vld [vmem:[%s1 + $0xe0] sm:$0xff]
    %v70 = vld [vmem:[%s1 + $0xe8] sm:$0xff]
    %v71 = vld [vmem:[%s1 + $0xf0] sm:$0xff]
    %v72 = vld [vmem:[%s1 + $0xf8] sm:$0xff]
    %v73 = vld [vmem:[%s3] sm:$0x3]
    %v75 = vlaneseq
    %v76 = vshrl.u32 %v75, 7
    %v77 = vsub.s32 0, %v76
    %v78 = vrot.slane %v73, %v77
    %v79 = vlaneseq
    %v80 = vshrl.u32 %v79, 7
    %v81 = vsub.s32 1, %v80
    %v82 = vrot.slane %v73, %v81
    %v93 = vcombine.low %v33, %v34
    %v94 = vcombine.low %v35, %v36
    %v95 = vcombine.low %v37, %v38
    %v96 = vcombine.low %v39, %v40
    %v98 = vunpack.c.l.s4 1966171168
    %v99 = vunpack.c.0.s8 %v98
    %v100 = vlaneseq
    %v101 = vshrl.u32 %v100, 7
    %v102 = vsub.s32 %v99, %v101
    %v103 = vrot.slane %v93, %v102
    %v105 = vunpack.c.l.s4 1966171168
    %v106 = vunpack.c.0.s8 %v105
    %v107 = vlaneseq
    %v108 = vshrl.u32 %v107, 7
    %v109 = vsub.s32 %v106, %v108
    %v110 = vrot.slane %v94, %v109
    %v112 = vunpack.c.l.s4 1966171168
    %v113 = vunpack.c.0.s8 %v112
    %v114 = vlaneseq
    %v115 = vshrl.u32 %v114, 7
    %v116 = vsub.s32 %v113, %v115
    %v117 = vrot.slane %v95, %v116
    %v119 = vunpack.c.l.s4 1966171168
    %v120 = vunpack.c.0.s8 %v119
    %v121 = vlaneseq
    %v122 = vshrl.u32 %v121, 7
    %v123 = vsub.s32 %v120, %v122
    %v124 = vrot.slane %v96, %v123
    %v125 = vcombine.low %v103, %v110
    %v126 = vcombine.high %v103, %v110
    %v127 = vcombine.low %v117, %v124
    %v128 = vcombine.high %v117, %v124
    %v130 = vunpack.c.l.s4 1966171168
    %v131 = vunpack.c.0.s8 %v130
    %v132 = vlaneseq
    %v133 = vshrl.u32 %v132, 7
    %v134 = vsub.s32 %v131, %v133
    %v135 = vrot.slane %v125, %v134
    %v137 = vunpack.c.l.s4 1966171168
    %v138 = vunpack.c.0.s8 %v137
    %v139 = vlaneseq
    %v140 = vshrl.u32 %v139, 7
    %v141 = vsub.s32 %v138, %v140
    %v142 = vrot.slane %v126, %v141
    %v144 = vunpack.c.l.s4 1966171168
    %v145 = vunpack.c.0.s8 %v144
    %v146 = vlaneseq
    %v147 = vshrl.u32 %v146, 7
    %v148 = vsub.s32 %v145, %v147
    %v149 = vrot.slane %v127, %v148
    %v151 = vunpack.c.l.s4 1966171168
    %v152 = vunpack.c.0.s8 %v151
    %v153 = vlaneseq
    %v154 = vshrl.u32 %v153, 7
    %v155 = vsub.s32 %v152, %v154
    %v156 = vrot.slane %v128, %v155
    %v157 = vcombine.low %v135, %v149
    %v158 = vcombine.low %v142, %v156
    %v193 = vunpack.c.l.b16 %v41
    %v194 = vunpack.c.h.b16 %v41
    %v195 = vunpack.c.l.b16 %v42
    %v196 = vunpack.c.h.b16 %v42
    %v197 = vunpack.c.l.b16 %v43
    %v198 = vunpack.c.h.b16 %v43
    %v199 = vunpack.c.l.b16 %v44
    %v200 = vunpack.c.h.b16 %v44
    %v201 = vunpack.c.l.b16 %v45
    %v202 = vunpack.c.h.b16 %v45
    %v203 = vunpack.c.l.b16 %v46
    %v204 = vunpack.c.h.b16 %v46
    %v205 = vunpack.c.l.b16 %v47
    %v206 = vunpack.c.h.b16 %v47
    %v207 = vunpack.c.l.b16 %v48
    %v208 = vunpack.c.h.b16 %v48
    %v209 = vunpack.c.l.b16 %v49
    %v210 = vunpack.c.h.b16 %v49
    %v211 = vunpack.c.l.b16 %v50
    %v212 = vunpack.c.h.b16 %v50
    %v213 = vunpack.c.l.b16 %v51
    %v214 = vunpack.c.h.b16 %v51
    %v215 = vunpack.c.l.b16 %v52
    %v216 = vunpack.c.h.b16 %v52
    %v217 = vunpack.c.l.b16 %v53
    %v218 = vunpack.c.h.b16 %v53
    %v219 = vunpack.c.l.b16 %v54
    %v220 = vunpack.c.h.b16 %v54
    %v221 = vunpack.c.l.b16 %v55
    %v222 = vunpack.c.h.b16 %v55
    %v223 = vunpack.c.l.b16 %v56
    %v224 = vunpack.c.h.b16 %v56
    %v225 = vunpack.c.l.b16 %v57
    %v226 = vunpack.c.h.b16 %v57
    %v227 = vunpack.c.l.b16 %v58
    %v228 = vunpack.c.h.b16 %v58
    %v229 = vunpack.c.l.b16 %v59
    %v230 = vunpack.c.h.b16 %v59
    %v231 = vunpack.c.l.b16 %v60
    %v232 = vunpack.c.h.b16 %v60
    %v233 = vunpack.c.l.b16 %v61
    %v234 = vunpack.c.h.b16 %v61
    %v235 = vunpack.c.l.b16 %v62
    %v236 = vunpack.c.h.b16 %v62
    %v237 = vunpack.c.l.b16 %v63
    %v238 = vunpack.c.h.b16 %v63
    %v239 = vunpack.c.l.b16 %v64
    %v240 = vunpack.c.h.b16 %v64
    %v241 = vunpack.c.l.b16 %v65
    %v242 = vunpack.c.h.b16 %v65
    %v243 = vunpack.c.l.b16 %v66
    %v244 = vunpack.c.h.b16 %v66
    %v245 = vunpack.c.l.b16 %v67
    %v246 = vunpack.c.h.b16 %v67
    %v247 = vunpack.c.l.b16 %v68
    %v248 = vunpack.c.h.b16 %v68
    %v249 = vunpack.c.l.b16 %v69
    %v250 = vunpack.c.h.b16 %v69
    %v251 = vunpack.c.l.b16 %v70
    %v252 = vunpack.c.h.b16 %v70
    %v253 = vunpack.c.l.b16 %v71
    %v254 = vunpack.c.h.b16 %v71
    %v255 = vunpack.c.l.b16 %v72
    %v256 = vunpack.c.h.b16 %v72
    %v257 = vpack.c.b16 %v195, %v193
    %v258 = vpack.c.b16 %v196, %v194
    %v259 = vpack.c.b16 %v199, %v197
    %v260 = vpack.c.b16 %v200, %v198
    %v261 = vpack.c.b16 %v203, %v201
    %v262 = vpack.c.b16 %v204, %v202
    %v263 = vpack.c.b16 %v207, %v205
    %v264 = vpack.c.b16 %v208, %v206
    %v265 = vpack.c.b16 %v211, %v209
    %v266 = vpack.c.b16 %v212, %v210
    %v267 = vpack.c.b16 %v215, %v213
    %v268 = vpack.c.b16 %v216, %v214
    %v269 = vpack.c.b16 %v219, %v217
    %v270 = vpack.c.b16 %v220, %v218
    %v271 = vpack.c.b16 %v223, %v221
    %v272 = vpack.c.b16 %v224, %v222
    %v273 = vpack.c.b16 %v227, %v225
    %v274 = vpack.c.b16 %v228, %v226
    %v275 = vpack.c.b16 %v231, %v229
    %v276 = vpack.c.b16 %v232, %v230
    %v277 = vpack.c.b16 %v235, %v233
    %v278 = vpack.c.b16 %v236, %v234
    %v279 = vpack.c.b16 %v239, %v237
    %v280 = vpack.c.b16 %v240, %v238
    %v281 = vpack.c.b16 %v243, %v241
    %v282 = vpack.c.b16 %v244, %v242
    %v283 = vpack.c.b16 %v247, %v245
    %v284 = vpack.c.b16 %v248, %v246
    %v285 = vpack.c.b16 %v251, %v249
    %v286 = vpack.c.b16 %v252, %v250
    %v287 = vpack.c.b16 %v255, %v253
    %v288 = vpack.c.b16 %v256, %v254
    %321 = vmatprep.subr.bf16.mxu0 %v258
    %322 = vmatpush1.bf16.msra.mxu0 %v257
    %323 = vmatprep.subr.bf16.mxu0 %v260
    %324 = vmatpush1.bf16.msra.mxu0 %v259
    %325 = vmatprep.subr.bf16.mxu0 %v262
    %326 = vmatpush1.bf16.msra.mxu0 %v261
    %327 = vmatprep.subr.bf16.mxu0 %v264
    %328 = vmatpush1.bf16.msra.mxu0 %v263
    %329 = vmatprep.subr.bf16.mxu0 %v266
    %330 = vmatpush1.bf16.msra.mxu0 %v265
    %331 = vmatprep.subr.bf16.mxu0 %v268
    %332 = vmatpush1.bf16.msra.mxu0 %v267
    %333 = vmatprep.subr.bf16.mxu0 %v270
    %334 = vmatpush1.bf16.msra.mxu0 %v269
    %335 = vmatprep.subr.bf16.mxu0 %v272
    %336 = vmatpush1.bf16.msra.mxu0 %v271
    %337 = vmatprep.subr.bf16.mxu0 %v274
    %338 = vmatpush1.bf16.msra.mxu0 %v273
    %339 = vmatprep.subr.bf16.mxu0 %v276
    %340 = vmatpush1.bf16.msra.mxu0 %v275
    %341 = vmatprep.subr.bf16.mxu0 %v278
    %342 = vmatpush1.bf16.msra.mxu0 %v277
    %343 = vmatprep.subr.bf16.mxu0 %v280
    %344 = vmatpush1.bf16.msra.mxu0 %v279
    %345 = vmatprep.subr.bf16.mxu0 %v282
    %346 = vmatpush1.bf16.msra.mxu0 %v281
    %347 = vmatprep.subr.bf16.mxu0 %v284
    %348 = vmatpush1.bf16.msra.mxu0 %v283
    %349 = vmatprep.subr.bf16.mxu0 %v286
    %350 = vmatpush1.bf16.msra.mxu0 %v285
    %351 = vmatprep.subr.bf16.mxu0 %v288
    %352 = vmatpush1.bf16.msra.mxu0 %v287
    %353 = vmatprep.mubr.bf16.mxu0 %v158
    %354 = vmatmul.mubr.bf16.gmra.mrb[0].mxu0 %v157
    %v355 = vpop.f32.mrb[0].mxu0
    %v356 = vadd.f32 %v78, %v355
    %v357 = vpop.f32.mrb[0].mxu0
    %v358 = vadd.f32 %v82, %v357
    %v359 = vpop.f32.mrb[0].mxu0
    %v360 = vadd.f32 %v78, %v359
    %v361 = vpop.f32.mrb[0].mxu0
    %v362 = vadd.f32 %v82, %v361
    %363 = vdwg.mxu0
    %v368 = vcombine.low %v356, %v358
    %v369 = vcombine.high %v356, %v358
    %v371 = vunpack.c.l.s4 1983009808
    %v372 = vunpack.c.0.s8 %v371
    %v373 = vlaneseq
    %v374 = vshrl.u32 %v373, 7
    %v375 = vsub.s32 %v372, %v374
    %v376 = vrot.slane %v368, %v375
    %v378 = vunpack.c.l.s4 1983009808
    %v379 = vunpack.c.0.s8 %v378
    %v380 = vlaneseq
    %v381 = vshrl.u32 %v380, 7
    %v382 = vsub.s32 %v379, %v381
    %v383 = vrot.slane %v369, %v382
    %v384 = vcombine.high %v376, %v376
    %v385 = vcombine.high %v383, %v383
    %v386 = vcombine.low %v360, %v362
    %v387 = vcombine.high %v360, %v362
    %v389 = vunpack.c.l.s4 1983009808
    %v390 = vunpack.c.0.s8 %v389
    %v391 = vlaneseq
    %v392 = vshrl.u32 %v391, 7
    %v393 = vsub.s32 %v390, %v392
    %v394 = vrot.slane %v386, %v393
    %v396 = vunpack.c.l.s4 1983009808
    %v397 = vunpack.c.0.s8 %v396
    %v398 = vlaneseq
    %v399 = vshrl.u32 %v398, 7
    %v400 = vsub.s32 %v397, %v399
    %v401 = vrot.slane %v387, %v400
    %v402 = vcombine.high %v394, %v394
    %v403 = vcombine.high %v401, %v401
    %vm412 = vcmask 1041408
    %vm413 = vcmask 519170
    %vm414 = vmor %vm413, %vm412
    %415 = vst.msk [vmem:[#allocation2] sm:$0xf] %vm414, %v376
    %416 = vst.msk [vmem:[#allocation2 + $0x4] sm:$0xf] %vm414, %v384
    %417 = vst.msk [vmem:[#allocation2 + $0x8] sm:$0xf] %vm414, %v383
    %418 = vst.msk [vmem:[#allocation2 + $0xc] sm:$0xf] %vm414, %v385
    %419 = vst.msk [vmem:[#allocation2 + $0x10] sm:$0xf] %vm414, %v394
    %420 = vst.msk [vmem:[#allocation2 + $0x14] sm:$0xf] %vm414, %v402
    %421 = vst.msk [vmem:[#allocation2 + $0x18] sm:$0xf] %vm414, %v401
    %422 = vst.msk [vmem:[#allocation2 + $0x1c] sm:$0xf] %vm414, %v403
    %vm423 = vcmask 517120
    %424 = vst.msk [vmem:[#allocation3] sm:$0x3] %vm423, 0.0
    %v425 = vlaneseq
    %v426 = vand.u32 %v425, 127
    %v427 = vadd.s32 %v426, 128
    %vm428 = vcmp.lt.s32.totalorder %v426, 0
    %v429 = vsub.s32 0, %v426
    %v430 = vsel %vm428, %v429, %v426
    %v431 = vshrl.u32 %v430, 6
    %v432 = vand.u32 %v430, 63
    %v433 = vsub.s32 0, %v432
    %v434 = vsel %vm428, %v433, %v432
    %vm435 = vcmp.lt.s32.totalorder %v427, 0
    %v436 = vsub.s32 0, %v427
    %v437 = vsel %vm435, %v436, %v427
    %v438 = vshrl.u32 %v437, 6
    %v439 = vand.u32 %v437, 63
    %v440 = vsub.s32 0, %v439
    %v441 = vsel %vm435, %v440, %v439
    %vm442 = vcmp.ne.s32.totalorder %v434, 0
    %vm443 = vcmp.ne.s32.totalorder %v441, 0
    %vm444 = vcmp.lt.s32.totalorder %v434, 0
    %vm445 = vcmp.lt.s32.totalorder %v441, 0
    %vm446 = vmand %vm444, %vm442
    %vm447 = vmand %vm445, %vm443
    %v448 = vadd.s32 %v434, 64
    %v449 = vadd.s32 %v441, 64
    %v450 = vsel %vm446, %v448, %v434
    %v451 = vsel %vm447, %v449, %v441
    %vm452 = vcmp.lt.s32.totalorder %v450, 32
    %vm453 = vcmp.lt.s32.totalorder %v451, 32
    %v454 = vld [vmem:[%s4] sm:$0x1]
    %v456 = vlaneseq
    %v457 = vshrl.u32 %v456, 7
    %v458 = vsub.s32 0, %v457
    %v459 = vrot.slane %v454, %v458
    %v461 = vld [vmem:[#allocation3] sm:$0x3]
    %v462 = vld [vmem:[%s2] sm:$0xff]
    %v463 = vld [vmem:[%s2 + $0x8] sm:$0xff]
    %v464 = vld [vmem:[%s2 + $0x10] sm:$0xff]
    %v465 = vld [vmem:[%s2 + $0x18] sm:$0xff]
    %v466 = vld [vmem:[%s2 + $0x20] sm:$0xff]
    %v467 = vld [vmem:[%s2 + $0x28] sm:$0xff]
    %v468 = vld [vmem:[%s2 + $0x30] sm:$0xff]
    %v469 = vld [vmem:[%s2 + $0x38] sm:$0xff]
    %v470 = vld [vmem:[%s2 + $0x40] sm:$0xff]
    %v471 = vld [vmem:[%s2 + $0x48] sm:$0xff]
    %v472 = vld [vmem:[%s2 + $0x50] sm:$0xff]
    %v473 = vld [vmem:[%s2 + $0x58] sm:$0xff]
    %v474 = vld [vmem:[%s2 + $0x60] sm:$0xff]
    %v475 = vld [vmem:[%s2 + $0x68] sm:$0xff]
    %v476 = vld [vmem:[%s2 + $0x70] sm:$0xff]
    %v477 = vld [vmem:[%s2 + $0x78] sm:$0xff]
    %vm478 = vcmask 523264
    %v480 = vsel %vm478, %v461, 0
    %482 = vmatprep.subr.mxu0 %v463
    %483 = vmatpush1.msra.mxu0 %v462
    %484 = vmatprep.subr.mxu0 %v465
    %485 = vmatpush1.msra.mxu0 %v464
    %486 = vmatprep.subr.mxu0 %v467
    %487 = vmatpush1.msra.mxu0 %v466
    %488 = vmatprep.subr.mxu0 %v469
    %489 = vmatpush1.msra.mxu0 %v468
    %490 = vmatprep.subr.mxu0 %v471
    %491 = vmatpush1.msra.mxu0 %v470
    %492 = vmatprep.subr.mxu0 %v473
    %493 = vmatpush1.msra.mxu0 %v472
    %494 = vmatprep.subr.mxu0 %v475
    %495 = vmatpush1.msra.mxu0 %v474
    %496 = vmatprep.subr.mxu0 %v477
    %497 = vmatpush1.msra.mxu0 %v476
    %498 = vmatprep.subr.mxu0 0.0
    %499 = vmatpush1.msra.mxu0 0.0
    %500 = vmatprep.subr.mxu0 0.0
    %501 = vmatpush1.msra.mxu0 0.0
    %502 = vmatprep.subr.mxu0 0.0
    %503 = vmatpush1.msra.mxu0 0.0
    %504 = vmatprep.subr.mxu0 0.0
    %505 = vmatpush1.msra.mxu0 0.0
    %506 = vmatprep.subr.mxu0 0.0
    %507 = vmatpush1.msra.mxu0 0.0
    %508 = vmatprep.subr.mxu0 0.0
    %509 = vmatpush1.msra.mxu0 0.0
    %510 = vmatprep.subr.mxu0 0.0
    %511 = vmatpush1.msra.mxu0 0.0
    %512 = vmatprep.subr.mxu0 0.0
    %513 = vmatpush1.msra.mxu0 0.0
    %514 = vmatprep.subr.mxu0 0.0
    %515 = vmatpush1.msra.mxu0 0.0
    %516 = vmatprep.subr.mxu0 0.0
    %517 = vmatpush1.msra.mxu0 0.0
    %518 = vmatprep.subr.mxu0 0.0
    %519 = vmatpush1.msra.mxu0 0.0
    %520 = vmatprep.subr.mxu0 0.0
    %521 = vmatpush1.msra.mxu0 0.0
    %522 = vmatprep.subr.mxu0 0.0
    %523 = vmatpush1.msra.mxu0 0.0
    %524 = vmatprep.subr.mxu0 0.0
    %525 = vmatpush1.msra.mxu0 0.0
    %526 = vmatprep.subr.mxu0 0.0
    %527 = vmatpush1.msra.mxu0 0.0
    %528 = vmatprep.subr.mxu0 0.0
    %529 = vmatpush1.msra.mxu0 0.0
    %530 = vmatprep.subr.mxu0 0.0
    %531 = vmatpush1.msra.mxu0 0.0
    %532 = vmatprep.subr.mxu0 0.0
    %533 = vmatpush1.msra.mxu0 0.0
    %534 = vmatprep.subr.mxu0 0.0
    %535 = vmatpush1.msra.mxu0 0.0
    %536 = vmatprep.subr.mxu0 0.0
    %537 = vmatpush1.msra.mxu0 0.0
    %538 = vmatprep.subr.mxu0 0.0
    %539 = vmatpush1.msra.mxu0 0.0
    %540 = vmatprep.subr.mxu0 0.0
    %541 = vmatpush1.msra.mxu0 0.0
    %542 = vmatprep.subr.mxu0 0.0
    %543 = vmatpush1.msra.mxu0 0.0
    %544 = vmatprep.subr.mxu0 0.0
    %545 = vmatpush1.msra.mxu0 0.0
    %546 = vmatprep.mubr.f32.mxu0 0.0
    %547 = vmatmul.mubr.f32.gmra.mrb[0].mxu0 %v480
    %v548 = vpop.f32.mrb[0].mxu0
    %v549 = vadd.f32 0.0, %v548
    %v550 = vpop.f32.mrb[0].mxu0
    %v551 = vadd.f32 0.0, %v550
    %552 = vdwg.mxu0
    %v553 = vld [vmem:[#allocation2] sm:$0xf]
    %s554 = scalar_lea.vmem [#allocation2], 28
    %v555 = vld [vmem:[%s554] sm:$0xf]
    %v558 = vunpack.c.l.s4 1983009808
    %v559 = vunpack.c.0.s8 %v558
    %v560 = vlaneseq
    %v561 = vshrl.u32 %v560, 7
    %v562 = vsub.s32 %v559, %v561
    %v563 = vrot.slane %v553, %v562
    %v564 = vcombine.high %v563, %v563
    %v569 = vunpack.c.l.s4 1983009808
    %v570 = vunpack.c.0.s8 %v569
    %v571 = vlaneseq
    %v572 = vshrl.u32 %v571, 7
    %v573 = vsub.s32 %v570, %v572
    %v574 = vrot.slane %v555, %v573
    %v575 = vcombine.high %v574, %v574
    %v578 = vsel %vm452, %v563, %v574
    %v579 = vsel %vm453, %v564, %v575
    %v580 = vadd.f32 %v578, %v549
    %v581 = vxor.u32 %v580, 2147483648
    %v582 = vmul.f32 %v581, 1.442695
    %v583 = vpow.pop %v582
    %v584 = vadd.f32 %v583, 1.0
    %v585 = vrcp.pop %v584
    %v586 = vmul.f32 1.0, %v585
    %v587 = vadd.f32 %v551, %v459
    %v588 = vmul.f32 %v586, %v587
    %v589 = vadd.f32 %v579, %v588
    %v590 = vtanh.pop %v589
    %v591 = vsub.f32 1.0, %v586
    %593 = vrot.lane.b32.xlu0 %v590, 64
    %v594 = vpop.permute.xlu0 %593
    %v596 = vmul.f32 %v591, %v594
    %597 = vrot.lane.b32.xlu0 %v461, 64
    %v598 = vpop.permute.xlu0 %597
    %v600 = vmul.f32 %v586, %v598
    %v601 = vadd.f32 %v596, %v600
    %603 = vrot.lane.b32.xlu0 %v601, 64
    %v604 = vpop.permute.xlu0 %603
    %606 = vst.msk [vmem:[#allocation3] sm:$0x3] %vm423, %v604
    %vm607 = vcmask 254976
    %608 = vst.msk [vmem:[#allocation4] sm:$0x3] %vm607, %v604
    %s609 = scalar_lea.vmem [#allocation4], 14
    %vm610 = vcmask 517376
    %611 = vst.msk [vmem:[%s609] sm:$0x3] %vm610, %v604
    %v612 = vld [vmem:[#allocation3] sm:$0x3]
    %v613 = vld [vmem:[%s2] sm:$0xff]
    %v614 = vld [vmem:[%s2 + $0x8] sm:$0xff]
    %v615 = vld [vmem:[%s2 + $0x10] sm:$0xff]
    %v616 = vld [vmem:[%s2 + $0x18] sm:$0xff]
    %v617 = vld [vmem:[%s2 + $0x20] sm:$0xff]
    %v618 = vld [vmem:[%s2 + $0x28] sm:$0xff]
    %v619 = vld [vmem:[%s2 + $0x30] sm:$0xff]
    %v620 = vld [vmem:[%s2 + $0x38] sm:$0xff]
    %v621 = vld [vmem:[%s2 + $0x40] sm:$0xff]
    %v622 = vld [vmem:[%s2 + $0x48] sm:$0xff]
    %v623 = vld [vmem:[%s2 + $0x50] sm:$0xff]
    %v624 = vld [vmem:[%s2 + $0x58] sm:$0xff]
    %v625 = vld [vmem:[%s2 + $0x60] sm:$0xff]
    %v626 = vld [vmem:[%s2 + $0x68] sm:$0xff]
    %v627 = vld [vmem:[%s2 + $0x70] sm:$0xff]
    %v628 = vld [vmem:[%s2 + $0x78] sm:$0xff]
    %v630 = vsel %vm478, %v612, 0
    %632 = vmatprep.subr.mxu0 %v614
    %633 = vmatpush1.msra.mxu0 %v613
    %634 = vmatprep.subr.mxu0 %v616
    %635 = vmatpush1.msra.mxu0 %v615
    %636 = vmatprep.subr.mxu0 %v618
    %637 = vmatpush1.msra.mxu0 %v617
    %638 = vmatprep.subr.mxu0 %v620
    %639 = vmatpush1.msra.mxu0 %v619
    %640 = vmatprep.subr.mxu0 %v622
    %641 = vmatpush1.msra.mxu0 %v621
    %642 = vmatprep.subr.mxu0 %v624
    %643 = vmatpush1.msra.mxu0 %v623
    %644 = vmatprep.subr.mxu0 %v626
    %645 = vmatpush1.msra.mxu0 %v625
    %646 = vmatprep.subr.mxu0 %v628
    %647 = vmatpush1.msra.mxu0 %v627
    %648 = vmatprep.subr.mxu0 0.0
    %649 = vmatpush1.msra.mxu0 0.0
    %650 = vmatprep.subr.mxu0 0.0
    %651 = vmatpush1.msra.mxu0 0.0
    %652 = vmatprep.subr.mxu0 0.0
    %653 = vmatpush1.msra.mxu0 0.0
    %654 = vmatprep.subr.mxu0 0.0
    %655 = vmatpush1.msra.mxu0 0.0
    %656 = vmatprep.subr.mxu0 0.0
    %657 = vmatpush1.msra.mxu0 0.0
    %658 = vmatprep.subr.mxu0 0.0
    %659 = vmatpush1.msra.mxu0 0.0
    %660 = vmatprep.subr.mxu0 0.0
    %661 = vmatpush1.msra.mxu0 0.0
    %662 = vmatprep.subr.mxu0 0.0
    %663 = vmatpush1.msra.mxu0 0.0
    %664 = vmatprep.subr.mxu0 0.0
    %665 = vmatpush1.msra.mxu0 0.0
    %666 = vmatprep.subr.mxu0 0.0
    %667 = vmatpush1.msra.mxu0 0.0
    %668 = vmatprep.subr.mxu0 0.0
    %669 = vmatpush1.msra.mxu0 0.0
    %670 = vmatprep.subr.mxu0 0.0
    %671 = vmatpush1.msra.mxu0 0.0
    %672 = vmatprep.subr.mxu0 0.0
    %673 = vmatpush1.msra.mxu0 0.0
    %674 = vmatprep.subr.mxu0 0.0
    %675 = vmatpush1.msra.mxu0 0.0
    %676 = vmatprep.subr.mxu0 0.0
    %677 = vmatpush1.msra.mxu0 0.0
    %678 = vmatprep.subr.mxu0 0.0
    %679 = vmatpush1.msra.mxu0 0.0
    %680 = vmatprep.subr.mxu0 0.0
    %681 = vmatpush1.msra.mxu0 0.0
    %682 = vmatprep.subr.mxu0 0.0
    %683 = vmatpush1.msra.mxu0 0.0
    %684 = vmatprep.subr.mxu0 0.0
    %685 = vmatpush1.msra.mxu0 0.0
    %686 = vmatprep.subr.mxu0 0.0
    %687 = vmatpush1.msra.mxu0 0.0
    %688 = vmatprep.subr.mxu0 0.0
    %689 = vmatpush1.msra.mxu0 0.0
    %690 = vmatprep.subr.mxu0 0.0
    %691 = vmatpush1.msra.mxu0 0.0
    %692 = vmatprep.subr.mxu0 0.0
    %693 = vmatpush1.msra.mxu0 0.0
    %694 = vmatprep.subr.mxu0 0.0
    %695 = vmatpush1.msra.mxu0 0.0
    %696 = vmatprep.mubr.f32.mxu0 0.0
    %697 = vmatmul.mubr.f32.gmra.mrb[0].mxu0 %v630
    %v698 = vpop.f32.mrb[0].mxu0
    %v699 = vadd.f32 0.0, %v698
    %v700 = vpop.f32.mrb[0].mxu0
    %v701 = vadd.f32 0.0, %v700
    %702 = vdwg.mxu0
    %s703 = scalar_lea.vmem [#allocation2], 4
    %v704 = vld [vmem:[%s703] sm:$0xf]
    %s705 = scalar_lea.vmem [#allocation2], 24
    %v706 = vld [vmem:[%s705] sm:$0xf]
    %v709 = vunpack.c.l.s4 1983009808
    %v710 = vunpack.c.0.s8 %v709
    %v711 = vlaneseq
    %v712 = vshrl.u32 %v711, 7
    %v713 = vsub.s32 %v710, %v712
    %v714 = vrot.slane %v704, %v713
    %v715 = vcombine.high %v714, %v714
    %v720 = vunpack.c.l.s4 1983009808
    %v721 = vunpack.c.0.s8 %v720
    %v722 = vlaneseq
    %v723 = vshrl.u32 %v722, 7
    %v724 = vsub.s32 %v721, %v723
    %v725 = vrot.slane %v706, %v724
    %v726 = vcombine.high %v725, %v725
    %v729 = vsel %vm452, %v714, %v725
    %v730 = vsel %vm453, %v715, %v726
    %v731 = vadd.f32 %v729, %v699
    %v732 = vxor.u32 %v731, 2147483648
    %v733 = vmul.f32 %v732, 1.442695
    %v734 = vpow.pop %v733
    %v735 = vadd.f32 %v734, 1.0
    %v736 = vrcp.pop %v735
    %v737 = vmul.f32 1.0, %v736
    %v738 = vadd.f32 %v701, %v459
    %v739 = vmul.f32 %v737, %v738
    %v740 = vadd.f32 %v730, %v739
    %v741 = vtanh.pop %v740
    %v742 = vsub.f32 1.0, %v737
    %744 = vrot.lane.b32.xlu0 %v741, 64
    %v745 = vpop.permute.xlu0 %744
    %v747 = vmul.f32 %v742, %v745
    %748 = vrot.lane.b32.xlu0 %v612, 64
    %v749 = vpop.permute.xlu0 %748
    %v751 = vmul.f32 %v737, %v749
    %v752 = vadd.f32 %v747, %v751
    %754 = vrot.lane.b32.xlu0 %v752, 64
    %v755 = vpop.permute.xlu0 %754
    %757 = vst.msk [vmem:[#allocation3] sm:$0x3] %vm423, %v755
    %s758 = scalar_lea.vmem [#allocation4], 2
    %759 = vst.msk [vmem:[%s758] sm:$0x3] %vm607, %v755
    %s760 = scalar_lea.vmem [#allocation4], 12
    %761 = vst.msk [vmem:[%s760] sm:$0x3] %vm610, %v755
    %v762 = vld [vmem:[#allocation3] sm:$0x3]
    %v763 = vld [vmem:[%s2] sm:$0xff]
    %v764 = vld [vmem:[%s2 + $0x8] sm:$0xff]
    %v765 = vld [vmem:[%s2 + $0x10] sm:$0xff]
    %v766 = vld [vmem:[%s2 + $0x18] sm:$0xff]
    %v767 = vld [vmem:[%s2 + $0x20] sm:$0xff]
    %v768 = vld [vmem:[%s2 + $0x28] sm:$0xff]
    %v769 = vld [vmem:[%s2 + $0x30] sm:$0xff]
    %v770 = vld [vmem:[%s2 + $0x38] sm:$0xff]
    %v771 = vld [vmem:[%s2 + $0x40] sm:$0xff]
    %v772 = vld [vmem:[%s2 + $0x48] sm:$0xff]
    %v773 = vld [vmem:[%s2 + $0x50] sm:$0xff]
    %v774 = vld [vmem:[%s2 + $0x58] sm:$0xff]
    %v775 = vld [vmem:[%s2 + $0x60] sm:$0xff]
    %v776 = vld [vmem:[%s2 + $0x68] sm:$0xff]
    %v777 = vld [vmem:[%s2 + $0x70] sm:$0xff]
    %v778 = vld [vmem:[%s2 + $0x78] sm:$0xff]
    %v780 = vsel %vm478, %v762, 0
    %782 = vmatprep.subr.mxu0 %v764
    %783 = vmatpush1.msra.mxu0 %v763
    %784 = vmatprep.subr.mxu0 %v766
    %785 = vmatpush1.msra.mxu0 %v765
    %786 = vmatprep.subr.mxu0 %v768
    %787 = vmatpush1.msra.mxu0 %v767
    %788 = vmatprep.subr.mxu0 %v770
    %789 = vmatpush1.msra.mxu0 %v769
    %790 = vmatprep.subr.mxu0 %v772
    %791 = vmatpush1.msra.mxu0 %v771
    %792 = vmatprep.subr.mxu0 %v774
    %793 = vmatpush1.msra.mxu0 %v773
    %794 = vmatprep.subr.mxu0 %v776
    %795 = vmatpush1.msra.mxu0 %v775
    %796 = vmatprep.subr.mxu0 %v778
    %797 = vmatpush1.msra.mxu0 %v777
    %798 = vmatprep.subr.mxu0 0.0
    %799 = vmatpush1.msra.mxu0 0.0
    %800 = vmatprep.subr.mxu0 0.0
    %801 = vmatpush1.msra.mxu0 0.0
    %802 = vmatprep.subr.mxu0 0.0
    %803 = vmatpush1.msra.mxu0 0.0
    %804 = vmatprep.subr.mxu0 0.0
    %805 = vmatpush1.msra.mxu0 0.0
    %806 = vmatprep.subr.mxu0 0.0
    %807 = vmatpush1.msra.mxu0 0.0
    %808 = vmatprep.subr.mxu0 0.0
    %809 = vmatpush1.msra.mxu0 0.0
    %810 = vmatprep.subr.mxu0 0.0
    %811 = vmatpush1.msra.mxu0 0.0
    %812 = vmatprep.subr.mxu0 0.0
    %813 = vmatpush1.msra.mxu0 0.0
    %814 = vmatprep.subr.mxu0 0.0
    %815 = vmatpush1.msra.mxu0 0.0
    %816 = vmatprep.subr.mxu0 0.0
    %817 = vmatpush1.msra.mxu0 0.0
    %818 = vmatprep.subr.mxu0 0.0
    %819 = vmatpush1.msra.mxu0 0.0
    %820 = vmatprep.subr.mxu0 0.0
    %821 = vmatpush1.msra.mxu0 0.0
    %822 = vmatprep.subr.mxu0 0.0
    %823 = vmatpush1.msra.mxu0 0.0
    %824 = vmatprep.subr.mxu0 0.0
    %825 = vmatpush1.msra.mxu0 0.0
    %826 = vmatprep.subr.mxu0 0.0
    %827 = vmatpush1.msra.mxu0 0.0
    %828 = vmatprep.subr.mxu0 0.0
    %829 = vmatpush1.msra.mxu0 0.0
    %830 = vmatprep.subr.mxu0 0.0
    %831 = vmatpush1.msra.mxu0 0.0
    %832 = vmatprep.subr.mxu0 0.0
    %833 = vmatpush1.msra.mxu0 0.0
    %834 = vmatprep.subr.mxu0 0.0
    %835 = vmatpush1.msra.mxu0 0.0
    %836 = vmatprep.subr.mxu0 0.0
    %837 = vmatpush1.msra.mxu0 0.0
    %838 = vmatprep.subr.mxu0 0.0
    %839 = vmatpush1.msra.mxu0 0.0
    %840 = vmatprep.subr.mxu0 0.0
    %841 = vmatpush1.msra.mxu0 0.0
    %842 = vmatprep.subr.mxu0 0.0
    %843 = vmatpush1.msra.mxu0 0.0
    %844 = vmatprep.subr.mxu0 0.0
    %845 = vmatpush1.msra.mxu0 0.0
    %846 = vmatprep.mubr.f32.mxu0 0.0
    %847 = vmatmul.mubr.f32.gmra.mrb[0].mxu0 %v780
    %v848 = vpop.f32.mrb[0].mxu0
    %v849 = vadd.f32 0.0, %v848
    %v850 = vpop.f32.mrb[0].mxu0
    %v851 = vadd.f32 0.0, %v850
    %852 = vdwg.mxu0
    %s853 = scalar_lea.vmem [#allocation2], 8
    %v854 = vld [vmem:[%s853] sm:$0xf]
    %s855 = scalar_lea.vmem [#allocation2], 20
    %v856 = vld [vmem:[%s855] sm:$0xf]
    %v859 = vunpack.c.l.s4 1983009808
    %v860 = vunpack.c.0.s8 %v859
    %v861 = vlaneseq
    %v862 = vshrl.u32 %v861, 7
    %v863 = vsub.s32 %v860, %v862
    %v864 = vrot.slane %v854, %v863
    %v865 = vcombine.high %v864, %v864
    %v870 = vunpack.c.l.s4 1983009808
    %v871 = vunpack.c.0.s8 %v870
    %v872 = vlaneseq
    %v873 = vshrl.u32 %v872, 7
    %v874 = vsub.s32 %v871, %v873
    %v875 = vrot.slane %v856, %v874
    %v876 = vcombine.high %v875, %v875
    %v879 = vsel %vm452, %v864, %v875
    %v880 = vsel %vm453, %v865, %v876
    %v881 = vadd.f32 %v879, %v849
    %v882 = vxor.u32 %v881, 2147483648
    %v883 = vmul.f32 %v882, 1.442695
    %v884 = vpow.pop %v883
    %v885 = vadd.f32 %v884, 1.0
    %v886 = vrcp.pop %v885
    %v887 = vmul.f32 1.0, %v886
    %v888 = vadd.f32 %v851, %v459
    %v889 = vmul.f32 %v887, %v888
    %v890 = vadd.f32 %v880, %v889
    %v891 = vtanh.pop %v890
    %v892 = vsub.f32 1.0, %v887
    %894 = vrot.lane.b32.xlu0 %v891, 64
    %v895 = vpop.permute.xlu0 %894
    %v897 = vmul.f32 %v892, %v895
    %898 = vrot.lane.b32.xlu0 %v762, 64
    %v899 = vpop.permute.xlu0 %898
    %v901 = vmul.f32 %v887, %v899
    %v902 = vadd.f32 %v897, %v901
    %904 = vrot.lane.b32.xlu0 %v902, 64
    %v905 = vpop.permute.xlu0 %904
    %907 = vst.msk [vmem:[#allocation3] sm:$0x3] %vm423, %v905
    %s908 = scalar_lea.vmem [#allocation4], 4
    %909 = vst.msk [vmem:[%s908] sm:$0x3] %vm607, %v905
    %s910 = scalar_lea.vmem [#allocation4], 10
    %911 = vst.msk [vmem:[%s910] sm:$0x3] %vm610, %v905
    %v912 = vld [vmem:[#allocation3] sm:$0x3]
    %v913 = vld [vmem:[%s2] sm:$0xff]
    %v914 = vld [vmem:[%s2 + $0x8] sm:$0xff]
    %v915 = vld [vmem:[%s2 + $0x10] sm:$0xff]
    %v916 = vld [vmem:[%s2 + $0x18] sm:$0xff]
    %v917 = vld [vmem:[%s2 + $0x20] sm:$0xff]
    %v918 = vld [vmem:[%s2 + $0x28] sm:$0xff]
    %v919 = vld [vmem:[%s2 + $0x30] sm:$0xff]
    %v920 = vld [vmem:[%s2 + $0x38] sm:$0xff]
    %v921 = vld [vmem:[%s2 + $0x40] sm:$0xff]
    %v922 = vld [vmem:[%s2 + $0x48] sm:$0xff]
    %v923 = vld [vmem:[%s2 + $0x50] sm:$0xff]
    %v924 = vld [vmem:[%s2 + $0x58] sm:$0xff]
    %v925 = vld [vmem:[%s2 + $0x60] sm:$0xff]
    %v926 = vld [vmem:[%s2 + $0x68] sm:$0xff]
    %v927 = vld [vmem:[%s2 + $0x70] sm:$0xff]
    %v928 = vld [vmem:[%s2 + $0x78] sm:$0xff]
    %v930 = vsel %vm478, %v912, 0
    %932 = vmatprep.subr.mxu0 %v914
    %933 = vmatpush1.msra.mxu0 %v913
    %934 = vmatprep.subr.mxu0 %v916
    %935 = vmatpush1.msra.mxu0 %v915
    %936 = vmatprep.subr.mxu0 %v918
    %937 = vmatpush1.msra.mxu0 %v917
    %938 = vmatprep.subr.mxu0 %v920
    %939 = vmatpush1.msra.mxu0 %v919
    %940 = vmatprep.subr.mxu0 %v922
    %941 = vmatpush1.msra.mxu0 %v921
    %942 = vmatprep.subr.mxu0 %v924
    %943 = vmatpush1.msra.mxu0 %v923
    %944 = vmatprep.subr.mxu0 %v926
    %945 = vmatpush1.msra.mxu0 %v925
    %946 = vmatprep.subr.mxu0 %v928
    %947 = vmatpush1.msra.mxu0 %v927
    %948 = vmatprep.subr.mxu0 0.0
    %949 = vmatpush1.msra.mxu0 0.0
    %950 = vmatprep.subr.mxu0 0.0
    %951 = vmatpush1.msra.mxu0 0.0
    %952 = vmatprep.subr.mxu0 0.0
    %953 = vmatpush1.msra.mxu0 0.0
    %954 = vmatprep.subr.mxu0 0.0
    %955 = vmatpush1.msra.mxu0 0.0
    %956 = vmatprep.subr.mxu0 0.0
    %957 = vmatpush1.msra.mxu0 0.0
    %958 = vmatprep.subr.mxu0 0.0
    %959 = vmatpush1.msra.mxu0 0.0
    %960 = vmatprep.subr.mxu0 0.0
    %961 = vmatpush1.msra.mxu0 0.0
    %962 = vmatprep.subr.mxu0 0.0
    %963 = vmatpush1.msra.mxu0 0.0
    %964 = vmatprep.subr.mxu0 0.0
    %965 = vmatpush1.msra.mxu0 0.0
    %966 = vmatprep.subr.mxu0 0.0
    %967 = vmatpush1.msra.mxu0 0.0
    %968 = vmatprep.subr.mxu0 0.0
    %969 = vmatpush1.msra.mxu0 0.0
    %970 = vmatprep.subr.mxu0 0.0
    %971 = vmatpush1.msra.mxu0 0.0
    %972 = vmatprep.subr.mxu0 0.0
    %973 = vmatpush1.msra.mxu0 0.0
    %974 = vmatprep.subr.mxu0 0.0
    %975 = vmatpush1.msra.mxu0 0.0
    %976 = vmatprep.subr.mxu0 0.0
    %977 = vmatpush1.msra.mxu0 0.0
    %978 = vmatprep.subr.mxu0 0.0
    %979 = vmatpush1.msra.mxu0 0.0
    %980 = vmatprep.subr.mxu0 0.0
    %981 = vmatpush1.msra.mxu0 0.0
    %982 = vmatprep.subr.mxu0 0.0
    %983 = vmatpush1.msra.mxu0 0.0
    %984 = vmatprep.subr.mxu0 0.0
    %985 = vmatpush1.msra.mxu0 0.0
    %986 = vmatprep.subr.mxu0 0.0
    %987 = vmatpush1.msra.mxu0 0.0
    %988 = vmatprep.subr.mxu0 0.0
    %989 = vmatpush1.msra.mxu0 0.0
    %990 = vmatprep.subr.mxu0 0.0
    %991 = vmatpush1.msra.mxu0 0.0
    %992 = vmatprep.subr.mxu0 0.0
    %993 = vmatpush1.msra.mxu0 0.0
    %994 = vmatprep.subr.mxu0 0.0
    %995 = vmatpush1.msra.mxu0 0.0
    %996 = vmatprep.mubr.f32.mxu0 0.0
    %997 = vmatmul.mubr.f32.gmra.mrb[0].mxu0 %v930
    %v998 = vpop.f32.mrb[0].mxu0
    %v999 = vadd.f32 0.0, %v998
    %v1000 = vpop.f32.mrb[0].mxu0
    %v1001 = vadd.f32 0.0, %v1000
    %1002 = vdwg.mxu0
    %s1003 = scalar_lea.vmem [#allocation2], 12
    %v1004 = vld [vmem:[%s1003] sm:$0xf]
    %s1005 = scalar_lea.vmem [#allocation2], 16
    %v1006 = vld [vmem:[%s1005] sm:$0xf]
    %v1009 = vunpack.c.l.s4 1983009808
    %v1010 = vunpack.c.0.s8 %v1009
    %v1011 = vlaneseq
    %v1012 = vshrl.u32 %v1011, 7
    %v1013 = vsub.s32 %v1010, %v1012
    %v1014 = vrot.slane %v1004, %v1013
    %v1015 = vcombine.high %v1014, %v1014
    %v1020 = vunpack.c.l.s4 1983009808
    %v1021 = vunpack.c.0.s8 %v1020
    %v1022 = vlaneseq
    %v1023 = vshrl.u32 %v1022, 7
    %v1024 = vsub.s32 %v1021, %v1023
    %v1025 = vrot.slane %v1006, %v1024
    %v1026 = vcombine.high %v1025, %v1025
    %v1029 = vsel %vm452, %v1014, %v1025
    %v1030 = vsel %vm453, %v1015, %v1026
    %v1031 = vadd.f32 %v1029, %v999
    %v1032 = vxor.u32 %v1031, 2147483648
    %v1033 = vmul.f32 %v1032, 1.442695
    %v1034 = vpow.pop %v1033
    %v1035 = vadd.f32 %v1034, 1.0
    %v1036 = vrcp.pop %v1035
    %v1037 = vmul.f32 1.0, %v1036
    %v1038 = vadd.f32 %v1001, %v459
    %v1039 = vmul.f32 %v1037, %v1038
    %v1040 = vadd.f32 %v1030, %v1039
    %v1041 = vtanh.pop %v1040
    %v1042 = vsub.f32 1.0, %v1037
    %1044 = vrot.lane.b32.xlu0 %v1041, 64
    %v1045 = vpop.permute.xlu0 %1044
    %v1047 = vmul.f32 %v1042, %v1045
    %1048 = vrot.lane.b32.xlu0 %v912, 64
    %v1049 = vpop.permute.xlu0 %1048
    %v1051 = vmul.f32 %v1037, %v1049
    %v1052 = vadd.f32 %v1047, %v1051
    %1054 = vrot.lane.b32.xlu0 %v1052, 64
    %v1055 = vpop.permute.xlu0 %1054
    %1057 = vst.msk [vmem:[#allocation3] sm:$0x3] %vm423, %v1055
    %s1058 = scalar_lea.vmem [#allocation4], 6
    %1059 = vst.msk [vmem:[%s1058] sm:$0x3] %vm607, %v1055
    %s1060 = scalar_lea.vmem [#allocation4], 8
    %1061 = vst.msk [vmem:[%s1060] sm:$0x3] %vm610, %v1055
    %v1062 = vld [vmem:[#allocation3] sm:$0x3]
    %v1063 = vld [vmem:[%s2] sm:$0xff]
    %v1064 = vld [vmem:[%s2 + $0x8] sm:$0xff]
    %v1065 = vld [vmem:[%s2 + $0x10] sm:$0xff]
    %v1066 = vld [vmem:[%s2 + $0x18] sm:$0xff]
    %v1067 = vld [vmem:[%s2 + $0x20] sm:$0xff]
    %v1068 = vld [vmem:[%s2 + $0x28] sm:$0xff]
    %v1069 = vld [vmem:[%s2 + $0x30] sm:$0xff]
    %v1070 = vld [vmem:[%s2 + $0x38] sm:$0xff]
    %v1071 = vld [vmem:[%s2 + $0x40] sm:$0xff]
    %v1072 = vld [vmem:[%s2 + $0x48] sm:$0xff]
    %v1073 = vld [vmem:[%s2 + $0x50] sm:$0xff]
    %v1074 = vld [vmem:[%s2 + $0x58] sm:$0xff]
    %v1075 = vld [vmem:[%s2 + $0x60] sm:$0xff]
    %v1076 = vld [vmem:[%s2 + $0x68] sm:$0xff]
    %v1077 = vld [vmem:[%s2 + $0x70] sm:$0xff]
    %v1078 = vld [vmem:[%s2 + $0x78] sm:$0xff]
    %v1080 = vsel %vm478, %v1062, 0
    %1082 = vmatprep.subr.mxu0 %v1064
    %1083 = vmatpush1.msra.mxu0 %v1063
    %1084 = vmatprep.subr.mxu0 %v1066
    %1085 = vmatpush1.msra.mxu0 %v1065
    %1086 = vmatprep.subr.mxu0 %v1068
    %1087 = vmatpush1.msra.mxu0 %v1067
    %1088 = vmatprep.subr.mxu0 %v1070
    %1089 = vmatpush1.msra.mxu0 %v1069
    %1090 = vmatprep.subr.mxu0 %v1072
    %1091 = vmatpush1.msra.mxu0 %v1071
    %1092 = vmatprep.subr.mxu0 %v1074
    %1093 = vmatpush1.msra.mxu0 %v1073
    %1094 = vmatprep.subr.mxu0 %v1076
    %1095 = vmatpush1.msra.mxu0 %v1075
    %1096 = vmatprep.subr.mxu0 %v1078
    %1097 = vmatpush1.msra.mxu0 %v1077
    %1098 = vmatprep.subr.mxu0 0.0
    %1099 = vmatpush1.msra.mxu0 0.0
    %1100 = vmatprep.subr.mxu0 0.0
    %1101 = vmatpush1.msra.mxu0 0.0
    %1102 = vmatprep.subr.mxu0 0.0
    %1103 = vmatpush1.msra.mxu0 0.0
    %1104 = vmatprep.subr.mxu0 0.0
    %1105 = vmatpush1.msra.mxu0 0.0
    %1106 = vmatprep.subr.mxu0 0.0
    %1107 = vmatpush1.msra.mxu0 0.0
    %1108 = vmatprep.subr.mxu0 0.0
    %1109 = vmatpush1.msra.mxu0 0.0
    %1110 = vmatprep.subr.mxu0 0.0
    %1111 = vmatpush1.msra.mxu0 0.0
    %1112 = vmatprep.subr.mxu0 0.0
    %1113 = vmatpush1.msra.mxu0 0.0
    %1114 = vmatprep.subr.mxu0 0.0
    %1115 = vmatpush1.msra.mxu0 0.0
    %1116 = vmatprep.subr.mxu0 0.0
    %1117 = vmatpush1.msra.mxu0 0.0
    %1118 = vmatprep.subr.mxu0 0.0
    %1119 = vmatpush1.msra.mxu0 0.0
    %1120 = vmatprep.subr.mxu0 0.0
    %1121 = vmatpush1.msra.mxu0 0.0
    %1122 = vmatprep.subr.mxu0 0.0
    %1123 = vmatpush1.msra.mxu0 0.0
    %1124 = vmatprep.subr.mxu0 0.0
    %1125 = vmatpush1.msra.mxu0 0.0
    %1126 = vmatprep.subr.mxu0 0.0
    %1127 = vmatpush1.msra.mxu0 0.0
    %1128 = vmatprep.subr.mxu0 0.0
    %1129 = vmatpush1.msra.mxu0 0.0
    %1130 = vmatprep.subr.mxu0 0.0
    %1131 = vmatpush1.msra.mxu0 0.0
    %1132 = vmatprep.subr.mxu0 0.0
    %1133 = vmatpush1.msra.mxu0 0.0
    %1134 = vmatprep.subr.mxu0 0.0
    %1135 = vmatpush1.msra.mxu0 0.0
    %1136 = vmatprep.subr.mxu0 0.0
    %1137 = vmatpush1.msra.mxu0 0.0
    %1138 = vmatprep.subr.mxu0 0.0
    %1139 = vmatpush1.msra.mxu0 0.0
    %1140 = vmatprep.subr.mxu0 0.0
    %1141 = vmatpush1.msra.mxu0 0.0
    %1142 = vmatprep.subr.mxu0 0.0
    %1143 = vmatpush1.msra.mxu0 0.0
    %1144 = vmatprep.subr.mxu0 0.0
    %1145 = vmatpush1.msra.mxu0 0.0
    %1146 = vmatprep.mubr.f32.mxu0 0.0
    %1147 = vmatmul.mubr.f32.gmra.mrb[0].mxu0 %v1080
    %v1148 = vpop.f32.mrb[0].mxu0
    %v1149 = vadd.f32 0.0, %v1148
    %v1150 = vpop.f32.mrb[0].mxu0
    %v1151 = vadd.f32 0.0, %v1150
    %1152 = vdwg.mxu0
    %v1153 = vld [vmem:[%s1005] sm:$0xf]
    %v1154 = vld [vmem:[%s1003] sm:$0xf]
    %v1157 = vunpack.c.l.s4 1983009808
    %v1158 = vunpack.c.0.s8 %v1157
    %v1159 = vlaneseq
    %v1160 = vshrl.u32 %v1159, 7
    %v1161 = vsub.s32 %v1158, %v1160
    %v1162 = vrot.slane %v1153, %v1161
    %v1163 = vcombine.high %v1162, %v1162
    %v1168 = vunpack.c.l.s4 1983009808
    %v1169 = vunpack.c.0.s8 %v1168
    %v1170 = vlaneseq
    %v1171 = vshrl.u32 %v1170, 7
    %v1172 = vsub.s32 %v1169, %v1171
    %v1173 = vrot.slane %v1154, %v1172
    %v1174 = vcombine.high %v1173, %v1173
    %v1177 = vsel %vm452, %v1162, %v1173
    %v1178 = vsel %vm453, %v1163, %v1174
    %v1179 = vadd.f32 %v1177, %v1149
    %v1180 = vxor.u32 %v1179, 2147483648
    %v1181 = vmul.f32 %v1180, 1.442695
    %v1182 = vpow.pop %v1181
    %v1183 = vadd.f32 %v1182, 1.0
    %v1184 = vrcp.pop %v1183
    %v1185 = vmul.f32 1.0, %v1184
    %v1186 = vadd.f32 %v1151, %v459
    %v1187 = vmul.f32 %v1185, %v1186
    %v1188 = vadd.f32 %v1178, %v1187
    %v1189 = vtanh.pop %v1188
    %v1190 = vsub.f32 1.0, %v1185
    %1192 = vrot.lane.b32.xlu0 %v1189, 64
    %v1193 = vpop.permute.xlu0 %1192
    %v1195 = vmul.f32 %v1190, %v1193
    %1196 = vrot.lane.b32.xlu0 %v1062, 64
    %v1197 = vpop.permute.xlu0 %1196
    %v1199 = vmul.f32 %v1185, %v1197
    %v1200 = vadd.f32 %v1195, %v1199
    %1202 = vrot.lane.b32.xlu0 %v1200, 64
    %v1203 = vpop.permute.xlu0 %1202
    %1205 = vst.msk [vmem:[#allocation3] sm:$0x3] %vm423, %v1203
    %1206 = vst.msk [vmem:[%s1060] sm:$0x3] %vm607, %v1203
    %1207 = vst.msk [vmem:[%s1058] sm:$0x3] %vm610, %v1203
    %v1208 = vld [vmem:[#allocation3] sm:$0x3]
    %v1209 = vld [vmem:[%s2] sm:$0xff]
    %v1210 = vld [vmem:[%s2 + $0x8] sm:$0xff]
    %v1211 = vld [vmem:[%s2 + $0x10] sm:$0xff]
    %v1212 = vld [vmem:[%s2 + $0x18] sm:$0xff]
    %v1213 = vld [vmem:[%s2 + $0x20] sm:$0xff]
    %v1214 = vld [vmem:[%s2 + $0x28] sm:$0xff]
    %v1215 = vld [vmem:[%s2 + $0x30] sm:$0xff]
    %v1216 = vld [vmem:[%s2 + $0x38] sm:$0xff]
    %v1217 = vld [vmem:[%s2 + $0x40] sm:$0xff]
    %v1218 = vld [vmem:[%s2 + $0x48] sm:$0xff]
    %v1219 = vld [vmem:[%s2 + $0x50] sm:$0xff]
    %v1220 = vld [vmem:[%s2 + $0x58] sm:$0xff]
    %v1221 = vld [vmem:[%s2 + $0x60] sm:$0xff]
    %v1222 = vld [vmem:[%s2 + $0x68] sm:$0xff]
    %v1223 = vld [vmem:[%s2 + $0x70] sm:$0xff]
    %v1224 = vld [vmem:[%s2 + $0x78] sm:$0xff]
    %v1226 = vsel %vm478, %v1208, 0
    %1228 = vmatprep.subr.mxu0 %v1210
    %1229 = vmatpush1.msra.mxu0 %v1209
    %1230 = vmatprep.subr.mxu0 %v1212
    %1231 = vmatpush1.msra.mxu0 %v1211
    %1232 = vmatprep.subr.mxu0 %v1214
    %1233 = vmatpush1.msra.mxu0 %v1213
    %1234 = vmatprep.subr.mxu0 %v1216
    %1235 = vmatpush1.msra.mxu0 %v1215
    %1236 = vmatprep.subr.mxu0 %v1218
    %1237 = vmatpush1.msra.mxu0 %v1217
    %1238 = vmatprep.subr.mxu0 %v1220
    %1239 = vmatpush1.msra.mxu0 %v1219
    %1240 = vmatprep.subr.mxu0 %v1222
    %1241 = vmatpush1.msra.mxu0 %v1221
    %1242 = vmatprep.subr.mxu0 %v1224
    %1243 = vmatpush1.msra.mxu0 %v1223
    %1244 = vmatprep.subr.mxu0 0.0
    %1245 = vmatpush1.msra.mxu0 0.0
    %1246 = vmatprep.subr.mxu0 0.0
    %1247 = vmatpush1.msra.mxu0 0.0
    %1248 = vmatprep.subr.mxu0 0.0
    %1249 = vmatpush1.msra.mxu0 0.0
    %1250 = vmatprep.subr.mxu0 0.0
    %1251 = vmatpush1.msra.mxu0 0.0
    %1252 = vmatprep.subr.mxu0 0.0
    %1253 = vmatpush1.msra.mxu0 0.0
    %1254 = vmatprep.subr.mxu0 0.0
    %1255 = vmatpush1.msra.mxu0 0.0
    %1256 = vmatprep.subr.mxu0 0.0
    %1257 = vmatpush1.msra.mxu0 0.0
    %1258 = vmatprep.subr.mxu0 0.0
    %1259 = vmatpush1.msra.mxu0 0.0
    %1260 = vmatprep.subr.mxu0 0.0
    %1261 = vmatpush1.msra.mxu0 0.0
    %1262 = vmatprep.subr.mxu0 0.0
    %1263 = vmatpush1.msra.mxu0 0.0
    %1264 = vmatprep.subr.mxu0 0.0
    %1265 = vmatpush1.msra.mxu0 0.0
    %1266 = vmatprep.subr.mxu0 0.0
    %1267 = vmatpush1.msra.mxu0 0.0
    %1268 = vmatprep.subr.mxu0 0.0
    %1269 = vmatpush1.msra.mxu0 0.0
    %1270 = vmatprep.subr.mxu0 0.0
    %1271 = vmatpush1.msra.mxu0 0.0
    %1272 = vmatprep.subr.mxu0 0.0
    %1273 = vmatpush1.msra.mxu0 0.0
    %1274 = vmatprep.subr.mxu0 0.0
    %1275 = vmatpush1.msra.mxu0 0.0
    %1276 = vmatprep.subr.mxu0 0.0
    %1277 = vmatpush1.msra.mxu0 0.0
    %1278 = vmatprep.subr.mxu0 0.0
    %1279 = vmatpush1.msra.mxu0 0.0
    %1280 = vmatprep.subr.mxu0 0.0
    %1281 = vmatpush1.msra.mxu0 0.0
    %1282 = vmatprep.subr.mxu0 0.0
    %1283 = vmatpush1.msra.mxu0 0.0
    %1284 = vmatprep.subr.mxu0 0.0
    %1285 = vmatpush1.msra.mxu0 0.0
    %1286 = vmatprep.subr.mxu0 0.0
    %1287 = vmatpush1.msra.mxu0 0.0
    %1288 = vmatprep.subr.mxu0 0.0
    %1289 = vmatpush1.msra.mxu0 0.0
    %1290 = vmatprep.subr.mxu0 0.0
    %1291 = vmatpush1.msra.mxu0 0.0
    %1292 = vmatprep.mubr.f32.mxu0 0.0
    %1293 = vmatmul.mubr.f32.gmra.mrb[0].mxu0 %v1226
    %v1294 = vpop.f32.mrb[0].mxu0
    %v1295 = vadd.f32 0.0, %v1294
    %v1296 = vpop.f32.mrb[0].mxu0
    %v1297 = vadd.f32 0.0, %v1296
    %1298 = vdwg.mxu0
    %v1299 = vld [vmem:[%s855] sm:$0xf]
    %v1300 = vld [vmem:[%s853] sm:$0xf]
    %v1303 = vunpack.c.l.s4 1983009808
    %v1304 = vunpack.c.0.s8 %v1303
    %v1305 = vlaneseq
    %v1306 = vshrl.u32 %v1305, 7
    %v1307 = vsub.s32 %v1304, %v1306
    %v1308 = vrot.slane %v1299, %v1307
    %v1309 = vcombine.high %v1308, %v1308
    %v1314 = vunpack.c.l.s4 1983009808
    %v1315 = vunpack.c.0.s8 %v1314
    %v1316 = vlaneseq
    %v1317 = vshrl.u32 %v1316, 7
    %v1318 = vsub.s32 %v1315, %v1317
    %v1319 = vrot.slane %v1300, %v1318
    %v1320 = vcombine.high %v1319, %v1319
    %v1323 = vsel %vm452, %v1308, %v1319
    %v1324 = vsel %vm453, %v1309, %v1320
    %v1325 = vadd.f32 %v1323, %v1295
    %v1326 = vxor.u32 %v1325, 2147483648
    %v1327 = vmul.f32 %v1326, 1.442695
    %v1328 = vpow.pop %v1327
    %v1329 = vadd.f32 %v1328, 1.0
    %v1330 = vrcp.pop %v1329
    %v1331 = vmul.f32 1.0, %v1330
    %v1332 = vadd.f32 %v1297, %v459
    %v1333 = vmul.f32 %v1331, %v1332
    %v1334 = vadd.f32 %v1324, %v1333
    %v1335 = vtanh.pop %v1334
    %v1336 = vsub.f32 1.0, %v1331
    %1338 = vrot.lane.b32.xlu0 %v1335, 64
    %v1339 = vpop.permute.xlu0 %1338
    %v1341 = vmul.f32 %v1336, %v1339
    %1342 = vrot.lane.b32.xlu0 %v1208, 64
    %v1343 = vpop.permute.xlu0 %1342
    %v1345 = vmul.f32 %v1331, %v1343
    %v1346 = vadd.f32 %v1341, %v1345
    %1348 = vrot.lane.b32.xlu0 %v1346, 64
    %v1349 = vpop.permute.xlu0 %1348
    %1351 = vst.msk [vmem:[#allocation3] sm:$0x3] %vm423, %v1349
    %1352 = vst.msk [vmem:[%s910] sm:$0x3] %vm607, %v1349
    %1353 = vst.msk [vmem:[%s908] sm:$0x3] %vm610, %v1349
    %v1354 = vld [vmem:[#allocation3] sm:$0x3]
    %v1355 = vld [vmem:[%s2] sm:$0xff]
    %v1356 = vld [vmem:[%s2 + $0x8] sm:$0xff]
    %v1357 = vld [vmem:[%s2 + $0x10] sm:$0xff]
    %v1358 = vld [vmem:[%s2 + $0x18] sm:$0xff]
    %v1359 = vld [vmem:[%s2 + $0x20] sm:$0xff]
    %v1360 = vld [vmem:[%s2 + $0x28] sm:$0xff]
    %v1361 = vld [vmem:[%s2 + $0x30] sm:$0xff]
    %v1362 = vld [vmem:[%s2 + $0x38] sm:$0xff]
    %v1363 = vld [vmem:[%s2 + $0x40] sm:$0xff]
    %v1364 = vld [vmem:[%s2 + $0x48] sm:$0xff]
    %v1365 = vld [vmem:[%s2 + $0x50] sm:$0xff]
    %v1366 = vld [vmem:[%s2 + $0x58] sm:$0xff]
    %v1367 = vld [vmem:[%s2 + $0x60] sm:$0xff]
    %v1368 = vld [vmem:[%s2 + $0x68] sm:$0xff]
    %v1369 = vld [vmem:[%s2 + $0x70] sm:$0xff]
    %v1370 = vld [vmem:[%s2 + $0x78] sm:$0xff]
    %v1372 = vsel %vm478, %v1354, 0
    %1374 = vmatprep.subr.mxu0 %v1356
    %1375 = vmatpush1.msra.mxu0 %v1355
    %1376 = vmatprep.subr.mxu0 %v1358
    %1377 = vmatpush1.msra.mxu0 %v1357
    %1378 = vmatprep.subr.mxu0 %v1360
    %1379 = vmatpush1.msra.mxu0 %v1359
    %1380 = vmatprep.subr.mxu0 %v1362
    %1381 = vmatpush1.msra.mxu0 %v1361
    %1382 = vmatprep.subr.mxu0 %v1364
    %1383 = vmatpush1.msra.mxu0 %v1363
    %1384 = vmatprep.subr.mxu0 %v1366
    %1385 = vmatpush1.msra.mxu0 %v1365
    %1386 = vmatprep.subr.mxu0 %v1368
    %1387 = vmatpush1.msra.mxu0 %v1367
    %1388 = vmatprep.subr.mxu0 %v1370
    %1389 = vmatpush1.msra.mxu0 %v1369
    %1390 = vmatprep.subr.mxu0 0.0
    %1391 = vmatpush1.msra.mxu0 0.0
    %1392 = vmatprep.subr.mxu0 0.0
    %1393 = vmatpush1.msra.mxu0 0.0
    %1394 = vmatprep.subr.mxu0 0.0
    %1395 = vmatpush1.msra.mxu0 0.0
    %1396 = vmatprep.subr.mxu0 0.0
    %1397 = vmatpush1.msra.mxu0 0.0
    %1398 = vmatprep.subr.mxu0 0.0
    %1399 = vmatpush1.msra.mxu0 0.0
    %1400 = vmatprep.subr.mxu0 0.0
    %1401 = vmatpush1.msra.mxu0 0.0
    %1402 = vmatprep.subr.mxu0 0.0
    %1403 = vmatpush1.msra.mxu0 0.0
    %1404 = vmatprep.subr.mxu0 0.0
    %1405 = vmatpush1.msra.mxu0 0.0
    %1406 = vmatprep.subr.mxu0 0.0
    %1407 = vmatpush1.msra.mxu0 0.0
    %1408 = vmatprep.subr.mxu0 0.0
    %1409 = vmatpush1.msra.mxu0 0.0
    %1410 = vmatprep.subr.mxu0 0.0
    %1411 = vmatpush1.msra.mxu0 0.0
    %1412 = vmatprep.subr.mxu0 0.0
    %1413 = vmatpush1.msra.mxu0 0.0
    %1414 = vmatprep.subr.mxu0 0.0
    %1415 = vmatpush1.msra.mxu0 0.0
    %1416 = vmatprep.subr.mxu0 0.0
    %1417 = vmatpush1.msra.mxu0 0.0
    %1418 = vmatprep.subr.mxu0 0.0
    %1419 = vmatpush1.msra.mxu0 0.0
    %1420 = vmatprep.subr.mxu0 0.0
    %1421 = vmatpush1.msra.mxu0 0.0
    %1422 = vmatprep.subr.mxu0 0.0
    %1423 = vmatpush1.msra.mxu0 0.0
    %1424 = vmatprep.subr.mxu0 0.0
    %1425 = vmatpush1.msra.mxu0 0.0
    %1426 = vmatprep.subr.mxu0 0.0
    %1427 = vmatpush1.msra.mxu0 0.0
    %1428 = vmatprep.subr.mxu0 0.0
    %1429 = vmatpush1.msra.mxu0 0.0
    %1430 = vmatprep.subr.mxu0 0.0
    %1431 = vmatpush1.msra.mxu0 0.0
    %1432 = vmatprep.subr.mxu0 0.0
    %1433 = vmatpush1.msra.mxu0 0.0
    %1434 = vmatprep.subr.mxu0 0.0
    %1435 = vmatpush1.msra.mxu0 0.0
    %1436 = vmatprep.subr.mxu0 0.0
    %1437 = vmatpush1.msra.mxu0 0.0
    %1438 = vmatprep.mubr.f32.mxu0 0.0
    %1439 = vmatmul.mubr.f32.gmra.mrb[0].mxu0 %v1372
    %v1440 = vpop.f32.mrb[0].mxu0
    %v1441 = vadd.f32 0.0, %v1440
    %v1442 = vpop.f32.mrb[0].mxu0
    %v1443 = vadd.f32 0.0, %v1442
    %1444 = vdwg.mxu0
    %v1445 = vld [vmem:[%s705] sm:$0xf]
    %v1446 = vld [vmem:[%s703] sm:$0xf]
    %v1449 = vunpack.c.l.s4 1983009808
    %v1450 = vunpack.c.0.s8 %v1449
    %v1451 = vlaneseq
    %v1452 = vshrl.u32 %v1451, 7
    %v1453 = vsub.s32 %v1450, %v1452
    %v1454 = vrot.slane %v1445, %v1453
    %v1455 = vcombine.high %v1454, %v1454
    %v1460 = vunpack.c.l.s4 1983009808
    %v1461 = vunpack.c.0.s8 %v1460
    %v1462 = vlaneseq
    %v1463 = vshrl.u32 %v1462, 7
    %v1464 = vsub.s32 %v1461, %v1463
    %v1465 = vrot.slane %v1446, %v1464
    %v1466 = vcombine.high %v1465, %v1465
    %v1469 = vsel %vm452, %v1454, %v1465
    %v1470 = vsel %vm453, %v1455, %v1466
    %v1471 = vadd.f32 %v1469, %v1441
    %v1472 = vxor.u32 %v1471, 2147483648
    %v1473 = vmul.f32 %v1472, 1.442695
    %v1474 = vpow.pop %v1473
    %v1475 = vadd.f32 %v1474, 1.0
    %v1476 = vrcp.pop %v1475
    %v1477 = vmul.f32 1.0, %v1476
    %v1478 = vadd.f32 %v1443, %v459
    %v1479 = vmul.f32 %v1477, %v1478
    %v1480 = vadd.f32 %v1470, %v1479
    %v1481 = vtanh.pop %v1480
    %v1482 = vsub.f32 1.0, %v1477
    %1484 = vrot.lane.b32.xlu0 %v1481, 64
    %v1485 = vpop.permute.xlu0 %1484
    %v1487 = vmul.f32 %v1482, %v1485
    %1488 = vrot.lane.b32.xlu0 %v1354, 64
    %v1489 = vpop.permute.xlu0 %1488
    %v1491 = vmul.f32 %v1477, %v1489
    %v1492 = vadd.f32 %v1487, %v1491
    %1494 = vrot.lane.b32.xlu0 %v1492, 64
    %v1495 = vpop.permute.xlu0 %1494
    %1497 = vst.msk [vmem:[#allocation3] sm:$0x3] %vm423, %v1495
    %1498 = vst.msk [vmem:[%s760] sm:$0x3] %vm607, %v1495
    %1499 = vst.msk [vmem:[%s758] sm:$0x3] %vm610, %v1495
    %v1500 = vld [vmem:[#allocation3] sm:$0x3]
    %v1501 = vld [vmem:[%s2] sm:$0xff]
    %v1502 = vld [vmem:[%s2 + $0x8] sm:$0xff]
    %v1503 = vld [vmem:[%s2 + $0x10] sm:$0xff]
    %v1504 = vld [vmem:[%s2 + $0x18] sm:$0xff]
    %v1505 = vld [vmem:[%s2 + $0x20] sm:$0xff]
    %v1506 = vld [vmem:[%s2 + $0x28] sm:$0xff]
    %v1507 = vld [vmem:[%s2 + $0x30] sm:$0xff]
    %v1508 = vld [vmem:[%s2 + $0x38] sm:$0xff]
    %v1509 = vld [vmem:[%s2 + $0x40] sm:$0xff]
    %v1510 = vld [vmem:[%s2 + $0x48] sm:$0xff]
    %v1511 = vld [vmem:[%s2 + $0x50] sm:$0xff]
    %v1512 = vld [vmem:[%s2 + $0x58] sm:$0xff]
    %v1513 = vld [vmem:[%s2 + $0x60] sm:$0xff]
    %v1514 = vld [vmem:[%s2 + $0x68] sm:$0xff]
    %v1515 = vld [vmem:[%s2 + $0x70] sm:$0xff]
    %v1516 = vld [vmem:[%s2 + $0x78] sm:$0xff]
    %v1518 = vsel %vm478, %v1500, 0
    %1520 = vmatprep.subr.mxu0 %v1502
    %1521 = vmatpush1.msra.mxu0 %v1501
    %1522 = vmatprep.subr.mxu0 %v1504
    %1523 = vmatpush1.msra.mxu0 %v1503
    %1524 = vmatprep.subr.mxu0 %v1506
    %1525 = vmatpush1.msra.mxu0 %v1505
    %1526 = vmatprep.subr.mxu0 %v1508
    %1527 = vmatpush1.msra.mxu0 %v1507
    %1528 = vmatprep.subr.mxu0 %v1510
    %1529 = vmatpush1.msra.mxu0 %v1509
    %1530 = vmatprep.subr.mxu0 %v1512
    %1531 = vmatpush1.msra.mxu0 %v1511
    %1532 = vmatprep.subr.mxu0 %v1514
    %1533 = vmatpush1.msra.mxu0 %v1513
    %1534 = vmatprep.subr.mxu0 %v1516
    %1535 = vmatpush1.msra.mxu0 %v1515
    %1536 = vmatprep.subr.mxu0 0.0
    %1537 = vmatpush1.msra.mxu0 0.0
    %1538 = vmatprep.subr.mxu0 0.0
    %1539 = vmatpush1.msra.mxu0 0.0
    %1540 = vmatprep.subr.mxu0 0.0
    %1541 = vmatpush1.msra.mxu0 0.0
    %1542 = vmatprep.subr.mxu0 0.0
    %1543 = vmatpush1.msra.mxu0 0.0
    %1544 = vmatprep.subr.mxu0 0.0
    %1545 = vmatpush1.msra.mxu0 0.0
    %1546 = vmatprep.subr.mxu0 0.0
    %1547 = vmatpush1.msra.mxu0 0.0
    %1548 = vmatprep.subr.mxu0 0.0
    %1549 = vmatpush1.msra.mxu0 0.0
    %1550 = vmatprep.subr.mxu0 0.0
    %1551 = vmatpush1.msra.mxu0 0.0
    %1552 = vmatprep.subr.mxu0 0.0
    %1553 = vmatpush1.msra.mxu0 0.0
    %1554 = vmatprep.subr.mxu0 0.0
    %1555 = vmatpush1.msra.mxu0 0.0
    %1556 = vmatprep.subr.mxu0 0.0
    %1557 = vmatpush1.msra.mxu0 0.0
    %1558 = vmatprep.subr.mxu0 0.0
    %1559 = vmatpush1.msra.mxu0 0.0
    %1560 = vmatprep.subr.mxu0 0.0
    %1561 = vmatpush1.msra.mxu0 0.0
    %1562 = vmatprep.subr.mxu0 0.0
    %1563 = vmatpush1.msra.mxu0 0.0
    %1564 = vmatprep.subr.mxu0 0.0
    %1565 = vmatpush1.msra.mxu0 0.0
    %1566 = vmatprep.subr.mxu0 0.0
    %1567 = vmatpush1.msra.mxu0 0.0
    %1568 = vmatprep.subr.mxu0 0.0
    %1569 = vmatpush1.msra.mxu0 0.0
    %1570 = vmatprep.subr.mxu0 0.0
    %1571 = vmatpush1.msra.mxu0 0.0
    %1572 = vmatprep.subr.mxu0 0.0
    %1573 = vmatpush1.msra.mxu0 0.0
    %1574 = vmatprep.subr.mxu0 0.0
    %1575 = vmatpush1.msra.mxu0 0.0
    %1576 = vmatprep.subr.mxu0 0.0
    %1577 = vmatpush1.msra.mxu0 0.0
    %1578 = vmatprep.subr.mxu0 0.0
    %1579 = vmatpush1.msra.mxu0 0.0
    %1580 = vmatprep.subr.mxu0 0.0
    %1581 = vmatpush1.msra.mxu0 0.0
    %1582 = vmatprep.subr.mxu0 0.0
    %1583 = vmatpush1.msra.mxu0 0.0
    %1584 = vmatprep.mubr.f32.mxu0 0.0
    %1585 = vmatmul.mubr.f32.gmra.mrb[0].mxu0 %v1518
    %v1586 = vpop.f32.mrb[0].mxu0
    %v1587 = vadd.f32 0.0, %v1586
    %v1588 = vpop.f32.mrb[0].mxu0
    %v1589 = vadd.f32 0.0, %v1588
    %1590 = vdwg.mxu0
    %v1591 = vld [vmem:[%s554] sm:$0xf]
    %v1592 = vld [vmem:[#allocation2] sm:$0xf]
    %v1595 = vunpack.c.l.s4 1983009808
    %v1596 = vunpack.c.0.s8 %v1595
    %v1597 = vlaneseq
    %v1598 = vshrl.u32 %v1597, 7
    %v1599 = vsub.s32 %v1596, %v1598
    %v1600 = vrot.slane %v1591, %v1599
    %v1601 = vcombine.high %v1600, %v1600
    %v1606 = vunpack.c.l.s4 1983009808
    %v1607 = vunpack.c.0.s8 %v1606
    %v1608 = vlaneseq
    %v1609 = vshrl.u32 %v1608, 7
    %v1610 = vsub.s32 %v1607, %v1609
    %v1611 = vrot.slane %v1592, %v1610
    %v1612 = vcombine.high %v1611, %v1611
    %v1615 = vsel %vm452, %v1600, %v1611
    %v1616 = vsel %vm453, %v1601, %v1612
    %v1617 = vadd.f32 %v1615, %v1587
    %v1618 = vxor.u32 %v1617, 2147483648
    %v1619 = vmul.f32 %v1618, 1.442695
    %v1620 = vpow.pop %v1619
    %v1621 = vadd.f32 %v1620, 1.0
    %v1622 = vrcp.pop %v1621
    %v1623 = vmul.f32 1.0, %v1622
    %v1624 = vadd.f32 %v1589, %v459
    %v1625 = vmul.f32 %v1623, %v1624
    %v1626 = vadd.f32 %v1616, %v1625
    %v1627 = vtanh.pop %v1626
    %v1628 = vsub.f32 1.0, %v1623
    %1630 = vrot.lane.b32.xlu0 %v1627, 64
    %v1631 = vpop.permute.xlu0 %1630
    %v1633 = vmul.f32 %v1628, %v1631
    %1634 = vrot.lane.b32.xlu0 %v1500, 64
    %v1635 = vpop.permute.xlu0 %1634
    %v1637 = vmul.f32 %v1623, %v1635
    %v1638 = vadd.f32 %v1633, %v1637
    %1640 = vrot.lane.b32.xlu0 %v1638, 64
    %v1641 = vpop.permute.xlu0 %1640
    %1643 = vst.msk [vmem:[#allocation3] sm:$0x3] %vm423, %v1641
    %1644 = vst.msk [vmem:[%s609] sm:$0x3] %vm607, %v1641
    %1645 = vst.msk [vmem:[#allocation4] sm:$0x3] %vm610, %v1641
    %v1646 = vld [vmem:[#allocation4] sm:$0x3]
    %v1647 = vld [vmem:[#allocation4 + $0x2] sm:$0x3]
    %v1648 = vld [vmem:[#allocation4 + $0x4] sm:$0x3]
    %v1649 = vld [vmem:[#allocation4 + $0x6] sm:$0x3]
    %v1650 = vld [vmem:[#allocation4 + $0x8] sm:$0x3]
    %v1651 = vld [vmem:[#allocation4 + $0xa] sm:$0x3]
    %v1652 = vld [vmem:[#allocation4 + $0xc] sm:$0x3]
    %v1653 = vld [vmem:[#allocation4 + $0xe] sm:$0x3]
    %v1654 = vmax.f32 %v1646, 0.0
    %v1655 = vmax.f32 %v1647, 0.0
    %v1656 = vmax.f32 %v1648, 0.0
    %v1657 = vmax.f32 %v1649, 0.0
    %v1658 = vmax.f32 %v1650, 0.0
    %v1659 = vmax.f32 %v1651, 0.0
    %v1660 = vmax.f32 %v1652, 0.0
    %v1661 = vmax.f32 %v1653, 0.0
    %v1662 = vld [vmem:[%s5] sm:$0xff]
    %v1663 = vld [vmem:[%s5 + $0x8] sm:$0xff]
    %v1664 = vld [vmem:[%s5 + $0x10] sm:$0xff]
    %v1665 = vld [vmem:[%s5 + $0x18] sm:$0xff]
    %v1666 = vld [vmem:[%s5 + $0x20] sm:$0xff]
    %v1667 = vld [vmem:[%s5 + $0x28] sm:$0xff]
    %v1668 = vld [vmem:[%s5 + $0x30] sm:$0xff]
    %v1669 = vld [vmem:[%s5 + $0x38] sm:$0xff]
    %v1670 = vld [vmem:[%s6] sm:$0x1]
    %v1672 = vlaneseq
    %v1673 = vshrl.u32 %v1672, 7
    %v1674 = vsub.s32 0, %v1673
    %v1675 = vrot.slane %v1670, %v1674
    %v1685 = vcombine.low %v1654, %v1655
    %v1686 = vcombine.low %v1656, %v1657
    %v1688 = vunpack.c.l.s4 1983009808
    %v1689 = vunpack.c.0.s8 %v1688
    %v1690 = vlaneseq
    %v1691 = vshrl.u32 %v1690, 7
    %v1692 = vsub.s32 %v1689, %v1691
    %v1693 = vrot.slane %v1685, %v1692
    %v1695 = vunpack.c.l.s4 1983009808
    %v1696 = vunpack.c.0.s8 %v1695
    %v1697 = vlaneseq
    %v1698 = vshrl.u32 %v1697, 7
    %v1699 = vsub.s32 %v1696, %v1698
    %v1700 = vrot.slane %v1686, %v1699
    %v1701 = vcombine.low %v1693, %v1700
    %v1702 = vcombine.low %v1658, %v1659
    %v1703 = vcombine.low %v1660, %v1661
    %v1705 = vunpack.c.l.s4 1983009808
    %v1706 = vunpack.c.0.s8 %v1705
    %v1707 = vlaneseq
    %v1708 = vshrl.u32 %v1707, 7
    %v1709 = vsub.s32 %v1706, %v1708
    %v1710 = vrot.slane %v1702, %v1709
    %v1712 = vunpack.c.l.s4 1983009808
    %v1713 = vunpack.c.0.s8 %v1712
    %v1714 = vlaneseq
    %v1715 = vshrl.u32 %v1714, 7
    %v1716 = vsub.s32 %v1713, %v1715
    %v1717 = vrot.slane %v1703, %v1716
    %v1718 = vcombine.low %v1710, %v1717
    %v1719 = vsel %vm478, %v1701, 0
    %v1721 = vsel %vm478, %v1718, 0
    %1723 = vmatprep.subr.mxu0 0.0
    %1724 = vmatpush1.msra.mxu0 %v1662
    %1725 = vmatprep.subr.mxu0 0.0
    %1726 = vmatpush1.msra.mxu0 %v1663
    %1727 = vmatprep.subr.mxu0 0.0
    %1728 = vmatpush1.msra.mxu0 %v1664
    %1729 = vmatprep.subr.mxu0 0.0
    %1730 = vmatpush1.msra.mxu0 %v1665
    %1731 = vmatprep.subr.mxu0 0.0
    %1732 = vmatpush1.msra.mxu0 %v1666
    %1733 = vmatprep.subr.mxu0 0.0
    %1734 = vmatpush1.msra.mxu0 %v1667
    %1735 = vmatprep.subr.mxu0 0.0
    %1736 = vmatpush1.msra.mxu0 %v1668
    %1737 = vmatprep.subr.mxu0 0.0
    %1738 = vmatpush1.msra.mxu0 %v1669
    %1739 = vmatprep.subr.mxu0 0.0
    %1740 = vmatpush1.msra.mxu0 0.0
    %1741 = vmatprep.subr.mxu0 0.0
    %1742 = vmatpush1.msra.mxu0 0.0
    %1743 = vmatprep.subr.mxu0 0.0
    %1744 = vmatpush1.msra.mxu0 0.0
    %1745 = vmatprep.subr.mxu0 0.0
    %1746 = vmatpush1.msra.mxu0 0.0
    %1747 = vmatprep.subr.mxu0 0.0
    %1748 = vmatpush1.msra.mxu0 0.0
    %1749 = vmatprep.subr.mxu0 0.0
    %1750 = vmatpush1.msra.mxu0 0.0
    %1751 = vmatprep.subr.mxu0 0.0
    %1752 = vmatpush1.msra.mxu0 0.0
    %1753 = vmatprep.subr.mxu0 0.0
    %1754 = vmatpush1.msra.mxu0 0.0
    %1755 = vmatprep.subr.mxu0 0.0
    %1756 = vmatpush1.msra.mxu0 0.0
    %1757 = vmatprep.subr.mxu0 0.0
    %1758 = vmatpush1.msra.mxu0 0.0
    %1759 = vmatprep.subr.mxu0 0.0
    %1760 = vmatpush1.msra.mxu0 0.0
    %1761 = vmatprep.subr.mxu0 0.0
    %1762 = vmatpush1.msra.mxu0 0.0
    %1763 = vmatprep.subr.mxu0 0.0
    %1764 = vmatpush1.msra.mxu0 0.0
    %1765 = vmatprep.subr.mxu0 0.0
    %1766 = vmatpush1.msra.mxu0 0.0
    %1767 = vmatprep.subr.mxu0 0.0
    %1768 = vmatpush1.msra.mxu0 0.0
    %1769 = vmatprep.subr.mxu0 0.0
    %1770 = vmatpush1.msra.mxu0 0.0
    %1771 = vmatprep.subr.mxu0 0.0
    %1772 = vmatpush1.msra.mxu0 0.0
    %1773 = vmatprep.subr.mxu0 0.0
    %1774 = vmatpush1.msra.mxu0 0.0
    %1775 = vmatprep.subr.mxu0 0.0
    %1776 = vmatpush1.msra.mxu0 0.0
    %1777 = vmatprep.subr.mxu0 0.0
    %1778 = vmatpush1.msra.mxu0 0.0
    %1779 = vmatprep.subr.mxu0 0.0
    %1780 = vmatpush1.msra.mxu0 0.0
    %1781 = vmatprep.subr.mxu0 0.0
    %1782 = vmatpush1.msra.mxu0 0.0
    %1783 = vmatprep.subr.mxu0 0.0
    %1784 = vmatpush1.msra.mxu0 0.0
    %1785 = vmatprep.subr.mxu0 0.0
    %1786 = vmatpush1.msra.mxu0 0.0
    %1787 = vmatprep.mubr.f32.mxu0 0.0
    %1788 = vmatmul.mubr.f32.gmra.mrb[0].mxu0 %v1719
    %v1789 = vpop.f32.mrb[0].mxu0
    %v1790 = vadd.f32 %v1675, %v1789
    %v1791 = vpop.f32.mrb[0].mxu0
    %1792 = vmatprep.mubr.f32.mxu0 0.0
    %1793 = vmatmul.mubr.f32.gmra.mrb[0].mxu0 %v1721
    %v1794 = vpop.f32.mrb[0].mxu0
    %v1795 = vadd.f32 %v1675, %v1794
    %v1796 = vpop.f32.mrb[0].mxu0
    %1797 = vdwg.mxu0
    %v1798 = vmax.f32 %v1790, 0.0
    %v1799 = vmax.f32 %v1795, 0.0
    %v1802 = vcombine.high %v1798, %v1798
    %v1804 = vunpack.c.l.s4 1983009808
    %v1805 = vunpack.c.0.s8 %v1804
    %v1806 = vlaneseq
    %v1807 = vshrl.u32 %v1806, 7
    %v1808 = vsub.s32 %v1805, %v1807
    %v1809 = vrot.slane %v1798, %v1808
    %v1811 = vunpack.c.l.s4 1983009808
    %v1812 = vunpack.c.0.s8 %v1811
    %v1813 = vlaneseq
    %v1814 = vshrl.u32 %v1813, 7
    %v1815 = vsub.s32 %v1812, %v1814
    %v1816 = vrot.slane %v1802, %v1815
    %v1817 = vcombine.high %v1809, %v1809
    %v1818 = vcombine.high %v1816, %v1816
    %v1819 = vcombine.high %v1799, %v1799
    %v1821 = vunpack.c.l.s4 1983009808
    %v1822 = vunpack.c.0.s8 %v1821
    %v1823 = vlaneseq
    %v1824 = vshrl.u32 %v1823, 7
    %v1825 = vsub.s32 %v1822, %v1824
    %v1826 = vrot.slane %v1799, %v1825
    %v1828 = vunpack.c.l.s4 1983009808
    %v1829 = vunpack.c.0.s8 %v1828
    %v1830 = vlaneseq
    %v1831 = vshrl.u32 %v1830, 7
    %v1832 = vsub.s32 %v1829, %v1831
    %v1833 = vrot.slane %v1819, %v1832
    %v1834 = vcombine.high %v1826, %v1826
    %v1835 = vcombine.high %v1833, %v1833
    %v1844 = vsel %vm423, %v1809, 0.0
    %v1845 = vsel %vm423, %v1817, 0.0
    %v1846 = vadd.f32 %v1844, %v1845
    %v1847 = vsel %vm423, %v1816, 0.0
    %v1848 = vadd.f32 %v1846, %v1847
    %v1849 = vsel %vm423, %v1818, 0.0
    %v1850 = vadd.f32 %v1848, %v1849
    %v1851 = vsel %vm423, %v1826, 0.0
    %v1852 = vadd.f32 %v1850, %v1851
    %v1853 = vsel %vm423, %v1834, 0.0
    %v1854 = vadd.f32 %v1852, %v1853
    %v1855 = vsel %vm423, %v1833, 0.0
    %v1856 = vadd.f32 %v1854, %v1855
    %v1857 = vsel %vm423, %v1835, 0.0
    %v1858 = vadd.f32 %v1856, %v1857
    %v1859 = vld [vmem:[%s7] sm:$0xff]
    %v1860 = vld [vmem:[%s7 + $0x8] sm:$0xff]
    %v1861 = vld [vmem:[%s7 + $0x10] sm:$0xff]
    %v1862 = vld [vmem:[%s7 + $0x18] sm:$0xff]
    %v1863 = vld [vmem:[%s7 + $0x20] sm:$0xff]
    %v1864 = vld [vmem:[%s7 + $0x28] sm:$0xff]
    %v1865 = vld [vmem:[%s7 + $0x30] sm:$0xff]
    %v1866 = vld [vmem:[%s7 + $0x38] sm:$0xff]
    %v1867 = vld [vmem:[%s8] sm:$0x1]
    %v1868 = vmul.f32 %v1867, 8.0
    %v1870 = vlaneseq
    %v1871 = vshrl.u32 %v1870, 7
    %v1872 = vsub.s32 0, %v1871
    %v1873 = vrot.slane %v1868, %v1872
    %v1876 = vsel %vm478, %v1858, 0
    %1878 = vmatprep.subr.mxu0 0.0
    %1879 = vmatpush1.msra.mxu0 %v1859
    %1880 = vmatprep.subr.mxu0 0.0
    %1881 = vmatpush1.msra.mxu0 %v1860
    %1882 = vmatprep.subr.mxu0 0.0
    %1883 = vmatpush1.msra.mxu0 %v1861
    %1884 = vmatprep.subr.mxu0 0.0
    %1885 = vmatpush1.msra.mxu0 %v1862
    %1886 = vmatprep.subr.mxu0 0.0
    %1887 = vmatpush1.msra.mxu0 %v1863
    %1888 = vmatprep.subr.mxu0 0.0
    %1889 = vmatpush1.msra.mxu0 %v1864
    %1890 = vmatprep.subr.mxu0 0.0
    %1891 = vmatpush1.msra.mxu0 %v1865
    %1892 = vmatprep.subr.mxu0 0.0
    %1893 = vmatpush1.msra.mxu0 %v1866
    %1894 = vmatprep.subr.mxu0 0.0
    %1895 = vmatpush1.msra.mxu0 0.0
    %1896 = vmatprep.subr.mxu0 0.0
    %1897 = vmatpush1.msra.mxu0 0.0
    %1898 = vmatprep.subr.mxu0 0.0
    %1899 = vmatpush1.msra.mxu0 0.0
    %1900 = vmatprep.subr.mxu0 0.0
    %1901 = vmatpush1.msra.mxu0 0.0
    %1902 = vmatprep.subr.mxu0 0.0
    %1903 = vmatpush1.msra.mxu0 0.0
    %1904 = vmatprep.subr.mxu0 0.0
    %1905 = vmatpush1.msra.mxu0 0.0
    %1906 = vmatprep.subr.mxu0 0.0
    %1907 = vmatpush1.msra.mxu0 0.0
    %1908 = vmatprep.subr.mxu0 0.0
    %1909 = vmatpush1.msra.mxu0 0.0
    %1910 = vmatprep.subr.mxu0 0.0
    %1911 = vmatpush1.msra.mxu0 0.0
    %1912 = vmatprep.subr.mxu0 0.0
    %1913 = vmatpush1.msra.mxu0 0.0
    %1914 = vmatprep.subr.mxu0 0.0
    %1915 = vmatpush1.msra.mxu0 0.0
    %1916 = vmatprep.subr.mxu0 0.0
    %1917 = vmatpush1.msra.mxu0 0.0
    %1918 = vmatprep.subr.mxu0 0.0
    %1919 = vmatpush1.msra.mxu0 0.0
    %1920 = vmatprep.subr.mxu0 0.0
    %1921 = vmatpush1.msra.mxu0 0.0
    %1922 = vmatprep.subr.mxu0 0.0
    %1923 = vmatpush1.msra.mxu0 0.0
    %1924 = vmatprep.subr.mxu0 0.0
    %1925 = vmatpush1.msra.mxu0 0.0
    %1926 = vmatprep.subr.mxu0 0.0
    %1927 = vmatpush1.msra.mxu0 0.0
    %1928 = vmatprep.subr.mxu0 0.0
    %1929 = vmatpush1.msra.mxu0 0.0
    %1930 = vmatprep.subr.mxu0 0.0
    %1931 = vmatpush1.msra.mxu0 0.0
    %1932 = vmatprep.subr.mxu0 0.0
    %1933 = vmatpush1.msra.mxu0 0.0
    %1934 = vmatprep.subr.mxu0 0.0
    %1935 = vmatpush1.msra.mxu0 0.0
    %1936 = vmatprep.subr.mxu0 0.0
    %1937 = vmatpush1.msra.mxu0 0.0
    %1938 = vmatprep.subr.mxu0 0.0
    %1939 = vmatpush1.msra.mxu0 0.0
    %1940 = vmatprep.subr.mxu0 0.0
    %1941 = vmatpush1.msra.mxu0 0.0
    %1942 = vmatprep.mubr.f32.mxu0 0.0
    %1943 = vmatmul.mubr.f32.gmra.mrb[0].mxu0 %v1876
    %v1944 = vpop.f32.mrb[0].mxu0
    %v1945 = vadd.f32 %v1873, %v1944
    %v1946 = vpop.f32.mrb[0].mxu0
    %1947 = vdwg.mxu0
    %vm1948 = vcmask 9216
    %1949 = vst.msk [vmem:[#allocation5] sm:$0x3] %vm1948, %v1945
    // Predicated region
    $region38: #{_lambda_.3} parent=1 // pred_check
      _
    $region39: #{_lambda_.3} parent=1 // pred_check_branch
      %1951 = sbr.rel (0) target = $region41
    $region40: #{_lambda_.3} parent=1 // pred_region
      %s1953 = ssub.s32 32, 32
      %1954 = vsyncadd [#allocation6], %s1953
      %s1956 = sshll.u32 [#allocation5], 4
      %s1957 = int_to_ptr.vmem [resolvable:$true] %s1956
      %1959 = dma.vmem_to_hbm [thread:$0]  %s1957, 32, %s9, [#allocation6]
    $region41: #{_lambda_.3} parent=1 // pred_fallthru
      _
    // Predicated region
    $region42: #{_lambda_.3} parent=1 // pred_check
      _
    $region43: #{_lambda_.3} parent=1 // pred_check_branch
      %1961 = sbr.rel (0) target = $region45
    $region44: #{_lambda_.3} parent=1 // pred_region
      %1962 = dma.done [#allocation6], 32
    $region45: #{_lambda_.3} parent=1 // pred_fallthru
      _
    %1963 = vsyncpa [#allocation6], 1

// kernel: _lambda_.2
$region0: #{_lambda_.2}
  #allocation0 [shape = 'u32[]', space=smem, size = 0x4, offset = 0x4, fixed_abs, tag = 'smem constant byte address 0x4 - core index']
  #allocation1 [shape = 'u32[144,128]{1,0:T(1,128)}', space=vmem, size = 0x12000, scoped, tag = 'internal scratch']
  #allocation2 [shape = 'f32[8,8,192]{2,1,0:T(8,128)}', space=vmem, size = 0x10000, scoped, tag = 'scratch operand']
  #allocation3 [shape = 'f32[8,64]{1,0:T(8,128)}', space=vmem, size = 0x1000, scoped, tag = 'scratch operand']
  %s0 = inlined_call_operand.vmem [shape: bf16[8,8,2304], index: 0, kind: input, shape index: {}]
  %s1 = inlined_call_operand.vmem [shape: bf16[2304,192], index: 1, kind: input, shape index: {}]
  %s2 = inlined_call_operand.vmem [shape: f32[64,192], index: 2, kind: input, shape index: {}]
  %s3 = inlined_call_operand.vmem [shape: f32[1,192], index: 3, kind: input, shape index: {}]
  %s4 = inlined_call_operand.vmem [shape: f32[1,64], index: 4, kind: input, shape index: {}]
  %s5 = inlined_call_operand.vmem [shape: bf16[8,8,64], index: 5, kind: output, shape index: {}]
  %s6 = sld [smem:[#allocation0]]
  $region30: #{_lambda_.2} parent=0
    _
  %s8 = ssub.s32 1, %s6
  %s9 = scalar_select 0, %s8, %s6
  // Predicated region
  $region2: #{_lambda_.2} parent=0 // pred_check
    _
  $region3: #{_lambda_.2} parent=0 // pred_check_branch
    %11 = sbr.rel (0) target = $region5
  $region4: #{_lambda_.2} parent=0 // pred_region
    _
  $region5: #{_lambda_.2} parent=0 // pred_fallthru
    _
  // Predicated region
  $region6: #{_lambda_.2} parent=0 // pred_check
    _
  $region7: #{_lambda_.2} parent=0 // pred_check_branch
    %13 = sbr.rel (0) target = $region9
  $region8: #{_lambda_.2} parent=0 // pred_region
    _
  $region9: #{_lambda_.2} parent=0 // pred_fallthru
    _
  // Predicated region
  $region10: #{_lambda_.2} parent=0 // pred_check
    _
  $region11: #{_lambda_.2} parent=0 // pred_check_branch
    %15 = sbr.rel (0) target = $region13
  $region12: #{_lambda_.2} parent=0 // pred_region
    _
  $region13: #{_lambda_.2} parent=0 // pred_fallthru
    _
  // Predicated region
  $region14: #{_lambda_.2} parent=0 // pred_check
    _
  $region15: #{_lambda_.2} parent=0 // pred_check_branch
    %17 = sbr.rel (0) target = $region17
  $region16: #{_lambda_.2} parent=0 // pred_region
    _
  $region17: #{_lambda_.2} parent=0 // pred_fallthru
    _
  // Predicated region
  $region18: #{_lambda_.2} parent=0 // pred_check
    _
  $region19: #{_lambda_.2} parent=0 // pred_check_branch
    %19 = sbr.rel (0) target = $region21
  $region20: #{_lambda_.2} parent=0 // pred_region
    _
  $region21: #{_lambda_.2} parent=0 // pred_fallthru
    _
  %v20 = vld [vmem:[%s0] sm:$0xff]
  %v21 = vld [vmem:[%s0 + $0x8] sm:$0xff]
  %v22 = vld [vmem:[%s0 + $0x10] sm:$0xff]
  %v23 = vld [vmem:[%s0 + $0x18] sm:$0xff]
  %v24 = vld [vmem:[%s0 + $0x20] sm:$0xff]
  %v25 = vld [vmem:[%s0 + $0x28] sm:$0xff]
  %v26 = vld [vmem:[%s0 + $0x30] sm:$0xff]
  %v27 = vld [vmem:[%s0 + $0x38] sm:$0xff]
  %v28 = vld [vmem:[%s0 + $0x40] sm:$0xff]
  %v29 = vld [vmem:[%s0 + $0x48] sm:$0xff]
  %v30 = vld [vmem:[%s0 + $0x50] sm:$0xff]
  %v31 = vld [vmem:[%s0 + $0x58] sm:$0xff]
  %v32 = vld [vmem:[%s0 + $0x60] sm:$0xff]
  %v33 = vld [vmem:[%s0 + $0x68] sm:$0xff]
  %v34 = vld [vmem:[%s0 + $0x70] sm:$0xff]
  %v35 = vld [vmem:[%s0 + $0x78] sm:$0xff]
  %v36 = vld [vmem:[%s0 + $0x80] sm:$0xff]
  %v37 = vld [vmem:[%s0 + $0x88] sm:$0xff]
  %v38 = vld [vmem:[%s0 + $0x90] sm:$0xff]
  %v39 = vld [vmem:[%s0 + $0x98] sm:$0xff]
  %v40 = vld [vmem:[%s0 + $0xa0] sm:$0xff]
  %v41 = vld [vmem:[%s0 + $0xa8] sm:$0xff]
  %v42 = vld [vmem:[%s0 + $0xb0] sm:$0xff]
  %v43 = vld [vmem:[%s0 + $0xb8] sm:$0xff]
  %v44 = vld [vmem:[%s0 + $0xc0] sm:$0xff]
  %v45 = vld [vmem:[%s0 + $0xc8] sm:$0xff]
  %v46 = vld [vmem:[%s0 + $0xd0] sm:$0xff]
  %v47 = vld [vmem:[%s0 + $0xd8] sm:$0xff]
  %v48 = vld [vmem:[%s0 + $0xe0] sm:$0xff]
  %v49 = vld [vmem:[%s0 + $0xe8] sm:$0xff]
  %v50 = vld [vmem:[%s0 + $0xf0] sm:$0xff]
  %v51 = vld [vmem:[%s0 + $0xf8] sm:$0xff]
  %v52 = vld [vmem:[%s0 + $0x100] sm:$0xff]
  %v53 = vld [vmem:[%s0 + $0x108] sm:$0xff]
  %v54 = vld [vmem:[%s0 + $0x110] sm:$0xff]
  %v55 = vld [vmem:[%s0 + $0x118] sm:$0xff]
  %v56 = vld [vmem:[%s0 + $0x120] sm:$0xff]
  %v57 = vld [vmem:[%s0 + $0x128] sm:$0xff]
  %v58 = vld [vmem:[%s0 + $0x130] sm:$0xff]
  %v59 = vld [vmem:[%s0 + $0x138] sm:$0xff]
  %v60 = vld [vmem:[%s0 + $0x140] sm:$0xff]
  %v61 = vld [vmem:[%s0 + $0x148] sm:$0xff]
  %v62 = vld [vmem:[%s0 + $0x150] sm:$0xff]
  %v63 = vld [vmem:[%s0 + $0x158] sm:$0xff]
  %v64 = vld [vmem:[%s0 + $0x160] sm:$0xff]
  %v65 = vld [vmem:[%s0 + $0x168] sm:$0xff]
  %v66 = vld [vmem:[%s0 + $0x170] sm:$0xff]
  %v67 = vld [vmem:[%s0 + $0x178] sm:$0xff]
  %v68 = vld [vmem:[%s0 + $0x180] sm:$0xff]
  %v69 = vld [vmem:[%s0 + $0x188] sm:$0xff]
  %v70 = vld [vmem:[%s0 + $0x190] sm:$0xff]
  %v71 = vld [vmem:[%s0 + $0x198] sm:$0xff]
  %v72 = vld [vmem:[%s0 + $0x1a0] sm:$0xff]
  %v73 = vld [vmem:[%s0 + $0x1a8] sm:$0xff]
  %v74 = vld [vmem:[%s0 + $0x1b0] sm:$0xff]
  %v75 = vld [vmem:[%s0 + $0x1b8] sm:$0xff]
  %v76 = vld [vmem:[%s0 + $0x1c0] sm:$0xff]
  %v77 = vld [vmem:[%s0 + $0x1c8] sm:$0xff]
  %v78 = vld [vmem:[%s0 + $0x1d0] sm:$0xff]
  %v79 = vld [vmem:[%s0 + $0x1d8] sm:$0xff]
  %v80 = vld [vmem:[%s0 + $0x1e0] sm:$0xff]
  %v81 = vld [vmem:[%s0 + $0x1e8] sm:$0xff]
  %v82 = vld [vmem:[%s0 + $0x1f0] sm:$0xff]
  %v83 = vld [vmem:[%s0 + $0x1f8] sm:$0xff]
  %v84 = vld [vmem:[%s0 + $0x200] sm:$0xff]
  %v85 = vld [vmem:[%s0 + $0x208] sm:$0xff]
  %v86 = vld [vmem:[%s0 + $0x210] sm:$0xff]
  %v87 = vld [vmem:[%s0 + $0x218] sm:$0xff]
  %v88 = vld [vmem:[%s0 + $0x220] sm:$0xff]
  %v89 = vld [vmem:[%s0 + $0x228] sm:$0xff]
  %v90 = vld [vmem:[%s0 + $0x230] sm:$0xff]
  %v91 = vld [vmem:[%s0 + $0x238] sm:$0xff]
  %v92 = vld [vmem:[%s1] sm:$0xff]
  %v93 = vld [vmem:[%s1 + $0x8] sm:$0xff]
  %v94 = vld [vmem:[%s1 + $0x10] sm:$0xff]
  %v95 = vld [vmem:[%s1 + $0x18] sm:$0xff]
  %v96 = vld [vmem:[%s1 + $0x20] sm:$0xff]
  %v97 = vld [vmem:[%s1 + $0x28] sm:$0xff]
  %v98 = vld [vmem:[%s1 + $0x30] sm:$0xff]
  %v99 = vld [vmem:[%s1 + $0x38] sm:$0xff]
  %v100 = vld [vmem:[%s1 + $0x40] sm:$0xff]
  %v101 = vld [vmem:[%s1 + $0x48] sm:$0xff]
  %v102 = vld [vmem:[%s1 + $0x50] sm:$0xff]
  %v103 = vld [vmem:[%s1 + $0x58] sm:$0xff]
  %v104 = vld [vmem:[%s1 + $0x60] sm:$0xff]
  %v105 = vld [vmem:[%s1 + $0x68] sm:$0xff]
  %v106 = vld [vmem:[%s1 + $0x70] sm:$0xff]
  %v107 = vld [vmem:[%s1 + $0x78] sm:$0xff]
  %v108 = vld [vmem:[%s1 + $0x80] sm:$0xff]
  %v109 = vld [vmem:[%s1 + $0x88] sm:$0xff]
  %v110 = vld [vmem:[%s1 + $0x90] sm:$0xff]
  %v111 = vld [vmem:[%s1 + $0x98] sm:$0xff]
  %v112 = vld [vmem:[%s1 + $0xa0] sm:$0xff]
  %v113 = vld [vmem:[%s1 + $0xa8] sm:$0xff]
  %v114 = vld [vmem:[%s1 + $0xb0] sm:$0xff]
  %v115 = vld [vmem:[%s1 + $0xb8] sm:$0xff]
  %v116 = vld [vmem:[%s1 + $0xc0] sm:$0xff]
  %v117 = vld [vmem:[%s1 + $0xc8] sm:$0xff]
  %v118 = vld [vmem:[%s1 + $0xd0] sm:$0xff]
  %v119 = vld [vmem:[%s1 + $0xd8] sm:$0xff]
  %v120 = vld [vmem:[%s1 + $0xe0] sm:$0xff]
  %v121 = vld [vmem:[%s1 + $0xe8] sm:$0xff]
  %v122 = vld [vmem:[%s1 + $0xf0] sm:$0xff]
  %v123 = vld [vmem:[%s1 + $0xf8] sm:$0xff]
  %v124 = vld [vmem:[%s1 + $0x100] sm:$0xff]
  %v125 = vld [vmem:[%s1 + $0x108] sm:$0xff]
  %v126 = vld [vmem:[%s1 + $0x110] sm:$0xff]
  %v127 = vld [vmem:[%s1 + $0x118] sm:$0xff]
  %v128 = vld [vmem:[%s1 + $0x120] sm:$0xff]
  %v129 = vld [vmem:[%s1 + $0x128] sm:$0xff]
  %v130 = vld [vmem:[%s1 + $0x130] sm:$0xff]
  %v131 = vld [vmem:[%s1 + $0x138] sm:$0xff]
  %v132 = vld [vmem:[%s1 + $0x140] sm:$0xff]
  %v133 = vld [vmem:[%s1 + $0x148] sm:$0xff]
  %v134 = vld [vmem:[%s1 + $0x150] sm:$0xff]
  %v135 = vld [vmem:[%s1 + $0x158] sm:$0xff]
  %v136 = vld [vmem:[%s1 + $0x160] sm:$0xff]
  %v137 = vld [vmem:[%s1 + $0x168] sm:$0xff]
  %v138 = vld [vmem:[%s1 + $0x170] sm:$0xff]
  %v139 = vld [vmem:[%s1 + $0x178] sm:$0xff]
  %v140 = vld [vmem:[%s1 + $0x180] sm:$0xff]
  %v141 = vld [vmem:[%s1 + $0x188] sm:$0xff]
  %v142 = vld [vmem:[%s1 + $0x190] sm:$0xff]
  %v143 = vld [vmem:[%s1 + $0x198] sm:$0xff]
  %v144 = vld [vmem:[%s1 + $0x1a0] sm:$0xff]
  %v145 = vld [vmem:[%s1 + $0x1a8] sm:$0xff]
  %v146 = vld [vmem:[%s1 + $0x1b0] sm:$0xff]
  %v147 = vld [vmem:[%s1 + $0x1b8] sm:$0xff]
  %v148 = vld [vmem:[%s1 + $0x1c0] sm:$0xff]
  %v149 = vld [vmem:[%s1 + $0x1c8] sm:$0xff]
  %v150 = vld [vmem:[%s1 + $0x1d0] sm:$0xff]
  %v151 = vld [vmem:[%s1 + $0x1d8] sm:$0xff]
  %v152 = vld [vmem:[%s1 + $0x1e0] sm:$0xff]
  %v153 = vld [vmem:[%s1 + $0x1e8] sm:$0xff]
  %v154 = vld [vmem:[%s1 + $0x1f0] sm:$0xff]
  %v155 = vld [vmem:[%s1 + $0x1f8] sm:$0xff]
  %v156 = vld [vmem:[%s1 + $0x200] sm:$0xff]
  %v157 = vld [vmem:[%s1 + $0x208] sm:$0xff]
  %v158 = vld [vmem:[%s1 + $0x210] sm:$0xff]
  %v159 = vld [vmem:[%s1 + $0x218] sm:$0xff]
  %v160 = vld [vmem:[%s1 + $0x220] sm:$0xff]
  %v161 = vld [vmem:[%s1 + $0x228] sm:$0xff]
  %v162 = vld [vmem:[%s1 + $0x230] sm:$0xff]
  %v163 = vld [vmem:[%s1 + $0x238] sm:$0xff]
  %v164 = vld [vmem:[%s1 + $0x240] sm:$0xff]
  %v165 = vld [vmem:[%s1 + $0x248] sm:$0xff]
  %v166 = vld [vmem:[%s1 + $0x250] sm:$0xff]
  %v167 = vld [vmem:[%s1 + $0x258] sm:$0xff]
  %v168 = vld [vmem:[%s1 + $0x260] sm:$0xff]
  %v169 = vld [vmem:[%s1 + $0x268] sm:$0xff]
  %v170 = vld [vmem:[%s1 + $0x270] sm:$0xff]
  %v171 = vld [vmem:[%s1 + $0x278] sm:$0xff]
  %v172 = vld [vmem:[%s1 + $0x280] sm:$0xff]
  %v173 = vld [vmem:[%s1 + $0x288] sm:$0xff]
  %v174 = vld [vmem:[%s1 + $0x290] sm:$0xff]
  %v175 = vld [vmem:[%s1 + $0x298] sm:$0xff]
  %v176 = vld [vmem:[%s1 + $0x2a0] sm:$0xff]
  %v177 = vld [vmem:[%s1 + $0x2a8] sm:$0xff]
  %v178 = vld [vmem:[%s1 + $0x2b0] sm:$0xff]
  %v179 = vld [vmem:[%s1 + $0x2b8] sm:$0xff]
  %v180 = vld [vmem:[%s1 + $0x2c0] sm:$0xff]
  %v181 = vld [vmem:[%s1 + $0x2c8] sm:$0xff]
  %v182 = vld [vmem:[%s1 + $0x2d0] sm:$0xff]
  %v183 = vld [vmem:[%s1 + $0x2d8] sm:$0xff]
  %v184 = vld [vmem:[%s1 + $0x2e0] sm:$0xff]
  %v185 = vld [vmem:[%s1 + $0x2e8] sm:$0xff]
  %v186 = vld [vmem:[%s1 + $0x2f0] sm:$0xff]
  %v187 = vld [vmem:[%s1 + $0x2f8] sm:$0xff]
  %v188 = vld [vmem:[%s1 + $0x300] sm:$0xff]
  %v189 = vld [vmem:[%s1 + $0x308] sm:$0xff]
  %v190 = vld [vmem:[%s1 + $0x310] sm:$0xff]
  %v191 = vld [vmem:[%s1 + $0x318] sm:$0xff]
  %v192 = vld [vmem:[%s1 + $0x320] sm:$0xff]
  %v193 = vld [vmem:[%s1 + $0x328] sm:$0xff]
  %v194 = vld [vmem:[%s1 + $0x330] sm:$0xff]
  %v195 = vld [vmem:[%s1 + $0x338] sm:$0xff]
  %v196 = vld [vmem:[%s1 + $0x340] sm:$0xff]
  %v197 = vld [vmem:[%s1 + $0x348] sm:$0xff]
  %v198 = vld [vmem:[%s1 + $0x350] sm:$0xff]
  %v199 = vld [vmem:[%s1 + $0x358] sm:$0xff]
  %v200 = vld [vmem:[%s1 + $0x360] sm:$0xff]
  %v201 = vld [vmem:[%s1 + $0x368] sm:$0xff]
  %v202 = vld [vmem:[%s1 + $0x370] sm:$0xff]
  %v203 = vld [vmem:[%s1 + $0x378] sm:$0xff]
  %v204 = vld [vmem:[%s1 + $0x380] sm:$0xff]
  %v205 = vld [vmem:[%s1 + $0x388] sm:$0xff]
  %v206 = vld [vmem:[%s1 + $0x390] sm:$0xff]
  %v207 = vld [vmem:[%s1 + $0x398] sm:$0xff]
  %v208 = vld [vmem:[%s1 + $0x3a0] sm:$0xff]
  %v209 = vld [vmem:[%s1 + $0x3a8] sm:$0xff]
  %v210 = vld [vmem:[%s1 + $0x3b0] sm:$0xff]
  %v211 = vld [vmem:[%s1 + $0x3b8] sm:$0xff]
  %v212 = vld [vmem:[%s1 + $0x3c0] sm:$0xff]
  %v213 = vld [vmem:[%s1 + $0x3c8] sm:$0xff]
  %v214 = vld [vmem:[%s1 + $0x3d0] sm:$0xff]
  %v215 = vld [vmem:[%s1 + $0x3d8] sm:$0xff]
  %v216 = vld [vmem:[%s1 + $0x3e0] sm:$0xff]
  %v217 = vld [vmem:[%s1 + $0x3e8] sm:$0xff]
  %v218 = vld [vmem:[%s1 + $0x3f0] sm:$0xff]
  %v219 = vld [vmem:[%s1 + $0x3f8] sm:$0xff]
  %v220 = vld [vmem:[%s1 + $0x400] sm:$0xff]
  %v221 = vld [vmem:[%s1 + $0x408] sm:$0xff]
  %v222 = vld [vmem:[%s1 + $0x410] sm:$0xff]
  %v223 = vld [vmem:[%s1 + $0x418] sm:$0xff]
  %v224 = vld [vmem:[%s1 + $0x420] sm:$0xff]
  %v225 = vld [vmem:[%s1 + $0x428] sm:$0xff]
  %v226 = vld [vmem:[%s1 + $0x430] sm:$0xff]
  %v227 = vld [vmem:[%s1 + $0x438] sm:$0xff]
  %v228 = vld [vmem:[%s1 + $0x440] sm:$0xff]
  %v229 = vld [vmem:[%s1 + $0x448] sm:$0xff]
  %v230 = vld [vmem:[%s1 + $0x450] sm:$0xff]
  %v231 = vld [vmem:[%s1 + $0x458] sm:$0xff]
  %v232 = vld [vmem:[%s1 + $0x460] sm:$0xff]
  %v233 = vld [vmem:[%s1 + $0x468] sm:$0xff]
  %v234 = vld [vmem:[%s1 + $0x470] sm:$0xff]
  %v235 = vld [vmem:[%s1 + $0x478] sm:$0xff]
  %v236 = vld [vmem:[%s1 + $0x480] sm:$0xff]
  %v237 = vld [vmem:[%s1 + $0x488] sm:$0xff]
  %v238 = vld [vmem:[%s1 + $0x490] sm:$0xff]
  %v239 = vld [vmem:[%s1 + $0x498] sm:$0xff]
  %v240 = vld [vmem:[%s1 + $0x4a0] sm:$0xff]
  %v241 = vld [vmem:[%s1 + $0x4a8] sm:$0xff]
  %v242 = vld [vmem:[%s1 + $0x4b0] sm:$0xff]
  %v243 = vld [vmem:[%s1 + $0x4b8] sm:$0xff]
  %v244 = vld [vmem:[%s1 + $0x4c0] sm:$0xff]
  %v245 = vld [vmem:[%s1 + $0x4c8] sm:$0xff]
  %v246 = vld [vmem:[%s1 + $0x4d0] sm:$0xff]
  %v247 = vld [vmem:[%s1 + $0x4d8] sm:$0xff]
  %v248 = vld [vmem:[%s1 + $0x4e0] sm:$0xff]
  %v249 = vld [vmem:[%s1 + $0x4e8] sm:$0xff]
  %v250 = vld [vmem:[%s1 + $0x4f0] sm:$0xff]
  %v251 = vld [vmem:[%s1 + $0x4f8] sm:$0xff]
  %v252 = vld [vmem:[%s1 + $0x500] sm:$0xff]
  %v253 = vld [vmem:[%s1 + $0x508] sm:$0xff]
  %v254 = vld [vmem:[%s1 + $0x510] sm:$0xff]
  %v255 = vld [vmem:[%s1 + $0x518] sm:$0xff]
  %v256 = vld [vmem:[%s1 + $0x520] sm:$0xff]
  %v257 = vld [vmem:[%s1 + $0x528] sm:$0xff]
  %v258 = vld [vmem:[%s1 + $0x530] sm:$0xff]
  %v259 = vld [vmem:[%s1 + $0x538] sm:$0xff]
  %v260 = vld [vmem:[%s1 + $0x540] sm:$0xff]
  %v261 = vld [vmem:[%s1 + $0x548] sm:$0xff]
  %v262 = vld [vmem:[%s1 + $0x550] sm:$0xff]
  %v263 = vld [vmem:[%s1 + $0x558] sm:$0xff]
  %v264 = vld [vmem:[%s1 + $0x560] sm:$0xff]
  %v265 = vld [vmem:[%s1 + $0x568] sm:$0xff]
  %v266 = vld [vmem:[%s1 + $0x570] sm:$0xff]
  %v267 = vld [vmem:[%s1 + $0x578] sm:$0xff]
  %v268 = vld [vmem:[%s1 + $0x580] sm:$0xff]
  %v269 = vld [vmem:[%s1 + $0x588] sm:$0xff]
  %v270 = vld [vmem:[%s1 + $0x590] sm:$0xff]
  %v271 = vld [vmem:[%s1 + $0x598] sm:$0xff]
  %v272 = vld [vmem:[%s1 + $0x5a0] sm:$0xff]
  %v273 = vld [vmem:[%s1 + $0x5a8] sm:$0xff]
  %v274 = vld [vmem:[%s1 + $0x5b0] sm:$0xff]
  %v275 = vld [vmem:[%s1 + $0x5b8] sm:$0xff]
  %v276 = vld [vmem:[%s1 + $0x5c0] sm:$0xff]
  %v277 = vld [vmem:[%s1 + $0x5c8] sm:$0xff]
  %v278 = vld [vmem:[%s1 + $0x5d0] sm:$0xff]
  %v279 = vld [vmem:[%s1 + $0x5d8] sm:$0xff]
  %v280 = vld [vmem:[%s1 + $0x5e0] sm:$0xff]
  %v281 = vld [vmem:[%s1 + $0x5e8] sm:$0xff]
  %v282 = vld [vmem:[%s1 + $0x5f0] sm:$0xff]
  %v283 = vld [vmem:[%s1 + $0x5f8] sm:$0xff]
  %v284 = vld [vmem:[%s1 + $0x600] sm:$0xff]
  %v285 = vld [vmem:[%s1 + $0x608] sm:$0xff]
  %v286 = vld [vmem:[%s1 + $0x610] sm:$0xff]
  %v287 = vld [vmem:[%s1 + $0x618] sm:$0xff]
  %v288 = vld [vmem:[%s1 + $0x620] sm:$0xff]
  %v289 = vld [vmem:[%s1 + $0x628] sm:$0xff]
  %v290 = vld [vmem:[%s1 + $0x630] sm:$0xff]
  %v291 = vld [vmem:[%s1 + $0x638] sm:$0xff]
  %v292 = vld [vmem:[%s1 + $0x640] sm:$0xff]
  %v293 = vld [vmem:[%s1 + $0x648] sm:$0xff]
  %v294 = vld [vmem:[%s1 + $0x650] sm:$0xff]
  %v295 = vld [vmem:[%s1 + $0x658] sm:$0xff]
  %v296 = vld [vmem:[%s1 + $0x660] sm:$0xff]
  %v297 = vld [vmem:[%s1 + $0x668] sm:$0xff]
  %v298 = vld [vmem:[%s1 + $0x670] sm:$0xff]
  %v299 = vld [vmem:[%s1 + $0x678] sm:$0xff]
  %v300 = vld [vmem:[%s1 + $0x680] sm:$0xff]
  %v301 = vld [vmem:[%s1 + $0x688] sm:$0xff]
  %v302 = vld [vmem:[%s1 + $0x690] sm:$0xff]
  %v303 = vld [vmem:[%s1 + $0x698] sm:$0xff]
  %v304 = vld [vmem:[%s1 + $0x6a0] sm:$0xff]
  %v305 = vld [vmem:[%s1 + $0x6a8] sm:$0xff]
  %v306 = vld [vmem:[%s1 + $0x6b0] sm:$0xff]
  %v307 = vld [vmem:[%s1 + $0x6b8] sm:$0xff]
  %v308 = vld [vmem:[%s1 + $0x6c0] sm:$0xff]
  %v309 = vld [vmem:[%s1 + $0x6c8] sm:$0xff]
  %v310 = vld [vmem:[%s1 + $0x6d0] sm:$0xff]
  %v311 = vld [vmem:[%s1 + $0x6d8] sm:$0xff]
  %v312 = vld [vmem:[%s1 + $0x6e0] sm:$0xff]
  %v313 = vld [vmem:[%s1 + $0x6e8] sm:$0xff]
  %v314 = vld [vmem:[%s1 + $0x6f0] sm:$0xff]
  %v315 = vld [vmem:[%s1 + $0x6f8] sm:$0xff]
  %v316 = vld [vmem:[%s1 + $0x700] sm:$0xff]
  %v317 = vld [vmem:[%s1 + $0x708] sm:$0xff]
  %v318 = vld [vmem:[%s1 + $0x710] sm:$0xff]
  %v319 = vld [vmem:[%s1 + $0x718] sm:$0xff]
  %v320 = vld [vmem:[%s1 + $0x720] sm:$0xff]
  %v321 = vld [vmem:[%s1 + $0x728] sm:$0xff]
  %v322 = vld [vmem:[%s1 + $0x730] sm:$0xff]
  %v323 = vld [vmem:[%s1 + $0x738] sm:$0xff]
  %v324 = vld [vmem:[%s1 + $0x740] sm:$0xff]
  %v325 = vld [vmem:[%s1 + $0x748] sm:$0xff]
  %v326 = vld [vmem:[%s1 + $0x750] sm:$0xff]
  %v327 = vld [vmem:[%s1 + $0x758] sm:$0xff]
  %v328 = vld [vmem:[%s1 + $0x760] sm:$0xff]
  %v329 = vld [vmem:[%s1 + $0x768] sm:$0xff]
  %v330 = vld [vmem:[%s1 + $0x770] sm:$0xff]
  %v331 = vld [vmem:[%s1 + $0x778] sm:$0xff]
  %v332 = vld [vmem:[%s1 + $0x780] sm:$0xff]
  %v333 = vld [vmem:[%s1 + $0x788] sm:$0xff]
  %v334 = vld [vmem:[%s1 + $0x790] sm:$0xff]
  %v335 = vld [vmem:[%s1 + $0x798] sm:$0xff]
  %v336 = vld [vmem:[%s1 + $0x7a0] sm:$0xff]
  %v337 = vld [vmem:[%s1 + $0x7a8] sm:$0xff]
  %v338 = vld [vmem:[%s1 + $0x7b0] sm:$0xff]
  %v339 = vld [vmem:[%s1 + $0x7b8] sm:$0xff]
  %v340 = vld [vmem:[%s1 + $0x7c0] sm:$0xff]
  %v341 = vld [vmem:[%s1 + $0x7c8] sm:$0xff]
  %v342 = vld [vmem:[%s1 + $0x7d0] sm:$0xff]
  %v343 = vld [vmem:[%s1 + $0x7d8] sm:$0xff]
  %v344 = vld [vmem:[%s1 + $0x7e0] sm:$0xff]
  %v345 = vld [vmem:[%s1 + $0x7e8] sm:$0xff]
  %v346 = vld [vmem:[%s1 + $0x7f0] sm:$0xff]
  %v347 = vld [vmem:[%s1 + $0x7f8] sm:$0xff]
  %v348 = vld [vmem:[%s1 + $0x800] sm:$0xff]
  %v349 = vld [vmem:[%s1 + $0x808] sm:$0xff]
  %v350 = vld [vmem:[%s1 + $0x810] sm:$0xff]
  %v351 = vld [vmem:[%s1 + $0x818] sm:$0xff]
  %v352 = vld [vmem:[%s1 + $0x820] sm:$0xff]
  %v353 = vld [vmem:[%s1 + $0x828] sm:$0xff]
  %v354 = vld [vmem:[%s1 + $0x830] sm:$0xff]
  %v355 = vld [vmem:[%s1 + $0x838] sm:$0xff]
  %v356 = vld [vmem:[%s1 + $0x840] sm:$0xff]
  %v357 = vld [vmem:[%s1 + $0x848] sm:$0xff]
  %v358 = vld [vmem:[%s1 + $0x850] sm:$0xff]
  %v359 = vld [vmem:[%s1 + $0x858] sm:$0xff]
  %v360 = vld [vmem:[%s1 + $0x860] sm:$0xff]
  %v361 = vld [vmem:[%s1 + $0x868] sm:$0xff]
  %v362 = vld [vmem:[%s1 + $0x870] sm:$0xff]
  %v363 = vld [vmem:[%s1 + $0x878] sm:$0xff]
  %v364 = vld [vmem:[%s1 + $0x880] sm:$0xff]
  %v365 = vld [vmem:[%s1 + $0x888] sm:$0xff]
  %v366 = vld [vmem:[%s1 + $0x890] sm:$0xff]
  %v367 = vld [vmem:[%s1 + $0x898] sm:$0xff]
  %v368 = vld [vmem:[%s1 + $0x8a0] sm:$0xff]
  %v369 = vld [vmem:[%s1 + $0x8a8] sm:$0xff]
  %v370 = vld [vmem:[%s1 + $0x8b0] sm:$0xff]
  %v371 = vld [vmem:[%s1 + $0x8b8] sm:$0xff]
  %v372 = vld [vmem:[%s1 + $0x8c0] sm:$0xff]
  %v373 = vld [vmem:[%s1 + $0x8c8] sm:$0xff]
  %v374 = vld [vmem:[%s1 + $0x8d0] sm:$0xff]
  %v375 = vld [vmem:[%s1 + $0x8d8] sm:$0xff]
  %v376 = vld [vmem:[%s1 + $0x8e0] sm:$0xff]
  %v377 = vld [vmem:[%s1 + $0x8e8] sm:$0xff]
  %v378 = vld [vmem:[%s1 + $0x8f0] sm:$0xff]
  %v379 = vld [vmem:[%s1 + $0x8f8] sm:$0xff]
  %v380 = vld [vmem:[%s3] sm:$0x3]
  %v382 = vlaneseq
  %v383 = vshrl.u32 %v382, 7
  %v384 = vsub.s32 0, %v383
  %v385 = vrot.slane %v380, %v384
  %v386 = vlaneseq
  %v387 = vshrl.u32 %v386, 7
  %v388 = vsub.s32 1, %v387
  %v389 = vrot.slane %v380, %v388
  %v464 = vunpack.c.l.b16 %v20
  %v465 = vunpack.c.h.b16 %v20
  %v466 = vunpack.c.l.b16 %v21
  %v467 = vunpack.c.h.b16 %v21
  %v468 = vunpack.c.l.b16 %v22
  %v469 = vunpack.c.h.b16 %v22
  %v470 = vunpack.c.l.b16 %v23
  %v471 = vunpack.c.h.b16 %v23
  %v472 = vunpack.c.l.b16 %v24
  %v473 = vunpack.c.h.b16 %v24
  %v474 = vunpack.c.l.b16 %v25
  %v475 = vunpack.c.h.b16 %v25
  %v476 = vunpack.c.l.b16 %v26
  %v477 = vunpack.c.h.b16 %v26
  %v478 = vunpack.c.l.b16 %v27
  %v479 = vunpack.c.h.b16 %v27
  %v480 = vunpack.c.l.b16 %v28
  %v481 = vunpack.c.h.b16 %v28
  %v482 = vunpack.c.l.b16 %v29
  %v483 = vunpack.c.h.b16 %v29
  %v484 = vunpack.c.l.b16 %v30
  %v485 = vunpack.c.h.b16 %v30
  %v486 = vunpack.c.l.b16 %v31
  %v487 = vunpack.c.h.b16 %v31
  %v488 = vunpack.c.l.b16 %v32
  %v489 = vunpack.c.h.b16 %v32
  %v490 = vunpack.c.l.b16 %v33
  %v491 = vunpack.c.h.b16 %v33
  %v492 = vunpack.c.l.b16 %v34
  %v493 = vunpack.c.h.b16 %v34
  %v494 = vunpack.c.l.b16 %v35
  %v495 = vunpack.c.h.b16 %v35
  %v496 = vunpack.c.l.b16 %v36
  %v497 = vunpack.c.h.b16 %v36
  %v498 = vunpack.c.l.b16 %v37
  %v499 = vunpack.c.h.b16 %v37
  %v500 = vunpack.c.l.b16 %v38
  %v501 = vunpack.c.h.b16 %v38
  %v502 = vunpack.c.l.b16 %v39
  %v503 = vunpack.c.h.b16 %v39
  %v504 = vunpack.c.l.b16 %v40
  %v505 = vunpack.c.h.b16 %v40
  %v506 = vunpack.c.l.b16 %v41
  %v507 = vunpack.c.h.b16 %v41
  %v508 = vunpack.c.l.b16 %v42
  %v509 = vunpack.c.h.b16 %v42
  %v510 = vunpack.c.l.b16 %v43
  %v511 = vunpack.c.h.b16 %v43
  %v512 = vunpack.c.l.b16 %v44
  %v513 = vunpack.c.h.b16 %v44
  %v514 = vunpack.c.l.b16 %v45
  %v515 = vunpack.c.h.b16 %v45
  %v516 = vunpack.c.l.b16 %v46
  %v517 = vunpack.c.h.b16 %v46
  %v518 = vunpack.c.l.b16 %v47
  %v519 = vunpack.c.h.b16 %v47
  %v520 = vunpack.c.l.b16 %v48
  %v521 = vunpack.c.h.b16 %v48
  %v522 = vunpack.c.l.b16 %v49
  %v523 = vunpack.c.h.b16 %v49
  %v524 = vunpack.c.l.b16 %v50
  %v525 = vunpack.c.h.b16 %v50
  %v526 = vunpack.c.l.b16 %v51
  %v527 = vunpack.c.h.b16 %v51
  %v528 = vunpack.c.l.b16 %v52
  %v529 = vunpack.c.h.b16 %v52
  %v530 = vunpack.c.l.b16 %v53
  %v531 = vunpack.c.h.b16 %v53
  %v532 = vunpack.c.l.b16 %v54
  %v533 = vunpack.c.h.b16 %v54
  %v534 = vunpack.c.l.b16 %v55
  %v535 = vunpack.c.h.b16 %v55
  %v536 = vunpack.c.l.b16 %v56
  %v537 = vunpack.c.h.b16 %v56
  %v538 = vunpack.c.l.b16 %v57
  %v539 = vunpack.c.h.b16 %v57
  %v540 = vunpack.c.l.b16 %v58
  %v541 = vunpack.c.h.b16 %v58
  %v542 = vunpack.c.l.b16 %v59
  %v543 = vunpack.c.h.b16 %v59
  %v544 = vunpack.c.l.b16 %v60
  %v545 = vunpack.c.h.b16 %v60
  %v546 = vunpack.c.l.b16 %v61
  %v547 = vunpack.c.h.b16 %v61
  %v548 = vunpack.c.l.b16 %v62
  %v549 = vunpack.c.h.b16 %v62
  %v550 = vunpack.c.l.b16 %v63
  %v551 = vunpack.c.h.b16 %v63
  %v552 = vunpack.c.l.b16 %v64
  %v553 = vunpack.c.h.b16 %v64
  %v554 = vunpack.c.l.b16 %v65
  %v555 = vunpack.c.h.b16 %v65
  %v556 = vunpack.c.l.b16 %v66
  %v557 = vunpack.c.h.b16 %v66
  %v558 = vunpack.c.l.b16 %v67
  %v559 = vunpack.c.h.b16 %v67
  %v560 = vunpack.c.l.b16 %v68
  %v561 = vunpack.c.h.b16 %v68
  %v562 = vunpack.c.l.b16 %v69
  %v563 = vunpack.c.h.b16 %v69
  %v564 = vunpack.c.l.b16 %v70
  %v565 = vunpack.c.h.b16 %v70
  %v566 = vunpack.c.l.b16 %v71
  %v567 = vunpack.c.h.b16 %v71
  %v568 = vunpack.c.l.b16 %v72
  %v569 = vunpack.c.h.b16 %v72
  %v570 = vunpack.c.l.b16 %v73
  %v571 = vunpack.c.h.b16 %v73
  %v572 = vunpack.c.l.b16 %v74
  %v573 = vunpack.c.h.b16 %v74
  %v574 = vunpack.c.l.b16 %v75
  %v575 = vunpack.c.h.b16 %v75
  %v576 = vunpack.c.l.b16 %v76
  %v577 = vunpack.c.h.b16 %v76
  %v578 = vunpack.c.l.b16 %v77
  %v579 = vunpack.c.h.b16 %v77
  %v580 = vunpack.c.l.b16 %v78
  %v581 = vunpack.c.h.b16 %v78
  %v582 = vunpack.c.l.b16 %v79
  %v583 = vunpack.c.h.b16 %v79
  %v584 = vunpack.c.l.b16 %v80
  %v585 = vunpack.c.h.b16 %v80
  %v586 = vunpack.c.l.b16 %v81
  %v587 = vunpack.c.h.b16 %v81
  %v588 = vunpack.c.l.b16 %v82
  %v589 = vunpack.c.h.b16 %v82
  %v590 = vunpack.c.l.b16 %v83
  %v591 = vunpack.c.h.b16 %v83
  %v592 = vunpack.c.l.b16 %v84
  %v593 = vunpack.c.h.b16 %v84
  %v594 = vunpack.c.l.b16 %v85
  %v595 = vunpack.c.h.b16 %v85
  %v596 = vunpack.c.l.b16 %v86
  %v597 = vunpack.c.h.b16 %v86
  %v598 = vunpack.c.l.b16 %v87
  %v599 = vunpack.c.h.b16 %v87
  %v600 = vunpack.c.l.b16 %v88
  %v601 = vunpack.c.h.b16 %v88
  %v602 = vunpack.c.l.b16 %v89
  %v603 = vunpack.c.h.b16 %v89
  %v604 = vunpack.c.l.b16 %v90
  %v605 = vunpack.c.h.b16 %v90
  %v606 = vunpack.c.l.b16 %v91
  %v607 = vunpack.c.h.b16 %v91
  %v608 = vpack.c.b16 %v482, %v464
  %v609 = vpack.c.b16 %v483, %v465
  %v610 = vpack.c.b16 %v484, %v466
  %v611 = vpack.c.b16 %v485, %v467
  %v612 = vpack.c.b16 %v486, %v468
  %v613 = vpack.c.b16 %v487, %v469
  %v614 = vpack.c.b16 %v488, %v470
  %v615 = vpack.c.b16 %v489, %v471
  %v616 = vpack.c.b16 %v490, %v472
  %v617 = vpack.c.b16 %v491, %v473
  %v618 = vpack.c.b16 %v492, %v474
  %v619 = vpack.c.b16 %v493, %v475
  %v620 = vpack.c.b16 %v494, %v476
  %v621 = vpack.c.b16 %v495, %v477
  %v622 = vpack.c.b16 %v496, %v478
  %v623 = vpack.c.b16 %v497, %v479
  %v624 = vpack.c.b16 %v498, %v480
  %v625 = vpack.c.b16 %v499, %v481
  %v626 = vpack.c.b16 %v518, %v500
  %v627 = vpack.c.b16 %v519, %v501
  %v628 = vpack.c.b16 %v520, %v502
  %v629 = vpack.c.b16 %v521, %v503
  %v630 = vpack.c.b16 %v522, %v504
  %v631 = vpack.c.b16 %v523, %v505
  %v632 = vpack.c.b16 %v524, %v506
  %v633 = vpack.c.b16 %v525, %v507
  %v634 = vpack.c.b16 %v526, %v508
  %v635 = vpack.c.b16 %v527, %v509
  %v636 = vpack.c.b16 %v528, %v510
  %v637 = vpack.c.b16 %v529, %v511
  %v638 = vpack.c.b16 %v530, %v512
  %v639 = vpack.c.b16 %v531, %v513
  %v640 = vpack.c.b16 %v532, %v514
  %v641 = vpack.c.b16 %v533, %v515
  %v642 = vpack.c.b16 %v534, %v516
  %v643 = vpack.c.b16 %v535, %v517
  %v644 = vpack.c.b16 %v554, %v536
  %v645 = vpack.c.b16 %v555, %v537
  %v646 = vpack.c.b16 %v556, %v538
  %v647 = vpack.c.b16 %v557, %v539
  %v648 = vpack.c.b16 %v558, %v540
  %v649 = vpack.c.b16 %v559, %v541
  %v650 = vpack.c.b16 %v560, %v542
  %v651 = vpack.c.b16 %v561, %v543
  %v652 = vpack.c.b16 %v562, %v544
  %v653 = vpack.c.b16 %v563, %v545
  %v654 = vpack.c.b16 %v564, %v546
  %v655 = vpack.c.b16 %v565, %v547
  %v656 = vpack.c.b16 %v566, %v548
  %v657 = vpack.c.b16 %v567, %v549
  %v658 = vpack.c.b16 %v568, %v550
  %v659 = vpack.c.b16 %v569, %v551
  %v660 = vpack.c.b16 %v570, %v552
  %v661 = vpack.c.b16 %v571, %v553
  %v662 = vpack.c.b16 %v590, %v572
  %v663 = vpack.c.b16 %v591, %v573
  %v664 = vpack.c.b16 %v592, %v574
  %v665 = vpack.c.b16 %v593, %v575
  %v666 = vpack.c.b16 %v594, %v576
  %v667 = vpack.c.b16 %v595, %v577
  %v668 = vpack.c.b16 %v596, %v578
  %v669 = vpack.c.b16 %v597, %v579
  %v670 = vpack.c.b16 %v598, %v580
  %v671 = vpack.c.b16 %v599, %v581
  %v672 = vpack.c.b16 %v600, %v582
  %v673 = vpack.c.b16 %v601, %v583
  %v674 = vpack.c.b16 %v602, %v584
  %v675 = vpack.c.b16 %v603, %v585
  %v676 = vpack.c.b16 %v604, %v586
  %v677 = vpack.c.b16 %v605, %v587
  %v678 = vpack.c.b16 %v606, %v588
  %v679 = vpack.c.b16 %v607, %v589
  %v1040 = vunpack.c.l.b16 %v92
  %v1041 = vunpack.c.h.b16 %v92
  %v1042 = vunpack.c.l.b16 %v93
  %v1043 = vunpack.c.h.b16 %v93
  %v1044 = vunpack.c.l.b16 %v94
  %v1045 = vunpack.c.h.b16 %v94
  %v1046 = vunpack.c.l.b16 %v95
  %v1047 = vunpack.c.h.b16 %v95
  %v1048 = vunpack.c.l.b16 %v96
  %v1049 = vunpack.c.h.b16 %v96
  %v1050 = vunpack.c.l.b16 %v97
  %v1051 = vunpack.c.h.b16 %v97
  %v1052 = vunpack.c.l.b16 %v98
  %v1053 = vunpack.c.h.b16 %v98
  %v1054 = vunpack.c.l.b16 %v99
  %v1055 = vunpack.c.h.b16 %v99
  %v1056 = vunpack.c.l.b16 %v100
  %v1057 = vunpack.c.h.b16 %v100
  %v1058 = vunpack.c.l.b16 %v101
  %v1059 = vunpack.c.h.b16 %v101
  %v1060 = vunpack.c.l.b16 %v102
  %v1061 = vunpack.c.h.b16 %v102
  %v1062 = vunpack.c.l.b16 %v103
  %v1063 = vunpack.c.h.b16 %v103
  %v1064 = vunpack.c.l.b16 %v104
  %v1065 = vunpack.c.h.b16 %v104
  %v1066 = vunpack.c.l.b16 %v105
  %v1067 = vunpack.c.h.b16 %v105
  %v1068 = vunpack.c.l.b16 %v106
  %v1069 = vunpack.c.h.b16 %v106
  %v1070 = vunpack.c.l.b16 %v107
  %v1071 = vunpack.c.h.b16 %v107
  %v1072 = vunpack.c.l.b16 %v108
  %v1073 = vunpack.c.h.b16 %v108
  %v1074 = vunpack.c.l.b16 %v109
  %v1075 = vunpack.c.h.b16 %v109
  %v1076 = vunpack.c.l.b16 %v110
  %v1077 = vunpack.c.h.b16 %v110
  %v1078 = vunpack.c.l.b16 %v111
  %v1079 = vunpack.c.h.b16 %v111
  %v1080 = vunpack.c.l.b16 %v112
  %v1081 = vunpack.c.h.b16 %v112
  %v1082 = vunpack.c.l.b16 %v113
  %v1083 = vunpack.c.h.b16 %v113
  %v1084 = vunpack.c.l.b16 %v114
  %v1085 = vunpack.c.h.b16 %v114
  %v1086 = vunpack.c.l.b16 %v115
  %v1087 = vunpack.c.h.b16 %v115
  %v1088 = vunpack.c.l.b16 %v116
  %v1089 = vunpack.c.h.b16 %v116
  %v1090 = vunpack.c.l.b16 %v117
  %v1091 = vunpack.c.h.b16 %v117
  %v1092 = vunpack.c.l.b16 %v118
  %v1093 = vunpack.c.h.b16 %v118
  %v1094 = vunpack.c.l.b16 %v119
  %v1095 = vunpack.c.h.b16 %v119
  %v1096 = vunpack.c.l.b16 %v120
  %v1097 = vunpack.c.h.b16 %v120
  %v1098 = vunpack.c.l.b16 %v121
  %v1099 = vunpack.c.h.b16 %v121
  %v1100 = vunpack.c.l.b16 %v122
  %v1101 = vunpack.c.h.b16 %v122
  %v1102 = vunpack.c.l.b16 %v123
  %v1103 = vunpack.c.h.b16 %v123
  %v1104 = vunpack.c.l.b16 %v124
  %v1105 = vunpack.c.h.b16 %v124
  %v1106 = vunpack.c.l.b16 %v125
  %v1107 = vunpack.c.h.b16 %v125
  %v1108 = vunpack.c.l.b16 %v126
  %v1109 = vunpack.c.h.b16 %v126
  %v1110 = vunpack.c.l.b16 %v127
  %v1111 = vunpack.c.h.b16 %v127
  %v1112 = vunpack.c.l.b16 %v128
  %v1113 = vunpack.c.h.b16 %v128
  %v1114 = vunpack.c.l.b16 %v129
  %v1115 = vunpack.c.h.b16 %v129
  %v1116 = vunpack.c.l.b16 %v130
  %v1117 = vunpack.c.h.b16 %v130
  %v1118 = vunpack.c.l.b16 %v131
  %v1119 = vunpack.c.h.b16 %v131
  %v1120 = vunpack.c.l.b16 %v132
  %v1121 = vunpack.c.h.b16 %v132
  %v1122 = vunpack.c.l.b16 %v133
  %v1123 = vunpack.c.h.b16 %v133
  %v1124 = vunpack.c.l.b16 %v134
  %v1125 = vunpack.c.h.b16 %v134
  %v1126 = vunpack.c.l.b16 %v135
  %v1127 = vunpack.c.h.b16 %v135
  %v1128 = vunpack.c.l.b16 %v136
  %v1129 = vunpack.c.h.b16 %v136
  %v1130 = vunpack.c.l.b16 %v137
  %v1131 = vunpack.c.h.b16 %v137
  %v1132 = vunpack.c.l.b16 %v138
  %v1133 = vunpack.c.h.b16 %v138
  %v1134 = vunpack.c.l.b16 %v139
  %v1135 = vunpack.c.h.b16 %v139
  %v1136 = vunpack.c.l.b16 %v140
  %v1137 = vunpack.c.h.b16 %v140
  %v1138 = vunpack.c.l.b16 %v141
  %v1139 = vunpack.c.h.b16 %v141
  %v1140 = vunpack.c.l.b16 %v142
  %v1141 = vunpack.c.h.b16 %v142
  %v1142 = vunpack.c.l.b16 %v143
  %v1143 = vunpack.c.h.b16 %v143
  %v1144 = vunpack.c.l.b16 %v144
  %v1145 = vunpack.c.h.b16 %v144
  %v1146 = vunpack.c.l.b16 %v145
  %v1147 = vunpack.c.h.b16 %v145
  %v1148 = vunpack.c.l.b16 %v146
  %v1149 = vunpack.c.h.b16 %v146
  %v1150 = vunpack.c.l.b16 %v147
  %v1151 = vunpack.c.h.b16 %v147
  %v1152 = vunpack.c.l.b16 %v148
  %v1153 = vunpack.c.h.b16 %v148
  %v1154 = vunpack.c.l.b16 %v149
  %v1155 = vunpack.c.h.b16 %v149
  %v1156 = vunpack.c.l.b16 %v150
  %v1157 = vunpack.c.h.b16 %v150
  %v1158 = vunpack.c.l.b16 %v151
  %v1159 = vunpack.c.h.b16 %v151
  %v1160 = vunpack.c.l.b16 %v152
  %v1161 = vunpack.c.h.b16 %v152
  %v1162 = vunpack.c.l.b16 %v153
  %v1163 = vunpack.c.h.b16 %v153
  %v1164 = vunpack.c.l.b16 %v154
  %v1165 = vunpack.c.h.b16 %v154
  %v1166 = vunpack.c.l.b16 %v155
  %v1167 = vunpack.c.h.b16 %v155
  %v1168 = vunpack.c.l.b16 %v156
  %v1169 = vunpack.c.h.b16 %v156
  %v1170 = vunpack.c.l.b16 %v157
  %v1171 = vunpack.c.h.b16 %v157
  %v1172 = vunpack.c.l.b16 %v158
  %v1173 = vunpack.c.h.b16 %v158
  %v1174 = vunpack.c.l.b16 %v159
  %v1175 = vunpack.c.h.b16 %v159
  %v1176 = vunpack.c.l.b16 %v160
  %v1177 = vunpack.c.h.b16 %v160
  %v1178 = vunpack.c.l.b16 %v161
  %v1179 = vunpack.c.h.b16 %v161
  %v1180 = vunpack.c.l.b16 %v162
  %v1181 = vunpack.c.h.b16 %v162
  %v1182 = vunpack.c.l.b16 %v163
  %v1183 = vunpack.c.h.b16 %v163
  %v1184 = vunpack.c.l.b16 %v164
  %v1185 = vunpack.c.h.b16 %v164
  %v1186 = vunpack.c.l.b16 %v165
  %v1187 = vunpack.c.h.b16 %v165
  %v1188 = vunpack.c.l.b16 %v166
  %v1189 = vunpack.c.h.b16 %v166
  %v1190 = vunpack.c.l.b16 %v167
  %v1191 = vunpack.c.h.b16 %v167
  %v1192 = vunpack.c.l.b16 %v168
  %v1193 = vunpack.c.h.b16 %v168
  %v1194 = vunpack.c.l.b16 %v169
  %v1195 = vunpack.c.h.b16 %v169
  %v1196 = vunpack.c.l.b16 %v170
  %v1197 = vunpack.c.h.b16 %v170
  %v1198 = vunpack.c.l.b16 %v171
  %v1199 = vunpack.c.h.b16 %v171
  %v1200 = vunpack.c.l.b16 %v172
  %v1201 = vunpack.c.h.b16 %v172
  %v1202 = vunpack.c.l.b16 %v173
  %v1203 = vunpack.c.h.b16 %v173
  %v1204 = vunpack.c.l.b16 %v174
  %v1205 = vunpack.c.h.b16 %v174
  %v1206 = vunpack.c.l.b16 %v175
  %v1207 = vunpack.c.h.b16 %v175
  %v1208 = vunpack.c.l.b16 %v176
  %v1209 = vunpack.c.h.b16 %v176
  %v1210 = vunpack.c.l.b16 %v177
  %v1211 = vunpack.c.h.b16 %v177
  %v1212 = vunpack.c.l.b16 %v178
  %v1213 = vunpack.c.h.b16 %v178
  %v1214 = vunpack.c.l.b16 %v179
  %v1215 = vunpack.c.h.b16 %v179
  %v1216 = vunpack.c.l.b16 %v180
  %v1217 = vunpack.c.h.b16 %v180
  %v1218 = vunpack.c.l.b16 %v181
  %v1219 = vunpack.c.h.b16 %v181
  %v1220 = vunpack.c.l.b16 %v182
  %v1221 = vunpack.c.h.b16 %v182
  %v1222 = vunpack.c.l.b16 %v183
  %v1223 = vunpack.c.h.b16 %v183
  %v1224 = vunpack.c.l.b16 %v184
  %v1225 = vunpack.c.h.b16 %v184
  %v1226 = vunpack.c.l.b16 %v185
  %v1227 = vunpack.c.h.b16 %v185
  %v1228 = vunpack.c.l.b16 %v186
  %v1229 = vunpack.c.h.b16 %v186
  %v1230 = vunpack.c.l.b16 %v187
  %v1231 = vunpack.c.h.b16 %v187
  %v1232 = vunpack.c.l.b16 %v188
  %v1233 = vunpack.c.h.b16 %v188
  %v1234 = vunpack.c.l.b16 %v189
  %v1235 = vunpack.c.h.b16 %v189
  %v1236 = vunpack.c.l.b16 %v190
  %v1237 = vunpack.c.h.b16 %v190
  %v1238 = vunpack.c.l.b16 %v191
  %v1239 = vunpack.c.h.b16 %v191
  %v1240 = vunpack.c.l.b16 %v192
  %v1241 = vunpack.c.h.b16 %v192
  %v1242 = vunpack.c.l.b16 %v193
  %v1243 = vunpack.c.h.b16 %v193
  %v1244 = vunpack.c.l.b16 %v194
  %v1245 = vunpack.c.h.b16 %v194
  %v1246 = vunpack.c.l.b16 %v195
  %v1247 = vunpack.c.h.b16 %v195
  %v1248 = vunpack.c.l.b16 %v196
  %v1249 = vunpack.c.h.b16 %v196
  %v1250 = vunpack.c.l.b16 %v197
  %v1251 = vunpack.c.h.b16 %v197
  %v1252 = vunpack.c.l.b16 %v198
  %v1253 = vunpack.c.h.b16 %v198
  %v1254 = vunpack.c.l.b16 %v199
  %v1255 = vunpack.c.h.b16 %v199
  %v1256 = vunpack.c.l.b16 %v200
  %v1257 = vunpack.c.h.b16 %v200
  %v1258 = vunpack.c.l.b16 %v201
  %v1259 = vunpack.c.h.b16 %v201
  %v1260 = vunpack.c.l.b16 %v202
  %v1261 = vunpack.c.h.b16 %v202
  %v1262 = vunpack.c.l.b16 %v203
  %v1263 = vunpack.c.h.b16 %v203
  %v1264 = vunpack.c.l.b16 %v204
  %v1265 = vunpack.c.h.b16 %v204
  %v1266 = vunpack.c.l.b16 %v205
  %v1267 = vunpack.c.h.b16 %v205
  %v1268 = vunpack.c.l.b16 %v206
  %v1269 = vunpack.c.h.b16 %v206
  %v1270 = vunpack.c.l.b16 %v207
  %v1271 = vunpack.c.h.b16 %v207
  %v1272 = vunpack.c.l.b16 %v208
  %v1273 = vunpack.c.h.b16 %v208
  %v1274 = vunpack.c.l.b16 %v209
  %v1275 = vunpack.c.h.b16 %v209
  %v1276 = vunpack.c.l.b16 %v210
  %v1277 = vunpack.c.h.b16 %v210
  %v1278 = vunpack.c.l.b16 %v211
  %v1279 = vunpack.c.h.b16 %v211
  %v1280 = vunpack.c.l.b16 %v212
  %v1281 = vunpack.c.h.b16 %v212
  %v1282 = vunpack.c.l.b16 %v213
  %v1283 = vunpack.c.h.b16 %v213
  %v1284 = vunpack.c.l.b16 %v214
  %v1285 = vunpack.c.h.b16 %v214
  %v1286 = vunpack.c.l.b16 %v215
  %v1287 = vunpack.c.h.b16 %v215
  %v1288 = vunpack.c.l.b16 %v216
  %v1289 = vunpack.c.h.b16 %v216
  %v1290 = vunpack.c.l.b16 %v217
  %v1291 = vunpack.c.h.b16 %v217
  %v1292 = vunpack.c.l.b16 %v218
  %v1293 = vunpack.c.h.b16 %v218
  %v1294 = vunpack.c.l.b16 %v219
  %v1295 = vunpack.c.h.b16 %v219
  %v1296 = vunpack.c.l.b16 %v220
  %v1297 = vunpack.c.h.b16 %v220
  %v1298 = vunpack.c.l.b16 %v221
  %v1299 = vunpack.c.h.b16 %v221
  %v1300 = vunpack.c.l.b16 %v222
  %v1301 = vunpack.c.h.b16 %v222
  %v1302 = vunpack.c.l.b16 %v223
  %v1303 = vunpack.c.h.b16 %v223
  %v1304 = vunpack.c.l.b16 %v224
  %v1305 = vunpack.c.h.b16 %v224
  %v1306 = vunpack.c.l.b16 %v225
  %v1307 = vunpack.c.h.b16 %v225
  %v1308 = vunpack.c.l.b16 %v226
  %v1309 = vunpack.c.h.b16 %v226
  %v1310 = vunpack.c.l.b16 %v227
  %v1311 = vunpack.c.h.b16 %v227
  %v1312 = vunpack.c.l.b16 %v228
  %v1313 = vunpack.c.h.b16 %v228
  %v1314 = vunpack.c.l.b16 %v229
  %v1315 = vunpack.c.h.b16 %v229
  %v1316 = vunpack.c.l.b16 %v230
  %v1317 = vunpack.c.h.b16 %v230
  %v1318 = vunpack.c.l.b16 %v231
  %v1319 = vunpack.c.h.b16 %v231
  %v1320 = vunpack.c.l.b16 %v232
  %v1321 = vunpack.c.h.b16 %v232
  %v1322 = vunpack.c.l.b16 %v233
  %v1323 = vunpack.c.h.b16 %v233
  %v1324 = vunpack.c.l.b16 %v234
  %v1325 = vunpack.c.h.b16 %v234
  %v1326 = vunpack.c.l.b16 %v235
  %v1327 = vunpack.c.h.b16 %v235
  %v1328 = vunpack.c.l.b16 %v236
  %v1329 = vunpack.c.h.b16 %v236
  %v1330 = vunpack.c.l.b16 %v237
  %v1331 = vunpack.c.h.b16 %v237
  %v1332 = vunpack.c.l.b16 %v238
  %v1333 = vunpack.c.h.b16 %v238
  %v1334 = vunpack.c.l.b16 %v239
  %v1335 = vunpack.c.h.b16 %v239
  %v1336 = vunpack.c.l.b16 %v240
  %v1337 = vunpack.c.h.b16 %v240
  %v1338 = vunpack.c.l.b16 %v241
  %v1339 = vunpack.c.h.b16 %v241
  %v1340 = vunpack.c.l.b16 %v242
  %v1341 = vunpack.c.h.b16 %v242
  %v1342 = vunpack.c.l.b16 %v243
  %v1343 = vunpack.c.h.b16 %v243
  %v1344 = vunpack.c.l.b16 %v244
  %v1345 = vunpack.c.h.b16 %v244
  %v1346 = vunpack.c.l.b16 %v245
  %v1347 = vunpack.c.h.b16 %v245
  %v1348 = vunpack.c.l.b16 %v246
  %v1349 = vunpack.c.h.b16 %v246
  %v1350 = vunpack.c.l.b16 %v247
  %v1351 = vunpack.c.h.b16 %v247
  %v1352 = vunpack.c.l.b16 %v248
  %v1353 = vunpack.c.h.b16 %v248
  %v1354 = vunpack.c.l.b16 %v249
  %v1355 = vunpack.c.h.b16 %v249
  %v1356 = vunpack.c.l.b16 %v250
  %v1357 = vunpack.c.h.b16 %v250
  %v1358 = vunpack.c.l.b16 %v251
  %v1359 = vunpack.c.h.b16 %v251
  %v1360 = vunpack.c.l.b16 %v252
  %v1361 = vunpack.c.h.b16 %v252
  %v1362 = vunpack.c.l.b16 %v253
  %v1363 = vunpack.c.h.b16 %v253
  %v1364 = vunpack.c.l.b16 %v254
  %v1365 = vunpack.c.h.b16 %v254
  %v1366 = vunpack.c.l.b16 %v255
  %v1367 = vunpack.c.h.b16 %v255
  %v1368 = vunpack.c.l.b16 %v256
  %v1369 = vunpack.c.h.b16 %v256
  %v1370 = vunpack.c.l.b16 %v257
  %v1371 = vunpack.c.h.b16 %v257
  %v1372 = vunpack.c.l.b16 %v258
  %v1373 = vunpack.c.h.b16 %v258
  %v1374 = vunpack.c.l.b16 %v259
  %v1375 = vunpack.c.h.b16 %v259
  %v1376 = vunpack.c.l.b16 %v260
  %v1377 = vunpack.c.h.b16 %v260
  %v1378 = vunpack.c.l.b16 %v261
  %v1379 = vunpack.c.h.b16 %v261
  %v1380 = vunpack.c.l.b16 %v262
  %v1381 = vunpack.c.h.b16 %v262
  %v1382 = vunpack.c.l.b16 %v263
  %v1383 = vunpack.c.h.b16 %v263
  %v1384 = vunpack.c.l.b16 %v264
  %v1385 = vunpack.c.h.b16 %v264
  %v1386 = vunpack.c.l.b16 %v265
  %v1387 = vunpack.c.h.b16 %v265
  %v1388 = vunpack.c.l.b16 %v266
  %v1389 = vunpack.c.h.b16 %v266
  %v1390 = vunpack.c.l.b16 %v267
  %v1391 = vunpack.c.h.b16 %v267
  %v1392 = vunpack.c.l.b16 %v268
  %v1393 = vunpack.c.h.b16 %v268
  %v1394 = vunpack.c.l.b16 %v269
  %v1395 = vunpack.c.h.b16 %v269
  %v1396 = vunpack.c.l.b16 %v270
  %v1397 = vunpack.c.h.b16 %v270
  %v1398 = vunpack.c.l.b16 %v271
  %v1399 = vunpack.c.h.b16 %v271
  %v1400 = vunpack.c.l.b16 %v272
  %v1401 = vunpack.c.h.b16 %v272
  %v1402 = vunpack.c.l.b16 %v273
  %v1403 = vunpack.c.h.b16 %v273
  %v1404 = vunpack.c.l.b16 %v274
  %v1405 = vunpack.c.h.b16 %v274
  %v1406 = vunpack.c.l.b16 %v275
  %v1407 = vunpack.c.h.b16 %v275
  %v1408 = vunpack.c.l.b16 %v276
  %v1409 = vunpack.c.h.b16 %v276
  %v1410 = vunpack.c.l.b16 %v277
  %v1411 = vunpack.c.h.b16 %v277
  %v1412 = vunpack.c.l.b16 %v278
  %v1413 = vunpack.c.h.b16 %v278
  %v1414 = vunpack.c.l.b16 %v279
  %v1415 = vunpack.c.h.b16 %v279
  %v1416 = vunpack.c.l.b16 %v280
  %v1417 = vunpack.c.h.b16 %v280
  %v1418 = vunpack.c.l.b16 %v281
  %v1419 = vunpack.c.h.b16 %v281
  %v1420 = vunpack.c.l.b16 %v282
  %v1421 = vunpack.c.h.b16 %v282
  %v1422 = vunpack.c.l.b16 %v283
  %v1423 = vunpack.c.h.b16 %v283
  %v1424 = vunpack.c.l.b16 %v284
  %v1425 = vunpack.c.h.b16 %v284
  %v1426 = vunpack.c.l.b16 %v285
  %v1427 = vunpack.c.h.b16 %v285
  %v1428 = vunpack.c.l.b16 %v286
  %v1429 = vunpack.c.h.b16 %v286
  %v1430 = vunpack.c.l.b16 %v287
  %v1431 = vunpack.c.h.b16 %v287
  %v1432 = vunpack.c.l.b16 %v288
  %v1433 = vunpack.c.h.b16 %v288
  %v1434 = vunpack.c.l.b16 %v289
  %v1435 = vunpack.c.h.b16 %v289
  %v1436 = vunpack.c.l.b16 %v290
  %v1437 = vunpack.c.h.b16 %v290
  %v1438 = vunpack.c.l.b16 %v291
  %v1439 = vunpack.c.h.b16 %v291
  %v1440 = vunpack.c.l.b16 %v292
  %v1441 = vunpack.c.h.b16 %v292
  %v1442 = vunpack.c.l.b16 %v293
  %v1443 = vunpack.c.h.b16 %v293
  %v1444 = vunpack.c.l.b16 %v294
  %v1445 = vunpack.c.h.b16 %v294
  %v1446 = vunpack.c.l.b16 %v295
  %v1447 = vunpack.c.h.b16 %v295
  %v1448 = vunpack.c.l.b16 %v296
  %v1449 = vunpack.c.h.b16 %v296
  %v1450 = vunpack.c.l.b16 %v297
  %v1451 = vunpack.c.h.b16 %v297
  %v1452 = vunpack.c.l.b16 %v298
  %v1453 = vunpack.c.h.b16 %v298
  %v1454 = vunpack.c.l.b16 %v299
  %v1455 = vunpack.c.h.b16 %v299
  %v1456 = vunpack.c.l.b16 %v300
  %v1457 = vunpack.c.h.b16 %v300
  %v1458 = vunpack.c.l.b16 %v301
  %v1459 = vunpack.c.h.b16 %v301
  %v1460 = vunpack.c.l.b16 %v302
  %v1461 = vunpack.c.h.b16 %v302
  %v1462 = vunpack.c.l.b16 %v303
  %v1463 = vunpack.c.h.b16 %v303
  %v1464 = vunpack.c.l.b16 %v304
  %v1465 = vunpack.c.h.b16 %v304
  %v1466 = vunpack.c.l.b16 %v305
  %v1467 = vunpack.c.h.b16 %v305
  %v1468 = vunpack.c.l.b16 %v306
  %v1469 = vunpack.c.h.b16 %v306
  %v1470 = vunpack.c.l.b16 %v307
  %v1471 = vunpack.c.h.b16 %v307
  %v1472 = vunpack.c.l.b16 %v308
  %v1473 = vunpack.c.h.b16 %v308
  %v1474 = vunpack.c.l.b16 %v309
  %v1475 = vunpack.c.h.b16 %v309
  %v1476 = vunpack.c.l.b16 %v310
  %v1477 = vunpack.c.h.b16 %v310
  %v1478 = vunpack.c.l.b16 %v311
  %v1479 = vunpack.c.h.b16 %v311
  %v1480 = vunpack.c.l.b16 %v312
  %v1481 = vunpack.c.h.b16 %v312
  %v1482 = vunpack.c.l.b16 %v313
  %v1483 = vunpack.c.h.b16 %v313
  %v1484 = vunpack.c.l.b16 %v314
  %v1485 = vunpack.c.h.b16 %v314
  %v1486 = vunpack.c.l.b16 %v315
  %v1487 = vunpack.c.h.b16 %v315
  %v1488 = vunpack.c.l.b16 %v316
  %v1489 = vunpack.c.h.b16 %v316
  %v1490 = vunpack.c.l.b16 %v317
  %v1491 = vunpack.c.h.b16 %v317
  %v1492 = vunpack.c.l.b16 %v318
  %v1493 = vunpack.c.h.b16 %v318
  %v1494 = vunpack.c.l.b16 %v319
  %v1495 = vunpack.c.h.b16 %v319
  %v1496 = vunpack.c.l.b16 %v320
  %v1497 = vunpack.c.h.b16 %v320
  %v1498 = vunpack.c.l.b16 %v321
  %v1499 = vunpack.c.h.b16 %v321
  %v1500 = vunpack.c.l.b16 %v322
  %v1501 = vunpack.c.h.b16 %v322
  %v1502 = vunpack.c.l.b16 %v323
  %v1503 = vunpack.c.h.b16 %v323
  %v1504 = vunpack.c.l.b16 %v324
  %v1505 = vunpack.c.h.b16 %v324
  %v1506 = vunpack.c.l.b16 %v325
  %v1507 = vunpack.c.h.b16 %v325
  %v1508 = vunpack.c.l.b16 %v326
  %v1509 = vunpack.c.h.b16 %v326
  %v1510 = vunpack.c.l.b16 %v327
  %v1511 = vunpack.c.h.b16 %v327
  %v1512 = vunpack.c.l.b16 %v328
  %v1513 = vunpack.c.h.b16 %v328
  %v1514 = vunpack.c.l.b16 %v329
  %v1515 = vunpack.c.h.b16 %v329
  %v1516 = vunpack.c.l.b16 %v330
  %v1517 = vunpack.c.h.b16 %v330
  %v1518 = vunpack.c.l.b16 %v331
  %v1519 = vunpack.c.h.b16 %v331
  %v1520 = vunpack.c.l.b16 %v332
  %v1521 = vunpack.c.h.b16 %v332
  %v1522 = vunpack.c.l.b16 %v333
  %v1523 = vunpack.c.h.b16 %v333
  %v1524 = vunpack.c.l.b16 %v334
  %v1525 = vunpack.c.h.b16 %v334
  %v1526 = vunpack.c.l.b16 %v335
  %v1527 = vunpack.c.h.b16 %v335
  %v1528 = vunpack.c.l.b16 %v336
  %v1529 = vunpack.c.h.b16 %v336
  %v1530 = vunpack.c.l.b16 %v337
  %v1531 = vunpack.c.h.b16 %v337
  %v1532 = vunpack.c.l.b16 %v338
  %v1533 = vunpack.c.h.b16 %v338
  %v1534 = vunpack.c.l.b16 %v339
  %v1535 = vunpack.c.h.b16 %v339
  %v1536 = vunpack.c.l.b16 %v340
  %v1537 = vunpack.c.h.b16 %v340
  %v1538 = vunpack.c.l.b16 %v341
  %v1539 = vunpack.c.h.b16 %v341
  %v1540 = vunpack.c.l.b16 %v342
  %v1541 = vunpack.c.h.b16 %v342
  %v1542 = vunpack.c.l.b16 %v343
  %v1543 = vunpack.c.h.b16 %v343
  %v1544 = vunpack.c.l.b16 %v344
  %v1545 = vunpack.c.h.b16 %v344
  %v1546 = vunpack.c.l.b16 %v345
  %v1547 = vunpack.c.h.b16 %v345
  %v1548 = vunpack.c.l.b16 %v346
  %v1549 = vunpack.c.h.b16 %v346
  %v1550 = vunpack.c.l.b16 %v347
  %v1551 = vunpack.c.h.b16 %v347
  %v1552 = vunpack.c.l.b16 %v348
  %v1553 = vunpack.c.h.b16 %v348
  %v1554 = vunpack.c.l.b16 %v349
  %v1555 = vunpack.c.h.b16 %v349
  %v1556 = vunpack.c.l.b16 %v350
  %v1557 = vunpack.c.h.b16 %v350
  %v1558 = vunpack.c.l.b16 %v351
  %v1559 = vunpack.c.h.b16 %v351
  %v1560 = vunpack.c.l.b16 %v352
  %v1561 = vunpack.c.h.b16 %v352
  %v1562 = vunpack.c.l.b16 %v353
  %v1563 = vunpack.c.h.b16 %v353
  %v1564 = vunpack.c.l.b16 %v354
  %v1565 = vunpack.c.h.b16 %v354
  %v1566 = vunpack.c.l.b16 %v355
  %v1567 = vunpack.c.h.b16 %v355
  %v1568 = vunpack.c.l.b16 %v356
  %v1569 = vunpack.c.h.b16 %v356
  %v1570 = vunpack.c.l.b16 %v357
  %v1571 = vunpack.c.h.b16 %v357
  %v1572 = vunpack.c.l.b16 %v358
  %v1573 = vunpack.c.h.b16 %v358
  %v1574 = vunpack.c.l.b16 %v359
  %v1575 = vunpack.c.h.b16 %v359
  %v1576 = vunpack.c.l.b16 %v360
  %v1577 = vunpack.c.h.b16 %v360
  %v1578 = vunpack.c.l.b16 %v361
  %v1579 = vunpack.c.h.b16 %v361
  %v1580 = vunpack.c.l.b16 %v362
  %v1581 = vunpack.c.h.b16 %v362
  %v1582 = vunpack.c.l.b16 %v363
  %v1583 = vunpack.c.h.b16 %v363
  %v1584 = vunpack.c.l.b16 %v364
  %v1585 = vunpack.c.h.b16 %v364
  %v1586 = vunpack.c.l.b16 %v365
  %v1587 = vunpack.c.h.b16 %v365
  %v1588 = vunpack.c.l.b16 %v366
  %v1589 = vunpack.c.h.b16 %v366
  %v1590 = vunpack.c.l.b16 %v367
  %v1591 = vunpack.c.h.b16 %v367
  %v1592 = vunpack.c.l.b16 %v368
  %v1593 = vunpack.c.h.b16 %v368
  %v1594 = vunpack.c.l.b16 %v369
  %v1595 = vunpack.c.h.b16 %v369
  %v1596 = vunpack.c.l.b16 %v370
  %v1597 = vunpack.c.h.b16 %v370
  %v1598 = vunpack.c.l.b16 %v371
  %v1599 = vunpack.c.h.b16 %v371
  %v1600 = vunpack.c.l.b16 %v372
  %v1601 = vunpack.c.h.b16 %v372
  %v1602 = vunpack.c.l.b16 %v373
  %v1603 = vunpack.c.h.b16 %v373
  %v1604 = vunpack.c.l.b16 %v374
  %v1605 = vunpack.c.h.b16 %v374
  %v1606 = vunpack.c.l.b16 %v375
  %v1607 = vunpack.c.h.b16 %v375
  %v1608 = vunpack.c.l.b16 %v376
  %v1609 = vunpack.c.h.b16 %v376
  %v1610 = vunpack.c.l.b16 %v377
  %v1611 = vunpack.c.h.b16 %v377
  %v1612 = vunpack.c.l.b16 %v378
  %v1613 = vunpack.c.h.b16 %v378
  %v1614 = vunpack.c.l.b16 %v379
  %v1615 = vunpack.c.h.b16 %v379
  %v1616 = vpack.c.b16 %v1042, %v1040
  %v1617 = vpack.c.b16 %v1043, %v1041
  %v1618 = vpack.c.b16 %v1046, %v1044
  %v1619 = vpack.c.b16 %v1047, %v1045
  %v1620 = vpack.c.b16 %v1050, %v1048
  %v1621 = vpack.c.b16 %v1051, %v1049
  %v1622 = vpack.c.b16 %v1054, %v1052
  %v1623 = vpack.c.b16 %v1055, %v1053
  %v1624 = vpack.c.b16 %v1058, %v1056
  %v1625 = vpack.c.b16 %v1059, %v1057
  %v1626 = vpack.c.b16 %v1062, %v1060
  %v1627 = vpack.c.b16 %v1063, %v1061
  %v1628 = vpack.c.b16 %v1066, %v1064
  %v1629 = vpack.c.b16 %v1067, %v1065
  %v1630 = vpack.c.b16 %v1070, %v1068
  %v1631 = vpack.c.b16 %v1071, %v1069
  %v1632 = vpack.c.b16 %v1074, %v1072
  %v1633 = vpack.c.b16 %v1075, %v1073
  %v1634 = vpack.c.b16 %v1078, %v1076
  %v1635 = vpack.c.b16 %v1079, %v1077
  %v1636 = vpack.c.b16 %v1082, %v1080
  %v1637 = vpack.c.b16 %v1083, %v1081
  %v1638 = vpack.c.b16 %v1086, %v1084
  %v1639 = vpack.c.b16 %v1087, %v1085
  %v1640 = vpack.c.b16 %v1090, %v1088
  %v1641 = vpack.c.b16 %v1091, %v1089
  %v1642 = vpack.c.b16 %v1094, %v1092
  %v1643 = vpack.c.b16 %v1095, %v1093
  %v1644 = vpack.c.b16 %v1098, %v1096
  %v1645 = vpack.c.b16 %v1099, %v1097
  %v1646 = vpack.c.b16 %v1102, %v1100
  %v1647 = vpack.c.b16 %v1103, %v1101
  %v1648 = vpack.c.b16 %v1106, %v1104
  %v1649 = vpack.c.b16 %v1107, %v1105
  %v1650 = vpack.c.b16 %v1110, %v1108
  %v1651 = vpack.c.b16 %v1111, %v1109
  %v1652 = vpack.c.b16 %v1114, %v1112
  %v1653 = vpack.c.b16 %v1115, %v1113
  %v1654 = vpack.c.b16 %v1118, %v1116
  %v1655 = vpack.c.b16 %v1119, %v1117
  %v1656 = vpack.c.b16 %v1122, %v1120
  %v1657 = vpack.c.b16 %v1123, %v1121
  %v1658 = vpack.c.b16 %v1126, %v1124
  %v1659 = vpack.c.b16 %v1127, %v1125
  %v1660 = vpack.c.b16 %v1130, %v1128
  %v1661 = vpack.c.b16 %v1131, %v1129
  %v1662 = vpack.c.b16 %v1134, %v1132
  %v1663 = vpack.c.b16 %v1135, %v1133
  %v1664 = vpack.c.b16 %v1138, %v1136
  %v1665 = vpack.c.b16 %v1139, %v1137
  %v1666 = vpack.c.b16 %v1142, %v1140
  %v1667 = vpack.c.b16 %v1143, %v1141
  %v1668 = vpack.c.b16 %v1146, %v1144
  %v1669 = vpack.c.b16 %v1147, %v1145
  %v1670 = vpack.c.b16 %v1150, %v1148
  %v1671 = vpack.c.b16 %v1151, %v1149
  %v1672 = vpack.c.b16 %v1154, %v1152
  %v1673 = vpack.c.b16 %v1155, %v1153
  %v1674 = vpack.c.b16 %v1158, %v1156
  %v1675 = vpack.c.b16 %v1159, %v1157
  %v1676 = vpack.c.b16 %v1162, %v1160
  %v1677 = vpack.c.b16 %v1163, %v1161
  %v1678 = vpack.c.b16 %v1166, %v1164
  %v1679 = vpack.c.b16 %v1167, %v1165
  %v1680 = vpack.c.b16 %v1170, %v1168
  %v1681 = vpack.c.b16 %v1171, %v1169
  %v1682 = vpack.c.b16 %v1174, %v1172
  %v1683 = vpack.c.b16 %v1175, %v1173
  %v1684 = vpack.c.b16 %v1178, %v1176
  %v1685 = vpack.c.b16 %v1179, %v1177
  %v1686 = vpack.c.b16 %v1182, %v1180
  %v1687 = vpack.c.b16 %v1183, %v1181
  %v1688 = vpack.c.b16 %v1186, %v1184
  %v1689 = vpack.c.b16 %v1187, %v1185
  %v1690 = vpack.c.b16 %v1190, %v1188
  %v1691 = vpack.c.b16 %v1191, %v1189
  %v1692 = vpack.c.b16 %v1194, %v1192
  %v1693 = vpack.c.b16 %v1195, %v1193
  %v1694 = vpack.c.b16 %v1198, %v1196
  %v1695 = vpack.c.b16 %v1199, %v1197
  %v1696 = vpack.c.b16 %v1202, %v1200
  %v1697 = vpack.c.b16 %v1203, %v1201
  %v1698 = vpack.c.b16 %v1206, %v1204
  %v1699 = vpack.c.b16 %v1207, %v1205
  %v1700 = vpack.c.b16 %v1210, %v1208
  %v1701 = vpack.c.b16 %v1211, %v1209
  %v1702 = vpack.c.b16 %v1214, %v1212
  %v1703 = vpack.c.b16 %v1215, %v1213
  %v1704 = vpack.c.b16 %v1218, %v1216
  %v1705 = vpack.c.b16 %v1219, %v1217
  %v1706 = vpack.c.b16 %v1222, %v1220
  %v1707 = vpack.c.b16 %v1223, %v1221
  %v1708 = vpack.c.b16 %v1226, %v1224
  %v1709 = vpack.c.b16 %v1227, %v1225
  %v1710 = vpack.c.b16 %v1230, %v1228
  %v1711 = vpack.c.b16 %v1231, %v1229
  %v1712 = vpack.c.b16 %v1234, %v1232
  %v1713 = vpack.c.b16 %v1235, %v1233
  %v1714 = vpack.c.b16 %v1238, %v1236
  %v1715 = vpack.c.b16 %v1239, %v1237
  %v1716 = vpack.c.b16 %v1242, %v1240
  %v1717 = vpack.c.b16 %v1243, %v1241
  %v1718 = vpack.c.b16 %v1246, %v1244
  %v1719 = vpack.c.b16 %v1247, %v1245
  %v1720 = vpack.c.b16 %v1250, %v1248
  %v1721 = vpack.c.b16 %v1251, %v1249
  %v1722 = vpack.c.b16 %v1254, %v1252
  %v1723 = vpack.c.b16 %v1255, %v1253
  %v1724 = vpack.c.b16 %v1258, %v1256
  %v1725 = vpack.c.b16 %v1259, %v1257
  %v1726 = vpack.c.b16 %v1262, %v1260
  %v1727 = vpack.c.b16 %v1263, %v1261
  %v1728 = vpack.c.b16 %v1266, %v1264
  %v1729 = vpack.c.b16 %v1267, %v1265
  %v1730 = vpack.c.b16 %v1270, %v1268
  %v1731 = vpack.c.b16 %v1271, %v1269
  %v1732 = vpack.c.b16 %v1274, %v1272
  %v1733 = vpack.c.b16 %v1275, %v1273
  %v1734 = vpack.c.b16 %v1278, %v1276
  %v1735 = vpack.c.b16 %v1279, %v1277
  %v1736 = vpack.c.b16 %v1282, %v1280
  %v1737 = vpack.c.b16 %v1283, %v1281
  %v1738 = vpack.c.b16 %v1286, %v1284
  %v1739 = vpack.c.b16 %v1287, %v1285
  %v1740 = vpack.c.b16 %v1290, %v1288
  %v1741 = vpack.c.b16 %v1291, %v1289
  %v1742 = vpack.c.b16 %v1294, %v1292
  %v1743 = vpack.c.b16 %v1295, %v1293
  %v1744 = vpack.c.b16 %v1298, %v1296
  %v1745 = vpack.c.b16 %v1299, %v1297
  %v1746 = vpack.c.b16 %v1302, %v1300
  %v1747 = vpack.c.b16 %v1303, %v1301
  %v1748 = vpack.c.b16 %v1306, %v1304
  %v1749 = vpack.c.b16 %v1307, %v1305
  %v1750 = vpack.c.b16 %v1310, %v1308
  %v1751 = vpack.c.b16 %v1311, %v1309
  %v1752 = vpack.c.b16 %v1314, %v1312
  %v1753 = vpack.c.b16 %v1315, %v1313
  %v1754 = vpack.c.b16 %v1318, %v1316
  %v1755 = vpack.c.b16 %v1319, %v1317
  %v1756 = vpack.c.b16 %v1322, %v1320
  %v1757 = vpack.c.b16 %v1323, %v1321
  %v1758 = vpack.c.b16 %v1326, %v1324
  %v1759 = vpack.c.b16 %v1327, %v1325
  %v1760 = vpack.c.b16 %v1330, %v1328
  %v1761 = vpack.c.b16 %v1331, %v1329
  %v1762 = vpack.c.b16 %v1334, %v1332
  %v1763 = vpack.c.b16 %v1335, %v1333
  %v1764 = vpack.c.b16 %v1338, %v1336
  %v1765 = vpack.c.b16 %v1339, %v1337
  %v1766 = vpack.c.b16 %v1342, %v1340
  %v1767 = vpack.c.b16 %v1343, %v1341
  %v1768 = vpack.c.b16 %v1346, %v1344
  %v1769 = vpack.c.b16 %v1347, %v1345
  %v1770 = vpack.c.b16 %v1350, %v1348
  %v1771 = vpack.c.b16 %v1351, %v1349
  %v1772 = vpack.c.b16 %v1354, %v1352
  %v1773 = vpack.c.b16 %v1355, %v1353
  %v1774 = vpack.c.b16 %v1358, %v1356
  %v1775 = vpack.c.b16 %v1359, %v1357
  %v1776 = vpack.c.b16 %v1362, %v1360
  %v1777 = vpack.c.b16 %v1363, %v1361
  %v1778 = vpack.c.b16 %v1366, %v1364
  %v1779 = vpack.c.b16 %v1367, %v1365
  %v1780 = vpack.c.b16 %v1370, %v1368
  %v1781 = vpack.c.b16 %v1371, %v1369
  %v1782 = vpack.c.b16 %v1374, %v1372
  %v1783 = vpack.c.b16 %v1375, %v1373
  %v1784 = vpack.c.b16 %v1378, %v1376
  %v1785 = vpack.c.b16 %v1379, %v1377
  %v1786 = vpack.c.b16 %v1382, %v1380
  %v1787 = vpack.c.b16 %v1383, %v1381
  %v1788 = vpack.c.b16 %v1386, %v1384
  %v1789 = vpack.c.b16 %v1387, %v1385
  %v1790 = vpack.c.b16 %v1390, %v1388
  %v1791 = vpack.c.b16 %v1391, %v1389
  %v1792 = vpack.c.b16 %v1394, %v1392
  %v1793 = vpack.c.b16 %v1395, %v1393
  %v1794 = vpack.c.b16 %v1398, %v1396
  %v1795 = vpack.c.b16 %v1399, %v1397
  %v1796 = vpack.c.b16 %v1402, %v1400
  %v1797 = vpack.c.b16 %v1403, %v1401
  %v1798 = vpack.c.b16 %v1406, %v1404
  %v1799 = vpack.c.b16 %v1407, %v1405
  %v1800 = vpack.c.b16 %v1410, %v1408
  %v1801 = vpack.c.b16 %v1411, %v1409
  %v1802 = vpack.c.b16 %v1414, %v1412
  %v1803 = vpack.c.b16 %v1415, %v1413
  %v1804 = vpack.c.b16 %v1418, %v1416
  %v1805 = vpack.c.b16 %v1419, %v1417
  %v1806 = vpack.c.b16 %v1422, %v1420
  %v1807 = vpack.c.b16 %v1423, %v1421
  %v1808 = vpack.c.b16 %v1426, %v1424
  %v1809 = vpack.c.b16 %v1427, %v1425
  %v1810 = vpack.c.b16 %v1430, %v1428
  %v1811 = vpack.c.b16 %v1431, %v1429
  %v1812 = vpack.c.b16 %v1434, %v1432
  %v1813 = vpack.c.b16 %v1435, %v1433
  %v1814 = vpack.c.b16 %v1438, %v1436
  %v1815 = vpack.c.b16 %v1439, %v1437
  %v1816 = vpack.c.b16 %v1442, %v1440
  %v1817 = vpack.c.b16 %v1443, %v1441
  %v1818 = vpack.c.b16 %v1446, %v1444
  %v1819 = vpack.c.b16 %v1447, %v1445
  %v1820 = vpack.c.b16 %v1450, %v1448
  %v1821 = vpack.c.b16 %v1451, %v1449
  %v1822 = vpack.c.b16 %v1454, %v1452
  %v1823 = vpack.c.b16 %v1455, %v1453
  %v1824 = vpack.c.b16 %v1458, %v1456
  %v1825 = vpack.c.b16 %v1459, %v1457
  %v1826 = vpack.c.b16 %v1462, %v1460
  %v1827 = vpack.c.b16 %v1463, %v1461
  %v1828 = vpack.c.b16 %v1466, %v1464
  %v1829 = vpack.c.b16 %v1467, %v1465
  %v1830 = vpack.c.b16 %v1470, %v1468
  %v1831 = vpack.c.b16 %v1471, %v1469
  %v1832 = vpack.c.b16 %v1474, %v1472
  %v1833 = vpack.c.b16 %v1475, %v1473
  %v1834 = vpack.c.b16 %v1478, %v1476
  %v1835 = vpack.c.b16 %v1479, %v1477
  %v1836 = vpack.c.b16 %v1482, %v1480
  %v1837 = vpack.c.b16 %v1483, %v1481
  %v1838 = vpack.c.b16 %v1486, %v1484
  %v1839 = vpack.c.b16 %v1487, %v1485
  %v1840 = vpack.c.b16 %v1490, %v1488
  %v1841 = vpack.c.b16 %v1491, %v1489
  %v1842 = vpack.c.b16 %v1494, %v1492
  %v1843 = vpack.c.b16 %v1495, %v1493
  %v1844 = vpack.c.b16 %v1498, %v1496
  %v1845 = vpack.c.b16 %v1499, %v1497
  %v1846 = vpack.c.b16 %v1502, %v1500
  %v1847 = vpack.c.b16 %v1503, %v1501
  %v1848 = vpack.c.b16 %v1506, %v1504
  %v1849 = vpack.c.b16 %v1507, %v1505
  %v1850 = vpack.c.b16 %v1510, %v1508
  %v1851 = vpack.c.b16 %v1511, %v1509
  %v1852 = vpack.c.b16 %v1514, %v1512
  %v1853 = vpack.c.b16 %v1515, %v1513
  %v1854 = vpack.c.b16 %v1518, %v1516
  %v1855 = vpack.c.b16 %v1519, %v1517
  %v1856 = vpack.c.b16 %v1522, %v1520
  %v1857 = vpack.c.b16 %v1523, %v1521
  %v1858 = vpack.c.b16 %v1526, %v1524
  %v1859 = vpack.c.b16 %v1527, %v1525
  %v1860 = vpack.c.b16 %v1530, %v1528
  %v1861 = vpack.c.b16 %v1531, %v1529
  %v1862 = vpack.c.b16 %v1534, %v1532
  %v1863 = vpack.c.b16 %v1535, %v1533
  %v1864 = vpack.c.b16 %v1538, %v1536
  %v1865 = vpack.c.b16 %v1539, %v1537
  %v1866 = vpack.c.b16 %v1542, %v1540
  %v1867 = vpack.c.b16 %v1543, %v1541
  %v1868 = vpack.c.b16 %v1546, %v1544
  %v1869 = vpack.c.b16 %v1547, %v1545
  %v1870 = vpack.c.b16 %v1550, %v1548
  %v1871 = vpack.c.b16 %v1551, %v1549
  %v1872 = vpack.c.b16 %v1554, %v1552
  %v1873 = vpack.c.b16 %v1555, %v1553
  %v1874 = vpack.c.b16 %v1558, %v1556
  %v1875 = vpack.c.b16 %v1559, %v1557
  %v1876 = vpack.c.b16 %v1562, %v1560
  %v1877 = vpack.c.b16 %v1563, %v1561
  %v1878 = vpack.c.b16 %v1566, %v1564
  %v1879 = vpack.c.b16 %v1567, %v1565
  %v1880 = vpack.c.b16 %v1570, %v1568
  %v1881 = vpack.c.b16 %v1571, %v1569
  %v1882 = vpack.c.b16 %v1574, %v1572
  %v1883 = vpack.c.b16 %v1575, %v1573
  %v1884 = vpack.c.b16 %v1578, %v1576
  %v1885 = vpack.c.b16 %v1579, %v1577
  %v1886 = vpack.c.b16 %v1582, %v1580
  %v1887 = vpack.c.b16 %v1583, %v1581
  %v1888 = vpack.c.b16 %v1586, %v1584
  %v1889 = vpack.c.b16 %v1587, %v1585
  %v1890 = vpack.c.b16 %v1590, %v1588
  %v1891 = vpack.c.b16 %v1591, %v1589
  %v1892 = vpack.c.b16 %v1594, %v1592
  %v1893 = vpack.c.b16 %v1595, %v1593
  %v1894 = vpack.c.b16 %v1598, %v1596
  %v1895 = vpack.c.b16 %v1599, %v1597
  %v1896 = vpack.c.b16 %v1602, %v1600
  %v1897 = vpack.c.b16 %v1603, %v1601
  %v1898 = vpack.c.b16 %v1606, %v1604
  %v1899 = vpack.c.b16 %v1607, %v1605
  %v1900 = vpack.c.b16 %v1610, %v1608
  %v1901 = vpack.c.b16 %v1611, %v1609
  %v1902 = vpack.c.b16 %v1614, %v1612
  %v1903 = vpack.c.b16 %v1615, %v1613
  %2192 = vmatprep.subr.bf16.mxu0 %v1617
  %2193 = vmatpush1.bf16.msra.mxu0 %v1616
  %2194 = vmatprep.subr.bf16.mxu0 %v1619
  %2195 = vmatpush1.bf16.msra.mxu0 %v1618
  %2196 = vmatprep.subr.bf16.mxu0 %v1621
  %2197 = vmatpush1.bf16.msra.mxu0 %v1620
  %2198 = vmatprep.subr.bf16.mxu0 %v1623
  %2199 = vmatpush1.bf16.msra.mxu0 %v1622
  %2200 = vmatprep.subr.bf16.mxu0 %v1625
  %2201 = vmatpush1.bf16.msra.mxu0 %v1624
  %2202 = vmatprep.subr.bf16.mxu0 %v1627
  %2203 = vmatpush1.bf16.msra.mxu0 %v1626
  %2204 = vmatprep.subr.bf16.mxu0 %v1629
  %2205 = vmatpush1.bf16.msra.mxu0 %v1628
  %2206 = vmatprep.subr.bf16.mxu0 %v1631
  %2207 = vmatpush1.bf16.msra.mxu0 %v1630
  %2208 = vmatprep.subr.bf16.mxu0 %v1633
  %2209 = vmatpush1.bf16.msra.mxu0 %v1632
  %2210 = vmatprep.subr.bf16.mxu0 %v1635
  %2211 = vmatpush1.bf16.msra.mxu0 %v1634
  %2212 = vmatprep.subr.bf16.mxu0 %v1637
  %2213 = vmatpush1.bf16.msra.mxu0 %v1636
  %2214 = vmatprep.subr.bf16.mxu0 %v1639
  %2215 = vmatpush1.bf16.msra.mxu0 %v1638
  %2216 = vmatprep.subr.bf16.mxu0 %v1641
  %2217 = vmatpush1.bf16.msra.mxu0 %v1640
  %2218 = vmatprep.subr.bf16.mxu0 %v1643
  %2219 = vmatpush1.bf16.msra.mxu0 %v1642
  %2220 = vmatprep.subr.bf16.mxu0 %v1645
  %2221 = vmatpush1.bf16.msra.mxu0 %v1644
  %2222 = vmatprep.subr.bf16.mxu0 %v1647
  %2223 = vmatpush1.bf16.msra.mxu0 %v1646
  %2224 = vmatprep.mubr.bf16.mxu0 %v609
  %2225 = vmatmul.mubr.bf16.gmra.mrb[0].mxu0 %v608
  %v2226 = vpop.f32.mrb[0].mxu0
  %v2227 = vadd.f32 %v385, %v2226
  %v2228 = vpop.f32.mrb[0].mxu0
  %v2229 = vadd.f32 %v389, %v2228
  %v2230 = vpop.f32.mrb[0].mxu0
  %v2231 = vadd.f32 %v385, %v2230
  %v2232 = vpop.f32.mrb[0].mxu0
  %v2233 = vadd.f32 %v389, %v2232
  %2234 = vmatprep.mubr.bf16.mxu0 %v627
  %2235 = vmatmul.mubr.bf16.gmra.mrb[0].mxu0 %v626
  %v2236 = vpop.f32.mrb[0].mxu0
  %v2237 = vadd.f32 %v385, %v2236
  %v2238 = vpop.f32.mrb[0].mxu0
  %v2239 = vadd.f32 %v389, %v2238
  %v2240 = vpop.f32.mrb[0].mxu0
  %v2241 = vadd.f32 %v385, %v2240
  %v2242 = vpop.f32.mrb[0].mxu0
  %v2243 = vadd.f32 %v389, %v2242
  %2244 = vmatprep.mubr.bf16.mxu0 %v645
  %2245 = vmatmul.mubr.bf16.gmra.mrb[0].mxu0 %v644
  %v2246 = vpop.f32.mrb[0].mxu0
  %v2247 = vadd.f32 %v385, %v2246
  %v2248 = vpop.f32.mrb[0].mxu0
  %v2249 = vadd.f32 %v389, %v2248
  %v2250 = vpop.f32.mrb[0].mxu0
  %v2251 = vadd.f32 %v385, %v2250
  %v2252 = vpop.f32.mrb[0].mxu0
  %v2253 = vadd.f32 %v389, %v2252
  %2254 = vmatprep.mubr.bf16.mxu0 %v663
  %2255 = vmatmul.mubr.bf16.gmra.mrb[0].mxu0 %v662
  %v2256 = vpop.f32.mrb[0].mxu0
  %v2257 = vadd.f32 %v385, %v2256
  %v2258 = vpop.f32.mrb[0].mxu0
  %v2259 = vadd.f32 %v389, %v2258
  %v2260 = vpop.f32.mrb[0].mxu0
  %v2261 = vadd.f32 %v385, %v2260
  %v2262 = vpop.f32.mrb[0].mxu0
  %v2263 = vadd.f32 %v389, %v2262
  %2264 = vdwg.mxu0
  %2265 = vmatprep.subr.bf16.mxu0 %v1649
  %2266 = vmatpush1.bf16.msra.mxu0 %v1648
  %2267 = vmatprep.subr.bf16.mxu0 %v1651
  %2268 = vmatpush1.bf16.msra.mxu0 %v1650
  %2269 = vmatprep.subr.bf16.mxu0 %v1653
  %2270 = vmatpush1.bf16.msra.mxu0 %v1652
  %2271 = vmatprep.subr.bf16.mxu0 %v1655
  %2272 = vmatpush1.bf16.msra.mxu0 %v1654
  %2273 = vmatprep.subr.bf16.mxu0 %v1657
  %2274 = vmatpush1.bf16.msra.mxu0 %v1656
  %2275 = vmatprep.subr.bf16.mxu0 %v1659
  %2276 = vmatpush1.bf16.msra.mxu0 %v1658
  %2277 = vmatprep.subr.bf16.mxu0 %v1661
  %2278 = vmatpush1.bf16.msra.mxu0 %v1660
  %2279 = vmatprep.subr.bf16.mxu0 %v1663
  %2280 = vmatpush1.bf16.msra.mxu0 %v1662
  %2281 = vmatprep.subr.bf16.mxu0 %v1665
  %2282 = vmatpush1.bf16.msra.mxu0 %v1664
  %2283 = vmatprep.subr.bf16.mxu0 %v1667
  %2284 = vmatpush1.bf16.msra.mxu0 %v1666
  %2285 = vmatprep.subr.bf16.mxu0 %v1669
  %2286 = vmatpush1.bf16.msra.mxu0 %v1668
  %2287 = vmatprep.subr.bf16.mxu0 %v1671
  %2288 = vmatpush1.bf16.msra.mxu0 %v1670
  %2289 = vmatprep.subr.bf16.mxu0 %v1673
  %2290 = vmatpush1.bf16.msra.mxu0 %v1672
  %2291 = vmatprep.subr.bf16.mxu0 %v1675
  %2292 = vmatpush1.bf16.msra.mxu0 %v1674
  %2293 = vmatprep.subr.bf16.mxu0 %v1677
  %2294 = vmatpush1.bf16.msra.mxu0 %v1676
  %2295 = vmatprep.subr.bf16.mxu0 %v1679
  %2296 = vmatpush1.bf16.msra.mxu0 %v1678
  %2297 = vmatprep.mubr.bf16.mxu0 %v611
  %2298 = vmatmul.mubr.bf16.gmra.mrb[0].mxu0 %v610
  %v2299 = vpop.f32.mrb[0].mxu0
  %v2300 = vadd.f32 %v2227, %v2299
  %v2301 = vpop.f32.mrb[0].mxu0
  %v2302 = vadd.f32 %v2229, %v2301
  %v2303 = vpop.f32.mrb[0].mxu0
  %v2304 = vadd.f32 %v2231, %v2303
  %v2305 = vpop.f32.mrb[0].mxu0
  %v2306 = vadd.f32 %v2233, %v2305
  %2307 = vmatprep.mubr.bf16.mxu0 %v629
  %2308 = vmatmul.mubr.bf16.gmra.mrb[0].mxu0 %v628
  %v2309 = vpop.f32.mrb[0].mxu0
  %v2310 = vadd.f32 %v2237, %v2309
  %v2311 = vpop.f32.mrb[0].mxu0
  %v2312 = vadd.f32 %v2239, %v2311
  %v2313 = vpop.f32.mrb[0].mxu0
  %v2314 = vadd.f32 %v2241, %v2313
  %v2315 = vpop.f32.mrb[0].mxu0
  %v2316 = vadd.f32 %v2243, %v2315
  %2317 = vmatprep.mubr.bf16.mxu0 %v647
  %2318 = vmatmul.mubr.bf16.gmra.mrb[0].mxu0 %v646
  %v2319 = vpop.f32.mrb[0].mxu0
  %v2320 = vadd.f32 %v2247, %v2319
  %v2321 = vpop.f32.mrb[0].mxu0
  %v2322 = vadd.f32 %v2249, %v2321
  %v2323 = vpop.f32.mrb[0].mxu0
  %v2324 = vadd.f32 %v2251, %v2323
  %v2325 = vpop.f32.mrb[0].mxu0
  %v2326 = vadd.f32 %v2253, %v2325
  %2327 = vmatprep.mubr.bf16.mxu0 %v665
  %2328 = vmatmul.mubr.bf16.gmra.mrb[0].mxu0 %v664
  %v2329 = vpop.f32.mrb[0].mxu0
  %v2330 = vadd.f32 %v2257, %v2329
  %v2331 = vpop.f32.mrb[0].mxu0
  %v2332 = vadd.f32 %v2259, %v2331
  %v2333 = vpop.f32.mrb[0].mxu0
  %v2334 = vadd.f32 %v2261, %v2333
  %v2335 = vpop.f32.mrb[0].mxu0
  %v2336 = vadd.f32 %v2263, %v2335
  %2337 = vdwg.mxu0
  %2338 = vmatprep.subr.bf16.mxu0 %v1681
  %2339 = vmatpush1.bf16.msra.mxu0 %v1680
  %2340 = vmatprep.subr.bf16.mxu0 %v1683
  %2341 = vmatpush1.bf16.msra.mxu0 %v1682
  %2342 = vmatprep.subr.bf16.mxu0 %v1685
  %2343 = vmatpush1.bf16.msra.mxu0 %v1684
  %2344 = vmatprep.subr.bf16.mxu0 %v1687
  %2345 = vmatpush1.bf16.msra.mxu0 %v1686
  %2346 = vmatprep.subr.bf16.mxu0 %v1689
  %2347 = vmatpush1.bf16.msra.mxu0 %v1688
  %2348 = vmatprep.subr.bf16.mxu0 %v1691
  %2349 = vmatpush1.bf16.msra.mxu0 %v1690
  %2350 = vmatprep.subr.bf16.mxu0 %v1693
  %2351 = vmatpush1.bf16.msra.mxu0 %v1692
  %2352 = vmatprep.subr.bf16.mxu0 %v1695
  %2353 = vmatpush1.bf16.msra.mxu0 %v1694
  %2354 = vmatprep.subr.bf16.mxu0 %v1697
  %2355 = vmatpush1.bf16.msra.mxu0 %v1696
  %2356 = vmatprep.subr.bf16.mxu0 %v1699
  %2357 = vmatpush1.bf16.msra.mxu0 %v1698
  %2358 = vmatprep.subr.bf16.mxu0 %v1701
  %2359 = vmatpush1.bf16.msra.mxu0 %v1700
  %2360 = vmatprep.subr.bf16.mxu0 %v1703
  %2361 = vmatpush1.bf16.msra.mxu0 %v1702
  %2362 = vmatprep.subr.bf16.mxu0 %v1705
  %2363 = vmatpush1.bf16.msra.mxu0 %v1704
  %2364 = vmatprep.subr.bf16.mxu0 %v1707
  %2365 = vmatpush1.bf16.msra.mxu0 %v1706
  %2366 = vmatprep.subr.bf16.mxu0 %v1709
  %2367 = vmatpush1.bf16.msra.mxu0 %v1708
  %2368 = vmatprep.subr.bf16.mxu0 %v1711
  %2369 = vmatpush1.bf16.msra.mxu0 %v1710
  %2370 = vmatprep.mubr.bf16.mxu0 %v613
  %2371 = vmatmul.mubr.bf16.gmra.mrb[0].mxu0 %v612
  %v2372 = vpop.f32.mrb[0].mxu0
  %v2373 = vadd.f32 %v2300, %v2372
  %v2374 = vpop.f32.mrb[0].mxu0
  %v2375 = vadd.f32 %v2302, %v2374
  %v2376 = vpop.f32.mrb[0].mxu0
  %v2377 = vadd.f32 %v2304, %v2376
  %v2378 = vpop.f32.mrb[0].mxu0
  %v2379 = vadd.f32 %v2306, %v2378
  %2380 = vmatprep.mubr.bf16.mxu0 %v631
  %2381 = vmatmul.mubr.bf16.gmra.mrb[0].mxu0 %v630
  %v2382 = vpop.f32.mrb[0].mxu0
  %v2383 = vadd.f32 %v2310, %v2382
  %v2384 = vpop.f32.mrb[0].mxu0
  %v2385 = vadd.f32 %v2312, %v2384
  %v2386 = vpop.f32.mrb[0].mxu0
  %v2387 = vadd.f32 %v2314, %v2386
  %v2388 = vpop.f32.mrb[0].mxu0
  %v2389 = vadd.f32 %v2316, %v2388
  %2390 = vmatprep.mubr.bf16.mxu0 %v649
  %2391 = vmatmul.mubr.bf16.gmra.mrb[0].mxu0 %v648
  %v2392 = vpop.f32.mrb[0].mxu0
  %v2393 = vadd.f32 %v2320, %v2392
  %v2394 = vpop.f32.mrb[0].mxu0
  %v2395 = vadd.f32 %v2322, %v2394
  %v2396 = vpop.f32.mrb[0].mxu0
  %v2397 = vadd.f32 %v2324, %v2396
  %v2398 = vpop.f32.mrb[0].mxu0
  %v2399 = vadd.f32 %v2326, %v2398
  %2400 = vmatprep.mubr.bf16.mxu0 %v667
  %2401 = vmatmul.mubr.bf16.gmra.mrb[0].mxu0 %v666
  %v2402 = vpop.f32.mrb[0].mxu0
  %v2403 = vadd.f32 %v2330, %v2402
  %v2404 = vpop.f32.mrb[0].mxu0
  %v2405 = vadd.f32 %v2332, %v2404
  %v2406 = vpop.f32.mrb[0].mxu0
  %v2407 = vadd.f32 %v2334, %v2406
  %v2408 = vpop.f32.mrb[0].mxu0
  %v2409 = vadd.f32 %v2336, %v2408
  %2410 = vdwg.mxu0
  %2411 = vmatprep.subr.bf16.mxu0 %v1713
  %2412 = vmatpush1.bf16.msra.mxu0 %v1712
  %2413 = vmatprep.subr.bf16.mxu0 %v1715
  %2414 = vmatpush1.bf16.msra.mxu0 %v1714
  %2415 = vmatprep.subr.bf16.mxu0 %v1717
  %2416 = vmatpush1.bf16.msra.mxu0 %v1716
  %2417 = vmatprep.subr.bf16.mxu0 %v1719
  %2418 = vmatpush1.bf16.msra.mxu0 %v1718
  %2419 = vmatprep.subr.bf16.mxu0 %v1721
  %2420 = vmatpush1.bf16.msra.mxu0 %v1720
  %2421 = vmatprep.subr.bf16.mxu0 %v1723
  %2422 = vmatpush1.bf16.msra.mxu0 %v1722
  %2423 = vmatprep.subr.bf16.mxu0 %v1725
  %2424 = vmatpush1.bf16.msra.mxu0 %v1724
  %2425 = vmatprep.subr.bf16.mxu0 %v1727
  %2426 = vmatpush1.bf16.msra.mxu0 %v1726
  %2427 = vmatprep.subr.bf16.mxu0 %v1729
  %2428 = vmatpush1.bf16.msra.mxu0 %v1728
  %2429 = vmatprep.subr.bf16.mxu0 %v1731
  %2430 = vmatpush1.bf16.msra.mxu0 %v1730
  %2431 = vmatprep.subr.bf16.mxu0 %v1733
  %2432 = vmatpush1.bf16.msra.mxu0 %v1732
  %2433 = vmatprep.subr.bf16.mxu0 %v1735
  %2434 = vmatpush1.bf16.msra.mxu0 %v1734
  %2435 = vmatprep.subr.bf16.mxu0 %v1737
  %2436 = vmatpush1.bf16.msra.mxu0 %v1736
  %2437 = vmatprep.subr.bf16.mxu0 %v1739
  %2438 = vmatpush1.bf16.msra.mxu0 %v1738
  %2439 = vmatprep.subr.bf16.mxu0 %v1741
  %2440 = vmatpush1.bf16.msra.mxu0 %v1740
  %2441 = vmatprep.subr.bf16.mxu0 %v1743
  %2442 = vmatpush1.bf16.msra.mxu0 %v1742
  %2443 = vmatprep.mubr.bf16.mxu0 %v615
  %2444 = vmatmul.mubr.bf16.gmra.mrb[0].mxu0 %v614
  %v2445 = vpop.f32.mrb[0].mxu0
  %v2446 = vadd.f32 %v2373, %v2445
  %v2447 = vpop.f32.mrb[0].mxu0
  %v2448 = vadd.f32 %v2375, %v2447
  %v2449 = vpop.f32.mrb[0].mxu0
  %v2450 = vadd.f32 %v2377, %v2449
  %v2451 = vpop.f32.mrb[0].mxu0
  %v2452 = vadd.f32 %v2379, %v2451
  %2453 = vmatprep.mubr.bf16.mxu0 %v633
  %2454 = vmatmul.mubr.bf16.gmra.mrb[0].mxu0 %v632
  %v2455 = vpop.f32.mrb[0].mxu0
  %v2456 = vadd.f32 %v2383, %v2455
  %v2457 = vpop.f32.mrb[0].mxu0
  %v2458 = vadd.f32 %v2385, %v2457
  %v2459 = vpop.f32.mrb[0].mxu0
  %v2460 = vadd.f32 %v2387, %v2459
  %v2461 = vpop.f32.mrb[0].mxu0
  %v2462 = vadd.f32 %v2389, %v2461
  %2463 = vmatprep.mubr.bf16.mxu0 %v651
  %2464 = vmatmul.mubr.bf16.gmra.mrb[0].mxu0 %v650
  %v2465 = vpop.f32.mrb[0].mxu0
  %v2466 = vadd.f32 %v2393, %v2465
  %v2467 = vpop.f32.mrb[0].mxu0
  %v2468 = vadd.f32 %v2395, %v2467
  %v2469 = vpop.f32.mrb[0].mxu0
  %v2470 = vadd.f32 %v2397, %v2469
  %v2471 = vpop.f32.mrb[0].mxu0
  %v2472 = vadd.f32 %v2399, %v2471
  %2473 = vmatprep.mubr.bf16.mxu0 %v669
  %2474 = vmatmul.mubr.bf16.gmra.mrb[0].mxu0 %v668
  %v2475 = vpop.f32.mrb[0].mxu0
  %v2476 = vadd.f32 %v2403, %v2475
  %v2477 = vpop.f32.mrb[0].mxu0
  %v2478 = vadd.f32 %v2405, %v2477
  %v2479 = vpop.f32.mrb[0].mxu0
  %v2480 = vadd.f32 %v2407, %v2479
  %v2481 = vpop.f32.mrb[0].mxu0
  %v2482 = vadd.f32 %v2409, %v2481
  %2483 = vdwg.mxu0
  %2484 = vmatprep.subr.bf16.mxu0 %v1745
  %2485 = vmatpush1.bf16.msra.mxu0 %v1744
  %2486 = vmatprep.subr.bf16.mxu0 %v1747
  %2487 = vmatpush1.bf16.msra.mxu0 %v1746
  %2488 = vmatprep.subr.bf16.mxu0 %v1749
  %2489 = vmatpush1.bf16.msra.mxu0 %v1748
  %2490 = vmatprep.subr.bf16.mxu0 %v1751
  %2491 = vmatpush1.bf16.msra.mxu0 %v1750
  %2492 = vmatprep.subr.bf16.mxu0 %v1753
  %2493 = vmatpush1.bf16.msra.mxu0 %v1752
  %2494 = vmatprep.subr.bf16.mxu0 %v1755
  %2495 = vmatpush1.bf16.msra.mxu0 %v1754
  %2496 = vmatprep.subr.bf16.mxu0 %v1757
  %2497 = vmatpush1.bf16.msra.mxu0 %v1756
  %2498 = vmatprep.subr.bf16.mxu0 %v1759
  %2499 = vmatpush1.bf16.msra.mxu0 %v1758
  %2500 = vmatprep.subr.bf16.mxu0 %v1761
  %2501 = vmatpush1.bf16.msra.mxu0 %v1760
  %2502 = vmatprep.subr.bf16.mxu0 %v1763
  %2503 = vmatpush1.bf16.msra.mxu0 %v1762
  %2504 = vmatprep.subr.bf16.mxu0 %v1765
  %2505 = vmatpush1.bf16.msra.mxu0 %v1764
  %2506 = vmatprep.subr.bf16.mxu0 %v1767
  %2507 = vmatpush1.bf16.msra.mxu0 %v1766
  %2508 = vmatprep.subr.bf16.mxu0 %v1769
  %2509 = vmatpush1.bf16.msra.mxu0 %v1768
  %2510 = vmatprep.subr.bf16.mxu0 %v1771
  %2511 = vmatpush1.bf16.msra.mxu0 %v1770
  %2512 = vmatprep.subr.bf16.mxu0 %v1773
  %2513 = vmatpush1.bf16.msra.mxu0 %v1772
  %2514 = vmatprep.subr.bf16.mxu0 %v1775
  %2515 = vmatpush1.bf16.msra.mxu0 %v1774
  %2516 = vmatprep.mubr.bf16.mxu0 %v617
  %2517 = vmatmul.mubr.bf16.gmra.mrb[0].mxu0 %v616
  %v2518 = vpop.f32.mrb[0].mxu0
  %v2519 = vadd.f32 %v2446, %v2518
  %v2520 = vpop.f32.mrb[0].mxu0
  %v2521 = vadd.f32 %v2448, %v2520
  %v2522 = vpop.f32.mrb[0].mxu0
  %v2523 = vadd.f32 %v2450, %v2522
  %v2524 = vpop.f32.mrb[0].mxu0
  %v2525 = vadd.f32 %v2452, %v2524
  %2526 = vmatprep.mubr.bf16.mxu0 %v635
  %2527 = vmatmul.mubr.bf16.gmra.mrb[0].mxu0 %v634
  %v2528 = vpop.f32.mrb[0].mxu0
  %v2529 = vadd.f32 %v2456, %v2528
  %v2530 = vpop.f32.mrb[0].mxu0
  %v2531 = vadd.f32 %v2458, %v2530
  %v2532 = vpop.f32.mrb[0].mxu0
  %v2533 = vadd.f32 %v2460, %v2532
  %v2534 = vpop.f32.mrb[0].mxu0
  %v2535 = vadd.f32 %v2462, %v2534
  %2536 = vmatprep.mubr.bf16.mxu0 %v653
  %2537 = vmatmul.mubr.bf16.gmra.mrb[0].mxu0 %v652
  %v2538 = vpop.f32.mrb[0].mxu0
  %v2539 = vadd.f32 %v2466, %v2538
  %v2540 = vpop.f32.mrb[0].mxu0
  %v2541 = vadd.f32 %v2468, %v2540
  %v2542 = vpop.f32.mrb[0].mxu0
  %v2543 = vadd.f32 %v2470, %v2542
  %v2544 = vpop.f32.mrb[0].mxu0
  %v2545 = vadd.f32 %v2472, %v2544
  %2546 = vmatprep.mubr.bf16.mxu0 %v671
  %2547 = vmatmul.mubr.bf16.gmra.mrb[0].mxu0 %v670
  %v2548 = vpop.f32.mrb[0].mxu0
  %v2549 = vadd.f32 %v2476, %v2548
  %v2550 = vpop.f32.mrb[0].mxu0
  %v2551 = vadd.f32 %v2478, %v2550
  %v2552 = vpop.f32.mrb[0].mxu0
  %v2553 = vadd.f32 %v2480, %v2552
  %v2554 = vpop.f32.mrb[0].mxu0
  %v2555 = vadd.f32 %v2482, %v2554
  %2556 = vdwg.mxu0
  %2557 = vmatprep.subr.bf16.mxu0 %v1777
  %2558 = vmatpush1.bf16.msra.mxu0 %v1776
  %2559 = vmatprep.subr.bf16.mxu0 %v1779
  %2560 = vmatpush1.bf16.msra.mxu0 %v1778
  %2561 = vmatprep.subr.bf16.mxu0 %v1781
  %2562 = vmatpush1.bf16.msra.mxu0 %v1780
  %2563 = vmatprep.subr.bf16.mxu0 %v1783
  %2564 = vmatpush1.bf16.msra.mxu0 %v1782
  %2565 = vmatprep.subr.bf16.mxu0 %v1785
  %2566 = vmatpush1.bf16.msra.mxu0 %v1784
  %2567 = vmatprep.subr.bf16.mxu0 %v1787
  %2568 = vmatpush1.bf16.msra.mxu0 %v1786
  %2569 = vmatprep.subr.bf16.mxu0 %v1789
  %2570 = vmatpush1.bf16.msra.mxu0 %v1788
  %2571 = vmatprep.subr.bf16.mxu0 %v1791
  %2572 = vmatpush1.bf16.msra.mxu0 %v1790
  %2573 = vmatprep.subr.bf16.mxu0 %v1793
  %2574 = vmatpush1.bf16.msra.mxu0 %v1792
  %2575 = vmatprep.subr.bf16.mxu0 %v1795
  %2576 = vmatpush1.bf16.msra.mxu0 %v1794
  %2577 = vmatprep.subr.bf16.mxu0 %v1797
  %2578 = vmatpush1.bf16.msra.mxu0 %v1796
  %2579 = vmatprep.subr.bf16.mxu0 %v1799
  %2580 = vmatpush1.bf16.msra.mxu0 %v1798
  %2581 = vmatprep.subr.bf16.mxu0 %v1801
  %2582 = vmatpush1.bf16.msra.mxu0 %v1800
  %2583 = vmatprep.subr.bf16.mxu0 %v1803
  %2584 = vmatpush1.bf16.msra.mxu0 %v1802
  %2585 = vmatprep.subr.bf16.mxu0 %v1805
  %2586 = vmatpush1.bf16.msra.mxu0 %v1804
  %2587 = vmatprep.subr.bf16.mxu0 %v1807
  %2588 = vmatpush1.bf16.msra.mxu0 %v1806
  %2589 = vmatprep.mubr.bf16.mxu0 %v619
  %2590 = vmatmul.mubr.bf16.gmra.mrb[0].mxu0 %v618
  %v2591 = vpop.f32.mrb[0].mxu0
  %v2592 = vadd.f32 %v2519, %v2591
  %v2593 = vpop.f32.mrb[0].mxu0
  %v2594 = vadd.f32 %v2521, %v2593
  %v2595 = vpop.f32.mrb[0].mxu0
  %v2596 = vadd.f32 %v2523, %v2595
  %v2597 = vpop.f32.mrb[0].mxu0
  %v2598 = vadd.f32 %v2525, %v2597
  %2599 = vmatprep.mubr.bf16.mxu0 %v637
  %2600 = vmatmul.mubr.bf16.gmra.mrb[0].mxu0 %v636
  %v2601 = vpop.f32.mrb[0].mxu0
  %v2602 = vadd.f32 %v2529, %v2601
  %v2603 = vpop.f32.mrb[0].mxu0
  %v2604 = vadd.f32 %v2531, %v2603
  %v2605 = vpop.f32.mrb[0].mxu0
  %v2606 = vadd.f32 %v2533, %v2605
  %v2607 = vpop.f32.mrb[0].mxu0
  %v2608 = vadd.f32 %v2535, %v2607
  %2609 = vmatprep.mubr.bf16.mxu0 %v655
  %2610 = vmatmul.mubr.bf16.gmra.mrb[0].mxu0 %v654
  %v2611 = vpop.f32.mrb[0].mxu0
  %v2612 = vadd.f32 %v2539, %v2611
  %v2613 = vpop.f32.mrb[0].mxu0
  %v2614 = vadd.f32 %v2541, %v2613
  %v2615 = vpop.f32.mrb[0].mxu0
  %v2616 = vadd.f32 %v2543, %v2615
  %v2617 = vpop.f32.mrb[0].mxu0
  %v2618 = vadd.f32 %v2545, %v2617
  %2619 = vmatprep.mubr.bf16.mxu0 %v673
  %2620 = vmatmul.mubr.bf16.gmra.mrb[0].mxu0 %v672
  %v2621 = vpop.f32.mrb[0].mxu0
  %v2622 = vadd.f32 %v2549, %v2621
  %v2623 = vpop.f32.mrb[0].mxu0
  %v2624 = vadd.f32 %v2551, %v2623
  %v2625 = vpop.f32.mrb[0].mxu0
  %v2626 = vadd.f32 %v2553, %v2625
  %v2627 = vpop.f32.mrb[0].mxu0
  %v2628 = vadd.f32 %v2555, %v2627
  %2629 = vdwg.mxu0
  %2630 = vmatprep.subr.bf16.mxu0 %v1809
  %2631 = vmatpush1.bf16.msra.mxu0 %v1808
  %2632 = vmatprep.subr.bf16.mxu0 %v1811
  %2633 = vmatpush1.bf16.msra.mxu0 %v1810
  %2634 = vmatprep.subr.bf16.mxu0 %v1813
  %2635 = vmatpush1.bf16.msra.mxu0 %v1812
  %2636 = vmatprep.subr.bf16.mxu0 %v1815
  %2637 = vmatpush1.bf16.msra.mxu0 %v1814
  %2638 = vmatprep.subr.bf16.mxu0 %v1817
  %2639 = vmatpush1.bf16.msra.mxu0 %v1816
  %2640 = vmatprep.subr.bf16.mxu0 %v1819
  %2641 = vmatpush1.bf16.msra.mxu0 %v1818
  %2642 = vmatprep.subr.bf16.mxu0 %v1821
  %2643 = vmatpush1.bf16.msra.mxu0 %v1820
  %2644 = vmatprep.subr.bf16.mxu0 %v1823
  %2645 = vmatpush1.bf16.msra.mxu0 %v1822
  %2646 = vmatprep.subr.bf16.mxu0 %v1825
  %2647 = vmatpush1.bf16.msra.mxu0 %v1824
  %2648 = vmatprep.subr.bf16.mxu0 %v1827
  %2649 = vmatpush1.bf16.msra.mxu0 %v1826
  %2650 = vmatprep.subr.bf16.mxu0 %v1829
  %2651 = vmatpush1.bf16.msra.mxu0 %v1828
  %2652 = vmatprep.subr.bf16.mxu0 %v1831
  %2653 = vmatpush1.bf16.msra.mxu0 %v1830
  %2654 = vmatprep.subr.bf16.mxu0 %v1833
  %2655 = vmatpush1.bf16.msra.mxu0 %v1832
  %2656 = vmatprep.subr.bf16.mxu0 %v1835
  %2657 = vmatpush1.bf16.msra.mxu0 %v1834
  %2658 = vmatprep.subr.bf16.mxu0 %v1837
  %2659 = vmatpush1.bf16.msra.mxu0 %v1836
  %2660 = vmatprep.subr.bf16.mxu0 %v1839
  %2661 = vmatpush1.bf16.msra.mxu0 %v1838
  %2662 = vmatprep.mubr.bf16.mxu0 %v621
  %2663 = vmatmul.mubr.bf16.gmra.mrb[0].mxu0 %v620
  %v2664 = vpop.f32.mrb[0].mxu0
  %v2665 = vadd.f32 %v2592, %v2664
  %v2666 = vpop.f32.mrb[0].mxu0
  %v2667 = vadd.f32 %v2594, %v2666
  %v2668 = vpop.f32.mrb[0].mxu0
  %v2669 = vadd.f32 %v2596, %v2668
  %v2670 = vpop.f32.mrb[0].mxu0
  %v2671 = vadd.f32 %v2598, %v2670
  %2672 = vmatprep.mubr.bf16.mxu0 %v639
  %2673 = vmatmul.mubr.bf16.gmra.mrb[0].mxu0 %v638
  %v2674 = vpop.f32.mrb[0].mxu0
  %v2675 = vadd.f32 %v2602, %v2674
  %v2676 = vpop.f32.mrb[0].mxu0
  %v2677 = vadd.f32 %v2604, %v2676
  %v2678 = vpop.f32.mrb[0].mxu0
  %v2679 = vadd.f32 %v2606, %v2678
  %v2680 = vpop.f32.mrb[0].mxu0
  %v2681 = vadd.f32 %v2608, %v2680
  %2682 = vmatprep.mubr.bf16.mxu0 %v657
  %2683 = vmatmul.mubr.bf16.gmra.mrb[0].mxu0 %v656
  %v2684 = vpop.f32.mrb[0].mxu0
  %v2685 = vadd.f32 %v2612, %v2684
  %v2686 = vpop.f32.mrb[0].mxu0
  %v2687 = vadd.f32 %v2614, %v2686
  %v2688 = vpop.f32.mrb[0].mxu0
  %v2689 = vadd.f32 %v2616, %v2688
  %v2690 = vpop.f32.mrb[0].mxu0
  %v2691 = vadd.f32 %v2618, %v2690
  %2692 = vmatprep.mubr.bf16.mxu0 %v675
  %2693 = vmatmul.mubr.bf16.gmra.mrb[0].mxu0 %v674
  %v2694 = vpop.f32.mrb[0].mxu0
  %v2695 = vadd.f32 %v2622, %v2694
  %v2696 = vpop.f32.mrb[0].mxu0
  %v2697 = vadd.f32 %v2624, %v2696
  %v2698 = vpop.f32.mrb[0].mxu0
  %v2699 = vadd.f32 %v2626, %v2698
  %v2700 = vpop.f32.mrb[0].mxu0
  %v2701 = vadd.f32 %v2628, %v2700
  %2702 = vdwg.mxu0
  %2703 = vmatprep.subr.bf16.mxu0 %v1841
  %2704 = vmatpush1.bf16.msra.mxu0 %v1840
  %2705 = vmatprep.subr.bf16.mxu0 %v1843
  %2706 = vmatpush1.bf16.msra.mxu0 %v1842
  %2707 = vmatprep.subr.bf16.mxu0 %v1845
  %2708 = vmatpush1.bf16.msra.mxu0 %v1844
  %2709 = vmatprep.subr.bf16.mxu0 %v1847
  %2710 = vmatpush1.bf16.msra.mxu0 %v1846
  %2711 = vmatprep.subr.bf16.mxu0 %v1849
  %2712 = vmatpush1.bf16.msra.mxu0 %v1848
  %2713 = vmatprep.subr.bf16.mxu0 %v1851
  %2714 = vmatpush1.bf16.msra.mxu0 %v1850
  %2715 = vmatprep.subr.bf16.mxu0 %v1853
  %2716 = vmatpush1.bf16.msra.mxu0 %v1852
  %2717 = vmatprep.subr.bf16.mxu0 %v1855
  %2718 = vmatpush1.bf16.msra.mxu0 %v1854
  %2719 = vmatprep.subr.bf16.mxu0 %v1857
  %2720 = vmatpush1.bf16.msra.mxu0 %v1856
  %2721 = vmatprep.subr.bf16.mxu0 %v1859
  %2722 = vmatpush1.bf16.msra.mxu0 %v1858
  %2723 = vmatprep.subr.bf16.mxu0 %v1861
  %2724 = vmatpush1.bf16.msra.mxu0 %v1860
  %2725 = vmatprep.subr.bf16.mxu0 %v1863
  %2726 = vmatpush1.bf16.msra.mxu0 %v1862
  %2727 = vmatprep.subr.bf16.mxu0 %v1865
  %2728 = vmatpush1.bf16.msra.mxu0 %v1864
  %2729 = vmatprep.subr.bf16.mxu0 %v1867
  %2730 = vmatpush1.bf16.msra.mxu0 %v1866
  %2731 = vmatprep.subr.bf16.mxu0 %v1869
  %2732 = vmatpush1.bf16.msra.mxu0 %v1868
  %2733 = vmatprep.subr.bf16.mxu0 %v1871
  %2734 = vmatpush1.bf16.msra.mxu0 %v1870
  %2735 = vmatprep.mubr.bf16.mxu0 %v623
  %2736 = vmatmul.mubr.bf16.gmra.mrb[0].mxu0 %v622
  %v2737 = vpop.f32.mrb[0].mxu0
  %v2738 = vadd.f32 %v2665, %v2737
  %v2739 = vpop.f32.mrb[0].mxu0
  %v2740 = vadd.f32 %v2667, %v2739
  %v2741 = vpop.f32.mrb[0].mxu0
  %v2742 = vadd.f32 %v2669, %v2741
  %v2743 = vpop.f32.mrb[0].mxu0
  %v2744 = vadd.f32 %v2671, %v2743
  %2745 = vmatprep.mubr.bf16.mxu0 %v641
  %2746 = vmatmul.mubr.bf16.gmra.mrb[0].mxu0 %v640
  %v2747 = vpop.f32.mrb[0].mxu0
  %v2748 = vadd.f32 %v2675, %v2747
  %v2749 = vpop.f32.mrb[0].mxu0
  %v2750 = vadd.f32 %v2677, %v2749
  %v2751 = vpop.f32.mrb[0].mxu0
  %v2752 = vadd.f32 %v2679, %v2751
  %v2753 = vpop.f32.mrb[0].mxu0
  %v2754 = vadd.f32 %v2681, %v2753
  %2755 = vmatprep.mubr.bf16.mxu0 %v659
  %2756 = vmatmul.mubr.bf16.gmra.mrb[0].mxu0 %v658
  %v2757 = vpop.f32.mrb[0].mxu0
  %v2758 = vadd.f32 %v2685, %v2757
  %v2759 = vpop.f32.mrb[0].mxu0
  %v2760 = vadd.f32 %v2687, %v2759
  %v2761 = vpop.f32.mrb[0].mxu0
  %v2762 = vadd.f32 %v2689, %v2761
  %v2763 = vpop.f32.mrb[0].mxu0
  %v2764 = vadd.f32 %v2691, %v2763
  %2765 = vmatprep.mubr.bf16.mxu0 %v677
  %2766 = vmatmul.mubr.bf16.gmra.mrb[0].mxu0 %v676
  %v2767 = vpop.f32.mrb[0].mxu0
  %v2768 = vadd.f32 %v2695, %v2767
  %v2769 = vpop.f32.mrb[0].mxu0
  %v2770 = vadd.f32 %v2697, %v2769
  %v2771 = vpop.f32.mrb[0].mxu0
  %v2772 = vadd.f32 %v2699, %v2771
  %v2773 = vpop.f32.mrb[0].mxu0
  %v2774 = vadd.f32 %v2701, %v2773
  %2775 = vdwg.mxu0
  %2776 = vmatprep.subr.bf16.mxu0 %v1873
  %2777 = vmatpush1.bf16.msra.mxu0 %v1872
  %2778 = vmatprep.subr.bf16.mxu0 %v1875
  %2779 = vmatpush1.bf16.msra.mxu0 %v1874
  %2780 = vmatprep.subr.bf16.mxu0 %v1877
  %2781 = vmatpush1.bf16.msra.mxu0 %v1876
  %2782 = vmatprep.subr.bf16.mxu0 %v1879
  %2783 = vmatpush1.bf16.msra.mxu0 %v1878
  %2784 = vmatprep.subr.bf16.mxu0 %v1881
  %2785 = vmatpush1.bf16.msra.mxu0 %v1880
  %2786 = vmatprep.subr.bf16.mxu0 %v1883
  %2787 = vmatpush1.bf16.msra.mxu0 %v1882
  %2788 = vmatprep.subr.bf16.mxu0 %v1885
  %2789 = vmatpush1.bf16.msra.mxu0 %v1884
  %2790 = vmatprep.subr.bf16.mxu0 %v1887
  %2791 = vmatpush1.bf16.msra.mxu0 %v1886
  %2792 = vmatprep.subr.bf16.mxu0 %v1889
  %2793 = vmatpush1.bf16.msra.mxu0 %v1888
  %2794 = vmatprep.subr.bf16.mxu0 %v1891
  %2795 = vmatpush1.bf16.msra.mxu0 %v1890
  %2796 = vmatprep.subr.bf16.mxu0 %v1893
  %2797 = vmatpush1.bf16.msra.mxu0 %v1892
  %2798 = vmatprep.subr.bf16.mxu0 %v1895
  %2799 = vmatpush1.bf16.msra.mxu0 %v1894
  %2800 = vmatprep.subr.bf16.mxu0 %v1897
  %2801 = vmatpush1.bf16.msra.mxu0 %v1896
  %2802 = vmatprep.subr.bf16.mxu0 %v1899
  %2803 = vmatpush1.bf16.msra.mxu0 %v1898
  %2804 = vmatprep.subr.bf16.mxu0 %v1901
  %2805 = vmatpush1.bf16.msra.mxu0 %v1900
  %2806 = vmatprep.subr.bf16.mxu0 %v1903
  %2807 = vmatpush1.bf16.msra.mxu0 %v1902
  %2808 = vmatprep.mubr.bf16.mxu0 %v625
  %2809 = vmatmul.mubr.bf16.gmra.mrb[0].mxu0 %v624
  %v2810 = vpop.f32.mrb[0].mxu0
  %v2811 = vadd.f32 %v2738, %v2810
  %v2812 = vpop.f32.mrb[0].mxu0
  %v2813 = vadd.f32 %v2740, %v2812
  %v2814 = vpop.f32.mrb[0].mxu0
  %v2815 = vadd.f32 %v2742, %v2814
  %v2816 = vpop.f32.mrb[0].mxu0
  %v2817 = vadd.f32 %v2744, %v2816
  %2818 = vmatprep.mubr.bf16.mxu0 %v643
  %2819 = vmatmul.mubr.bf16.gmra.mrb[0].mxu0 %v642
  %v2820 = vpop.f32.mrb[0].mxu0
  %v2821 = vadd.f32 %v2748, %v2820
  %v2822 = vpop.f32.mrb[0].mxu0
  %v2823 = vadd.f32 %v2750, %v2822
  %v2824 = vpop.f32.mrb[0].mxu0
  %v2825 = vadd.f32 %v2752, %v2824
  %v2826 = vpop.f32.mrb[0].mxu0
  %v2827 = vadd.f32 %v2754, %v2826
  %2828 = vmatprep.mubr.bf16.mxu0 %v661
  %2829 = vmatmul.mubr.bf16.gmra.mrb[0].mxu0 %v660
  %v2830 = vpop.f32.mrb[0].mxu0
  %v2831 = vadd.f32 %v2758, %v2830
  %v2832 = vpop.f32.mrb[0].mxu0
  %v2833 = vadd.f32 %v2760, %v2832
  %v2834 = vpop.f32.mrb[0].mxu0
  %v2835 = vadd.f32 %v2762, %v2834
  %v2836 = vpop.f32.mrb[0].mxu0
  %v2837 = vadd.f32 %v2764, %v2836
  %2838 = vmatprep.mubr.bf16.mxu0 %v679
  %2839 = vmatmul.mubr.bf16.gmra.mrb[0].mxu0 %v678
  %v2840 = vpop.f32.mrb[0].mxu0
  %v2841 = vadd.f32 %v2768, %v2840
  %v2842 = vpop.f32.mrb[0].mxu0
  %v2843 = vadd.f32 %v2770, %v2842
  %v2844 = vpop.f32.mrb[0].mxu0
  %v2845 = vadd.f32 %v2772, %v2844
  %v2846 = vpop.f32.mrb[0].mxu0
  %v2847 = vadd.f32 %v2774, %v2846
  %2848 = vdwg.mxu0
  %2849 = vst [vmem:[#allocation2] sm:$0xff] %v2811
  %vm2850 = vcmask 523264
  %2851 = vst.msk [vmem:[#allocation2 + $0x8] sm:$0xff] %vm2850, %v2813
  %2852 = vst [vmem:[#allocation2 + $0x10] sm:$0xff] %v2815
  %2853 = vst.msk [vmem:[#allocation2 + $0x18] sm:$0xff] %vm2850, %v2817
  %2854 = vst [vmem:[#allocation2 + $0x20] sm:$0xff] %v2821
  %2855 = vst.msk [vmem:[#allocation2 + $0x28] sm:$0xff] %vm2850, %v2823
  %2856 = vst [vmem:[#allocation2 + $0x30] sm:$0xff] %v2825
  %2857 = vst.msk [vmem:[#allocation2 + $0x38] sm:$0xff] %vm2850, %v2827
  %2858 = vst [vmem:[#allocation2 + $0x40] sm:$0xff] %v2831
  %2859 = vst.msk [vmem:[#allocation2 + $0x48] sm:$0xff] %vm2850, %v2833
  %2860 = vst [vmem:[#allocation2 + $0x50] sm:$0xff] %v2835
  %2861 = vst.msk [vmem:[#allocation2 + $0x58] sm:$0xff] %vm2850, %v2837
  %2862 = vst [vmem:[#allocation2 + $0x60] sm:$0xff] %v2841
  %2863 = vst.msk [vmem:[#allocation2 + $0x68] sm:$0xff] %vm2850, %v2843
  %2864 = vst [vmem:[#allocation2 + $0x70] sm:$0xff] %v2845
  %2865 = vst.msk [vmem:[#allocation2 + $0x78] sm:$0xff] %vm2850, %v2847
  %2866 = vst.msk [vmem:[#allocation3] sm:$0xff] %vm2850, 0.0
  %v2867 = vlaneseq
  %v2868 = vand.u32 %v2867, 127
  %v2869 = vadd.s32 %v2868, 128
  %vm2870 = vcmp.lt.s32.totalorder %v2868, 0
  %v2871 = vsub.s32 0, %v2868
  %v2872 = vsel %vm2870, %v2871, %v2868
  %v2873 = vshrl.u32 %v2872, 6
  %v2874 = vand.u32 %v2872, 63
  %v2875 = vsub.s32 0, %v2874
  %v2876 = vsel %vm2870, %v2875, %v2874
  %vm2877 = vcmp.lt.s32.totalorder %v2869, 0
  %v2878 = vsub.s32 0, %v2869
  %v2879 = vsel %vm2877, %v2878, %v2869
  %v2880 = vshrl.u32 %v2879, 6
  %v2881 = vand.u32 %v2879, 63
  %v2882 = vsub.s32 0, %v2881
  %v2883 = vsel %vm2877, %v2882, %v2881
  %vm2884 = vcmp.ne.s32.totalorder %v2876, 0
  %vm2885 = vcmp.ne.s32.totalorder %v2883, 0
  %vm2886 = vcmp.lt.s32.totalorder %v2876, 0
  %vm2887 = vcmp.lt.s32.totalorder %v2883, 0
  %vm2888 = vmand %vm2886, %vm2884
  %vm2889 = vmand %vm2887, %vm2885
  %v2890 = vadd.s32 %v2876, 64
  %v2891 = vadd.s32 %v2883, 64
  %v2892 = vsel %vm2888, %v2890, %v2876
  %v2893 = vsel %vm2889, %v2891, %v2883
  %vm2894 = vcmp.lt.s32.totalorder %v2892, 32
  %vm2895 = vcmp.lt.s32.totalorder %v2893, 32
  %v2896 = vld [vmem:[%s4] sm:$0x1]
  %v2898 = vlaneseq
  %v2899 = vshrl.u32 %v2898, 7
  %v2900 = vsub.s32 0, %v2899
  %v2901 = vrot.slane %v2896, %v2900
  %v2903 = vld [vmem:[#allocation3] sm:$0xff]
  %v2904 = vld [vmem:[%s2] sm:$0xff]
  %v2905 = vld [vmem:[%s2 + $0x8] sm:$0xff]
  %v2906 = vld [vmem:[%s2 + $0x10] sm:$0xff]
  %v2907 = vld [vmem:[%s2 + $0x18] sm:$0xff]
  %v2908 = vld [vmem:[%s2 + $0x20] sm:$0xff]
  %v2909 = vld [vmem:[%s2 + $0x28] sm:$0xff]
  %v2910 = vld [vmem:[%s2 + $0x30] sm:$0xff]
  %v2911 = vld [vmem:[%s2 + $0x38] sm:$0xff]
  %v2912 = vld [vmem:[%s2 + $0x40] sm:$0xff]
  %v2913 = vld [vmem:[%s2 + $0x48] sm:$0xff]
  %v2914 = vld [vmem:[%s2 + $0x50] sm:$0xff]
  %v2915 = vld [vmem:[%s2 + $0x58] sm:$0xff]
  %v2916 = vld [vmem:[%s2 + $0x60] sm:$0xff]
  %v2917 = vld [vmem:[%s2 + $0x68] sm:$0xff]
  %v2918 = vld [vmem:[%s2 + $0x70] sm:$0xff]
  %v2919 = vld [vmem:[%s2 + $0x78] sm:$0xff]
  %v2921 = vsel %vm2850, %v2903, 0
  %2923 = vmatprep.subr.mxu0 %v2905
  %2924 = vmatpush1.msra.mxu0 %v2904
  %2925 = vmatprep.subr.mxu0 %v2907
  %2926 = vmatpush1.msra.mxu0 %v2906
  %2927 = vmatprep.subr.mxu0 %v2909
  %2928 = vmatpush1.msra.mxu0 %v2908
  %2929 = vmatprep.subr.mxu0 %v2911
  %2930 = vmatpush1.msra.mxu0 %v2910
  %2931 = vmatprep.subr.mxu0 %v2913
  %2932 = vmatpush1.msra.mxu0 %v2912
  %2933 = vmatprep.subr.mxu0 %v2915
  %2934 = vmatpush1.msra.mxu0 %v2914
  %2935 = vmatprep.subr.mxu0 %v2917
  %2936 = vmatpush1.msra.mxu0 %v2916
  %2937 = vmatprep.subr.mxu0 %v2919
  %2938 = vmatpush1.msra.mxu0 %v2918
  %2939 = vmatprep.subr.mxu0 0.0
  %2940 = vmatpush1.msra.mxu0 0.0
  %2941 = vmatprep.subr.mxu0 0.0
  %2942 = vmatpush1.msra.mxu0 0.0
  %2943 = vmatprep.subr.mxu0 0.0
  %2944 = vmatpush1.msra.mxu0 0.0
  %2945 = vmatprep.subr.mxu0 0.0
  %2946 = vmatpush1.msra.mxu0 0.0
  %2947 = vmatprep.subr.mxu0 0.0
  %2948 = vmatpush1.msra.mxu0 0.0
  %2949 = vmatprep.subr.mxu0 0.0
  %2950 = vmatpush1.msra.mxu0 0.0
  %2951 = vmatprep.subr.mxu0 0.0
  %2952 = vmatpush1.msra.mxu0 0.0
  %2953 = vmatprep.subr.mxu0 0.0
  %2954 = vmatpush1.msra.mxu0 0.0
  %2955 = vmatprep.subr.mxu0 0.0
  %2956 = vmatpush1.msra.mxu0 0.0
  %2957 = vmatprep.subr.mxu0 0.0
  %2958 = vmatpush1.msra.mxu0 0.0
  %2959 = vmatprep.subr.mxu0 0.0
  %2960 = vmatpush1.msra.mxu0 0.0
  %2961 = vmatprep.subr.mxu0 0.0
  %2962 = vmatpush1.msra.mxu0 0.0
  %2963 = vmatprep.subr.mxu0 0.0
  %2964 = vmatpush1.msra.mxu0 0.0
  %2965 = vmatprep.subr.mxu0 0.0
  %2966 = vmatpush1.msra.mxu0 0.0
  %2967 = vmatprep.subr.mxu0 0.0
  %2968 = vmatpush1.msra.mxu0 0.0
  %2969 = vmatprep.subr.mxu0 0.0
  %2970 = vmatpush1.msra.mxu0 0.0
  %2971 = vmatprep.subr.mxu0 0.0
  %2972 = vmatpush1.msra.mxu0 0.0
  %2973 = vmatprep.subr.mxu0 0.0
  %2974 = vmatpush1.msra.mxu0 0.0
  %2975 = vmatprep.subr.mxu0 0.0
  %2976 = vmatpush1.msra.mxu0 0.0
  %2977 = vmatprep.subr.mxu0 0.0
  %2978 = vmatpush1.msra.mxu0 0.0
  %2979 = vmatprep.subr.mxu0 0.0
  %2980 = vmatpush1.msra.mxu0 0.0
  %2981 = vmatprep.subr.mxu0 0.0
  %2982 = vmatpush1.msra.mxu0 0.0
  %2983 = vmatprep.subr.mxu0 0.0
  %2984 = vmatpush1.msra.mxu0 0.0
  %2985 = vmatprep.subr.mxu0 0.0
  %2986 = vmatpush1.msra.mxu0 0.0
  %2987 = vmatprep.mubr.f32.mxu0 0.0
  %2988 = vmatmul.mubr.f32.gmra.mrb[0].mxu0 %v2921
  %v2989 = vpop.f32.mrb[0].mxu0
  %v2990 = vadd.f32 0.0, %v2989
  %v2991 = vpop.f32.mrb[0].mxu0
  %v2992 = vadd.f32 0.0, %v2991
  %2993 = vdwg.mxu0
  %v2994 = vld [vmem:[#allocation2] sm:$0xff]
  %v2995 = vld [vmem:[#allocation2 + $0x8] sm:$0xff]
  %s2996 = scalar_lea.vmem [#allocation2], 112
  %v2997 = vld [vmem:[%s2996] sm:$0xff]
  %v2998 = vld [vmem:[%s2996 + $0x8] sm:$0xff]
  %v2999 = vsel %vm2894, %v2994, %v2997
  %v3000 = vsel %vm2895, %v2995, %v2998
  %v3001 = vadd.f32 %v2999, %v2990
  %v3002 = vxor.u32 %v3001, 2147483648
  %v3003 = vmul.f32 %v3002, 1.442695
  %v3004 = vpow.pop %v3003
  %v3005 = vadd.f32 %v3004, 1.0
  %v3006 = vrcp.pop %v3005
  %v3007 = vmul.f32 1.0, %v3006
  %v3008 = vadd.f32 %v2992, %v2901
  %v3009 = vmul.f32 %v3007, %v3008
  %v3010 = vadd.f32 %v3000, %v3009
  %v3011 = vtanh.pop %v3010
  %v3012 = vsub.f32 1.0, %v3007
  %3014 = vrot.lane.b32.xlu0 %v3011, 64
  %v3015 = vpop.permute.xlu0 %3014
  %v3017 = vmul.f32 %v3012, %v3015
  %3018 = vrot.lane.b32.xlu0 %v2903, 64
  %v3019 = vpop.permute.xlu0 %3018
  %v3021 = vmul.f32 %v3007, %v3019
  %v3022 = vadd.f32 %v3017, %v3021
  %3024 = vrot.lane.b32.xlu0 %v3022, 64
  %v3025 = vpop.permute.xlu0 %3024
  %3027 = vst.msk [vmem:[#allocation3] sm:$0xff] %vm2850, %v3025
  %v3028 = vpack.c.bf16 %v3022, %v3022
  %v3030 = vunpack.c.l.b16 %v3028
  %v3031 = vpack.c.b16 %v3030, %v3030
  %3032 = vrot.lane.b32.xlu0 %v3031, 64
  %v3033 = vpop.permute.xlu0 %3032
  %vm3035 = vcmask 257024
  %3036 = vst.msk [vmem:[%s5] sm:$0xf] %vm3035, %v3033
  %s3037 = scalar_lea.vmem %s5, 28
  %vm3038 = vcmask 519424
  %3039 = vst.msk [vmem:[%s3037] sm:$0xf] %vm3038, %v3033
  %v3040 = vld [vmem:[#allocation3] sm:$0xff]
  %v3041 = vld [vmem:[%s2] sm:$0xff]
  %v3042 = vld [vmem:[%s2 + $0x8] sm:$0xff]
  %v3043 = vld [vmem:[%s2 + $0x10] sm:$0xff]
  %v3044 = vld [vmem:[%s2 + $0x18] sm:$0xff]
  %v3045 = vld [vmem:[%s2 + $0x20] sm:$0xff]
  %v3046 = vld [vmem:[%s2 + $0x28] sm:$0xff]
  %v3047 = vld [vmem:[%s2 + $0x30] sm:$0xff]
  %v3048 = vld [vmem:[%s2 + $0x38] sm:$0xff]
  %v3049 = vld [vmem:[%s2 + $0x40] sm:$0xff]
  %v3050 = vld [vmem:[%s2 + $0x48] sm:$0xff]
  %v3051 = vld [vmem:[%s2 + $0x50] sm:$0xff]
  %v3052 = vld [vmem:[%s2 + $0x58] sm:$0xff]
  %v3053 = vld [vmem:[%s2 + $0x60] sm:$0xff]
  %v3054 = vld [vmem:[%s2 + $0x68] sm:$0xff]
  %v3055 = vld [vmem:[%s2 + $0x70] sm:$0xff]
  %v3056 = vld [vmem:[%s2 + $0x78] sm:$0xff]
  %v3058 = vsel %vm2850, %v3040, 0
  %3060 = vmatprep.subr.mxu0 %v3042
  %3061 = vmatpush1.msra.mxu0 %v3041
  %3062 = vmatprep.subr.mxu0 %v3044
  %3063 = vmatpush1.msra.mxu0 %v3043
  %3064 = vmatprep.subr.mxu0 %v3046
  %3065 = vmatpush1.msra.mxu0 %v3045
  %3066 = vmatprep.subr.mxu0 %v3048
  %3067 = vmatpush1.msra.mxu0 %v3047
  %3068 = vmatprep.subr.mxu0 %v3050
  %3069 = vmatpush1.msra.mxu0 %v3049
  %3070 = vmatprep.subr.mxu0 %v3052
  %3071 = vmatpush1.msra.mxu0 %v3051
  %3072 = vmatprep.subr.mxu0 %v3054
  %3073 = vmatpush1.msra.mxu0 %v3053
  %3074 = vmatprep.subr.mxu0 %v3056
  %3075 = vmatpush1.msra.mxu0 %v3055
  %3076 = vmatprep.subr.mxu0 0.0
  %3077 = vmatpush1.msra.mxu0 0.0
  %3078 = vmatprep.subr.mxu0 0.0
  %3079 = vmatpush1.msra.mxu0 0.0
  %3080 = vmatprep.subr.mxu0 0.0
  %3081 = vmatpush1.msra.mxu0 0.0
  %3082 = vmatprep.subr.mxu0 0.0
  %3083 = vmatpush1.msra.mxu0 0.0
  %3084 = vmatprep.subr.mxu0 0.0
  %3085 = vmatpush1.msra.mxu0 0.0
  %3086 = vmatprep.subr.mxu0 0.0
  %3087 = vmatpush1.msra.mxu0 0.0
  %3088 = vmatprep.subr.mxu0 0.0
  %3089 = vmatpush1.msra.mxu0 0.0
  %3090 = vmatprep.subr.mxu0 0.0
  %3091 = vmatpush1.msra.mxu0 0.0
  %3092 = vmatprep.subr.mxu0 0.0
  %3093 = vmatpush1.msra.mxu0 0.0
  %3094 = vmatprep.subr.mxu0 0.0
  %3095 = vmatpush1.msra.mxu0 0.0
  %3096 = vmatprep.subr.mxu0 0.0
  %3097 = vmatpush1.msra.mxu0 0.0
  %3098 = vmatprep.subr.mxu0 0.0
  %3099 = vmatpush1.msra.mxu0 0.0
  %3100 = vmatprep.subr.mxu0 0.0
  %3101 = vmatpush1.msra.mxu0 0.0
  %3102 = vmatprep.subr.mxu0 0.0
  %3103 = vmatpush1.msra.mxu0 0.0
  %3104 = vmatprep.subr.mxu0 0.0
  %3105 = vmatpush1.msra.mxu0 0.0
  %3106 = vmatprep.subr.mxu0 0.0
  %3107 = vmatpush1.msra.mxu0 0.0
  %3108 = vmatprep.subr.mxu0 0.0
  %3109 = vmatpush1.msra.mxu0 0.0
  %3110 = vmatprep.subr.mxu0 0.0
  %3111 = vmatpush1.msra.mxu0 0.0
  %3112 = vmatprep.subr.mxu0 0.0
  %3113 = vmatpush1.msra.mxu0 0.0
  %3114 = vmatprep.subr.mxu0 0.0
  %3115 = vmatpush1.msra.mxu0 0.0
  %3116 = vmatprep.subr.mxu0 0.0
  %3117 = vmatpush1.msra.mxu0 0.0
  %3118 = vmatprep.subr.mxu0 0.0
  %3119 = vmatpush1.msra.mxu0 0.0
  %3120 = vmatprep.subr.mxu0 0.0
  %3121 = vmatpush1.msra.mxu0 0.0
  %3122 = vmatprep.subr.mxu0 0.0
  %3123 = vmatpush1.msra.mxu0 0.0
  %3124 = vmatprep.mubr.f32.mxu0 0.0
  %3125 = vmatmul.mubr.f32.gmra.mrb[0].mxu0 %v3058
  %v3126 = vpop.f32.mrb[0].mxu0
  %v3127 = vadd.f32 0.0, %v3126
  %v3128 = vpop.f32.mrb[0].mxu0
  %v3129 = vadd.f32 0.0, %v3128
  %3130 = vdwg.mxu0
  %s3131 = scalar_lea.vmem [#allocation2], 16
  %v3132 = vld [vmem:[%s3131] sm:$0xff]
  %v3133 = vld [vmem:[%s3131 + $0x8] sm:$0xff]
  %s3134 = scalar_lea.vmem [#allocation2], 96
  %v3135 = vld [vmem:[%s3134] sm:$0xff]
  %v3136 = vld [vmem:[%s3134 + $0x8] sm:$0xff]
  %v3137 = vsel %vm2894, %v3132, %v3135
  %v3138 = vsel %vm2895, %v3133, %v3136
  %v3139 = vadd.f32 %v3137, %v3127
  %v3140 = vxor.u32 %v3139, 2147483648
  %v3141 = vmul.f32 %v3140, 1.442695
  %v3142 = vpow.pop %v3141
  %v3143 = vadd.f32 %v3142, 1.0
  %v3144 = vrcp.pop %v3143
  %v3145 = vmul.f32 1.0, %v3144
  %v3146 = vadd.f32 %v3129, %v2901
  %v3147 = vmul.f32 %v3145, %v3146
  %v3148 = vadd.f32 %v3138, %v3147
  %v3149 = vtanh.pop %v3148
  %v3150 = vsub.f32 1.0, %v3145
  %3152 = vrot.lane.b32.xlu0 %v3149, 64
  %v3153 = vpop.permute.xlu0 %3152
  %v3155 = vmul.f32 %v3150, %v3153
  %3156 = vrot.lane.b32.xlu0 %v3040, 64
  %v3157 = vpop.permute.xlu0 %3156
  %v3159 = vmul.f32 %v3145, %v3157
  %v3160 = vadd.f32 %v3155, %v3159
  %3162 = vrot.lane.b32.xlu0 %v3160, 64
  %v3163 = vpop.permute.xlu0 %3162
  %3165 = vst.msk [vmem:[#allocation3] sm:$0xff] %vm2850, %v3163
  %v3166 = vpack.c.bf16 %v3160, %v3160
  %v3168 = vunpack.c.l.b16 %v3166
  %v3169 = vpack.c.b16 %v3168, %v3168
  %3170 = vrot.lane.b32.xlu0 %v3169, 64
  %v3171 = vpop.permute.xlu0 %3170
  %s3173 = scalar_lea.vmem %s5, 4
  %3174 = vst.msk [vmem:[%s3173] sm:$0xf] %vm3035, %v3171
  %s3175 = scalar_lea.vmem %s5, 24
  %3176 = vst.msk [vmem:[%s3175] sm:$0xf] %vm3038, %v3171
  %v3177 = vld [vmem:[#allocation3] sm:$0xff]
  %v3178 = vld [vmem:[%s2] sm:$0xff]
  %v3179 = vld [vmem:[%s2 + $0x8] sm:$0xff]
  %v3180 = vld [vmem:[%s2 + $0x10] sm:$0xff]
  %v3181 = vld [vmem:[%s2 + $0x18] sm:$0xff]
  %v3182 = vld [vmem:[%s2 + $0x20] sm:$0xff]
  %v3183 = vld [vmem:[%s2 + $0x28] sm:$0xff]
  %v3184 = vld [vmem:[%s2 + $0x30] sm:$0xff]
  %v3185 = vld [vmem:[%s2 + $0x38] sm:$0xff]
  %v3186 = vld [vmem:[%s2 + $0x40] sm:$0xff]
  %v3187 = vld [vmem:[%s2 + $0x48] sm:$0xff]
  %v3188 = vld [vmem:[%s2 + $0x50] sm:$0xff]
  %v3189 = vld [vmem:[%s2 + $0x58] sm:$0xff]
  %v3190 = vld [vmem:[%s2 + $0x60] sm:$0xff]
  %v3191 = vld [vmem:[%s2 + $0x68] sm:$0xff]
  %v3192 = vld [vmem:[%s2 + $0x70] sm:$0xff]
  %v3193 = vld [vmem:[%s2 + $0x78] sm:$0xff]
  %v3195 = vsel %vm2850, %v3177, 0
  %3197 = vmatprep.subr.mxu0 %v3179
  %3198 = vmatpush1.msra.mxu0 %v3178
  %3199 = vmatprep.subr.mxu0 %v3181
  %3200 = vmatpush1.msra.mxu0 %v3180
  %3201 = vmatprep.subr.mxu0 %v3183
  %3202 = vmatpush1.msra.mxu0 %v3182
  %3203 = vmatprep.subr.mxu0 %v3185
  %3204 = vmatpush1.msra.mxu0 %v3184
  %3205 = vmatprep.subr.mxu0 %v3187
  %3206 = vmatpush1.msra.mxu0 %v3186
  %3207 = vmatprep.subr.mxu0 %v3189
  %3208 = vmatpush1.msra.mxu0 %v3188
  %3209 = vmatprep.subr.mxu0 %v3191
  %3210 = vmatpush1.msra.mxu0 %v3190
  %3211 = vmatprep.subr.mxu0 %v3193
  %3212 = vmatpush1.msra.mxu0 %v3192
  %3213 = vmatprep.subr.mxu0 0.0
  %3214 = vmatpush1.msra.mxu0 0.0
  %3215 = vmatprep.subr.mxu0 0.0
  %3216 = vmatpush1.msra.mxu0 0.0
  %3217 = vmatprep.subr.mxu0 0.0
  %3218 = vmatpush1.msra.mxu0 0.0
  %3219 = vmatprep.subr.mxu0 0.0
  %3220 = vmatpush1.msra.mxu0 0.0
  %3221 = vmatprep.subr.mxu0 0.0
  %3222 = vmatpush1.msra.mxu0 0.0
  %3223 = vmatprep.subr.mxu0 0.0
  %3224 = vmatpush1.msra.mxu0 0.0
  %3225 = vmatprep.subr.mxu0 0.0
  %3226 = vmatpush1.msra.mxu0 0.0
  %3227 = vmatprep.subr.mxu0 0.0
  %3228 = vmatpush1.msra.mxu0 0.0
  %3229 = vmatprep.subr.mxu0 0.0
  %3230 = vmatpush1.msra.mxu0 0.0
  %3231 = vmatprep.subr.mxu0 0.0
  %3232 = vmatpush1.msra.mxu0 0.0
  %3233 = vmatprep.subr.mxu0 0.0
  %3234 = vmatpush1.msra.mxu0 0.0
  %3235 = vmatprep.subr.mxu0 0.0
  %3236 = vmatpush1.msra.mxu0 0.0
  %3237 = vmatprep.subr.mxu0 0.0
  %3238 = vmatpush1.msra.mxu0 0.0
  %3239 = vmatprep.subr.mxu0 0.0
  %3240 = vmatpush1.msra.mxu0 0.0
  %3241 = vmatprep.subr.mxu0 0.0
  %3242 = vmatpush1.msra.mxu0 0.0
  %3243 = vmatprep.subr.mxu0 0.0
  %3244 = vmatpush1.msra.mxu0 0.0
  %3245 = vmatprep.subr.mxu0 0.0
  %3246 = vmatpush1.msra.mxu0 0.0
  %3247 = vmatprep.subr.mxu0 0.0
  %3248 = vmatpush1.msra.mxu0 0.0
  %3249 = vmatprep.subr.mxu0 0.0
  %3250 = vmatpush1.msra.mxu0 0.0
  %3251 = vmatprep.subr.mxu0 0.0
  %3252 = vmatpush1.msra.mxu0 0.0
  %3253 = vmatprep.subr.mxu0 0.0
  %3254 = vmatpush1.msra.mxu0 0.0
  %3255 = vmatprep.subr.mxu0 0.0
  %3256 = vmatpush1.msra.mxu0 0.0
  %3257 = vmatprep.subr.mxu0 0.0
  %3258 = vmatpush1.msra.mxu0 0.0
  %3259 = vmatprep.subr.mxu0 0.0
  %3260 = vmatpush1.msra.mxu0 0.0
  %3261 = vmatprep.mubr.f32.mxu0 0.0
  %3262 = vmatmul.mubr.f32.gmra.mrb[0].mxu0 %v3195
  %v3263 = vpop.f32.mrb[0].mxu0
  %v3264 = vadd.f32 0.0, %v3263
  %v3265 = vpop.f32.mrb[0].mxu0
  %v3266 = vadd.f32 0.0, %v3265
  %3267 = vdwg.mxu0
  %s3268 = scalar_lea.vmem [#allocation2], 32
  %v3269 = vld [vmem:[%s3268] sm:$0xff]
  %v3270 = vld [vmem:[%s3268 + $0x8] sm:$0xff]
  %s3271 = scalar_lea.vmem [#allocation2], 80
  %v3272 = vld [vmem:[%s3271] sm:$0xff]
  %v3273 = vld [vmem:[%s3271 + $0x8] sm:$0xff]
  %v3274 = vsel %vm2894, %v3269, %v3272
  %v3275 = vsel %vm2895, %v3270, %v3273
  %v3276 = vadd.f32 %v3274, %v3264
  %v3277 = vxor.u32 %v3276, 2147483648
  %v3278 = vmul.f32 %v3277, 1.442695
  %v3279 = vpow.pop %v3278
  %v3280 = vadd.f32 %v3279, 1.0
  %v3281 = vrcp.pop %v3280
  %v3282 = vmul.f32 1.0, %v3281
  %v3283 = vadd.f32 %v3266, %v2901
  %v3284 = vmul.f32 %v3282, %v3283
  %v3285 = vadd.f32 %v3275, %v3284
  %v3286 = vtanh.pop %v3285
  %v3287 = vsub.f32 1.0, %v3282
  %3289 = vrot.lane.b32.xlu0 %v3286, 64
  %v3290 = vpop.permute.xlu0 %3289
  %v3292 = vmul.f32 %v3287, %v3290
  %3293 = vrot.lane.b32.xlu0 %v3177, 64
  %v3294 = vpop.permute.xlu0 %3293
  %v3296 = vmul.f32 %v3282, %v3294
  %v3297 = vadd.f32 %v3292, %v3296
  %3299 = vrot.lane.b32.xlu0 %v3297, 64
  %v3300 = vpop.permute.xlu0 %3299
  %3302 = vst.msk [vmem:[#allocation3] sm:$0xff] %vm2850, %v3300
  %v3303 = vpack.c.bf16 %v3297, %v3297
  %v3305 = vunpack.c.l.b16 %v3303
  %v3306 = vpack.c.b16 %v3305, %v3305
  %3307 = vrot.lane.b32.xlu0 %v3306, 64
  %v3308 = vpop.permute.xlu0 %3307
  %s3310 = scalar_lea.vmem %s5, 8
  %3311 = vst.msk [vmem:[%s3310] sm:$0xf] %vm3035, %v3308
  %s3312 = scalar_lea.vmem %s5, 20
  %3313 = vst.msk [vmem:[%s3312] sm:$0xf] %vm3038, %v3308
  %v3314 = vld [vmem:[#allocation3] sm:$0xff]
  %v3315 = vld [vmem:[%s2] sm:$0xff]
  %v3316 = vld [vmem:[%s2 + $0x8] sm:$0xff]
  %v3317 = vld [vmem:[%s2 + $0x10] sm:$0xff]
  %v3318 = vld [vmem:[%s2 + $0x18] sm:$0xff]
  %v3319 = vld [vmem:[%s2 + $0x20] sm:$0xff]
  %v3320 = vld [vmem:[%s2 + $0x28] sm:$0xff]
  %v3321 = vld [vmem:[%s2 + $0x30] sm:$0xff]
  %v3322 = vld [vmem:[%s2 + $0x38] sm:$0xff]
  %v3323 = vld [vmem:[%s2 + $0x40] sm:$0xff]
  %v3324 = vld [vmem:[%s2 + $0x48] sm:$0xff]
  %v3325 = vld [vmem:[%s2 + $0x50] sm:$0xff]
  %v3326 = vld [vmem:[%s2 + $0x58] sm:$0xff]
  %v3327 = vld [vmem:[%s2 + $0x60] sm:$0xff]
  %v3328 = vld [vmem:[%s2 + $0x68] sm:$0xff]
  %v3329 = vld [vmem:[%s2 + $0x70] sm:$0xff]
  %v3330 = vld [vmem:[%s2 + $0x78] sm:$0xff]
  %v3332 = vsel %vm2850, %v3314, 0
  %3334 = vmatprep.subr.mxu0 %v3316
  %3335 = vmatpush1.msra.mxu0 %v3315
  %3336 = vmatprep.subr.mxu0 %v3318
  %3337 = vmatpush1.msra.mxu0 %v3317
  %3338 = vmatprep.subr.mxu0 %v3320
  %3339 = vmatpush1.msra.mxu0 %v3319
  %3340 = vmatprep.subr.mxu0 %v3322
  %3341 = vmatpush1.msra.mxu0 %v3321
  %3342 = vmatprep.subr.mxu0 %v3324
  %3343 = vmatpush1.msra.mxu0 %v3323
  %3344 = vmatprep.subr.mxu0 %v3326
  %3345 = vmatpush1.msra.mxu0 %v3325
  %3346 = vmatprep.subr.mxu0 %v3328
  %3347 = vmatpush1.msra.mxu0 %v3327
  %3348 = vmatprep.subr.mxu0 %v3330
  %3349 = vmatpush1.msra.mxu0 %v3329
  %3350 = vmatprep.subr.mxu0 0.0
  %3351 = vmatpush1.msra.mxu0 0.0
  %3352 = vmatprep.subr.mxu0 0.0
  %3353 = vmatpush1.msra.mxu0 0.0
  %3354 = vmatprep.subr.mxu0 0.0
  %3355 = vmatpush1.msra.mxu0 0.0
  %3356 = vmatprep.subr.mxu0 0.0
  %3357 = vmatpush1.msra.mxu0 0.0
  %3358 = vmatprep.subr.mxu0 0.0
  %3359 = vmatpush1.msra.mxu0 0.0
  %3360 = vmatprep.subr.mxu0 0.0
  %3361 = vmatpush1.msra.mxu0 0.0
  %3362 = vmatprep.subr.mxu0 0.0
  %3363 = vmatpush1.msra.mxu0 0.0
  %3364 = vmatprep.subr.mxu0 0.0
  %3365 = vmatpush1.msra.mxu0 0.0
  %3366 = vmatprep.subr.mxu0 0.0
  %3367 = vmatpush1.msra.mxu0 0.0
  %3368 = vmatprep.subr.mxu0 0.0
  %3369 = vmatpush1.msra.mxu0 0.0
  %3370 = vmatprep.subr.mxu0 0.0
  %3371 = vmatpush1.msra.mxu0 0.0
  %3372 = vmatprep.subr.mxu0 0.0
  %3373 = vmatpush1.msra.mxu0 0.0
  %3374 = vmatprep.subr.mxu0 0.0
  %3375 = vmatpush1.msra.mxu0 0.0
  %3376 = vmatprep.subr.mxu0 0.0
  %3377 = vmatpush1.msra.mxu0 0.0
  %3378 = vmatprep.subr.mxu0 0.0
  %3379 = vmatpush1.msra.mxu0 0.0
  %3380 = vmatprep.subr.mxu0 0.0
  %3381 = vmatpush1.msra.mxu0 0.0
  %3382 = vmatprep.subr.mxu0 0.0
  %3383 = vmatpush1.msra.mxu0 0.0
  %3384 = vmatprep.subr.mxu0 0.0
  %3385 = vmatpush1.msra.mxu0 0.0
  %3386 = vmatprep.subr.mxu0 0.0
  %3387 = vmatpush1.msra.mxu0 0.0
  %3388 = vmatprep.subr.mxu0 0.0
  %3389 = vmatpush1.msra.mxu0 0.0
  %3390 = vmatprep.subr.mxu0 0.0
  %3391 = vmatpush1.msra.mxu0 0.0
  %3392 = vmatprep.subr.mxu0 0.0
  %3393 = vmatpush1.msra.mxu0 0.0
  %3394 = vmatprep.subr.mxu0 0.0
  %3395 = vmatpush1.msra.mxu0 0.0
  %3396 = vmatprep.subr.mxu0 0.0
  %3397 = vmatpush1.msra.mxu0 0.0
  %3398 = vmatprep.mubr.f32.mxu0 0.0
  %3399 = vmatmul.mubr.f32.gmra.mrb[0].mxu0 %v3332
  %v3400 = vpop.f32.mrb[0].mxu0
  %v3401 = vadd.f32 0.0, %v3400
  %v3402 = vpop.f32.mrb[0].mxu0
  %v3403 = vadd.f32 0.0, %v3402
  %3404 = vdwg.mxu0
  %s3405 = scalar_lea.vmem [#allocation2], 48
  %v3406 = vld [vmem:[%s3405] sm:$0xff]
  %v3407 = vld [vmem:[%s3405 + $0x8] sm:$0xff]
  %s3408 = scalar_lea.vmem [#allocation2], 64
  %v3409 = vld [vmem:[%s3408] sm:$0xff]
  %v3410 = vld [vmem:[%s3408 + $0x8] sm:$0xff]
  %v3411 = vsel %vm2894, %v3406, %v3409
  %v3412 = vsel %vm2895, %v3407, %v3410
  %v3413 = vadd.f32 %v3411, %v3401
  %v3414 = vxor.u32 %v3413, 2147483648
  %v3415 = vmul.f32 %v3414, 1.442695
  %v3416 = vpow.pop %v3415
  %v3417 = vadd.f32 %v3416, 1.0
  %v3418 = vrcp.pop %v3417
  %v3419 = vmul.f32 1.0, %v3418
  %v3420 = vadd.f32 %v3403, %v2901
  %v3421 = vmul.f32 %v3419, %v3420
  %v3422 = vadd.f32 %v3412, %v3421
  %v3423 = vtanh.pop %v3422
  %v3424 = vsub.f32 1.0, %v3419
  %3426 = vrot.lane.b32.xlu0 %v3423, 64
  %v3427 = vpop.permute.xlu0 %3426
  %v3429 = vmul.f32 %v3424, %v3427
  %3430 = vrot.lane.b32.xlu0 %v3314, 64
  %v3431 = vpop.permute.xlu0 %3430
  %v3433 = vmul.f32 %v3419, %v3431
  %v3434 = vadd.f32 %v3429, %v3433
  %3436 = vrot.lane.b32.xlu0 %v3434, 64
  %v3437 = vpop.permute.xlu0 %3436
  %3439 = vst.msk [vmem:[#allocation3] sm:$0xff] %vm2850, %v3437
  %v3440 = vpack.c.bf16 %v3434, %v3434
  %v3442 = vunpack.c.l.b16 %v3440
  %v3443 = vpack.c.b16 %v3442, %v3442
  %3444 = vrot.lane.b32.xlu0 %v3443, 64
  %v3445 = vpop.permute.xlu0 %3444
  %s3447 = scalar_lea.vmem %s5, 12
  %3448 = vst.msk [vmem:[%s3447] sm:$0xf] %vm3035, %v3445
  %s3449 = scalar_lea.vmem %s5, 16
  %3450 = vst.msk [vmem:[%s3449] sm:$0xf] %vm3038, %v3445
  %v3451 = vld [vmem:[#allocation3] sm:$0xff]
  %v3452 = vld [vmem:[%s2] sm:$0xff]
  %v3453 = vld [vmem:[%s2 + $0x8] sm:$0xff]
  %v3454 = vld [vmem:[%s2 + $0x10] sm:$0xff]
  %v3455 = vld [vmem:[%s2 + $0x18] sm:$0xff]
  %v3456 = vld [vmem:[%s2 + $0x20] sm:$0xff]
  %v3457 = vld [vmem:[%s2 + $0x28] sm:$0xff]
  %v3458 = vld [vmem:[%s2 + $0x30] sm:$0xff]
  %v3459 = vld [vmem:[%s2 + $0x38] sm:$0xff]
  %v3460 = vld [vmem:[%s2 + $0x40] sm:$0xff]
  %v3461 = vld [vmem:[%s2 + $0x48] sm:$0xff]
  %v3462 = vld [vmem:[%s2 + $0x50] sm:$0xff]
  %v3463 = vld [vmem:[%s2 + $0x58] sm:$0xff]
  %v3464 = vld [vmem:[%s2 + $0x60] sm:$0xff]
  %v3465 = vld [vmem:[%s2 + $0x68] sm:$0xff]
  %v3466 = vld [vmem:[%s2 + $0x70] sm:$0xff]
  %v3467 = vld [vmem:[%s2 + $0x78] sm:$0xff]
  %v3469 = vsel %vm2850, %v3451, 0
  %3471 = vmatprep.subr.mxu0 %v3453
  %3472 = vmatpush1.msra.mxu0 %v3452
  %3473 = vmatprep.subr.mxu0 %v3455
  %3474 = vmatpush1.msra.mxu0 %v3454
  %3475 = vmatprep.subr.mxu0 %v3457
  %3476 = vmatpush1.msra.mxu0 %v3456
  %3477 = vmatprep.subr.mxu0 %v3459
  %3478 = vmatpush1.msra.mxu0 %v3458
  %3479 = vmatprep.subr.mxu0 %v3461
  %3480 = vmatpush1.msra.mxu0 %v3460
  %3481 = vmatprep.subr.mxu0 %v3463
  %3482 = vmatpush1.msra.mxu0 %v3462
  %3483 = vmatprep.subr.mxu0 %v3465
  %3484 = vmatpush1.msra.mxu0 %v3464
  %3485 = vmatprep.subr.mxu0 %v3467
  %3486 = vmatpush1.msra.mxu0 %v3466
  %3487 = vmatprep.subr.mxu0 0.0
  %3488 = vmatpush1.msra.mxu0 0.0
  %3489 = vmatprep.subr.mxu0 0.0
  %3490 = vmatpush1.msra.mxu0 0.0
  %3491 = vmatprep.subr.mxu0 0.0
  %3492 = vmatpush1.msra.mxu0 0.0
  %3493 = vmatprep.subr.mxu0 0.0
  %3494 = vmatpush1.msra.mxu0 0.0
  %3495 = vmatprep.subr.mxu0 0.0
  %3496 = vmatpush1.msra.mxu0 0.0
  %3497 = vmatprep.subr.mxu0 0.0
  %3498 = vmatpush1.msra.mxu0 0.0
  %3499 = vmatprep.subr.mxu0 0.0
  %3500 = vmatpush1.msra.mxu0 0.0
  %3501 = vmatprep.subr.mxu0 0.0
  %3502 = vmatpush1.msra.mxu0 0.0
  %3503 = vmatprep.subr.mxu0 0.0
  %3504 = vmatpush1.msra.mxu0 0.0
  %3505 = vmatprep.subr.mxu0 0.0
  %3506 = vmatpush1.msra.mxu0 0.0
  %3507 = vmatprep.subr.mxu0 0.0
  %3508 = vmatpush1.msra.mxu0 0.0
  %3509 = vmatprep.subr.mxu0 0.0
  %3510 = vmatpush1.msra.mxu0 0.0
  %3511 = vmatprep.subr.mxu0 0.0
  %3512 = vmatpush1.msra.mxu0 0.0
  %3513 = vmatprep.subr.mxu0 0.0
  %3514 = vmatpush1.msra.mxu0 0.0
  %3515 = vmatprep.subr.mxu0 0.0
  %3516 = vmatpush1.msra.mxu0 0.0
  %3517 = vmatprep.subr.mxu0 0.0
  %3518 = vmatpush1.msra.mxu0 0.0
  %3519 = vmatprep.subr.mxu0 0.0
  %3520 = vmatpush1.msra.mxu0 0.0
  %3521 = vmatprep.subr.mxu0 0.0
  %3522 = vmatpush1.msra.mxu0 0.0
  %3523 = vmatprep.subr.mxu0 0.0
  %3524 = vmatpush1.msra.mxu0 0.0
  %3525 = vmatprep.subr.mxu0 0.0
  %3526 = vmatpush1.msra.mxu0 0.0
  %3527 = vmatprep.subr.mxu0 0.0
  %3528 = vmatpush1.msra.mxu0 0.0
  %3529 = vmatprep.subr.mxu0 0.0
  %3530 = vmatpush1.msra.mxu0 0.0
  %3531 = vmatprep.subr.mxu0 0.0
  %3532 = vmatpush1.msra.mxu0 0.0
  %3533 = vmatprep.subr.mxu0 0.0
  %3534 = vmatpush1.msra.mxu0 0.0
  %3535 = vmatprep.mubr.f32.mxu0 0.0
  %3536 = vmatmul.mubr.f32.gmra.mrb[0].mxu0 %v3469
  %v3537 = vpop.f32.mrb[0].mxu0
  %v3538 = vadd.f32 0.0, %v3537
  %v3539 = vpop.f32.mrb[0].mxu0
  %v3540 = vadd.f32 0.0, %v3539
  %3541 = vdwg.mxu0
  %v3542 = vld [vmem:[%s3408] sm:$0xff]
  %v3543 = vld [vmem:[%s3408 + $0x8] sm:$0xff]
  %v3544 = vld [vmem:[%s3405] sm:$0xff]
  %v3545 = vld [vmem:[%s3405 + $0x8] sm:$0xff]
  %v3546 = vsel %vm2894, %v3542, %v3544
  %v3547 = vsel %vm2895, %v3543, %v3545
  %v3548 = vadd.f32 %v3546, %v3538
  %v3549 = vxor.u32 %v3548, 2147483648
  %v3550 = vmul.f32 %v3549, 1.442695
  %v3551 = vpow.pop %v3550
  %v3552 = vadd.f32 %v3551, 1.0
  %v3553 = vrcp.pop %v3552
  %v3554 = vmul.f32 1.0, %v3553
  %v3555 = vadd.f32 %v3540, %v2901
  %v3556 = vmul.f32 %v3554, %v3555
  %v3557 = vadd.f32 %v3547, %v3556
  %v3558 = vtanh.pop %v3557
  %v3559 = vsub.f32 1.0, %v3554
  %3561 = vrot.lane.b32.xlu0 %v3558, 64
  %v3562 = vpop.permute.xlu0 %3561
  %v3564 = vmul.f32 %v3559, %v3562
  %3565 = vrot.lane.b32.xlu0 %v3451, 64
  %v3566 = vpop.permute.xlu0 %3565
  %v3568 = vmul.f32 %v3554, %v3566
  %v3569 = vadd.f32 %v3564, %v3568
  %3571 = vrot.lane.b32.xlu0 %v3569, 64
  %v3572 = vpop.permute.xlu0 %3571
  %3574 = vst.msk [vmem:[#allocation3] sm:$0xff] %vm2850, %v3572
  %v3575 = vpack.c.bf16 %v3569, %v3569
  %v3577 = vunpack.c.l.b16 %v3575
  %v3578 = vpack.c.b16 %v3577, %v3577
  %3579 = vrot.lane.b32.xlu0 %v3578, 64
  %v3580 = vpop.permute.xlu0 %3579
  %3582 = vst.msk [vmem:[%s3449] sm:$0xf] %vm3035, %v3580
  %3583 = vst.msk [vmem:[%s3447] sm:$0xf] %vm3038, %v3580
  %v3584 = vld [vmem:[#allocation3] sm:$0xff]
  %v3585 = vld [vmem:[%s2] sm:$0xff]
  %v3586 = vld [vmem:[%s2 + $0x8] sm:$0xff]
  %v3587 = vld [vmem:[%s2 + $0x10] sm:$0xff]
  %v3588 = vld [vmem:[%s2 + $0x18] sm:$0xff]
  %v3589 = vld [vmem:[%s2 + $0x20] sm:$0xff]
  %v3590 = vld [vmem:[%s2 + $0x28] sm:$0xff]
  %v3591 = vld [vmem:[%s2 + $0x30] sm:$0xff]
  %v3592 = vld [vmem:[%s2 + $0x38] sm:$0xff]
  %v3593 = vld [vmem:[%s2 + $0x40] sm:$0xff]
  %v3594 = vld [vmem:[%s2 + $0x48] sm:$0xff]
  %v3595 = vld [vmem:[%s2 + $0x50] sm:$0xff]
  %v3596 = vld [vmem:[%s2 + $0x58] sm:$0xff]
  %v3597 = vld [vmem:[%s2 + $0x60] sm:$0xff]
  %v3598 = vld [vmem:[%s2 + $0x68] sm:$0xff]
  %v3599 = vld [vmem:[%s2 + $0x70] sm:$0xff]
  %v3600 = vld [vmem:[%s2 + $0x78] sm:$0xff]
  %v3602 = vsel %vm2850, %v3584, 0
  %3604 = vmatprep.subr.mxu0 %v3586
  %3605 = vmatpush1.msra.mxu0 %v3585
  %3606 = vmatprep.subr.mxu0 %v3588
  %3607 = vmatpush1.msra.mxu0 %v3587
  %3608 = vmatprep.subr.mxu0 %v3590
  %3609 = vmatpush1.msra.mxu0 %v3589
  %3610 = vmatprep.subr.mxu0 %v3592
  %3611 = vmatpush1.msra.mxu0 %v3591
  %3612 = vmatprep.subr.mxu0 %v3594
  %3613 = vmatpush1.msra.mxu0 %v3593
  %3614 = vmatprep.subr.mxu0 %v3596
  %3615 = vmatpush1.msra.mxu0 %v3595
  %3616 = vmatprep.subr.mxu0 %v3598
  %3617 = vmatpush1.msra.mxu0 %v3597
  %3618 = vmatprep.subr.mxu0 %v3600
  %3619 = vmatpush1.msra.mxu0 %v3599
  %3620 = vmatprep.subr.mxu0 0.0
  %3621 = vmatpush1.msra.mxu0 0.0
  %3622 = vmatprep.subr.mxu0 0.0
  %3623 = vmatpush1.msra.mxu0 0.0
  %3624 = vmatprep.subr.mxu0 0.0
  %3625 = vmatpush1.msra.mxu0 0.0
  %3626 = vmatprep.subr.mxu0 0.0
  %3627 = vmatpush1.msra.mxu0 0.0
  %3628 = vmatprep.subr.mxu0 0.0
  %3629 = vmatpush1.msra.mxu0 0.0
  %3630 = vmatprep.subr.mxu0 0.0
  %3631 = vmatpush1.msra.mxu0 0.0
  %3632 = vmatprep.subr.mxu0 0.0
  %3633 = vmatpush1.msra.mxu0 0.0
  %3634 = vmatprep.subr.mxu0 0.0
  %3635 = vmatpush1.msra.mxu0 0.0
  %3636 = vmatprep.subr.mxu0 0.0
  %3637 = vmatpush1.msra.mxu0 0.0
  %3638 = vmatprep.subr.mxu0 0.0
  %3639 = vmatpush1.msra.mxu0 0.0
  %3640 = vmatprep.subr.mxu0 0.0
  %3641 = vmatpush1.msra.mxu0 0.0
  %3642 = vmatprep.subr.mxu0 0.0
  %3643 = vmatpush1.msra.mxu0 0.0
  %3644 = vmatprep.subr.mxu0 0.0
  %3645 = vmatpush1.msra.mxu0 0.0
  %3646 = vmatprep.subr.mxu0 0.0
  %3647 = vmatpush1.msra.mxu0 0.0
  %3648 = vmatprep.subr.mxu0 0.0
  %3649 = vmatpush1.msra.mxu0 0.0
  %3650 = vmatprep.subr.mxu0 0.0
  %3651 = vmatpush1.msra.mxu0 0.0
  %3652 = vmatprep.subr.mxu0 0.0
  %3653 = vmatpush1.msra.mxu0 0.0
  %3654 = vmatprep.subr.mxu0 0.0
  %3655 = vmatpush1.msra.mxu0 0.0
  %3656 = vmatprep.subr.mxu0 0.0
  %3657 = vmatpush1.msra.mxu0 0.0
  %3658 = vmatprep.subr.mxu0 0.0
  %3659 = vmatpush1.msra.mxu0 0.0
  %3660 = vmatprep.subr.mxu0 0.0
  %3661 = vmatpush1.msra.mxu0 0.0
  %3662 = vmatprep.subr.mxu0 0.0
  %3663 = vmatpush1.msra.mxu0 0.0
  %3664 = vmatprep.subr.mxu0 0.0
  %3665 = vmatpush1.msra.mxu0 0.0
  %3666 = vmatprep.subr.mxu0 0.0
  %3667 = vmatpush1.msra.mxu0 0.0
  %3668 = vmatprep.mubr.f32.mxu0 0.0
  %3669 = vmatmul.mubr.f32.gmra.mrb[0].mxu0 %v3602
  %v3670 = vpop.f32.mrb[0].mxu0
  %v3671 = vadd.f32 0.0, %v3670
  %v3672 = vpop.f32.mrb[0].mxu0
  %v3673 = vadd.f32 0.0, %v3672
  %3674 = vdwg.mxu0
  %v3675 = vld [vmem:[%s3271] sm:$0xff]
  %v3676 = vld [vmem:[%s3271 + $0x8] sm:$0xff]
  %v3677 = vld [vmem:[%s3268] sm:$0xff]
  %v3678 = vld [vmem:[%s3268 + $0x8] sm:$0xff]
  %v3679 = vsel %vm2894, %v3675, %v3677
  %v3680 = vsel %vm2895, %v3676, %v3678
  %v3681 = vadd.f32 %v3679, %v3671
  %v3682 = vxor.u32 %v3681, 2147483648
  %v3683 = vmul.f32 %v3682, 1.442695
  %v3684 = vpow.pop %v3683
  %v3685 = vadd.f32 %v3684, 1.0
  %v3686 = vrcp.pop %v3685
  %v3687 = vmul.f32 1.0, %v3686
  %v3688 = vadd.f32 %v3673, %v2901
  %v3689 = vmul.f32 %v3687, %v3688
  %v3690 = vadd.f32 %v3680, %v3689
  %v3691 = vtanh.pop %v3690
  %v3692 = vsub.f32 1.0, %v3687
  %3694 = vrot.lane.b32.xlu0 %v3691, 64
  %v3695 = vpop.permute.xlu0 %3694
  %v3697 = vmul.f32 %v3692, %v3695
  %3698 = vrot.lane.b32.xlu0 %v3584, 64
  %v3699 = vpop.permute.xlu0 %3698
  %v3701 = vmul.f32 %v3687, %v3699
  %v3702 = vadd.f32 %v3697, %v3701
  %3704 = vrot.lane.b32.xlu0 %v3702, 64
  %v3705 = vpop.permute.xlu0 %3704
  %3707 = vst.msk [vmem:[#allocation3] sm:$0xff] %vm2850, %v3705
  %v3708 = vpack.c.bf16 %v3702, %v3702
  %v3710 = vunpack.c.l.b16 %v3708
  %v3711 = vpack.c.b16 %v3710, %v3710
  %3712 = vrot.lane.b32.xlu0 %v3711, 64
  %v3713 = vpop.permute.xlu0 %3712
  %3715 = vst.msk [vmem:[%s3312] sm:$0xf] %vm3035, %v3713
  %3716 = vst.msk [vmem:[%s3310] sm:$0xf] %vm3038, %v3713
  %v3717 = vld [vmem:[#allocation3] sm:$0xff]
  %v3718 = vld [vmem:[%s2] sm:$0xff]
  %v3719 = vld [vmem:[%s2 + $0x8] sm:$0xff]
  %v3720 = vld [vmem:[%s2 + $0x10] sm:$0xff]
  %v3721 = vld [vmem:[%s2 + $0x18] sm:$0xff]
  %v3722 = vld [vmem:[%s2 + $0x20] sm:$0xff]
  %v3723 = vld [vmem:[%s2 + $0x28] sm:$0xff]
  %v3724 = vld [vmem:[%s2 + $0x30] sm:$0xff]
  %v3725 = vld [vmem:[%s2 + $0x38] sm:$0xff]
  %v3726 = vld [vmem:[%s2 + $0x40] sm:$0xff]
  %v3727 = vld [vmem:[%s2 + $0x48] sm:$0xff]
  %v3728 = vld [vmem:[%s2 + $0x50] sm:$0xff]
  %v3729 = vld [vmem:[%s2 + $0x58] sm:$0xff]
  %v3730 = vld [vmem:[%s2 + $0x60] sm:$0xff]
  %v3731 = vld [vmem:[%s2 + $0x68] sm:$0xff]
  %v3732 = vld [vmem:[%s2 + $0x70] sm:$0xff]
  %v3733 = vld [vmem:[%s2 + $0x78] sm:$0xff]
  %v3735 = vsel %vm2850, %v3717, 0
  %3737 = vmatprep.subr.mxu0 %v3719
  %3738 = vmatpush1.msra.mxu0 %v3718
  %3739 = vmatprep.subr.mxu0 %v3721
  %3740 = vmatpush1.msra.mxu0 %v3720
  %3741 = vmatprep.subr.mxu0 %v3723
  %3742 = vmatpush1.msra.mxu0 %v3722
  %3743 = vmatprep.subr.mxu0 %v3725
  %3744 = vmatpush1.msra.mxu0 %v3724
  %3745 = vmatprep.subr.mxu0 %v3727
  %3746 = vmatpush1.msra.mxu0 %v3726
  %3747 = vmatprep.subr.mxu0 %v3729
  %3748 = vmatpush1.msra.mxu0 %v3728
  %3749 = vmatprep.subr.mxu0 %v3731
  %3750 = vmatpush1.msra.mxu0 %v3730
  %3751 = vmatprep.subr.mxu0 %v3733
  %3752 = vmatpush1.msra.mxu0 %v3732
  %3753 = vmatprep.subr.mxu0 0.0
  %3754 = vmatpush1.msra.mxu0 0.0
  %3755 = vmatprep.subr.mxu0 0.0
  %3756 = vmatpush1.msra.mxu0 0.0
  %3757 = vmatprep.subr.mxu0 0.0
  %3758 = vmatpush1.msra.mxu0 0.0
  %3759 = vmatprep.subr.mxu0 0.0
  %3760 = vmatpush1.msra.mxu0 0.0
  %3761 = vmatprep.subr.mxu0 0.0
  %3762 = vmatpush1.msra.mxu0 0.0
  %3763 = vmatprep.subr.mxu0 0.0
  %3764 = vmatpush1.msra.mxu0 0.0
  %3765 = vmatprep.subr.mxu0 0.0
  %3766 = vmatpush1.msra.mxu0 0.0
  %3767 = vmatprep.subr.mxu0 0.0
  %3768 = vmatpush1.msra.mxu0 0.0
  %3769 = vmatprep.subr.mxu0 0.0
  %3770 = vmatpush1.msra.mxu0 0.0
  %3771 = vmatprep.subr.mxu0 0.0
  %3772 = vmatpush1.msra.mxu0 0.0
  %3773 = vmatprep.subr.mxu0 0.0
  %3774 = vmatpush1.msra.mxu0 0.0
  %3775 = vmatprep.subr.mxu0 0.0
  %3776 = vmatpush1.msra.mxu0 0.0
  %3777 = vmatprep.subr.mxu0 0.0
  %3778 = vmatpush1.msra.mxu0 0.0
  %3779 = vmatprep.subr.mxu0 0.0
  %3780 = vmatpush1.msra.mxu0 0.0
  %3781 = vmatprep.subr.mxu0 0.0
  %3782 = vmatpush1.msra.mxu0 0.0
  %3783 = vmatprep.subr.mxu0 0.0
  %3784 = vmatpush1.msra.mxu0 0.0
  %3785 = vmatprep.subr.mxu0 0.0
  %3786 = vmatpush1.msra.mxu0 0.0
  %3787 = vmatprep.subr.mxu0 0.0
  %3788 = vmatpush1.msra.mxu0 0.0
  %3789 = vmatprep.subr.mxu0 0.0
  %3790 = vmatpush1.msra.mxu0 0.0
  %3791 = vmatprep.subr.mxu0 0.0
  %3792 = vmatpush1.msra.mxu0 0.0
  %3793 = vmatprep.subr.mxu0 0.0
  %3794 = vmatpush1.msra.mxu0 0.0
  %3795 = vmatprep.subr.mxu0 0.0
  %3796 = vmatpush1.msra.mxu0 0.0
  %3797 = vmatprep.subr.mxu0 0.0
  %3798 = vmatpush1.msra.mxu0 0.0
  %3799 = vmatprep.subr.mxu0 0.0
  %3800 = vmatpush1.msra.mxu0 0.0
  %3801 = vmatprep.mubr.f32.mxu0 0.0
  %3802 = vmatmul.mubr.f32.gmra.mrb[0].mxu0 %v3735
  %v3803 = vpop.f32.mrb[0].mxu0
  %v3804 = vadd.f32 0.0, %v3803
  %v3805 = vpop.f32.mrb[0].mxu0
  %v3806 = vadd.f32 0.0, %v3805
  %3807 = vdwg.mxu0
  %v3808 = vld [vmem:[%s3134] sm:$0xff]
  %v3809 = vld [vmem:[%s3134 + $0x8] sm:$0xff]
  %v3810 = vld [vmem:[%s3131] sm:$0xff]
  %v3811 = vld [vmem:[%s3131 + $0x8] sm:$0xff]
  %v3812 = vsel %vm2894, %v3808, %v3810
  %v3813 = vsel %vm2895, %v3809, %v3811
  %v3814 = vadd.f32 %v3812, %v3804
  %v3815 = vxor.u32 %v3814, 2147483648
  %v3816 = vmul.f32 %v3815, 1.442695
  %v3817 = vpow.pop %v3816
  %v3818 = vadd.f32 %v3817, 1.0
  %v3819 = vrcp.pop %v3818
  %v3820 = vmul.f32 1.0, %v3819
  %v3821 = vadd.f32 %v3806, %v2901
  %v3822 = vmul.f32 %v3820, %v3821
  %v3823 = vadd.f32 %v3813, %v3822
  %v3824 = vtanh.pop %v3823
  %v3825 = vsub.f32 1.0, %v3820
  %3827 = vrot.lane.b32.xlu0 %v3824, 64
  %v3828 = vpop.permute.xlu0 %3827
  %v3830 = vmul.f32 %v3825, %v3828
  %3831 = vrot.lane.b32.xlu0 %v3717, 64
  %v3832 = vpop.permute.xlu0 %3831
  %v3834 = vmul.f32 %v3820, %v3832
  %v3835 = vadd.f32 %v3830, %v3834
  %3837 = vrot.lane.b32.xlu0 %v3835, 64
  %v3838 = vpop.permute.xlu0 %3837
  %3840 = vst.msk [vmem:[#allocation3] sm:$0xff] %vm2850, %v3838
  %v3841 = vpack.c.bf16 %v3835, %v3835
  %v3843 = vunpack.c.l.b16 %v3841
  %v3844 = vpack.c.b16 %v3843, %v3843
  %3845 = vrot.lane.b32.xlu0 %v3844, 64
  %v3846 = vpop.permute.xlu0 %3845
  %3848 = vst.msk [vmem:[%s3175] sm:$0xf] %vm3035, %v3846
  %3849 = vst.msk [vmem:[%s3173] sm:$0xf] %vm3038, %v3846
  %v3850 = vld [vmem:[#allocation3] sm:$0xff]
  %v3851 = vld [vmem:[%s2] sm:$0xff]
  %v3852 = vld [vmem:[%s2 + $0x8] sm:$0xff]
  %v3853 = vld [vmem:[%s2 + $0x10] sm:$0xff]
  %v3854 = vld [vmem:[%s2 + $0x18] sm:$0xff]
  %v3855 = vld [vmem:[%s2 + $0x20] sm:$0xff]
  %v3856 = vld [vmem:[%s2 + $0x28] sm:$0xff]
  %v3857 = vld [vmem:[%s2 + $0x30] sm:$0xff]
  %v3858 = vld [vmem:[%s2 + $0x38] sm:$0xff]
  %v3859 = vld [vmem:[%s2 + $0x40] sm:$0xff]
  %v3860 = vld [vmem:[%s2 + $0x48] sm:$0xff]
  %v3861 = vld [vmem:[%s2 + $0x50] sm:$0xff]
  %v3862 = vld [vmem:[%s2 + $0x58] sm:$0xff]
  %v3863 = vld [vmem:[%s2 + $0x60] sm:$0xff]
  %v3864 = vld [vmem:[%s2 + $0x68] sm:$0xff]
  %v3865 = vld [vmem:[%s2 + $0x70] sm:$0xff]
  %v3866 = vld [vmem:[%s2 + $0x78] sm:$0xff]
  %v3868 = vsel %vm2850, %v3850, 0
  %3870 = vmatprep.subr.mxu0 %v3852
  %3871 = vmatpush1.msra.mxu0 %v3851
  %3872 = vmatprep.subr.mxu0 %v3854
  %3873 = vmatpush1.msra.mxu0 %v3853
  %3874 = vmatprep.subr.mxu0 %v3856
  %3875 = vmatpush1.msra.mxu0 %v3855
  %3876 = vmatprep.subr.mxu0 %v3858
  %3877 = vmatpush1.msra.mxu0 %v3857
  %3878 = vmatprep.subr.mxu0 %v3860
  %3879 = vmatpush1.msra.mxu0 %v3859
  %3880 = vmatprep.subr.mxu0 %v3862
  %3881 = vmatpush1.msra.mxu0 %v3861
  %3882 = vmatprep.subr.mxu0 %v3864
  %3883 = vmatpush1.msra.mxu0 %v3863
  %3884 = vmatprep.subr.mxu0 %v3866
  %3885 = vmatpush1.msra.mxu0 %v3865
  %3886 = vmatprep.subr.mxu0 0.0
  %3887 = vmatpush1.msra.mxu0 0.0
  %3888 = vmatprep.subr.mxu0 0.0
  %3889 = vmatpush1.msra.mxu0 0.0
  %3890 = vmatprep.subr.mxu0 0.0
  %3891 = vmatpush1.msra.mxu0 0.0
  %3892 = vmatprep.subr.mxu0 0.0
  %3893 = vmatpush1.msra.mxu0 0.0
  %3894 = vmatprep.subr.mxu0 0.0
  %3895 = vmatpush1.msra.mxu0 0.0
  %3896 = vmatprep.subr.mxu0 0.0
  %3897 = vmatpush1.msra.mxu0 0.0
  %3898 = vmatprep.subr.mxu0 0.0
  %3899 = vmatpush1.msra.mxu0 0.0
  %3900 = vmatprep.subr.mxu0 0.0
  %3901 = vmatpush1.msra.mxu0 0.0
  %3902 = vmatprep.subr.mxu0 0.0
  %3903 = vmatpush1.msra.mxu0 0.0
  %3904 = vmatprep.subr.mxu0 0.0
  %3905 = vmatpush1.msra.mxu0 0.0
  %3906 = vmatprep.subr.mxu0 0.0
  %3907 = vmatpush1.msra.mxu0 0.0
  %3908 = vmatprep.subr.mxu0 0.0
  %3909 = vmatpush1.msra.mxu0 0.0
  %3910 = vmatprep.subr.mxu0 0.0
  %3911 = vmatpush1.msra.mxu0 0.0
  %3912 = vmatprep.subr.mxu0 0.0
  %3913 = vmatpush1.msra.mxu0 0.0
  %3914 = vmatprep.subr.mxu0 0.0
  %3915 = vmatpush1.msra.mxu0 0.0
  %3916 = vmatprep.subr.mxu0 0.0
  %3917 = vmatpush1.msra.mxu0 0.0
  %3918 = vmatprep.subr.mxu0 0.0
  %3919 = vmatpush1.msra.mxu0 0.0
  %3920 = vmatprep.subr.mxu0 0.0
  %3921 = vmatpush1.msra.mxu0 0.0
  %3922 = vmatprep.subr.mxu0 0.0
  %3923 = vmatpush1.msra.mxu0 0.0
  %3924 = vmatprep.subr.mxu0 0.0
  %3925 = vmatpush1.msra.mxu0 0.0
  %3926 = vmatprep.subr.mxu0 0.0
  %3927 = vmatpush1.msra.mxu0 0.0
  %3928 = vmatprep.subr.mxu0 0.0
  %3929 = vmatpush1.msra.mxu0 0.0
  %3930 = vmatprep.subr.mxu0 0.0
  %3931 = vmatpush1.msra.mxu0 0.0
  %3932 = vmatprep.subr.mxu0 0.0
  %3933 = vmatpush1.msra.mxu0 0.0
  %3934 = vmatprep.mubr.f32.mxu0 0.0
  %3935 = vmatmul.mubr.f32.gmra.mrb[0].mxu0 %v3868
  %v3936 = vpop.f32.mrb[0].mxu0
  %v3937 = vadd.f32 0.0, %v3936
  %v3938 = vpop.f32.mrb[0].mxu0
  %v3939 = vadd.f32 0.0, %v3938
  %3940 = vdwg.mxu0
  %v3941 = vld [vmem:[%s2996] sm:$0xff]
  %v3942 = vld [vmem:[%s2996 + $0x8] sm:$0xff]
  %v3943 = vld [vmem:[#allocation2] sm:$0xff]
  %v3944 = vld [vmem:[#allocation2 + $0x8] sm:$0xff]
  %v3945 = vsel %vm2894, %v3941, %v3943
  %v3946 = vsel %vm2895, %v3942, %v3944
  %v3947 = vadd.f32 %v3945, %v3937
  %v3948 = vxor.u32 %v3947, 2147483648
  %v3949 = vmul.f32 %v3948, 1.442695
  %v3950 = vpow.pop %v3949
  %v3951 = vadd.f32 %v3950, 1.0
  %v3952 = vrcp.pop %v3951
  %v3953 = vmul.f32 1.0, %v3952
  %v3954 = vadd.f32 %v3939, %v2901
  %v3955 = vmul.f32 %v3953, %v3954
  %v3956 = vadd.f32 %v3946, %v3955
  %v3957 = vtanh.pop %v3956
  %v3958 = vsub.f32 1.0, %v3953
  %3960 = vrot.lane.b32.xlu0 %v3957, 64
  %v3961 = vpop.permute.xlu0 %3960
  %v3963 = vmul.f32 %v3958, %v3961
  %3964 = vrot.lane.b32.xlu0 %v3850, 64
  %v3965 = vpop.permute.xlu0 %3964
  %v3967 = vmul.f32 %v3953, %v3965
  %v3968 = vadd.f32 %v3963, %v3967
  %3970 = vrot.lane.b32.xlu0 %v3968, 64
  %v3971 = vpop.permute.xlu0 %3970
  %3973 = vst.msk [vmem:[#allocation3] sm:$0xff] %vm2850, %v3971
  %v3974 = vpack.c.bf16 %v3968, %v3968
  %v3976 = vunpack.c.l.b16 %v3974
  %v3977 = vpack.c.b16 %v3976, %v3976
  %3978 = vrot.lane.b32.xlu0 %v3977, 64
  %v3979 = vpop.permute.xlu0 %3978
  %3981 = vst.msk [vmem:[%s3037] sm:$0xf] %vm3035, %v3979
  %3982 = vst.msk [vmem:[%s5] sm:$0xf] %vm3038, %v3979
  // Predicated region
  $region22: #{_lambda_.2} parent=0 // pred_check
    _
  $region23: #{_lambda_.2} parent=0 // pred_check_branch
    %3984 = sbr.rel (0) target = $region25
  $region24: #{_lambda_.2} parent=0 // pred_region
    _
  $region25: #{_lambda_.2} parent=0 // pred_fallthru
    _
  // Predicated region
  $region26: #{_lambda_.2} parent=0 // pred_check
    _
  $region27: #{_lambda_.2} parent=0 // pred_check_branch
    %3986 = sbr.rel (0) target = $region29
  $region28: #{_lambda_.2} parent=0 // pred_region
    _
  $region29: #{_lambda_.2} parent=0 // pred_fallthru
    _

</llo_original>
